<compile_context>
chip_gen: v6e
topology: v6e:2x2x1
jax: 0.10.0
libtpu: 0.0.40
codegen_flags: <defaults>
</compile_context>

<pallas_src>
import jax
import jax.numpy as jnp
from jax import lax
from jax.experimental import pallas as pl
from jax.experimental.pallas import tpu as pltpu

# ----------------------------- model configuration --------------------------
NODE_DIM = 11          # args.node_dim  (in_dim of MPNNModel)
EDGE_DIM = 4           # args.edge_dim
EMB = 64               # args.graph_dims (emb_dim)
NUM_LAYERS = 4         # args.num_layers
BIND_H1, BIND_H2, BIND_H3, BIND_OUT = 1024, 1024, 512, 3
LANE = 128             # lane-dense padding for the final logits
BN_EPS = 1e-5


# --------------------------------- kernel -----------------------------------
def cpi_kernel(src_ref, dst_ref, dstT_ref, batch_ref, x_ref, eattr_ref, tgt_ref,
               w_in_ref, b_in_ref, w64_ref, we_ref, bmp_ref,
               wb1_hbm, wb2_hbm, wb3_hbm, wb4_hbm, bb_ref,
               bind_ref, loss_ref,
               wb1_v, wb2_v, wb3_v, wb4_v, dma_sem):
    f32 = jnp.float32
    bf16 = jnp.bfloat16
    n_nodes = x_ref.shape[0]
    n_edges = src_ref.shape[0]
    n_graphs = tgt_ref.shape[0]
    D = EMB

    # ---- kick off bind-MLP weight DMAs now; they overlap the MPNN layers ----
    cps = [pltpu.make_async_copy(wb1_hbm, wb1_v, dma_sem.at[0]),
           pltpu.make_async_copy(wb2_hbm, wb2_v, dma_sem.at[1]),
           pltpu.make_async_copy(wb3_hbm, wb3_v, dma_sem.at[2]),
           pltpu.make_async_copy(wb4_hbm, wb4_v, dma_sem.at[3])]
    for cp in cps:
        cp.start()

    # ---- one-hot gather / scatter / pool matrices (loop-invariant) ----
    node_ids = lax.broadcasted_iota(jnp.int32, (n_edges, n_nodes), 1)
    src_oh = (node_ids == src_ref[...]).astype(f32)            # [E, N] gather src
    dst_oh = (node_ids == dst_ref[...]).astype(f32)            # [E, N] gather dst
    node_ids_t = lax.broadcasted_iota(jnp.int32, (n_nodes, n_edges), 0)
    dst_oh_t = (node_ids_t == dstT_ref[...]).astype(f32)       # [N, E] scatter-add

    # ---- hoisted edge projection: one lane-dense matmul for all layers ----
    eproj = jnp.dot(eattr_ref[...], we_ref[...],
                    preferred_element_type=f32)                 # [E, L*128]

    # ---- lin_in ----
    h = jnp.dot(x_ref[...], w_in_ref[...],
                preferred_element_type=f32) + b_in_ref[...]     # [N, D]

    # ---- NUM_LAYERS rounds of message passing (unrolled; BN pre-folded) ----
    for l in range(NUM_LAYERS):
        w_hi = w64_ref[l, 0]
        w_hj = w64_ref[l, 1]
        w_m2 = w64_ref[l, 2]
        w_uh = w64_ref[l, 3]
        w_ua = w64_ref[l, 4]
        w_u2 = w64_ref[l, 5]
        bm = bmp_ref[l]                                         # [4, D]
        b_m1, b_m2 = bm[0:1, :], bm[1:2, :]
        b_u1, b_u2 = bm[2:3, :], bm[3:4, :]

        # message: project on nodes, then gather to edges (identical math)
        p_i = jnp.dot(h, w_hi, preferred_element_type=f32)      # [N, D]
        p_j = jnp.dot(h, w_hj, preferred_element_type=f32)      # [N, D]
        m = (jnp.dot(dst_oh, p_i, preferred_element_type=f32)
             + jnp.dot(src_oh, p_j, preferred_element_type=f32)
             + eproj[:, l * LANE:l * LANE + D] + b_m1)          # [E, D]
        m = jnp.maximum(m, 0.0)
        m = jnp.maximum(jnp.dot(m, w_m2, preferred_element_type=f32) + b_m2, 0.0)

        # aggregate: scatter-add onto destination nodes ([N,E] @ [E,D])
        aggr = jnp.dot(dst_oh_t, m, preferred_element_type=f32)  # [N, D]

        # update
        u = (jnp.dot(h, w_uh, preferred_element_type=f32)
             + jnp.dot(aggr, w_ua, preferred_element_type=f32)
             + b_u1)
        u = jnp.maximum(u, 0.0)
        u = jnp.maximum(jnp.dot(u, w_u2, preferred_element_type=f32) + b_u2, 0.0)

        h = h + u                                               # residual (MPNNModel)

    # ---- global mean pool ----
    graph_ids = lax.broadcasted_iota(jnp.int32, (n_graphs, n_nodes), 0)
    member = (graph_ids == batch_ref[...]).astype(f32)          # [B, N]
    counts = jnp.maximum(jnp.sum(member, axis=1, keepdims=True), 1.0)
    pool = member * pl.reciprocal(counts, approx=False)
    hg = jnp.dot(pool, h, preferred_element_type=f32)           # [B, D]

    # ---- bind MLP head (bf16 weights, f32 accumulate; Dropout == identity) ----
    for cp in cps:
        cp.wait()                                               # DMAs hidden above
    bb = bb_ref[...]                                            # [4, 1024]
    z = jnp.maximum(jnp.dot(hg.astype(bf16), wb1_v[...],
                            preferred_element_type=f32) + bb[0:1, :], 0.0)
    z = jnp.maximum(jnp.dot(z.astype(bf16), wb2_v[...],
                            preferred_element_type=f32) + bb[1:2, :], 0.0)
    z = jnp.maximum(jnp.dot(z.astype(bf16), wb3_v[...],
                            preferred_element_type=f32) + bb[2:3, :BIND_H3], 0.0)
    logits = (jnp.dot(z.astype(bf16), wb4_v[...],
                      preferred_element_type=f32) + bb[3:4, :LANE])  # [B, 128]

    # ---- lane-dense epilogue on padded logits; mask cols >= BIND_OUT ----
    lane_ids = lax.broadcasted_iota(jnp.int32, (n_graphs, LANE), 1)
    valid = (lane_ids < BIND_OUT).astype(f32)
    bind_ref[...] = 1.0 / (1.0 + jnp.exp(-logits))              # sliced in wrapper
    t = tgt_ref[...]                                            # [B, 128] zero-padded
    # log(1+exp(-|x|)) == log1p(exp(-|x|)) to within f32 rounding for these logits
    bce = (jnp.maximum(logits, 0.0) - logits * t
           + jnp.log(1.0 + jnp.exp(-jnp.abs(logits)))) * valid
    s = jnp.sum(bce, axis=1, keepdims=True)
    s = jnp.sum(s, axis=0, keepdims=True)
    loss_ref[...] = s * (1.0 / (n_graphs * BIND_OUT))


# --------------------------- parameter preparation ---------------------------
def fold_bn(wt, b, bn):
    """Fold eval-mode BatchNorm1d into the preceding Linear (y = x @ wt + b)."""
    gamma, beta, mean, var = bn
    s = gamma / jnp.sqrt(var + BN_EPS)
    return wt * s[None, :], (b - mean) * s + beta


def prepare_operands(params):
    """Done ONCE (hoisted out of forward): BN fold + slab packing + bf16 cast."""
    w64_rows, b_rows = [], []
    we_pad = jnp.zeros((EDGE_DIM, NUM_LAYERS * LANE), jnp.float32)
    for l, p in enumerate(params['layers']):
        wm1, bm1 = fold_bn(p['w_msg1'], p['b_msg1'], p['bn_msg1'])
        wm2, bm2 = fold_bn(p['w_msg2'], p['b_msg2'], p['bn_msg2'])
        wu1, bu1 = fold_bn(p['w_upd1'], p['b_upd1'], p['bn_upd1'])
        wu2, bu2 = fold_bn(p['w_upd2'], p['b_upd2'], p['bn_upd2'])
        w_hi, w_hj, w_e = wm1[:EMB], wm1[EMB:2 * EMB], wm1[2 * EMB:]
        w_uh, w_ua = wu1[:EMB], wu1[EMB:]
        # [6, 64, 64] per layer -> leading-dim indexed in kernel (no lane slices)
        w64_rows.append(jnp.stack([w_hi, w_hj, wm2, w_uh, w_ua, wu2], axis=0))
        # per-layer edge weight placed at 128-aligned lane offset
        we_pad = we_pad.at[:, l * LANE:l * LANE + EMB].set(w_e)
        b_rows.append(jnp.stack([bm1, bm2, bu1, bu2], axis=0))

    def pad1d(v, n):
        return jnp.pad(v, (0, n - v.shape[0]))

    bb = jnp.stack([params['bb1'], params['bb2'],
                    pad1d(params['bb3'], BIND_H1),
                    pad1d(params['bb4'], BIND_H1)], axis=0)          # [4, 1024]
    wb4_pad = jnp.pad(params['wb4'], ((0, 0), (0, LANE - BIND_OUT)))  # [512, 128]

    return dict(
        w_in=params['w_in'], b_in=params['b_in'].reshape(1, EMB),
        w64=jnp.stack(w64_rows, 0),                   # [L, 6, 64, 64] f32
        we=we_pad,                                    # [4, L*128]     f32
        bmp=jnp.stack(b_rows, 0),                     # [L, 4, 64]     f32
        # bind-MLP weights in bf16: halves the dominant weight-streaming bytes
        wb1=params['wb1'].astype(jnp.bfloat16),       # [64, 1024]
        wb2=params['wb2'].astype(jnp.bfloat16),       # [1024, 1024]
        wb3=params['wb3'].astype(jnp.bfloat16),       # [1024, 512]
        wb4=wb4_pad.astype(jnp.bfloat16),             # [512, 128]
        bb=bb,                                        # [4, 1024]      f32
    )


# ------------------------------- forward wrapper ------------------------------
def make_forward(n_nodes, n_edges, n_graphs):
    vmem = pl.BlockSpec(memory_space=pltpu.MemorySpace.VMEM)
    hbm = pl.BlockSpec(memory_space=pl.ANY)   # bind weights stay in HBM, DMA'd manually

    @jax.jit
    def forward(ops, x, edge_index, edge_attr, batch_vec, target):
        src_col = edge_index[0].astype(jnp.int32).reshape(n_edges, 1)
        dst_col = edge_index[1].astype(jnp.int32).reshape(n_edges, 1)
        dst_row = edge_index[1].astype(jnp.int32).reshape(1, n_edges)
        batch_row = batch_vec.astype(jnp.int32).reshape(1, n_nodes)
        tgt_pad = jnp.zeros((n_graphs, LANE), jnp.float32).at[:, :BIND_OUT].set(target)

        out_shapes = (jax.ShapeDtypeStruct((n_graphs, LANE), jnp.float32),
                      jax.ShapeDtypeStruct((1, 1), jnp.float32))
        bind_pad, loss = pl.pallas_call(
            cpi_kernel,
            out_shape=out_shapes,
            in_specs=[vmem] * 12 + [hbm] * 4 + [vmem],
            out_specs=(vmem, vmem),
            scratch_shapes=[
                pltpu.VMEM((EMB, BIND_H1), jnp.bfloat16),
                pltpu.VMEM((BIND_H1, BIND_H2), jnp.bfloat16),
                pltpu.VMEM((BIND_H2, BIND_H3), jnp.bfloat16),
                pltpu.VMEM((BIND_H3, LANE), jnp.bfloat16),
                pltpu.SemaphoreType.DMA((4,)),
            ],
            compiler_params=pltpu.CompilerParams(
                vmem_limit_bytes=32 * 1024 * 1024),
        )(src_col, dst_col, dst_row, batch_row, x, edge_attr, tgt_pad,
          ops['w_in'], ops['b_in'], ops['w64'], ops['we'], ops['bmp'],
          ops['wb1'], ops['wb2'], ops['wb3'], ops['wb4'], ops['bb'])
        return bind_pad[:, :BIND_OUT], loss[0, 0]

    return forward


# --------------------------- pure-JAX reference -------------------------------
def reference_forward(params, x, edge_index, edge_attr, batch_vec, target):
    def bn(y, bnp):
        gamma, beta, mean, var = bnp
        return (y - mean) / jnp.sqrt(var + BN_EPS) * gamma + beta

    relu = jax.nn.relu
    h = x @ params['w_in'] + params['b_in']
    src, dst = edge_index[0], edge_index[1]
    for p in params['layers']:
        h_i, h_j = h[dst], h[src]
        m_in = jnp.concatenate([h_i, h_j, edge_attr], axis=-1)
        m = relu(bn(m_in @ p['w_msg1'] + p['b_msg1'], p['bn_msg1']))
        m = relu(bn(m @ p['w_msg2'] + p['b_msg2'], p['bn_msg2']))
        aggr = jnp.zeros_like(h).at[dst].add(m)
        u_in = jnp.concatenate([h, aggr], axis=-1)
        u = relu(bn(u_in @ p['w_upd1'] + p['b_upd1'], p['bn_upd1']))
        u = relu(bn(u @ p['w_upd2'] + p['b_upd2'], p['bn_upd2']))
        h = h + u
    n_graphs = target.shape[0]
    sums = jnp.zeros((n_graphs, h.shape[1]), h.dtype).at[batch_vec].add(h)
    counts = jnp.zeros((n_graphs,), h.dtype).at[batch_vec].add(1.0)
    hg = sums / counts[:, None]
    z = relu(hg @ params['wb1'] + params['bb1'])
    z = relu(z @ params['wb2'] + params['bb2'])
    z = relu(z @ params['wb3'] + params['bb3'])
    logits = z @ params['wb4'] + params['bb4']
    sig = jax.nn.sigmoid(logits)
    bce = jnp.mean(jnp.maximum(logits, 0.0) - logits * target
                   + jnp.log1p(jnp.exp(-jnp.abs(logits))))
    return sig, bce


# ------------------------------ initialization --------------------------------
def init_params(key):
    keys = list(jax.random.split(key, 256))
    it = iter(keys)

    def w(shape, scale):
        return (scale * jax.random.normal(next(it), shape)).astype(jnp.float32)

    def bn_params(dim):
        gamma = (1.0 + 0.1 * jax.random.normal(next(it), (dim,))).astype(jnp.float32)
        beta = (0.1 * jax.random.normal(next(it), (dim,))).astype(jnp.float32)
        mean = (0.1 * jax.random.normal(next(it), (dim,))).astype(jnp.float32)
        var = jax.random.uniform(next(it), (dim,), minval=0.5, maxval=1.5
                                 ).astype(jnp.float32)
        return gamma, beta, mean, var

    params = {
        'w_in': w((NODE_DIM, EMB), 0.3), 'b_in': w((EMB,), 0.1),
        'layers': [],
        'wb1': w((EMB, BIND_H1), 0.12), 'bb1': w((BIND_H1,), 0.05),
        'wb2': w((BIND_H1, BIND_H2), 0.03), 'bb2': w((BIND_H2,), 0.05),
        'wb3': w((BIND_H2, BIND_H3), 0.03), 'bb3': w((BIND_H3,), 0.05),
        'wb4': w((BIND_H3, BIND_OUT), 0.04), 'bb4': w((BIND_OUT,), 0.05),
    }
    for _ in range(NUM_LAYERS):
        params['layers'].append({
            'w_msg1': w((2 * EMB + EDGE_DIM, EMB), 0.1), 'b_msg1': w((EMB,), 0.05),
            'bn_msg1': bn_params(EMB),
            'w_msg2': w((EMB, EMB), 0.1), 'b_msg2': w((EMB,), 0.05),
            'bn_msg2': bn_params(EMB),
            'w_upd1': w((2 * EMB, EMB), 0.1), 'b_upd1': w((EMB,), 0.05),
            'bn_upd1': bn_params(EMB),
            'w_upd2': w((EMB, EMB), 0.1), 'b_upd2': w((EMB,), 0.05),
            'bn_upd2': bn_params(EMB),
        })
    return params


# ------------------------------------ main -------------------------------------
if __name__ == "__main__":
    N_NODES, N_EDGES, N_GRAPHS = 16, 32, 2

    key = jax.random.PRNGKey(0)
    k_param, k_x, k_e, k_src, k_dst, k_t = jax.random.split(key, 6)

    params = init_params(k_param)
    ops = prepare_operands(params)

    # binary node / edge features (unpackbits treated as host-side preprocessing)
    x = jax.random.bernoulli(k_x, 0.5, (N_NODES, NODE_DIM)).astype(jnp.float32)
    edge_attr = jax.random.bernoulli(k_e, 0.5, (N_EDGES, EDGE_DIM)).astype(jnp.float32)

    # two graphs of 8 nodes each, 16 within-graph edges per graph
    half_e, half_n = N_EDGES // 2, N_NODES // 2
    src0 = jax.random.randint(k_src, (half_e,), 0, half_n)
    dst0 = jax.random.randint(k_dst, (half_e,), 0, half_n)
    src = jnp.concatenate([src0, src0 + half_n]).astype(jnp.int32)
    dst = jnp.concatenate([dst0, dst0 + half_n]).astype(jnp.int32)
    edge_index = jnp.stack([src, dst], axis=0)
    batch_vec = jnp.concatenate([jnp.zeros((half_n,), jnp.int32),
                                 jnp.ones((half_n,), jnp.int32)])
    target = jax.random.bernoulli(k_t, 0.5, (N_GRAPHS, BIND_OUT)).astype(jnp.float32)

    forward = make_forward(N_NODES, N_EDGES, N_GRAPHS)
    bind, loss = forward(ops, x, edge_index, edge_attr, batch_vec, target)
    bind, loss = jax.block_until_ready((bind, loss))

    ref_bind, ref_loss = reference_forward(params, x, edge_index, edge_attr,
                                           batch_vec, target)

    assert bind.shape == (N_GRAPHS, BIND_OUT)
    # tolerance accounts for MXU f32 accumulation order and bf16 bind-MLP weights
    assert jnp.allclose(bind, ref_bind, atol=3e-2, rtol=3e-2), (
        f"bind max abs diff {jnp.max(jnp.abs(bind - ref_bind))}")
    assert jnp.allclose(loss, ref_loss, atol=3e-2, rtol=3e-2), (
        f"loss diff {jnp.abs(loss - ref_loss)}")

    print("KERNEL_OK")
</pallas_src>

<mosaic_0001>
module attributes {stable_mosaic.version = 11 : i64} {
  func.func @cpi_kernel(%arg0: memref<32x1xi32, #tpu.memory_space<vmem>>, %arg1: memref<32x1xi32, #tpu.memory_space<vmem>>, %arg2: memref<1x32xi32, #tpu.memory_space<vmem>>, %arg3: memref<1x16xi32, #tpu.memory_space<vmem>>, %arg4: memref<16x11xf32, #tpu.memory_space<vmem>>, %arg5: memref<32x4xf32, #tpu.memory_space<vmem>>, %arg6: memref<2x128xf32, #tpu.memory_space<vmem>>, %arg7: memref<11x64xf32, #tpu.memory_space<vmem>>, %arg8: memref<1x64xf32, #tpu.memory_space<vmem>>, %arg9: memref<4x6x64x64xf32, #tpu.memory_space<vmem>>, %arg10: memref<4x512xf32, #tpu.memory_space<vmem>>, %arg11: memref<4x4x64xf32, #tpu.memory_space<vmem>>, %arg12: memref<64x1024xbf16, #tpu.memory_space<any>>, %arg13: memref<1024x1024xbf16, #tpu.memory_space<any>>, %arg14: memref<1024x512xbf16, #tpu.memory_space<any>>, %arg15: memref<512x128xbf16, #tpu.memory_space<any>>, %arg16: memref<4x1024xf32, #tpu.memory_space<vmem>>, %arg17: memref<2x128xf32, #tpu.memory_space<vmem>>, %arg18: memref<1x1xf32, #tpu.memory_space<vmem>>, %arg19: memref<64x1024xbf16, #tpu.memory_space<vmem>>, %arg20: memref<1024x1024xbf16, #tpu.memory_space<vmem>>, %arg21: memref<1024x512xbf16, #tpu.memory_space<vmem>>, %arg22: memref<512x128xbf16, #tpu.memory_space<vmem>>, %arg23: memref<4x!tpu.dma_semaphore, #tpu.memory_space<semaphore_mem>>) attributes {dimension_semantics = [], scalar_prefetch = 0 : i64, scratch_operands = 5 : i64, tpu.core_type = #tpu.core_type<tc>} {
    %c0_i32 = arith.constant 0 : i32
    %0 = tpu.memref_slice %arg23[%c0_i32] : memref<4x!tpu.dma_semaphore, #tpu.memory_space<semaphore_mem>> -> memref<1x!tpu.dma_semaphore, #tpu.memory_space<semaphore_mem>>
    %1 = tpu.memref_squeeze %0 : memref<1x!tpu.dma_semaphore, #tpu.memory_space<semaphore_mem>> -> memref<!tpu.dma_semaphore, #tpu.memory_space<semaphore_mem>>
    tpu.enqueue_dma source(%arg12 : memref<64x1024xbf16, #tpu.memory_space<any>>) target(%arg19 : memref<64x1024xbf16, #tpu.memory_space<vmem>>) target_semaphore(%1 : memref<!tpu.dma_semaphore, #tpu.memory_space<semaphore_mem>>)
    %c1_i32 = arith.constant 1 : i32
    %2 = tpu.memref_slice %arg23[%c1_i32] : memref<4x!tpu.dma_semaphore, #tpu.memory_space<semaphore_mem>> -> memref<1x!tpu.dma_semaphore, #tpu.memory_space<semaphore_mem>>
    %3 = tpu.memref_squeeze %2 : memref<1x!tpu.dma_semaphore, #tpu.memory_space<semaphore_mem>> -> memref<!tpu.dma_semaphore, #tpu.memory_space<semaphore_mem>>
    tpu.enqueue_dma source(%arg13 : memref<1024x1024xbf16, #tpu.memory_space<any>>) target(%arg20 : memref<1024x1024xbf16, #tpu.memory_space<vmem>>) target_semaphore(%3 : memref<!tpu.dma_semaphore, #tpu.memory_space<semaphore_mem>>)
    %c2_i32 = arith.constant 2 : i32
    %4 = tpu.memref_slice %arg23[%c2_i32] : memref<4x!tpu.dma_semaphore, #tpu.memory_space<semaphore_mem>> -> memref<1x!tpu.dma_semaphore, #tpu.memory_space<semaphore_mem>>
    %5 = tpu.memref_squeeze %4 : memref<1x!tpu.dma_semaphore, #tpu.memory_space<semaphore_mem>> -> memref<!tpu.dma_semaphore, #tpu.memory_space<semaphore_mem>>
    tpu.enqueue_dma source(%arg14 : memref<1024x512xbf16, #tpu.memory_space<any>>) target(%arg21 : memref<1024x512xbf16, #tpu.memory_space<vmem>>) target_semaphore(%5 : memref<!tpu.dma_semaphore, #tpu.memory_space<semaphore_mem>>)
    %c3_i32 = arith.constant 3 : i32
    %6 = tpu.memref_slice %arg23[%c3_i32] : memref<4x!tpu.dma_semaphore, #tpu.memory_space<semaphore_mem>> -> memref<1x!tpu.dma_semaphore, #tpu.memory_space<semaphore_mem>>
    %7 = tpu.memref_squeeze %6 : memref<1x!tpu.dma_semaphore, #tpu.memory_space<semaphore_mem>> -> memref<!tpu.dma_semaphore, #tpu.memory_space<semaphore_mem>>
    tpu.enqueue_dma source(%arg15 : memref<512x128xbf16, #tpu.memory_space<any>>) target(%arg22 : memref<512x128xbf16, #tpu.memory_space<vmem>>) target_semaphore(%7 : memref<!tpu.dma_semaphore, #tpu.memory_space<semaphore_mem>>)
    %8 = tpu.iota {dimensions = array<i32: 1>} : vector<32x16xi32>
    %c0 = arith.constant 0 : index
    %c0_0 = arith.constant 0 : index
    %9 = vector.load %arg0[%c0, %c0_0] : memref<32x1xi32, #tpu.memory_space<vmem>>, vector<32x1xi32>
    %10 = vector.broadcast %9 : vector<32x1xi32> to vector<32x16xi32>
    %11 = arith.cmpi eq, %8, %10 : vector<32x16xi32>
    %12 = arith.extui %11 : vector<32x16xi1> to vector<32x16xi32>
    %13 = arith.sitofp %12 : vector<32x16xi32> to vector<32x16xf32>
    %c0_1 = arith.constant 0 : index
    %c0_2 = arith.constant 0 : index
    %14 = vector.load %arg1[%c0_1, %c0_2] : memref<32x1xi32, #tpu.memory_space<vmem>>, vector<32x1xi32>
    %15 = vector.broadcast %14 : vector<32x1xi32> to vector<32x16xi32>
    %16 = arith.cmpi eq, %8, %15 : vector<32x16xi32>
    %17 = arith.extui %16 : vector<32x16xi1> to vector<32x16xi32>
    %18 = arith.sitofp %17 : vector<32x16xi32> to vector<32x16xf32>
    %19 = tpu.iota {dimensions = array<i32: 0>} : vector<16x32xi32>
    %c0_3 = arith.constant 0 : index
    %c0_4 = arith.constant 0 : index
    %20 = vector.load %arg2[%c0_3, %c0_4] : memref<1x32xi32, #tpu.memory_space<vmem>>, vector<1x32xi32>
    %21 = vector.broadcast %20 : vector<1x32xi32> to vector<16x32xi32>
    %22 = arith.cmpi eq, %19, %21 : vector<16x32xi32>
    %23 = arith.extui %22 : vector<16x32xi1> to vector<16x32xi32>
    %24 = arith.sitofp %23 : vector<16x32xi32> to vector<16x32xf32>
    %c0_5 = arith.constant 0 : index
    %c0_6 = arith.constant 0 : index
    %25 = vector.load %arg5[%c0_5, %c0_6] : memref<32x4xf32, #tpu.memory_space<vmem>>, vector<32x4xf32>
    %c0_7 = arith.constant 0 : index
    %c0_8 = arith.constant 0 : index
    %26 = vector.load %arg10[%c0_7, %c0_8] : memref<4x512xf32, #tpu.memory_space<vmem>>, vector<4x512xf32>
    %cst = arith.constant dense<0.000000e+00> : vector<32x512xf32>
    %27 = tpu.matmul %25, %26, %cst {dimension_numbers = #tpu.dot_dimension_numbers<[1], [0], [0], [1], [0, 0, 1, 1], [], []>} : vector<32x4xf32>, vector<4x512xf32>, vector<32x512xf32> -> vector<32x512xf32>
    %c0_9 = arith.constant 0 : index
    %c0_10 = arith.constant 0 : index
    %28 = vector.load %arg4[%c0_9, %c0_10] : memref<16x11xf32, #tpu.memory_space<vmem>>, vector<16x11xf32>
    %c0_11 = arith.constant 0 : index
    %c0_12 = arith.constant 0 : index
    %29 = vector.load %arg7[%c0_11, %c0_12] : memref<11x64xf32, #tpu.memory_space<vmem>>, vector<11x64xf32>
    %cst_13 = arith.constant dense<0.000000e+00> : vector<16x64xf32>
    %30 = tpu.matmul %28, %29, %cst_13 {dimension_numbers = #tpu.dot_dimension_numbers<[1], [0], [0], [1], [0, 0, 1, 1], [], []>} : vector<16x11xf32>, vector<11x64xf32>, vector<16x64xf32> -> vector<16x64xf32>
    %c0_14 = arith.constant 0 : index
    %c0_15 = arith.constant 0 : index
    %31 = vector.load %arg8[%c0_14, %c0_15] : memref<1x64xf32, #tpu.memory_space<vmem>>, vector<1x64xf32>
    %32 = vector.broadcast %31 : vector<1x64xf32> to vector<16x64xf32>
    %33 = arith.addf %30, %32 : vector<16x64xf32>
    %c0_16 = arith.constant 0 : index
    %c0_17 = arith.constant 0 : index
    %c0_18 = arith.constant 0 : index
    %c0_19 = arith.constant 0 : index
    %34 = vector.load %arg9[%c0_16, %c0_17, %c0_18, %c0_19] : memref<4x6x64x64xf32, #tpu.memory_space<vmem>>, vector<1x1x64x64xf32>
    %35 = vector.shape_cast %34 : vector<1x1x64x64xf32> to vector<64x64xf32>
    %c0_20 = arith.constant 0 : index
    %c1 = arith.constant 1 : index
    %c0_21 = arith.constant 0 : index
    %c0_22 = arith.constant 0 : index
    %36 = vector.load %arg9[%c0_20, %c1, %c0_21, %c0_22] : memref<4x6x64x64xf32, #tpu.memory_space<vmem>>, vector<1x1x64x64xf32>
    %37 = vector.shape_cast %36 : vector<1x1x64x64xf32> to vector<64x64xf32>
    %c0_23 = arith.constant 0 : index
    %c2 = arith.constant 2 : index
    %c0_24 = arith.constant 0 : index
    %c0_25 = arith.constant 0 : index
    %38 = vector.load %arg9[%c0_23, %c2, %c0_24, %c0_25] : memref<4x6x64x64xf32, #tpu.memory_space<vmem>>, vector<1x1x64x64xf32>
    %39 = vector.shape_cast %38 : vector<1x1x64x64xf32> to vector<64x64xf32>
    %c0_26 = arith.constant 0 : index
    %c3 = arith.constant 3 : index
    %c0_27 = arith.constant 0 : index
    %c0_28 = arith.constant 0 : index
    %40 = vector.load %arg9[%c0_26, %c3, %c0_27, %c0_28] : memref<4x6x64x64xf32, #tpu.memory_space<vmem>>, vector<1x1x64x64xf32>
    %41 = vector.shape_cast %40 : vector<1x1x64x64xf32> to vector<64x64xf32>
    %c0_29 = arith.constant 0 : index
    %c4 = arith.constant 4 : index
    %c0_30 = arith.constant 0 : index
    %c0_31 = arith.constant 0 : index
    %42 = vector.load %arg9[%c0_29, %c4, %c0_30, %c0_31] : memref<4x6x64x64xf32, #tpu.memory_space<vmem>>, vector<1x1x64x64xf32>
    %43 = vector.shape_cast %42 : vector<1x1x64x64xf32> to vector<64x64xf32>
    %c0_32 = arith.constant 0 : index
    %c5 = arith.constant 5 : index
    %c0_33 = arith.constant 0 : index
    %c0_34 = arith.constant 0 : index
    %44 = vector.load %arg9[%c0_32, %c5, %c0_33, %c0_34] : memref<4x6x64x64xf32, #tpu.memory_space<vmem>>, vector<1x1x64x64xf32>
    %45 = vector.shape_cast %44 : vector<1x1x64x64xf32> to vector<64x64xf32>
    %c0_35 = arith.constant 0 : index
    %c0_36 = arith.constant 0 : index
    %c0_37 = arith.constant 0 : index
    %46 = vector.load %arg11[%c0_35, %c0_36, %c0_37] : memref<4x4x64xf32, #tpu.memory_space<vmem>>, vector<1x4x64xf32>
    %47 = vector.shape_cast %46 : vector<1x4x64xf32> to vector<4x64xf32>
    %48 = vector.extract_strided_slice %47 {offsets = [0, 0], sizes = [1, 64], strides = [1, 1]} : vector<4x64xf32> to vector<1x64xf32>
    %49 = vector.extract_strided_slice %47 {offsets = [1, 0], sizes = [1, 64], strides = [1, 1]} : vector<4x64xf32> to vector<1x64xf32>
    %50 = vector.extract_strided_slice %47 {offsets = [2, 0], sizes = [1, 64], strides = [1, 1]} : vector<4x64xf32> to vector<1x64xf32>
    %51 = vector.extract_strided_slice %47 {offsets = [3, 0], sizes = [1, 64], strides = [1, 1]} : vector<4x64xf32> to vector<1x64xf32>
    %cst_38 = arith.constant dense<0.000000e+00> : vector<16x64xf32>
    %52 = tpu.matmul %33, %35, %cst_38 {dimension_numbers = #tpu.dot_dimension_numbers<[1], [0], [0], [1], [0, 0, 1, 1], [], []>} : vector<16x64xf32>, vector<64x64xf32>, vector<16x64xf32> -> vector<16x64xf32>
    %cst_39 = arith.constant dense<0.000000e+00> : vector<16x64xf32>
    %53 = tpu.matmul %33, %37, %cst_39 {dimension_numbers = #tpu.dot_dimension_numbers<[1], [0], [0], [1], [0, 0, 1, 1], [], []>} : vector<16x64xf32>, vector<64x64xf32>, vector<16x64xf32> -> vector<16x64xf32>
    %cst_40 = arith.constant dense<0.000000e+00> : vector<32x64xf32>
    %54 = tpu.matmul %18, %52, %cst_40 {dimension_numbers = #tpu.dot_dimension_numbers<[1], [0], [0], [1], [0, 0, 1, 1], [], []>} : vector<32x16xf32>, vector<16x64xf32>, vector<32x64xf32> -> vector<32x64xf32>
    %cst_41 = arith.constant dense<0.000000e+00> : vector<32x64xf32>
    %55 = tpu.matmul %13, %53, %cst_41 {dimension_numbers = #tpu.dot_dimension_numbers<[1], [0], [0], [1], [0, 0, 1, 1], [], []>} : vector<32x16xf32>, vector<16x64xf32>, vector<32x64xf32> -> vector<32x64xf32>
    %56 = arith.addf %54, %55 : vector<32x64xf32>
    %57 = vector.extract_strided_slice %27 {offsets = [0, 0], sizes = [32, 64], strides = [1, 1]} : vector<32x512xf32> to vector<32x64xf32>
    %58 = arith.addf %56, %57 : vector<32x64xf32>
    %59 = vector.broadcast %48 : vector<1x64xf32> to vector<32x64xf32>
    %60 = arith.addf %58, %59 : vector<32x64xf32>
    %cst_42 = arith.constant 0.000000e+00 : f32
    %61 = vector.broadcast %cst_42 : f32 to vector<32x64xf32>
    %62 = arith.maximumf %60, %61 : vector<32x64xf32>
    %cst_43 = arith.constant dense<0.000000e+00> : vector<32x64xf32>
    %63 = tpu.matmul %62, %39, %cst_43 {dimension_numbers = #tpu.dot_dimension_numbers<[1], [0], [0], [1], [0, 0, 1, 1], [], []>} : vector<32x64xf32>, vector<64x64xf32>, vector<32x64xf32> -> vector<32x64xf32>
    %64 = vector.broadcast %49 : vector<1x64xf32> to vector<32x64xf32>
    %65 = arith.addf %63, %64 : vector<32x64xf32>
    %cst_44 = arith.constant 0.000000e+00 : f32
    %66 = vector.broadcast %cst_44 : f32 to vector<32x64xf32>
    %67 = arith.maximumf %65, %66 : vector<32x64xf32>
    %cst_45 = arith.constant dense<0.000000e+00> : vector<16x64xf32>
    %68 = tpu.matmul %24, %67, %cst_45 {dimension_numbers = #tpu.dot_dimension_numbers<[1], [0], [0], [1], [0, 0, 1, 1], [], []>} : vector<16x32xf32>, vector<32x64xf32>, vector<16x64xf32> -> vector<16x64xf32>
    %cst_46 = arith.constant dense<0.000000e+00> : vector<16x64xf32>
    %69 = tpu.matmul %33, %41, %cst_46 {dimension_numbers = #tpu.dot_dimension_numbers<[1], [0], [0], [1], [0, 0, 1, 1], [], []>} : vector<16x64xf32>, vector<64x64xf32>, vector<16x64xf32> -> vector<16x64xf32>
    %cst_47 = arith.constant dense<0.000000e+00> : vector<16x64xf32>
    %70 = tpu.matmul %68, %43, %cst_47 {dimension_numbers = #tpu.dot_dimension_numbers<[1], [0], [0], [1], [0, 0, 1, 1], [], []>} : vector<16x64xf32>, vector<64x64xf32>, vector<16x64xf32> -> vector<16x64xf32>
    %71 = arith.addf %69, %70 : vector<16x64xf32>
    %72 = vector.broadcast %50 : vector<1x64xf32> to vector<16x64xf32>
    %73 = arith.addf %71, %72 : vector<16x64xf32>
    %cst_48 = arith.constant 0.000000e+00 : f32
    %74 = vector.broadcast %cst_48 : f32 to vector<16x64xf32>
    %75 = arith.maximumf %73, %74 : vector<16x64xf32>
    %cst_49 = arith.constant dense<0.000000e+00> : vector<16x64xf32>
    %76 = tpu.matmul %75, %45, %cst_49 {dimension_numbers = #tpu.dot_dimension_numbers<[1], [0], [0], [1], [0, 0, 1, 1], [], []>} : vector<16x64xf32>, vector<64x64xf32>, vector<16x64xf32> -> vector<16x64xf32>
    %77 = vector.broadcast %51 : vector<1x64xf32> to vector<16x64xf32>
    %78 = arith.addf %76, %77 : vector<16x64xf32>
    %cst_50 = arith.constant 0.000000e+00 : f32
    %79 = vector.broadcast %cst_50 : f32 to vector<16x64xf32>
    %80 = arith.maximumf %78, %79 : vector<16x64xf32>
    %81 = arith.addf %33, %80 : vector<16x64xf32>
    %c1_51 = arith.constant 1 : index
    %c0_52 = arith.constant 0 : index
    %c0_53 = arith.constant 0 : index
    %c0_54 = arith.constant 0 : index
    %82 = vector.load %arg9[%c1_51, %c0_52, %c0_53, %c0_54] : memref<4x6x64x64xf32, #tpu.memory_space<vmem>>, vector<1x1x64x64xf32>
    %83 = vector.shape_cast %82 : vector<1x1x64x64xf32> to vector<64x64xf32>
    %c1_55 = arith.constant 1 : index
    %c1_56 = arith.constant 1 : index
    %c0_57 = arith.constant 0 : index
    %c0_58 = arith.constant 0 : index
    %84 = vector.load %arg9[%c1_55, %c1_56, %c0_57, %c0_58] : memref<4x6x64x64xf32, #tpu.memory_space<vmem>>, vector<1x1x64x64xf32>
    %85 = vector.shape_cast %84 : vector<1x1x64x64xf32> to vector<64x64xf32>
    %c1_59 = arith.constant 1 : index
    %c2_60 = arith.constant 2 : index
    %c0_61 = arith.constant 0 : index
    %c0_62 = arith.constant 0 : index
    %86 = vector.load %arg9[%c1_59, %c2_60, %c0_61, %c0_62] : memref<4x6x64x64xf32, #tpu.memory_space<vmem>>, vector<1x1x64x64xf32>
    %87 = vector.shape_cast %86 : vector<1x1x64x64xf32> to vector<64x64xf32>
    %c1_63 = arith.constant 1 : index
    %c3_64 = arith.constant 3 : index
    %c0_65 = arith.constant 0 : index
    %c0_66 = arith.constant 0 : index
    %88 = vector.load %arg9[%c1_63, %c3_64, %c0_65, %c0_66] : memref<4x6x64x64xf32, #tpu.memory_space<vmem>>, vector<1x1x64x64xf32>
    %89 = vector.shape_cast %88 : vector<1x1x64x64xf32> to vector<64x64xf32>
    %c1_67 = arith.constant 1 : index
    %c4_68 = arith.constant 4 : index
    %c0_69 = arith.constant 0 : index
    %c0_70 = arith.constant 0 : index
    %90 = vector.load %arg9[%c1_67, %c4_68, %c0_69, %c0_70] : memref<4x6x64x64xf32, #tpu.memory_space<vmem>>, vector<1x1x64x64xf32>
    %91 = vector.shape_cast %90 : vector<1x1x64x64xf32> to vector<64x64xf32>
    %c1_71 = arith.constant 1 : index
    %c5_72 = arith.constant 5 : index
    %c0_73 = arith.constant 0 : index
    %c0_74 = arith.constant 0 : index
    %92 = vector.load %arg9[%c1_71, %c5_72, %c0_73, %c0_74] : memref<4x6x64x64xf32, #tpu.memory_space<vmem>>, vector<1x1x64x64xf32>
    %93 = vector.shape_cast %92 : vector<1x1x64x64xf32> to vector<64x64xf32>
    %c1_75 = arith.constant 1 : index
    %c0_76 = arith.constant 0 : index
    %c0_77 = arith.constant 0 : index
    %94 = vector.load %arg11[%c1_75, %c0_76, %c0_77] : memref<4x4x64xf32, #tpu.memory_space<vmem>>, vector<1x4x64xf32>
    %95 = vector.shape_cast %94 : vector<1x4x64xf32> to vector<4x64xf32>
    %96 = vector.extract_strided_slice %95 {offsets = [0, 0], sizes = [1, 64], strides = [1, 1]} : vector<4x64xf32> to vector<1x64xf32>
    %97 = vector.extract_strided_slice %95 {offsets = [1, 0], sizes = [1, 64], strides = [1, 1]} : vector<4x64xf32> to vector<1x64xf32>
    %98 = vector.extract_strided_slice %95 {offsets = [2, 0], sizes = [1, 64], strides = [1, 1]} : vector<4x64xf32> to vector<1x64xf32>
    %99 = vector.extract_strided_slice %95 {offsets = [3, 0], sizes = [1, 64], strides = [1, 1]} : vector<4x64xf32> to vector<1x64xf32>
    %cst_78 = arith.constant dense<0.000000e+00> : vector<16x64xf32>
    %100 = tpu.matmul %81, %83, %cst_78 {dimension_numbers = #tpu.dot_dimension_numbers<[1], [0], [0], [1], [0, 0, 1, 1], [], []>} : vector<16x64xf32>, vector<64x64xf32>, vector<16x64xf32> -> vector<16x64xf32>
    %cst_79 = arith.constant dense<0.000000e+00> : vector<16x64xf32>
    %101 = tpu.matmul %81, %85, %cst_79 {dimension_numbers = #tpu.dot_dimension_numbers<[1], [0], [0], [1], [0, 0, 1, 1], [], []>} : vector<16x64xf32>, vector<64x64xf32>, vector<16x64xf32> -> vector<16x64xf32>
    %cst_80 = arith.constant dense<0.000000e+00> : vector<32x64xf32>
    %102 = tpu.matmul %18, %100, %cst_80 {dimension_numbers = #tpu.dot_dimension_numbers<[1], [0], [0], [1], [0, 0, 1, 1], [], []>} : vector<32x16xf32>, vector<16x64xf32>, vector<32x64xf32> -> vector<32x64xf32>
    %cst_81 = arith.constant dense<0.000000e+00> : vector<32x64xf32>
    %103 = tpu.matmul %13, %101, %cst_81 {dimension_numbers = #tpu.dot_dimension_numbers<[1], [0], [0], [1], [0, 0, 1, 1], [], []>} : vector<32x16xf32>, vector<16x64xf32>, vector<32x64xf32> -> vector<32x64xf32>
    %104 = arith.addf %102, %103 : vector<32x64xf32>
    %105 = vector.extract_strided_slice %27 {offsets = [0, 128], sizes = [32, 64], strides = [1, 1]} : vector<32x512xf32> to vector<32x64xf32>
    %106 = arith.addf %104, %105 : vector<32x64xf32>
    %107 = vector.broadcast %96 : vector<1x64xf32> to vector<32x64xf32>
    %108 = arith.addf %106, %107 : vector<32x64xf32>
    %cst_82 = arith.constant 0.000000e+00 : f32
    %109 = vector.broadcast %cst_82 : f32 to vector<32x64xf32>
    %110 = arith.maximumf %108, %109 : vector<32x64xf32>
    %cst_83 = arith.constant dense<0.000000e+00> : vector<32x64xf32>
    %111 = tpu.matmul %110, %87, %cst_83 {dimension_numbers = #tpu.dot_dimension_numbers<[1], [0], [0], [1], [0, 0, 1, 1], [], []>} : vector<32x64xf32>, vector<64x64xf32>, vector<32x64xf32> -> vector<32x64xf32>
    %112 = vector.broadcast %97 : vector<1x64xf32> to vector<32x64xf32>
    %113 = arith.addf %111, %112 : vector<32x64xf32>
    %cst_84 = arith.constant 0.000000e+00 : f32
    %114 = vector.broadcast %cst_84 : f32 to vector<32x64xf32>
    %115 = arith.maximumf %113, %114 : vector<32x64xf32>
    %cst_85 = arith.constant dense<0.000000e+00> : vector<16x64xf32>
    %116 = tpu.matmul %24, %115, %cst_85 {dimension_numbers = #tpu.dot_dimension_numbers<[1], [0], [0], [1], [0, 0, 1, 1], [], []>} : vector<16x32xf32>, vector<32x64xf32>, vector<16x64xf32> -> vector<16x64xf32>
    %cst_86 = arith.constant dense<0.000000e+00> : vector<16x64xf32>
    %117 = tpu.matmul %81, %89, %cst_86 {dimension_numbers = #tpu.dot_dimension_numbers<[1], [0], [0], [1], [0, 0, 1, 1], [], []>} : vector<16x64xf32>, vector<64x64xf32>, vector<16x64xf32> -> vector<16x64xf32>
    %cst_87 = arith.constant dense<0.000000e+00> : vector<16x64xf32>
    %118 = tpu.matmul %116, %91, %cst_87 {dimension_numbers = #tpu.dot_dimension_numbers<[1], [0], [0], [1], [0, 0, 1, 1], [], []>} : vector<16x64xf32>, vector<64x64xf32>, vector<16x64xf32> -> vector<16x64xf32>
    %119 = arith.addf %117, %118 : vector<16x64xf32>
    %120 = vector.broadcast %98 : vector<1x64xf32> to vector<16x64xf32>
    %121 = arith.addf %119, %120 : vector<16x64xf32>
    %cst_88 = arith.constant 0.000000e+00 : f32
    %122 = vector.broadcast %cst_88 : f32 to vector<16x64xf32>
    %123 = arith.maximumf %121, %122 : vector<16x64xf32>
    %cst_89 = arith.constant dense<0.000000e+00> : vector<16x64xf32>
    %124 = tpu.matmul %123, %93, %cst_89 {dimension_numbers = #tpu.dot_dimension_numbers<[1], [0], [0], [1], [0, 0, 1, 1], [], []>} : vector<16x64xf32>, vector<64x64xf32>, vector<16x64xf32> -> vector<16x64xf32>
    %125 = vector.broadcast %99 : vector<1x64xf32> to vector<16x64xf32>
    %126 = arith.addf %124, %125 : vector<16x64xf32>
    %cst_90 = arith.constant 0.000000e+00 : f32
    %127 = vector.broadcast %cst_90 : f32 to vector<16x64xf32>
    %128 = arith.maximumf %126, %127 : vector<16x64xf32>
    %129 = arith.addf %81, %128 : vector<16x64xf32>
    %c2_91 = arith.constant 2 : index
    %c0_92 = arith.constant 0 : index
    %c0_93 = arith.constant 0 : index
    %c0_94 = arith.constant 0 : index
    %130 = vector.load %arg9[%c2_91, %c0_92, %c0_93, %c0_94] : memref<4x6x64x64xf32, #tpu.memory_space<vmem>>, vector<1x1x64x64xf32>
    %131 = vector.shape_cast %130 : vector<1x1x64x64xf32> to vector<64x64xf32>
    %c2_95 = arith.constant 2 : index
    %c1_96 = arith.constant 1 : index
    %c0_97 = arith.constant 0 : index
    %c0_98 = arith.constant 0 : index
    %132 = vector.load %arg9[%c2_95, %c1_96, %c0_97, %c0_98] : memref<4x6x64x64xf32, #tpu.memory_space<vmem>>, vector<1x1x64x64xf32>
    %133 = vector.shape_cast %132 : vector<1x1x64x64xf32> to vector<64x64xf32>
    %c2_99 = arith.constant 2 : index
    %c2_100 = arith.constant 2 : index
    %c0_101 = arith.constant 0 : index
    %c0_102 = arith.constant 0 : index
    %134 = vector.load %arg9[%c2_99, %c2_100, %c0_101, %c0_102] : memref<4x6x64x64xf32, #tpu.memory_space<vmem>>, vector<1x1x64x64xf32>
    %135 = vector.shape_cast %134 : vector<1x1x64x64xf32> to vector<64x64xf32>
    %c2_103 = arith.constant 2 : index
    %c3_104 = arith.constant 3 : index
    %c0_105 = arith.constant 0 : index
    %c0_106 = arith.constant 0 : index
    %136 = vector.load %arg9[%c2_103, %c3_104, %c0_105, %c0_106] : memref<4x6x64x64xf32, #tpu.memory_space<vmem>>, vector<1x1x64x64xf32>
    %137 = vector.shape_cast %136 : vector<1x1x64x64xf32> to vector<64x64xf32>
    %c2_107 = arith.constant 2 : index
    %c4_108 = arith.constant 4 : index
    %c0_109 = arith.constant 0 : index
    %c0_110 = arith.constant 0 : index
    %138 = vector.load %arg9[%c2_107, %c4_108, %c0_109, %c0_110] : memref<4x6x64x64xf32, #tpu.memory_space<vmem>>, vector<1x1x64x64xf32>
    %139 = vector.shape_cast %138 : vector<1x1x64x64xf32> to vector<64x64xf32>
    %c2_111 = arith.constant 2 : index
    %c5_112 = arith.constant 5 : index
    %c0_113 = arith.constant 0 : index
    %c0_114 = arith.constant 0 : index
    %140 = vector.load %arg9[%c2_111, %c5_112, %c0_113, %c0_114] : memref<4x6x64x64xf32, #tpu.memory_space<vmem>>, vector<1x1x64x64xf32>
    %141 = vector.shape_cast %140 : vector<1x1x64x64xf32> to vector<64x64xf32>
    %c2_115 = arith.constant 2 : index
    %c0_116 = arith.constant 0 : index
    %c0_117 = arith.constant 0 : index
    %142 = vector.load %arg11[%c2_115, %c0_116, %c0_117] : memref<4x4x64xf32, #tpu.memory_space<vmem>>, vector<1x4x64xf32>
    %143 = vector.shape_cast %142 : vector<1x4x64xf32> to vector<4x64xf32>
    %144 = vector.extract_strided_slice %143 {offsets = [0, 0], sizes = [1, 64], strides = [1, 1]} : vector<4x64xf32> to vector<1x64xf32>
    %145 = vector.extract_strided_slice %143 {offsets = [1, 0], sizes = [1, 64], strides = [1, 1]} : vector<4x64xf32> to vector<1x64xf32>
    %146 = vector.extract_strided_slice %143 {offsets = [2, 0], sizes = [1, 64], strides = [1, 1]} : vector<4x64xf32> to vector<1x64xf32>
    %147 = vector.extract_strided_slice %143 {offsets = [3, 0], sizes = [1, 64], strides = [1, 1]} : vector<4x64xf32> to vector<1x64xf32>
    %cst_118 = arith.constant dense<0.000000e+00> : vector<16x64xf32>
    %148 = tpu.matmul %129, %131, %cst_118 {dimension_numbers = #tpu.dot_dimension_numbers<[1], [0], [0], [1], [0, 0, 1, 1], [], []>} : vector<16x64xf32>, vector<64x64xf32>, vector<16x64xf32> -> vector<16x64xf32>
    %cst_119 = arith.constant dense<0.000000e+00> : vector<16x64xf32>
    %149 = tpu.matmul %129, %133, %cst_119 {dimension_numbers = #tpu.dot_dimension_numbers<[1], [0], [0], [1], [0, 0, 1, 1], [], []>} : vector<16x64xf32>, vector<64x64xf32>, vector<16x64xf32> -> vector<16x64xf32>
    %cst_120 = arith.constant dense<0.000000e+00> : vector<32x64xf32>
    %150 = tpu.matmul %18, %148, %cst_120 {dimension_numbers = #tpu.dot_dimension_numbers<[1], [0], [0], [1], [0, 0, 1, 1], [], []>} : vector<32x16xf32>, vector<16x64xf32>, vector<32x64xf32> -> vector<32x64xf32>
    %cst_121 = arith.constant dense<0.000000e+00> : vector<32x64xf32>
    %151 = tpu.matmul %13, %149, %cst_121 {dimension_numbers = #tpu.dot_dimension_numbers<[1], [0], [0], [1], [0, 0, 1, 1], [], []>} : vector<32x16xf32>, vector<16x64xf32>, vector<32x64xf32> -> vector<32x64xf32>
    %152 = arith.addf %150, %151 : vector<32x64xf32>
    %153 = vector.extract_strided_slice %27 {offsets = [0, 256], sizes = [32, 64], strides = [1, 1]} : vector<32x512xf32> to vector<32x64xf32>
    %154 = arith.addf %152, %153 : vector<32x64xf32>
    %155 = vector.broadcast %144 : vector<1x64xf32> to vector<32x64xf32>
    %156 = arith.addf %154, %155 : vector<32x64xf32>
    %cst_122 = arith.constant 0.000000e+00 : f32
    %157 = vector.broadcast %cst_122 : f32 to vector<32x64xf32>
    %158 = arith.maximumf %156, %157 : vector<32x64xf32>
    %cst_123 = arith.constant dense<0.000000e+00> : vector<32x64xf32>
    %159 = tpu.matmul %158, %135, %cst_123 {dimension_numbers = #tpu.dot_dimension_numbers<[1], [0], [0], [1], [0, 0, 1, 1], [], []>} : vector<32x64xf32>, vector<64x64xf32>, vector<32x64xf32> -> vector<32x64xf32>
    %160 = vector.broadcast %145 : vector<1x64xf32> to vector<32x64xf32>
    %161 = arith.addf %159, %160 : vector<32x64xf32>
    %cst_124 = arith.constant 0.000000e+00 : f32
    %162 = vector.broadcast %cst_124 : f32 to vector<32x64xf32>
    %163 = arith.maximumf %161, %162 : vector<32x64xf32>
    %cst_125 = arith.constant dense<0.000000e+00> : vector<16x64xf32>
    %164 = tpu.matmul %24, %163, %cst_125 {dimension_numbers = #tpu.dot_dimension_numbers<[1], [0], [0], [1], [0, 0, 1, 1], [], []>} : vector<16x32xf32>, vector<32x64xf32>, vector<16x64xf32> -> vector<16x64xf32>
    %cst_126 = arith.constant dense<0.000000e+00> : vector<16x64xf32>
    %165 = tpu.matmul %129, %137, %cst_126 {dimension_numbers = #tpu.dot_dimension_numbers<[1], [0], [0], [1], [0, 0, 1, 1], [], []>} : vector<16x64xf32>, vector<64x64xf32>, vector<16x64xf32> -> vector<16x64xf32>
    %cst_127 = arith.constant dense<0.000000e+00> : vector<16x64xf32>
    %166 = tpu.matmul %164, %139, %cst_127 {dimension_numbers = #tpu.dot_dimension_numbers<[1], [0], [0], [1], [0, 0, 1, 1], [], []>} : vector<16x64xf32>, vector<64x64xf32>, vector<16x64xf32> -> vector<16x64xf32>
    %167 = arith.addf %165, %166 : vector<16x64xf32>
    %168 = vector.broadcast %146 : vector<1x64xf32> to vector<16x64xf32>
    %169 = arith.addf %167, %168 : vector<16x64xf32>
    %cst_128 = arith.constant 0.000000e+00 : f32
    %170 = vector.broadcast %cst_128 : f32 to vector<16x64xf32>
    %171 = arith.maximumf %169, %170 : vector<16x64xf32>
    %cst_129 = arith.constant dense<0.000000e+00> : vector<16x64xf32>
    %172 = tpu.matmul %171, %141, %cst_129 {dimension_numbers = #tpu.dot_dimension_numbers<[1], [0], [0], [1], [0, 0, 1, 1], [], []>} : vector<16x64xf32>, vector<64x64xf32>, vector<16x64xf32> -> vector<16x64xf32>
    %173 = vector.broadcast %147 : vector<1x64xf32> to vector<16x64xf32>
    %174 = arith.addf %172, %173 : vector<16x64xf32>
    %cst_130 = arith.constant 0.000000e+00 : f32
    %175 = vector.broadcast %cst_130 : f32 to vector<16x64xf32>
    %176 = arith.maximumf %174, %175 : vector<16x64xf32>
    %177 = arith.addf %129, %176 : vector<16x64xf32>
    %c3_131 = arith.constant 3 : index
    %c0_132 = arith.constant 0 : index
    %c0_133 = arith.constant 0 : index
    %c0_134 = arith.constant 0 : index
    %178 = vector.load %arg9[%c3_131, %c0_132, %c0_133, %c0_134] : memref<4x6x64x64xf32, #tpu.memory_space<vmem>>, vector<1x1x64x64xf32>
    %179 = vector.shape_cast %178 : vector<1x1x64x64xf32> to vector<64x64xf32>
    %c3_135 = arith.constant 3 : index
    %c1_136 = arith.constant 1 : index
    %c0_137 = arith.constant 0 : index
    %c0_138 = arith.constant 0 : index
    %180 = vector.load %arg9[%c3_135, %c1_136, %c0_137, %c0_138] : memref<4x6x64x64xf32, #tpu.memory_space<vmem>>, vector<1x1x64x64xf32>
    %181 = vector.shape_cast %180 : vector<1x1x64x64xf32> to vector<64x64xf32>
    %c3_139 = arith.constant 3 : index
    %c2_140 = arith.constant 2 : index
    %c0_141 = arith.constant 0 : index
    %c0_142 = arith.constant 0 : index
    %182 = vector.load %arg9[%c3_139, %c2_140, %c0_141, %c0_142] : memref<4x6x64x64xf32, #tpu.memory_space<vmem>>, vector<1x1x64x64xf32>
    %183 = vector.shape_cast %182 : vector<1x1x64x64xf32> to vector<64x64xf32>
    %c3_143 = arith.constant 3 : index
    %c3_144 = arith.constant 3 : index
    %c0_145 = arith.constant 0 : index
    %c0_146 = arith.constant 0 : index
    %184 = vector.load %arg9[%c3_143, %c3_144, %c0_145, %c0_146] : memref<4x6x64x64xf32, #tpu.memory_space<vmem>>, vector<1x1x64x64xf32>
    %185 = vector.shape_cast %184 : vector<1x1x64x64xf32> to vector<64x64xf32>
    %c3_147 = arith.constant 3 : index
    %c4_148 = arith.constant 4 : index
    %c0_149 = arith.constant 0 : index
    %c0_150 = arith.constant 0 : index
    %186 = vector.load %arg9[%c3_147, %c4_148, %c0_149, %c0_150] : memref<4x6x64x64xf32, #tpu.memory_space<vmem>>, vector<1x1x64x64xf32>
    %187 = vector.shape_cast %186 : vector<1x1x64x64xf32> to vector<64x64xf32>
    %c3_151 = arith.constant 3 : index
    %c5_152 = arith.constant 5 : index
    %c0_153 = arith.constant 0 : index
    %c0_154 = arith.constant 0 : index
    %188 = vector.load %arg9[%c3_151, %c5_152, %c0_153, %c0_154] : memref<4x6x64x64xf32, #tpu.memory_space<vmem>>, vector<1x1x64x64xf32>
    %189 = vector.shape_cast %188 : vector<1x1x64x64xf32> to vector<64x64xf32>
    %c3_155 = arith.constant 3 : index
    %c0_156 = arith.constant 0 : index
    %c0_157 = arith.constant 0 : index
    %190 = vector.load %arg11[%c3_155, %c0_156, %c0_157] : memref<4x4x64xf32, #tpu.memory_space<vmem>>, vector<1x4x64xf32>
    %191 = vector.shape_cast %190 : vector<1x4x64xf32> to vector<4x64xf32>
    %192 = vector.extract_strided_slice %191 {offsets = [0, 0], sizes = [1, 64], strides = [1, 1]} : vector<4x64xf32> to vector<1x64xf32>
    %193 = vector.extract_strided_slice %191 {offsets = [1, 0], sizes = [1, 64], strides = [1, 1]} : vector<4x64xf32> to vector<1x64xf32>
    %194 = vector.extract_strided_slice %191 {offsets = [2, 0], sizes = [1, 64], strides = [1, 1]} : vector<4x64xf32> to vector<1x64xf32>
    %195 = vector.extract_strided_slice %191 {offsets = [3, 0], sizes = [1, 64], strides = [1, 1]} : vector<4x64xf32> to vector<1x64xf32>
    %cst_158 = arith.constant dense<0.000000e+00> : vector<16x64xf32>
    %196 = tpu.matmul %177, %179, %cst_158 {dimension_numbers = #tpu.dot_dimension_numbers<[1], [0], [0], [1], [0, 0, 1, 1], [], []>} : vector<16x64xf32>, vector<64x64xf32>, vector<16x64xf32> -> vector<16x64xf32>
    %cst_159 = arith.constant dense<0.000000e+00> : vector<16x64xf32>
    %197 = tpu.matmul %177, %181, %cst_159 {dimension_numbers = #tpu.dot_dimension_numbers<[1], [0], [0], [1], [0, 0, 1, 1], [], []>} : vector<16x64xf32>, vector<64x64xf32>, vector<16x64xf32> -> vector<16x64xf32>
    %cst_160 = arith.constant dense<0.000000e+00> : vector<32x64xf32>
    %198 = tpu.matmul %18, %196, %cst_160 {dimension_numbers = #tpu.dot_dimension_numbers<[1], [0], [0], [1], [0, 0, 1, 1], [], []>} : vector<32x16xf32>, vector<16x64xf32>, vector<32x64xf32> -> vector<32x64xf32>
    %cst_161 = arith.constant dense<0.000000e+00> : vector<32x64xf32>
    %199 = tpu.matmul %13, %197, %cst_161 {dimension_numbers = #tpu.dot_dimension_numbers<[1], [0], [0], [1], [0, 0, 1, 1], [], []>} : vector<32x16xf32>, vector<16x64xf32>, vector<32x64xf32> -> vector<32x64xf32>
    %200 = arith.addf %198, %199 : vector<32x64xf32>
    %201 = vector.extract_strided_slice %27 {offsets = [0, 384], sizes = [32, 64], strides = [1, 1]} : vector<32x512xf32> to vector<32x64xf32>
    %202 = arith.addf %200, %201 : vector<32x64xf32>
    %203 = vector.broadcast %192 : vector<1x64xf32> to vector<32x64xf32>
    %204 = arith.addf %202, %203 : vector<32x64xf32>
    %cst_162 = arith.constant 0.000000e+00 : f32
    %205 = vector.broadcast %cst_162 : f32 to vector<32x64xf32>
    %206 = arith.maximumf %204, %205 : vector<32x64xf32>
    %cst_163 = arith.constant dense<0.000000e+00> : vector<32x64xf32>
    %207 = tpu.matmul %206, %183, %cst_163 {dimension_numbers = #tpu.dot_dimension_numbers<[1], [0], [0], [1], [0, 0, 1, 1], [], []>} : vector<32x64xf32>, vector<64x64xf32>, vector<32x64xf32> -> vector<32x64xf32>
    %208 = vector.broadcast %193 : vector<1x64xf32> to vector<32x64xf32>
    %209 = arith.addf %207, %208 : vector<32x64xf32>
    %cst_164 = arith.constant 0.000000e+00 : f32
    %210 = vector.broadcast %cst_164 : f32 to vector<32x64xf32>
    %211 = arith.maximumf %209, %210 : vector<32x64xf32>
    %cst_165 = arith.constant dense<0.000000e+00> : vector<16x64xf32>
    %212 = tpu.matmul %24, %211, %cst_165 {dimension_numbers = #tpu.dot_dimension_numbers<[1], [0], [0], [1], [0, 0, 1, 1], [], []>} : vector<16x32xf32>, vector<32x64xf32>, vector<16x64xf32> -> vector<16x64xf32>
    %cst_166 = arith.constant dense<0.000000e+00> : vector<16x64xf32>
    %213 = tpu.matmul %177, %185, %cst_166 {dimension_numbers = #tpu.dot_dimension_numbers<[1], [0], [0], [1], [0, 0, 1, 1], [], []>} : vector<16x64xf32>, vector<64x64xf32>, vector<16x64xf32> -> vector<16x64xf32>
    %cst_167 = arith.constant dense<0.000000e+00> : vector<16x64xf32>
    %214 = tpu.matmul %212, %187, %cst_167 {dimension_numbers = #tpu.dot_dimension_numbers<[1], [0], [0], [1], [0, 0, 1, 1], [], []>} : vector<16x64xf32>, vector<64x64xf32>, vector<16x64xf32> -> vector<16x64xf32>
    %215 = arith.addf %213, %214 : vector<16x64xf32>
    %216 = vector.broadcast %194 : vector<1x64xf32> to vector<16x64xf32>
    %217 = arith.addf %215, %216 : vector<16x64xf32>
    %cst_168 = arith.constant 0.000000e+00 : f32
    %218 = vector.broadcast %cst_168 : f32 to vector<16x64xf32>
    %219 = arith.maximumf %217, %218 : vector<16x64xf32>
    %cst_169 = arith.constant dense<0.000000e+00> : vector<16x64xf32>
    %220 = tpu.matmul %219, %189, %cst_169 {dimension_numbers = #tpu.dot_dimension_numbers<[1], [0], [0], [1], [0, 0, 1, 1], [], []>} : vector<16x64xf32>, vector<64x64xf32>, vector<16x64xf32> -> vector<16x64xf32>
    %221 = vector.broadcast %195 : vector<1x64xf32> to vector<16x64xf32>
    %222 = arith.addf %220, %221 : vector<16x64xf32>
    %cst_170 = arith.constant 0.000000e+00 : f32
    %223 = vector.broadcast %cst_170 : f32 to vector<16x64xf32>
    %224 = arith.maximumf %222, %223 : vector<16x64xf32>
    %225 = arith.addf %177, %224 : vector<16x64xf32>
    %226 = tpu.iota {dimensions = array<i32: 0>} : vector<2x16xi32>
    %c0_171 = arith.constant 0 : index
    %c0_172 = arith.constant 0 : index
    %227 = vector.load %arg3[%c0_171, %c0_172] : memref<1x16xi32, #tpu.memory_space<vmem>>, vector<1x16xi32>
    %228 = vector.broadcast %227 : vector<1x16xi32> to vector<2x16xi32>
    %229 = arith.cmpi eq, %226, %228 : vector<2x16xi32>
    %230 = arith.extui %229 : vector<2x16xi1> to vector<2x16xi32>
    %231 = arith.sitofp %230 : vector<2x16xi32> to vector<2x16xf32>
    %cst_173 = arith.constant dense<0.000000e+00> : vector<2xf32>
    %232 = vector.multi_reduction <add>, %231, %cst_173 [1] : vector<2x16xf32> to vector<2xf32>
    %233 = vector.shape_cast %232 : vector<2xf32> to vector<2x1xf32>
    %cst_174 = arith.constant 1.000000e+00 : f32
    %234 = vector.broadcast %cst_174 : f32 to vector<2x1xf32>
    %235 = arith.maximumf %233, %234 : vector<2x1xf32>
    %236 = tpu.reciprocal %235 : vector<2x1xf32> -> vector<2x1xf32>
    %237 = vector.broadcast %236 : vector<2x1xf32> to vector<2x16xf32>
    %238 = arith.mulf %231, %237 : vector<2x16xf32>
    %cst_175 = arith.constant dense<0.000000e+00> : vector<2x64xf32>
    %239 = tpu.matmul %238, %225, %cst_175 {dimension_numbers = #tpu.dot_dimension_numbers<[1], [0], [0], [1], [0, 0, 1, 1], [], []>} : vector<2x16xf32>, vector<16x64xf32>, vector<2x64xf32> -> vector<2x64xf32>
    %c0_i32_176 = arith.constant 0 : i32
    %240 = tpu.memref_slice %arg23[%c0_i32_176] : memref<4x!tpu.dma_semaphore, #tpu.memory_space<semaphore_mem>> -> memref<1x!tpu.dma_semaphore, #tpu.memory_space<semaphore_mem>>
    %241 = tpu.memref_squeeze %240 : memref<1x!tpu.dma_semaphore, #tpu.memory_space<semaphore_mem>> -> memref<!tpu.dma_semaphore, #tpu.memory_space<semaphore_mem>>
    tpu.wait_dma2 semaphore(%241 : memref<!tpu.dma_semaphore, #tpu.memory_space<semaphore_mem>>) src(%arg12 : memref<64x1024xbf16, #tpu.memory_space<any>>) dst(%arg19 : memref<64x1024xbf16, #tpu.memory_space<vmem>>)
    %c1_i32_177 = arith.constant 1 : i32
    %242 = tpu.memref_slice %arg23[%c1_i32_177] : memref<4x!tpu.dma_semaphore, #tpu.memory_space<semaphore_mem>> -> memref<1x!tpu.dma_semaphore, #tpu.memory_space<semaphore_mem>>
    %243 = tpu.memref_squeeze %242 : memref<1x!tpu.dma_semaphore, #tpu.memory_space<semaphore_mem>> -> memref<!tpu.dma_semaphore, #tpu.memory_space<semaphore_mem>>
    tpu.wait_dma2 semaphore(%243 : memref<!tpu.dma_semaphore, #tpu.memory_space<semaphore_mem>>) src(%arg13 : memref<1024x1024xbf16, #tpu.memory_space<any>>) dst(%arg20 : memref<1024x1024xbf16, #tpu.memory_space<vmem>>)
    %c2_i32_178 = arith.constant 2 : i32
    %244 = tpu.memref_slice %arg23[%c2_i32_178] : memref<4x!tpu.dma_semaphore, #tpu.memory_space<semaphore_mem>> -> memref<1x!tpu.dma_semaphore, #tpu.memory_space<semaphore_mem>>
    %245 = tpu.memref_squeeze %244 : memref<1x!tpu.dma_semaphore, #tpu.memory_space<semaphore_mem>> -> memref<!tpu.dma_semaphore, #tpu.memory_space<semaphore_mem>>
    tpu.wait_dma2 semaphore(%245 : memref<!tpu.dma_semaphore, #tpu.memory_space<semaphore_mem>>) src(%arg14 : memref<1024x512xbf16, #tpu.memory_space<any>>) dst(%arg21 : memref<1024x512xbf16, #tpu.memory_space<vmem>>)
    %c3_i32_179 = arith.constant 3 : i32
    %246 = tpu.memref_slice %arg23[%c3_i32_179] : memref<4x!tpu.dma_semaphore, #tpu.memory_space<semaphore_mem>> -> memref<1x!tpu.dma_semaphore, #tpu.memory_space<semaphore_mem>>
    %247 = tpu.memref_squeeze %246 : memref<1x!tpu.dma_semaphore, #tpu.memory_space<semaphore_mem>> -> memref<!tpu.dma_semaphore, #tpu.memory_space<semaphore_mem>>
    tpu.wait_dma2 semaphore(%247 : memref<!tpu.dma_semaphore, #tpu.memory_space<semaphore_mem>>) src(%arg15 : memref<512x128xbf16, #tpu.memory_space<any>>) dst(%arg22 : memref<512x128xbf16, #tpu.memory_space<vmem>>)
    %c0_180 = arith.constant 0 : index
    %c0_181 = arith.constant 0 : index
    %248 = vector.load %arg16[%c0_180, %c0_181] : memref<4x1024xf32, #tpu.memory_space<vmem>>, vector<4x1024xf32>
    %249 = arith.truncf %239 : vector<2x64xf32> to vector<2x64xbf16>
    %c0_182 = arith.constant 0 : index
    %c0_183 = arith.constant 0 : index
    %250 = vector.load %arg19[%c0_182, %c0_183] : memref<64x1024xbf16, #tpu.memory_space<vmem>>, vector<64x1024xbf16>
    %cst_184 = arith.constant dense<0.000000e+00> : vector<2x1024xf32>
    %251 = tpu.matmul %249, %250, %cst_184 {dimension_numbers = #tpu.dot_dimension_numbers<[1], [0], [0], [1], [0, 0, 1, 1], [], []>} : vector<2x64xbf16>, vector<64x1024xbf16>, vector<2x1024xf32> -> vector<2x1024xf32>
    %252 = vector.extract_strided_slice %248 {offsets = [0, 0], sizes = [1, 1024], strides = [1, 1]} : vector<4x1024xf32> to vector<1x1024xf32>
    %253 = vector.broadcast %252 : vector<1x1024xf32> to vector<2x1024xf32>
    %254 = arith.addf %251, %253 : vector<2x1024xf32>
    %cst_185 = arith.constant 0.000000e+00 : f32
    %255 = vector.broadcast %cst_185 : f32 to vector<2x1024xf32>
    %256 = arith.maximumf %254, %255 : vector<2x1024xf32>
    %257 = arith.truncf %256 : vector<2x1024xf32> to vector<2x1024xbf16>
    %c0_186 = arith.constant 0 : index
    %c0_187 = arith.constant 0 : index
    %258 = vector.load %arg20[%c0_186, %c0_187] : memref<1024x1024xbf16, #tpu.memory_space<vmem>>, vector<1024x1024xbf16>
    %cst_188 = arith.constant dense<0.000000e+00> : vector<2x1024xf32>
    %259 = tpu.matmul %257, %258, %cst_188 {dimension_numbers = #tpu.dot_dimension_numbers<[1], [0], [0], [1], [0, 0, 1, 1], [], []>} : vector<2x1024xbf16>, vector<1024x1024xbf16>, vector<2x1024xf32> -> vector<2x1024xf32>
    %260 = vector.extract_strided_slice %248 {offsets = [1, 0], sizes = [1, 1024], strides = [1, 1]} : vector<4x1024xf32> to vector<1x1024xf32>
    %261 = vector.broadcast %260 : vector<1x1024xf32> to vector<2x1024xf32>
    %262 = arith.addf %259, %261 : vector<2x1024xf32>
    %cst_189 = arith.constant 0.000000e+00 : f32
    %263 = vector.broadcast %cst_189 : f32 to vector<2x1024xf32>
    %264 = arith.maximumf %262, %263 : vector<2x1024xf32>
    %265 = arith.truncf %264 : vector<2x1024xf32> to vector<2x1024xbf16>
    %c0_190 = arith.constant 0 : index
    %c0_191 = arith.constant 0 : index
    %266 = vector.load %arg21[%c0_190, %c0_191] : memref<1024x512xbf16, #tpu.memory_space<vmem>>, vector<1024x512xbf16>
    %cst_192 = arith.constant dense<0.000000e+00> : vector<2x512xf32>
    %267 = tpu.matmul %265, %266, %cst_192 {dimension_numbers = #tpu.dot_dimension_numbers<[1], [0], [0], [1], [0, 0, 1, 1], [], []>} : vector<2x1024xbf16>, vector<1024x512xbf16>, vector<2x512xf32> -> vector<2x512xf32>
    %268 = vector.extract_strided_slice %248 {offsets = [2, 0], sizes = [1, 512], strides = [1, 1]} : vector<4x1024xf32> to vector<1x512xf32>
    %269 = vector.broadcast %268 : vector<1x512xf32> to vector<2x512xf32>
    %270 = arith.addf %267, %269 : vector<2x512xf32>
    %cst_193 = arith.constant 0.000000e+00 : f32
    %271 = vector.broadcast %cst_193 : f32 to vector<2x512xf32>
    %272 = arith.maximumf %270, %271 : vector<2x512xf32>
    %273 = arith.truncf %272 : vector<2x512xf32> to vector<2x512xbf16>
    %c0_194 = arith.constant 0 : index
    %c0_195 = arith.constant 0 : index
    %274 = vector.load %arg22[%c0_194, %c0_195] : memref<512x128xbf16, #tpu.memory_space<vmem>>, vector<512x128xbf16>
    %cst_196 = arith.constant dense<0.000000e+00> : vector<2x128xf32>
    %275 = tpu.matmul %273, %274, %cst_196 {dimension_numbers = #tpu.dot_dimension_numbers<[1], [0], [0], [1], [0, 0, 1, 1], [], []>} : vector<2x512xbf16>, vector<512x128xbf16>, vector<2x128xf32> -> vector<2x128xf32>
    %276 = vector.extract_strided_slice %248 {offsets = [3, 0], sizes = [1, 128], strides = [1, 1]} : vector<4x1024xf32> to vector<1x128xf32>
    %277 = vector.broadcast %276 : vector<1x128xf32> to vector<2x128xf32>
    %278 = arith.addf %275, %277 : vector<2x128xf32>
    %279 = tpu.iota {dimensions = array<i32: 1>} : vector<2x128xi32>
    %c3_i32_197 = arith.constant 3 : i32
    %280 = vector.broadcast %c3_i32_197 : i32 to vector<2x128xi32>
    %281 = arith.cmpi slt, %279, %280 : vector<2x128xi32>
    %282 = arith.extui %281 : vector<2x128xi1> to vector<2x128xi32>
    %283 = arith.sitofp %282 : vector<2x128xi32> to vector<2x128xf32>
    %cst_198 = arith.constant 0.000000e+00 : f32
    %284 = vector.broadcast %cst_198 : f32 to vector<2x128xf32>
    %285 = arith.subf %284, %278 : vector<2x128xf32>
    %286 = math.exp %285 : vector<2x128xf32>
    %cst_199 = arith.constant 1.000000e+00 : f32
    %287 = vector.broadcast %cst_199 : f32 to vector<2x128xf32>
    %288 = arith.addf %287, %286 : vector<2x128xf32>
    %cst_200 = arith.constant 1.000000e+00 : f32
    %289 = vector.broadcast %cst_200 : f32 to vector<2x128xf32>
    %290 = arith.divf %289, %288 : vector<2x128xf32>
    %c0_201 = arith.constant 0 : index
    %c0_202 = arith.constant 0 : index
    %291 = vector.load %arg17[%c0_201, %c0_202] : memref<2x128xf32, #tpu.memory_space<vmem>>, vector<2x128xf32>
    tpu.vector_store %arg17[%c0_201, %c0_202], %290 {strides = array<i32>} : memref<2x128xf32, #tpu.memory_space<vmem>>, vector<2x128xf32>,
    %c0_203 = arith.constant 0 : index
    %c0_204 = arith.constant 0 : index
    %292 = vector.load %arg6[%c0_203, %c0_204] : memref<2x128xf32, #tpu.memory_space<vmem>>, vector<2x128xf32>
    %cst_205 = arith.constant 0.000000e+00 : f32
    %293 = vector.broadcast %cst_205 : f32 to vector<2x128xf32>
    %294 = arith.maximumf %278, %293 : vector<2x128xf32>
    %295 = arith.mulf %278, %292 : vector<2x128xf32>
    %296 = arith.subf %294, %295 : vector<2x128xf32>
    %297 = math.absf %278 : vector<2x128xf32>
    %cst_206 = arith.constant 0.000000e+00 : f32
    %298 = vector.broadcast %cst_206 : f32 to vector<2x128xf32>
    %299 = arith.subf %298, %297 : vector<2x128xf32>
    %300 = math.exp %299 : vector<2x128xf32>
    %cst_207 = arith.constant 1.000000e+00 : f32
    %301 = vector.broadcast %cst_207 : f32 to vector<2x128xf32>
    %302 = arith.addf %301, %300 : vector<2x128xf32>
    %303 = math.log %302 : vector<2x128xf32>
    %304 = arith.addf %296, %303 : vector<2x128xf32>
    %305 = arith.mulf %304, %283 : vector<2x128xf32>
    %cst_208 = arith.constant dense<0.000000e+00> : vector<2xf32>
    %306 = vector.multi_reduction <add>, %305, %cst_208 [1] : vector<2x128xf32> to vector<2xf32>
    %307 = vector.shape_cast %306 : vector<2xf32> to vector<2x1xf32>
    %cst_209 = arith.constant dense<0.000000e+00> : vector<1xf32>
    %308 = vector.multi_reduction <add>, %307, %cst_209 [0] : vector<2x1xf32> to vector<1xf32>
    %309 = vector.shape_cast %308 : vector<1xf32> to vector<1x1xf32>
    %cst_210 = arith.constant 0.166666672 : f32
    %310 = vector.broadcast %cst_210 : f32 to vector<1x1xf32>
    %311 = arith.mulf %309, %310 : vector<1x1xf32>
    %c0_211 = arith.constant 0 : index
    %c0_212 = arith.constant 0 : index
    %312 = vector.load %arg18[%c0_211, %c0_212] : memref<1x1xf32, #tpu.memory_space<vmem>>, vector<1x1xf32>
    tpu.vector_store %arg18[%c0_211, %c0_212], %311 {strides = array<i32>} : memref<1x1xf32, #tpu.memory_space<vmem>>, vector<1x1xf32>,
    return
  }
}

</mosaic_0001>

<llo_original>
// kernel: forward.1
$region0: #{forward.1}
  #allocation0 [shape = 'u32[]', space=smem, size = 0x4, offset = 0x4, fixed_abs, tag = 'smem constant byte address 0x4 - core index']
  #allocation1 [shape = 'u32[144,128]{1,0:T(1,128)}', space=vmem, size = 0x12000, scoped, tag = 'internal scratch']
  #allocation2 [shape = 'bf16[64,1024]{1,0:T(8,128)(2,1)}', space=vmem, size = 0x20000, scoped, tag = 'scratch operand']
  #allocation3 [shape = 'bf16[1024,1024]{1,0:T(8,128)(2,1)}', space=vmem, size = 0x200000, scoped, tag = 'scratch operand']
  #allocation4 [shape = 'bf16[1024,512]{1,0:T(8,128)(2,1)}', space=vmem, size = 0x100000, scoped, tag = 'scratch operand']
  #allocation5 [shape = 'bf16[512,128]{1,0:T(8,128)(2,1)}', space=vmem, size = 0x20000, scoped, tag = 'scratch operand']
  #allocation6 [shape = 's32[4]{0}', space=sflag, size = 0x10, scoped, tag = 'scratch operand']
  #allocation24 [shape = 's32[]', space=sflag, size = 0x4, offset = 0, fixed_abs, tag = 'sflag constant byte address 0x0 - dummy sync flag']
  #allocation25 [shape = 's32[]', space=sflag, size = 0x4, offset = 0, fixed_abs, tag = 'sflag constant byte address 0x0 - dummy sync flag']
  #allocation26 [shape = 'u32[]', space=smem, size = 0x4, offset = 0x44, fixed_abs, tag = 'smem constant byte address 0x44 - assertion arg 0']
  #allocation27 [shape = 'u32[]', space=smem, size = 0x4, offset = 0x48, fixed_abs, tag = 'smem constant byte address 0x48 - assertion arg 1']
  #allocation28 [shape = 's32[]', space=sflag, size = 0x4, offset = 0, fixed_abs, tag = 'sflag constant byte address 0x0 - dummy sync flag']
  #allocation29 [shape = 's32[]', space=sflag, size = 0x4, offset = 0, fixed_abs, tag = 'sflag constant byte address 0x0 - dummy sync flag']
  #allocation30 [shape = 's32[]', space=sflag, size = 0x4, offset = 0, fixed_abs, tag = 'sflag constant byte address 0x0 - dummy sync flag']
  #allocation31 [shape = 's32[]', space=sflag, size = 0x4, offset = 0, fixed_abs, tag = 'sflag constant byte address 0x0 - dummy sync flag']
  #allocation32 [shape = 's32[]', space=sflag, size = 0x4, offset = 0, fixed_abs, tag = 'sflag constant byte address 0x0 - dummy sync flag']
  #allocation33 [shape = 's32[]', space=sflag, size = 0x4, offset = 0, fixed_abs, tag = 'sflag constant byte address 0x0 - dummy sync flag']
  %s0 = inlined_call_operand.vmem [shape: s32[32,1], index: 0, kind: input, shape index: {}]
  %s1 = inlined_call_operand.vmem [shape: s32[32,1], index: 1, kind: input, shape index: {}]
  %s2 = inlined_call_operand.vmem [shape: s32[1,32], index: 2, kind: input, shape index: {}]
  %s3 = inlined_call_operand.hbm [shape: s32[1,16], index: 3, kind: input, shape index: {}]
  %s4 = inlined_call_operand.hbm [shape: f32[16,11], index: 4, kind: input, shape index: {}]
  %s5 = inlined_call_operand.vmem [shape: f32[32,4], index: 5, kind: input, shape index: {}]
  %s6 = inlined_call_operand.vmem [shape: f32[2,128], index: 6, kind: input, shape index: {}]
  %s7 = inlined_call_operand.hbm [shape: f32[11,64], index: 7, kind: input, shape index: {}]
  %s8 = inlined_call_operand.hbm [shape: f32[1,64], index: 8, kind: input, shape index: {}]
  %s9 = inlined_call_operand.hbm [shape: f32[4,6,64,64], index: 9, kind: input, shape index: {}]
  %s10 = inlined_call_operand.hbm [shape: f32[4,512], index: 10, kind: input, shape index: {}]
  %s11 = inlined_call_operand.hbm [shape: f32[4,4,64], index: 11, kind: input, shape index: {}]
  %s12 = inlined_call_operand.hbm [shape: bf16[64,1024], index: 12, kind: input, shape index: {}]
  %s13 = inlined_call_operand.hbm [shape: bf16[1024,1024], index: 13, kind: input, shape index: {}]
  %s14 = inlined_call_operand.hbm [shape: bf16[1024,512], index: 14, kind: input, shape index: {}]
  %s15 = inlined_call_operand.hbm [shape: bf16[512,128], index: 15, kind: input, shape index: {}]
  %s16 = inlined_call_operand.hbm [shape: f32[4,1024], index: 16, kind: input, shape index: {}]
  %s17 = inlined_call_operand.hbm [shape: f32[2,128], index: 17, kind: output, shape index: {0}]
  %s18 = inlined_call_operand.hbm [shape: f32[1,1], index: 18, kind: output, shape index: {1}]
  %19 = xla_tuple %s17, %s18
  %s20 = sld [smem:[#allocation0]]
  $region118: #{forward.1} parent=0
    _
  %s22 = ssub.s32 1, %s20
  %s23 = scalar_select 0, %s22, %s20
  $region1: #{forward.1} parent=0
    #allocation7 [shape = 'u8[512]{0}', space=vmem, size = 0x400, scoped, tag = 'input window, operand 3, single buffered']
    #allocation8 [shape = 's32[1]{0}', space=sflag, size = 0x4, scoped, tag = 'scoped memory for forward.1']
    #allocation9 [shape = 's32[1]{0}', space=sflag, size = 0x4, scoped, tag = 'scoped memory for forward.1']
    #allocation10 [shape = 'u8[8192]{0}', space=vmem, size = 0x2000, scoped, tag = 'input window, operand 4, single buffered']
    #allocation11 [shape = 's32[1]{0}', space=sflag, size = 0x4, scoped, tag = 'scoped memory for forward.1']
    #allocation12 [shape = 'u8[8192]{0}', space=vmem, size = 0x2000, scoped, tag = 'input window, operand 7, single buffered']
    #allocation13 [shape = 'u8[512]{0}', space=vmem, size = 0x400, scoped, tag = 'input window, operand 8, single buffered']
    #allocation14 [shape = 's32[1]{0}', space=sflag, size = 0x4, scoped, tag = 'scoped memory for forward.1']
    #allocation15 [shape = 'u8[786432]{0}', space=vmem, size = 0xc0000, scoped, tag = 'input window, operand 9, single buffered']
    #allocation16 [shape = 'u8[8192]{0}', space=vmem, size = 0x2000, scoped, tag = 'input window, operand 10, single buffered']
    #allocation17 [shape = 's32[1]{0}', space=sflag, size = 0x4, scoped, tag = 'scoped memory for forward.1']
    #allocation18 [shape = 'u8[8192]{0}', space=vmem, size = 0x2000, scoped, tag = 'input window, operand 11, single buffered']
    #allocation19 [shape = 'u8[16384]{0}', space=vmem, size = 0x4000, scoped, tag = 'input window, operand 16, single buffered']
    #allocation20 [shape = 's32[1]{0}', space=sflag, size = 0x4, scoped, tag = 'scoped memory for forward.1']
    #allocation21 [shape = 'u8[1024]{0}', space=vmem, size = 0x400, scoped, tag = 'output window, operand 0, single buffered']
    #allocation22 [shape = 'u8[512]{0}', space=vmem, size = 0x400, scoped, tag = 'output window, operand 1, single buffered']
    #allocation23 [shape = 's32[1]{0}', space=sflag, size = 0x4, scoped, tag = 'scoped memory for forward.1']
    %24 = vsyncpa [#allocation8], 0
    %25 = vsyncpa [#allocation11], 0
    %26 = vsyncpa [#allocation14], 0
    %27 = vsyncpa [#allocation17], 0
    %28 = vsyncpa [#allocation20], 0
    %29 = vsyncpa [#allocation9], 0
    %30 = vsyncpa [#allocation23], 0
    // Predicated region
    $region2: #{forward.1} parent=1 // pred_check
      _
    $region3: #{forward.1} parent=1 // pred_check_branch
      %32 = sbr.rel (0) target = $region5
    $region4: #{forward.1} parent=1 // pred_region
      _
    $region5: #{forward.1} parent=1 // pred_fallthru
      _
    // Predicated region
    $region6: #{forward.1} parent=1 // pred_check
      _
    $region7: #{forward.1} parent=1 // pred_check_branch
      %34 = sbr.rel (0) target = $region9
    $region8: #{forward.1} parent=1 // pred_region
      _
    $region9: #{forward.1} parent=1 // pred_fallthru
      _
    // Predicated region
    $region10: #{forward.1} parent=1 // pred_check
      _
    $region11: #{forward.1} parent=1 // pred_check_branch
      %36 = sbr.rel (0) target = $region13
    $region12: #{forward.1} parent=1 // pred_region
      _
    $region13: #{forward.1} parent=1 // pred_fallthru
      _
    // Predicated region
    $region14: #{forward.1} parent=1 // pred_check
      _
    $region15: #{forward.1} parent=1 // pred_check_branch
      %38 = sbr.rel (0) target = $region17
    $region16: #{forward.1} parent=1 // pred_region
      %s40 = ssub.s32 16, 16
      %41 = vsyncadd [#allocation8], %s40
      %s43 = sshll.u32 [#allocation7], 4
      %s44 = int_to_ptr.vmem [resolvable:$true] %s43
      %46 = dma.hbm_to_vmem [thread:$0]  %s3, 16, %s44, [#allocation8]
    $region17: #{forward.1} parent=1 // pred_fallthru
      _
    // Predicated region
    $region18: #{forward.1} parent=1 // pred_check
      _
    $region19: #{forward.1} parent=1 // pred_check_branch
      %48 = sbr.rel (0) target = $region21
    $region20: #{forward.1} parent=1 // pred_region
      %s50 = ssub.s32 256, 256
      %51 = vsyncadd [#allocation11], %s50
      %s52 = sshll.u32 [#allocation10], 4
      %s53 = int_to_ptr.vmem [resolvable:$true] %s52
      %58 = dma.hbm_to_vmem [thread:$0]  %s4, 256, %s53, [#allocation11], 128, 128, 8
    $region21: #{forward.1} parent=1 // pred_fallthru
      _
    // Predicated region
    $region22: #{forward.1} parent=1 // pred_check
      _
    $region23: #{forward.1} parent=1 // pred_check_branch
      %60 = sbr.rel (0) target = $region25
    $region24: #{forward.1} parent=1 // pred_region
      _
    $region25: #{forward.1} parent=1 // pred_fallthru
      _
    // Predicated region
    $region26: #{forward.1} parent=1 // pred_check
      _
    $region27: #{forward.1} parent=1 // pred_check_branch
      %62 = sbr.rel (0) target = $region29
    $region28: #{forward.1} parent=1 // pred_region
      _
    $region29: #{forward.1} parent=1 // pred_fallthru
      _
    // Predicated region
    $region30: #{forward.1} parent=1 // pred_check
      _
    $region31: #{forward.1} parent=1 // pred_check_branch
      %64 = sbr.rel (0) target = $region33
    $region32: #{forward.1} parent=1 // pred_region
      %s66 = ssub.s32 256, 256
      %67 = vsyncadd [#allocation11], %s66
      %s68 = sshll.u32 [#allocation12], 4
      %s69 = int_to_ptr.vmem [resolvable:$true] %s68
      %74 = dma.hbm_to_vmem [thread:$0]  %s7, 256, %s69, [#allocation11], 128, 128, 8
    $region33: #{forward.1} parent=1 // pred_fallthru
      _
    // Predicated region
    $region34: #{forward.1} parent=1 // pred_check
      _
    $region35: #{forward.1} parent=1 // pred_check_branch
      %76 = sbr.rel (0) target = $region37
    $region36: #{forward.1} parent=1 // pred_region
      %s78 = ssub.s32 16, 16
      %79 = vsyncadd [#allocation14], %s78
      %s81 = sshll.u32 [#allocation13], 4
      %s82 = int_to_ptr.vmem [resolvable:$true] %s81
      %84 = dma.hbm_to_vmem [thread:$0]  %s8, 16, %s82, [#allocation14]
    $region37: #{forward.1} parent=1 // pred_fallthru
      _
    // Predicated region
    $region38: #{forward.1} parent=1 // pred_check
      _
    $region39: #{forward.1} parent=1 // pred_check_branch
      %86 = sbr.rel (0) target = $region41
    $region40: #{forward.1} parent=1 // pred_region
      %s88 = ssub.s32 24576, 24576
      %89 = vsyncadd [#allocation14], %s88
      %s90 = sshll.u32 [#allocation15], 4
      %s91 = int_to_ptr.vmem [resolvable:$true] %s90
      %96 = dma.hbm_to_vmem [thread:$0]  %s9, 24576, %s91, [#allocation14], 128, 128, 8
    $region41: #{forward.1} parent=1 // pred_fallthru
      _
    // Predicated region
    $region42: #{forward.1} parent=1 // pred_check
      _
    $region43: #{forward.1} parent=1 // pred_check_branch
      %98 = sbr.rel (0) target = $region45
    $region44: #{forward.1} parent=1 // pred_region
      %s100 = ssub.s32 256, 256
      %101 = vsyncadd [#allocation17], %s100
      %s103 = sshll.u32 [#allocation16], 4
      %s104 = int_to_ptr.vmem [resolvable:$true] %s103
      %106 = dma.hbm_to_vmem [thread:$0]  %s10, 256, %s104, [#allocation17]
    $region45: #{forward.1} parent=1 // pred_fallthru
      _
    // Predicated region
    $region46: #{forward.1} parent=1 // pred_check
      _
    $region47: #{forward.1} parent=1 // pred_check_branch
      %108 = sbr.rel (0) target = $region49
    $region48: #{forward.1} parent=1 // pred_region
      %s110 = ssub.s32 256, 256
      %111 = vsyncadd [#allocation17], %s110
      %s112 = sshll.u32 [#allocation18], 4
      %s113 = int_to_ptr.vmem [resolvable:$true] %s112
      %118 = dma.hbm_to_vmem [thread:$0]  %s11, 256, %s113, [#allocation17], 64, 64, 4
    $region49: #{forward.1} parent=1 // pred_fallthru
      _
    // Predicated region
    $region50: #{forward.1} parent=1 // pred_check
      _
    $region51: #{forward.1} parent=1 // pred_check_branch
      %120 = sbr.rel (0) target = $region53
    $region52: #{forward.1} parent=1 // pred_region
      %s122 = ssub.s32 512, 512
      %123 = vsyncadd [#allocation20], %s122
      %s125 = sshll.u32 [#allocation19], 4
      %s126 = int_to_ptr.vmem [resolvable:$true] %s125
      %128 = dma.hbm_to_vmem [thread:$0]  %s16, 512, %s126, [#allocation20]
    $region53: #{forward.1} parent=1 // pred_fallthru
      _
    // Predicated region
    $region54: #{forward.1} parent=1 // pred_check
      _
    $region55: #{forward.1} parent=1 // pred_check_branch
      %130 = sbr.rel (0) target = $region57
    $region56: #{forward.1} parent=1 // pred_region
      %131 = dma.done [#allocation8], 16
    $region57: #{forward.1} parent=1 // pred_fallthru
      _
    // Predicated region
    $region58: #{forward.1} parent=1 // pred_check
      _
    $region59: #{forward.1} parent=1 // pred_check_branch
      %133 = sbr.rel (0) target = $region61
    $region60: #{forward.1} parent=1 // pred_region
      %134 = dma.done [#allocation11], 256
    $region61: #{forward.1} parent=1 // pred_fallthru
      _
    // Predicated region
    $region62: #{forward.1} parent=1 // pred_check
      _
    $region63: #{forward.1} parent=1 // pred_check_branch
      %136 = sbr.rel (0) target = $region65
    $region64: #{forward.1} parent=1 // pred_region
      %137 = dma.done [#allocation11], 256
    $region65: #{forward.1} parent=1 // pred_fallthru
      _
    // Predicated region
    $region66: #{forward.1} parent=1 // pred_check
      _
    $region67: #{forward.1} parent=1 // pred_check_branch
      %139 = sbr.rel (0) target = $region69
    $region68: #{forward.1} parent=1 // pred_region
      %140 = dma.done [#allocation14], 16
    $region69: #{forward.1} parent=1 // pred_fallthru
      _
    // Predicated region
    $region70: #{forward.1} parent=1 // pred_check
      _
    $region71: #{forward.1} parent=1 // pred_check_branch
      %142 = sbr.rel (0) target = $region73
    $region72: #{forward.1} parent=1 // pred_region
      %143 = dma.done [#allocation14], 24576
    $region73: #{forward.1} parent=1 // pred_fallthru
      _
    // Predicated region
    $region74: #{forward.1} parent=1 // pred_check
      _
    $region75: #{forward.1} parent=1 // pred_check_branch
      %145 = sbr.rel (0) target = $region77
    $region76: #{forward.1} parent=1 // pred_region
      %146 = dma.done [#allocation17], 256
    $region77: #{forward.1} parent=1 // pred_fallthru
      _
    // Predicated region
    $region78: #{forward.1} parent=1 // pred_check
      _
    $region79: #{forward.1} parent=1 // pred_check_branch
      %148 = sbr.rel (0) target = $region81
    $region80: #{forward.1} parent=1 // pred_region
      %149 = dma.done [#allocation17], 256
    $region81: #{forward.1} parent=1 // pred_fallthru
      _
    // Predicated region
    $region82: #{forward.1} parent=1 // pred_check
      _
    $region83: #{forward.1} parent=1 // pred_check_branch
      %151 = sbr.rel (0) target = $region85
    $region84: #{forward.1} parent=1 // pred_region
      %152 = dma.done [#allocation20], 512
    $region85: #{forward.1} parent=1 // pred_fallthru
      _
    // Predicated region
    $region86: #{forward.1} parent=1 // pred_check
      _
    $region87: #{forward.1} parent=1 // pred_check_branch
      %155 = sbr.rel target = $region89
    $region88: #{forward.1} parent=1 // pred_region
      %156 = sst [smem:[#allocation26]] [#allocation25]
      %157 = sst [smem:[#allocation27]] [#allocation24]
    $region89: #{forward.1} parent=1 // pred_fallthru
      _
    %159 = shalt.err (0)
    %s161 = sshll.u32 [#allocation2], 4
    %s162 = int_to_ptr.vmem [resolvable:$true] %s161
    %164 = dma.hbm_to_vmem [thread:$0]  %s12, 4096, %s162, [#allocation6]
    %s165 = scalar_lea.sflag [#allocation6], 1
    // Predicated region
    $region90: #{forward.1} parent=1 // pred_check
      _
    $region91: #{forward.1} parent=1 // pred_check_branch
      %167 = sbr.rel target = $region93
    $region92: #{forward.1} parent=1 // pred_region
      %168 = sst [smem:[#allocation26]] [#allocation29]
      %169 = sst [smem:[#allocation27]] [#allocation28]
    $region93: #{forward.1} parent=1 // pred_fallthru
      _
    %171 = shalt.err (0)
    %s173 = sshll.u32 [#allocation3], 4
    %s174 = int_to_ptr.vmem [resolvable:$true] %s173
    %176 = dma.hbm_to_vmem [thread:$0]  %s13, 65536, %s174, %s165
    %s177 = scalar_lea.sflag [#allocation6], 2
    // Predicated region
    $region94: #{forward.1} parent=1 // pred_check
      _
    $region95: #{forward.1} parent=1 // pred_check_branch
      %179 = sbr.rel target = $region97
    $region96: #{forward.1} parent=1 // pred_region
      %180 = sst [smem:[#allocation26]] [#allocation31]
      %181 = sst [smem:[#allocation27]] [#allocation30]
    $region97: #{forward.1} parent=1 // pred_fallthru
      _
    %183 = shalt.err (0)
    %s185 = sshll.u32 [#allocation4], 4
    %s186 = int_to_ptr.vmem [resolvable:$true] %s185
    %188 = dma.hbm_to_vmem [thread:$0]  %s14, 32768, %s186, %s177
    %s189 = scalar_lea.sflag [#allocation6], 3
    // Predicated region
    $region98: #{forward.1} parent=1 // pred_check
      _
    $region99: #{forward.1} parent=1 // pred_check_branch
      %191 = sbr.rel target = $region101
    $region100: #{forward.1} parent=1 // pred_region
      %192 = sst [smem:[#allocation26]] [#allocation33]
      %193 = sst [smem:[#allocation27]] [#allocation32]
    $region101: #{forward.1} parent=1 // pred_fallthru
      _
    %195 = shalt.err (0)
    %s197 = sshll.u32 [#allocation5], 4
    %s198 = int_to_ptr.vmem [resolvable:$true] %s197
    %200 = dma.hbm_to_vmem [thread:$0]  %s15, 4096, %s198, %s189
    %v201 = vlaneseq
    %v202 = vand.u32 %v201, 127
    %v203 = vld [vmem:[%s0] sm:$0xff]
    %v204 = vld [vmem:[%s0 + $0x8] sm:$0xff]
    %v205 = vld [vmem:[%s0 + $0x10] sm:$0xff]
    %v206 = vld [vmem:[%s0 + $0x18] sm:$0xff]
    %207 = vset.pattern.permute.xlu0 0
    %208 = vperm.xlu0 %207, %v203
    %v209 = vpop.permute.xlu0 %208
    %210 = vset.pattern.permute.xlu0 0
    %211 = vperm.xlu0 %210, %v204
    %v212 = vpop.permute.xlu0 %211
    %213 = vset.pattern.permute.xlu0 0
    %214 = vperm.xlu0 %213, %v205
    %v215 = vpop.permute.xlu0 %214
    %216 = vset.pattern.permute.xlu0 0
    %217 = vperm.xlu0 %216, %v206
    %v218 = vpop.permute.xlu0 %217
    %vm219 = vcmp.eq.s32.totalorder %v202, %v209
    %vm220 = vcmp.eq.s32.totalorder %v202, %v212
    %vm221 = vcmp.eq.s32.totalorder %v202, %v215
    %vm222 = vcmp.eq.s32.totalorder %v202, %v218
    %v223 = vsel %vm219, 1, 0
    %v224 = vsel %vm220, 1, 0
    %v225 = vsel %vm221, 1, 0
    %v226 = vsel %vm222, 1, 0
    %v227 = vcvt.s32.f32 %v223
    %v228 = vcvt.s32.f32 %v224
    %v229 = vcvt.s32.f32 %v225
    %v230 = vcvt.s32.f32 %v226
    %v231 = vld [vmem:[%s1] sm:$0xff]
    %v232 = vld [vmem:[%s1 + $0x8] sm:$0xff]
    %v233 = vld [vmem:[%s1 + $0x10] sm:$0xff]
    %v234 = vld [vmem:[%s1 + $0x18] sm:$0xff]
    %235 = vset.pattern.permute.xlu0 0
    %236 = vperm.xlu0 %235, %v231
    %v237 = vpop.permute.xlu0 %236
    %238 = vset.pattern.permute.xlu0 0
    %239 = vperm.xlu0 %238, %v232
    %v240 = vpop.permute.xlu0 %239
    %241 = vset.pattern.permute.xlu0 0
    %242 = vperm.xlu0 %241, %v233
    %v243 = vpop.permute.xlu0 %242
    %244 = vset.pattern.permute.xlu0 0
    %245 = vperm.xlu0 %244, %v234
    %v246 = vpop.permute.xlu0 %245
    %vm247 = vcmp.eq.s32.totalorder %v202, %v237
    %vm248 = vcmp.eq.s32.totalorder %v202, %v240
    %vm249 = vcmp.eq.s32.totalorder %v202, %v243
    %vm250 = vcmp.eq.s32.totalorder %v202, %v246
    %v251 = vsel %vm247, 1, 0
    %v252 = vsel %vm248, 1, 0
    %v253 = vsel %vm249, 1, 0
    %v254 = vsel %vm250, 1, 0
    %v255 = vcvt.s32.f32 %v251
    %v256 = vcvt.s32.f32 %v252
    %v257 = vcvt.s32.f32 %v253
    %v258 = vcvt.s32.f32 %v254
    %v259 = vlaneseq
    %v260 = vshrl.u32 %v259, 7
    %v261 = vadd.s32 %v260, 8
    %v262 = vld [vmem:[%s2] sm:$0x1]
    %v263 = vlaneseq
    %v264 = vshrl.u32 %v263, 7
    %v265 = vsub.s32 0, %v264
    %v266 = vrot.slane %v262, %v265
    %vm267 = vcmp.eq.s32.totalorder %v260, %v266
    %vm268 = vcmp.eq.s32.totalorder %v261, %v266
    %v269 = vsel %vm267, 1, 0
    %v270 = vsel %vm268, 1, 0
    %v271 = vcvt.s32.f32 %v269
    %v272 = vcvt.s32.f32 %v270
    %v273 = vld [vmem:[%s5] sm:$0xff]
    %v274 = vld [vmem:[%s5 + $0x8] sm:$0xff]
    %v275 = vld [vmem:[%s5 + $0x10] sm:$0xff]
    %v276 = vld [vmem:[%s5 + $0x18] sm:$0xff]
    %v277 = vld [vmem:[#allocation16] sm:$0xff]
    %v278 = vld [vmem:[#allocation16 + $0x8] sm:$0xff]
    %v281 = vcombine.high %v277, %v277
    %v282 = vcombine.high %v278, %v278
    %vm283 = vcmask 31744
    %v285 = vsel %vm283, %v273, 0
    %v288 = vsel %vm283, %v274, 0
    %v291 = vsel %vm283, %v275, 0
    %v294 = vsel %vm283, %v276, 0
    %vm296 = vcmask 1043456
    %v297 = vsel %vm296, %v277, 0
    %v299 = vsel %vm296, %v281, 0
    %v301 = vsel %vm296, %v278, 0
    %v303 = vsel %vm296, %v282, 0
    %305 = vmatprep.subr.mxu0 0.0
    %306 = vmatpush1.msra.mxu0 0.0
    %307 = vmatprep.subr.mxu0 0.0
    %308 = vmatpush1.msra.mxu0 0.0
    %309 = vmatprep.subr.mxu0 0.0
    %310 = vmatpush1.msra.mxu0 0.0
    %311 = vmatprep.subr.mxu0 0.0
    %312 = vmatpush1.msra.mxu0 0.0
    %313 = vmatprep.subr.mxu0 0.0
    %314 = vmatpush1.msra.mxu0 0.0
    %315 = vmatprep.subr.mxu0 0.0
    %316 = vmatpush1.msra.mxu0 0.0
    %317 = vmatprep.subr.mxu0 0.0
    %318 = vmatpush1.msra.mxu0 0.0
    %319 = vmatprep.subr.mxu0 0.0
    %320 = vmatpush1.msra.mxu0 0.0
    %321 = vmatprep.subr.mxu0 0.0
    %322 = vmatpush1.msra.mxu0 0.0
    %323 = vmatprep.subr.mxu0 0.0
    %324 = vmatpush1.msra.mxu0 0.0
    %325 = vmatprep.subr.mxu0 0.0
    %326 = vmatpush1.msra.mxu0 0.0
    %327 = vmatprep.subr.mxu0 0.0
    %328 = vmatpush1.msra.mxu0 0.0
    %329 = vmatprep.subr.mxu0 0.0
    %330 = vmatpush1.msra.mxu0 0.0
    %331 = vmatprep.subr.mxu0 0.0
    %332 = vmatpush1.msra.mxu0 0.0
    %333 = vmatprep.subr.mxu0 0.0
    %334 = vmatpush1.msra.mxu0 0.0
    %335 = vmatprep.subr.mxu0 %v299
    %336 = vmatpush1.msra.mxu0 %v297
    %337 = vmatprep.subr.mxu0 0.0
    %338 = vmatpush2.msra.mxu0 0.0
    %339 = vmatprep.subr.mxu0 0.0
    %340 = vmatpush2.msra.mxu0 0.0
    %341 = vmatprep.subr.mxu0 0.0
    %342 = vmatpush2.msra.mxu0 0.0
    %343 = vmatprep.subr.mxu0 0.0
    %344 = vmatpush2.msra.mxu0 0.0
    %345 = vmatprep.subr.mxu0 0.0
    %346 = vmatpush2.msra.mxu0 0.0
    %347 = vmatprep.subr.mxu0 0.0
    %348 = vmatpush2.msra.mxu0 0.0
    %349 = vmatprep.subr.mxu0 0.0
    %350 = vmatpush2.msra.mxu0 0.0
    %351 = vmatprep.subr.mxu0 0.0
    %352 = vmatpush2.msra.mxu0 0.0
    %353 = vmatprep.subr.mxu0 0.0
    %354 = vmatpush2.msra.mxu0 0.0
    %355 = vmatprep.subr.mxu0 0.0
    %356 = vmatpush2.msra.mxu0 0.0
    %357 = vmatprep.subr.mxu0 0.0
    %358 = vmatpush2.msra.mxu0 0.0
    %359 = vmatprep.subr.mxu0 0.0
    %360 = vmatpush2.msra.mxu0 0.0
    %361 = vmatprep.subr.mxu0 0.0
    %362 = vmatpush2.msra.mxu0 0.0
    %363 = vmatprep.subr.mxu0 0.0
    %364 = vmatpush2.msra.mxu0 0.0
    %365 = vmatprep.subr.mxu0 0.0
    %366 = vmatpush2.msra.mxu0 0.0
    %367 = vmatprep.subr.mxu0 0.0
    %368 = vmatpush2.msra.mxu0 0.0
    %369 = vmatprep.mubr.f32.mxu0 0.0
    %370 = vmatmul.mubr.f32.gmra.mxu0 %v285
    %v371 = vpop.f32.mrf.mxu0
    %v372 = vadd.f32 0.0, %v371
    %v373 = vpop.f32.mrf.mxu0
    %v374 = vadd.f32 0.0, %v373
    %375 = vmatprep.mubr.f32.mxu0 0.0
    %376 = vmatmul.mubr.f32.gmra.mxu0 %v288
    %v377 = vpop.f32.mrf.mxu0
    %v378 = vadd.f32 0.0, %v377
    %v379 = vpop.f32.mrf.mxu0
    %v380 = vadd.f32 0.0, %v379
    %381 = vmatprep.mubr.f32.mxu0 0.0
    %382 = vmatmul.mubr.f32.gmra.mxu0 %v291
    %v383 = vpop.f32.mrf.mxu0
    %v384 = vadd.f32 0.0, %v383
    %v385 = vpop.f32.mrf.mxu0
    %v386 = vadd.f32 0.0, %v385
    %387 = vmatprep.mubr.f32.mxu0 0.0
    %388 = vmatmul.mubr.f32.gmra.mxu0 %v294
    %v389 = vpop.f32.mrf.mxu0
    %v390 = vadd.f32 0.0, %v389
    %v391 = vpop.f32.mrf.mxu0
    %v392 = vadd.f32 0.0, %v391
    %393 = vdwg.mxu0
    %394 = vmatprep.subr.mxu0 0.0
    %395 = vmatpush1.msra.mxu0 0.0
    %396 = vmatprep.subr.mxu0 0.0
    %397 = vmatpush1.msra.mxu0 0.0
    %398 = vmatprep.subr.mxu0 0.0
    %399 = vmatpush1.msra.mxu0 0.0
    %400 = vmatprep.subr.mxu0 0.0
    %401 = vmatpush1.msra.mxu0 0.0
    %402 = vmatprep.subr.mxu0 0.0
    %403 = vmatpush1.msra.mxu0 0.0
    %404 = vmatprep.subr.mxu0 0.0
    %405 = vmatpush1.msra.mxu0 0.0
    %406 = vmatprep.subr.mxu0 0.0
    %407 = vmatpush1.msra.mxu0 0.0
    %408 = vmatprep.subr.mxu0 0.0
    %409 = vmatpush1.msra.mxu0 0.0
    %410 = vmatprep.subr.mxu0 0.0
    %411 = vmatpush1.msra.mxu0 0.0
    %412 = vmatprep.subr.mxu0 0.0
    %413 = vmatpush1.msra.mxu0 0.0
    %414 = vmatprep.subr.mxu0 0.0
    %415 = vmatpush1.msra.mxu0 0.0
    %416 = vmatprep.subr.mxu0 0.0
    %417 = vmatpush1.msra.mxu0 0.0
    %418 = vmatprep.subr.mxu0 0.0
    %419 = vmatpush1.msra.mxu0 0.0
    %420 = vmatprep.subr.mxu0 0.0
    %421 = vmatpush1.msra.mxu0 0.0
    %422 = vmatprep.subr.mxu0 0.0
    %423 = vmatpush1.msra.mxu0 0.0
    %424 = vmatprep.subr.mxu0 %v303
    %425 = vmatpush1.msra.mxu0 %v301
    %426 = vmatprep.subr.mxu0 0.0
    %427 = vmatpush2.msra.mxu0 0.0
    %428 = vmatprep.subr.mxu0 0.0
    %429 = vmatpush2.msra.mxu0 0.0
    %430 = vmatprep.subr.mxu0 0.0
    %431 = vmatpush2.msra.mxu0 0.0
    %432 = vmatprep.subr.mxu0 0.0
    %433 = vmatpush2.msra.mxu0 0.0
    %434 = vmatprep.subr.mxu0 0.0
    %435 = vmatpush2.msra.mxu0 0.0
    %436 = vmatprep.subr.mxu0 0.0
    %437 = vmatpush2.msra.mxu0 0.0
    %438 = vmatprep.subr.mxu0 0.0
    %439 = vmatpush2.msra.mxu0 0.0
    %440 = vmatprep.subr.mxu0 0.0
    %441 = vmatpush2.msra.mxu0 0.0
    %442 = vmatprep.subr.mxu0 0.0
    %443 = vmatpush2.msra.mxu0 0.0
    %444 = vmatprep.subr.mxu0 0.0
    %445 = vmatpush2.msra.mxu0 0.0
    %446 = vmatprep.subr.mxu0 0.0
    %447 = vmatpush2.msra.mxu0 0.0
    %448 = vmatprep.subr.mxu0 0.0
    %449 = vmatpush2.msra.mxu0 0.0
    %450 = vmatprep.subr.mxu0 0.0
    %451 = vmatpush2.msra.mxu0 0.0
    %452 = vmatprep.subr.mxu0 0.0
    %453 = vmatpush2.msra.mxu0 0.0
    %454 = vmatprep.subr.mxu0 0.0
    %455 = vmatpush2.msra.mxu0 0.0
    %456 = vmatprep.subr.mxu0 0.0
    %457 = vmatpush2.msra.mxu0 0.0
    %458 = vmatprep.mubr.f32.mxu0 0.0
    %459 = vmatmul.mubr.f32.gmra.mxu0 %v285
    %v460 = vpop.f32.mrf.mxu0
    %v461 = vadd.f32 0.0, %v460
    %v462 = vpop.f32.mrf.mxu0
    %v463 = vadd.f32 0.0, %v462
    %464 = vmatprep.mubr.f32.mxu0 0.0
    %465 = vmatmul.mubr.f32.gmra.mxu0 %v288
    %v466 = vpop.f32.mrf.mxu0
    %v467 = vadd.f32 0.0, %v466
    %v468 = vpop.f32.mrf.mxu0
    %v469 = vadd.f32 0.0, %v468
    %470 = vmatprep.mubr.f32.mxu0 0.0
    %471 = vmatmul.mubr.f32.gmra.mxu0 %v291
    %v472 = vpop.f32.mrf.mxu0
    %v473 = vadd.f32 0.0, %v472
    %v474 = vpop.f32.mrf.mxu0
    %v475 = vadd.f32 0.0, %v474
    %476 = vmatprep.mubr.f32.mxu0 0.0
    %477 = vmatmul.mubr.f32.gmra.mxu0 %v294
    %v478 = vpop.f32.mrf.mxu0
    %v479 = vadd.f32 0.0, %v478
    %v480 = vpop.f32.mrf.mxu0
    %v481 = vadd.f32 0.0, %v480
    %482 = vdwg.mxu0
    %v483 = vld [vmem:[#allocation10] sm:$0xff]
    %v484 = vld [vmem:[#allocation10 + $0x8] sm:$0xff]
    %v485 = vld [vmem:[#allocation12] sm:$0xff]
    %v486 = vld [vmem:[#allocation12 + $0x8] sm:$0x7]
    %v487 = vld [vmem:[#allocation13] sm:$0x1]
    %v489 = vlaneseq
    %v490 = vshrl.u32 %v489, 7
    %v491 = vsub.s32 0, %v490
    %v492 = vrot.slane %v487, %v491
    %vm494 = vcmask 89088
    %v496 = vsel %vm494, %v483, 0
    %v499 = vsel %vm494, %v484, 0
    %vm501 = vcmask 1042432
    %v503 = vsel %vm501, %v486, 0
    %505 = vmatprep.subr.mxu0 0.0
    %506 = vmatpush1.msra.mxu0 0.0
    %507 = vmatprep.subr.mxu0 0.0
    %508 = vmatpush1.msra.mxu0 0.0
    %509 = vmatprep.subr.mxu0 0.0
    %510 = vmatpush1.msra.mxu0 0.0
    %511 = vmatprep.subr.mxu0 0.0
    %512 = vmatpush1.msra.mxu0 0.0
    %513 = vmatprep.subr.mxu0 0.0
    %514 = vmatpush1.msra.mxu0 0.0
    %515 = vmatprep.subr.mxu0 0.0
    %516 = vmatpush1.msra.mxu0 0.0
    %517 = vmatprep.subr.mxu0 0.0
    %518 = vmatpush1.msra.mxu0 0.0
    %519 = vmatprep.subr.mxu0 0.0
    %520 = vmatpush1.msra.mxu0 0.0
    %521 = vmatprep.subr.mxu0 0.0
    %522 = vmatpush1.msra.mxu0 0.0
    %523 = vmatprep.subr.mxu0 0.0
    %524 = vmatpush1.msra.mxu0 0.0
    %525 = vmatprep.subr.mxu0 0.0
    %526 = vmatpush1.msra.mxu0 0.0
    %527 = vmatprep.subr.mxu0 0.0
    %528 = vmatpush1.msra.mxu0 0.0
    %529 = vmatprep.subr.mxu0 0.0
    %530 = vmatpush1.msra.mxu0 0.0
    %531 = vmatprep.subr.mxu0 0.0
    %532 = vmatpush1.msra.mxu0 0.0
    %533 = vmatprep.subr.mxu0 0.0
    %534 = vmatpush1.msra.mxu0 %v503
    %535 = vmatprep.subr.mxu0 0.0
    %536 = vmatpush1.msra.mxu0 %v485
    %537 = vmatprep.subr.mxu0 0.0
    %538 = vmatpush2.msra.mxu0 0.0
    %539 = vmatprep.subr.mxu0 0.0
    %540 = vmatpush2.msra.mxu0 0.0
    %541 = vmatprep.subr.mxu0 0.0
    %542 = vmatpush2.msra.mxu0 0.0
    %543 = vmatprep.subr.mxu0 0.0
    %544 = vmatpush2.msra.mxu0 0.0
    %545 = vmatprep.subr.mxu0 0.0
    %546 = vmatpush2.msra.mxu0 0.0
    %547 = vmatprep.subr.mxu0 0.0
    %548 = vmatpush2.msra.mxu0 0.0
    %549 = vmatprep.subr.mxu0 0.0
    %550 = vmatpush2.msra.mxu0 0.0
    %551 = vmatprep.subr.mxu0 0.0
    %552 = vmatpush2.msra.mxu0 0.0
    %553 = vmatprep.subr.mxu0 0.0
    %554 = vmatpush2.msra.mxu0 0.0
    %555 = vmatprep.subr.mxu0 0.0
    %556 = vmatpush2.msra.mxu0 0.0
    %557 = vmatprep.subr.mxu0 0.0
    %558 = vmatpush2.msra.mxu0 0.0
    %559 = vmatprep.subr.mxu0 0.0
    %560 = vmatpush2.msra.mxu0 0.0
    %561 = vmatprep.subr.mxu0 0.0
    %562 = vmatpush2.msra.mxu0 0.0
    %563 = vmatprep.subr.mxu0 0.0
    %564 = vmatpush2.msra.mxu0 0.0
    %565 = vmatprep.subr.mxu0 0.0
    %566 = vmatpush2.msra.mxu0 0.0
    %567 = vmatprep.subr.mxu0 0.0
    %568 = vmatpush2.msra.mxu0 0.0
    %569 = vmatprep.mubr.f32.mxu0 0.0
    %570 = vmatmul.mubr.f32.gmra.mxu0 %v496
    %v571 = vpop.f32.mrf.mxu0
    %v572 = vadd.f32 %v492, %v571
    %v573 = vpop.f32.mrf.mxu0
    %574 = vmatprep.mubr.f32.mxu0 0.0
    %575 = vmatmul.mubr.f32.gmra.mxu0 %v499
    %v576 = vpop.f32.mrf.mxu0
    %v577 = vadd.f32 %v492, %v576
    %v578 = vpop.f32.mrf.mxu0
    %579 = vdwg.mxu0
    %v580 = vld [vmem:[#allocation15] sm:$0xff]
    %v581 = vld [vmem:[#allocation15 + $0x8] sm:$0xff]
    %v582 = vld [vmem:[#allocation15 + $0x10] sm:$0xff]
    %v583 = vld [vmem:[#allocation15 + $0x18] sm:$0xff]
    %v584 = vld [vmem:[#allocation15 + $0x20] sm:$0xff]
    %v585 = vld [vmem:[#allocation15 + $0x28] sm:$0xff]
    %v586 = vld [vmem:[#allocation15 + $0x30] sm:$0xff]
    %v587 = vld [vmem:[#allocation15 + $0x38] sm:$0xff]
    %s588 = scalar_lea.vmem [#allocation15], 64
    %v589 = vld [vmem:[%s588] sm:$0xff]
    %v590 = vld [vmem:[%s588 + $0x8] sm:$0xff]
    %v591 = vld [vmem:[%s588 + $0x10] sm:$0xff]
    %v592 = vld [vmem:[%s588 + $0x18] sm:$0xff]
    %v593 = vld [vmem:[%s588 + $0x20] sm:$0xff]
    %v594 = vld [vmem:[%s588 + $0x28] sm:$0xff]
    %v595 = vld [vmem:[%s588 + $0x30] sm:$0xff]
    %v596 = vld [vmem:[%s588 + $0x38] sm:$0xff]
    %s597 = scalar_lea.vmem [#allocation15], 128
    %v598 = vld [vmem:[%s597] sm:$0xff]
    %v599 = vld [vmem:[%s597 + $0x8] sm:$0xff]
    %v600 = vld [vmem:[%s597 + $0x10] sm:$0xff]
    %v601 = vld [vmem:[%s597 + $0x18] sm:$0xff]
    %v602 = vld [vmem:[%s597 + $0x20] sm:$0xff]
    %v603 = vld [vmem:[%s597 + $0x28] sm:$0xff]
    %v604 = vld [vmem:[%s597 + $0x30] sm:$0xff]
    %v605 = vld [vmem:[%s597 + $0x38] sm:$0xff]
    %s606 = scalar_lea.vmem [#allocation15], 192
    %v607 = vld [vmem:[%s606] sm:$0xff]
    %v608 = vld [vmem:[%s606 + $0x8] sm:$0xff]
    %v609 = vld [vmem:[%s606 + $0x10] sm:$0xff]
    %v610 = vld [vmem:[%s606 + $0x18] sm:$0xff]
    %v611 = vld [vmem:[%s606 + $0x20] sm:$0xff]
    %v612 = vld [vmem:[%s606 + $0x28] sm:$0xff]
    %v613 = vld [vmem:[%s606 + $0x30] sm:$0xff]
    %v614 = vld [vmem:[%s606 + $0x38] sm:$0xff]
    %s615 = scalar_lea.vmem [#allocation15], 256
    %v616 = vld [vmem:[%s615] sm:$0xff]
    %v617 = vld [vmem:[%s615 + $0x8] sm:$0xff]
    %v618 = vld [vmem:[%s615 + $0x10] sm:$0xff]
    %v619 = vld [vmem:[%s615 + $0x18] sm:$0xff]
    %v620 = vld [vmem:[%s615 + $0x20] sm:$0xff]
    %v621 = vld [vmem:[%s615 + $0x28] sm:$0xff]
    %v622 = vld [vmem:[%s615 + $0x30] sm:$0xff]
    %v623 = vld [vmem:[%s615 + $0x38] sm:$0xff]
    %s624 = scalar_lea.vmem [#allocation15], 320
    %v625 = vld [vmem:[%s624] sm:$0xff]
    %v626 = vld [vmem:[%s624 + $0x8] sm:$0xff]
    %v627 = vld [vmem:[%s624 + $0x10] sm:$0xff]
    %v628 = vld [vmem:[%s624 + $0x18] sm:$0xff]
    %v629 = vld [vmem:[%s624 + $0x20] sm:$0xff]
    %v630 = vld [vmem:[%s624 + $0x28] sm:$0xff]
    %v631 = vld [vmem:[%s624 + $0x30] sm:$0xff]
    %v632 = vld [vmem:[%s624 + $0x38] sm:$0xff]
    %v633 = vld [vmem:[#allocation18] sm:$0xf]
    %vm634 = vcmask 523264
    %v636 = vsel %vm634, %v572, 0
    %v639 = vsel %vm634, %v577, 0
    %641 = vmatprep.subr.mxu0 0.0
    %642 = vmatpush1.msra.mxu0 0.0
    %643 = vmatprep.subr.mxu0 0.0
    %644 = vmatpush1.msra.mxu0 0.0
    %645 = vmatprep.subr.mxu0 0.0
    %646 = vmatpush1.msra.mxu0 0.0
    %647 = vmatprep.subr.mxu0 0.0
    %648 = vmatpush1.msra.mxu0 0.0
    %649 = vmatprep.subr.mxu0 0.0
    %650 = vmatpush1.msra.mxu0 0.0
    %651 = vmatprep.subr.mxu0 0.0
    %652 = vmatpush1.msra.mxu0 0.0
    %653 = vmatprep.subr.mxu0 0.0
    %654 = vmatpush1.msra.mxu0 0.0
    %655 = vmatprep.subr.mxu0 0.0
    %656 = vmatpush1.msra.mxu0 0.0
    %657 = vmatprep.subr.mxu0 0.0
    %658 = vmatpush1.msra.mxu0 %v587
    %659 = vmatprep.subr.mxu0 0.0
    %660 = vmatpush1.msra.mxu0 %v586
    %661 = vmatprep.subr.mxu0 0.0
    %662 = vmatpush1.msra.mxu0 %v585
    %663 = vmatprep.subr.mxu0 0.0
    %664 = vmatpush1.msra.mxu0 %v584
    %665 = vmatprep.subr.mxu0 0.0
    %666 = vmatpush1.msra.mxu0 %v583
    %667 = vmatprep.subr.mxu0 0.0
    %668 = vmatpush1.msra.mxu0 %v582
    %669 = vmatprep.subr.mxu0 0.0
    %670 = vmatpush1.msra.mxu0 %v581
    %671 = vmatprep.subr.mxu0 0.0
    %672 = vmatpush1.msra.mxu0 %v580
    %673 = vmatprep.subr.mxu0 0.0
    %674 = vmatpush2.msra.mxu0 0.0
    %675 = vmatprep.subr.mxu0 0.0
    %676 = vmatpush2.msra.mxu0 0.0
    %677 = vmatprep.subr.mxu0 0.0
    %678 = vmatpush2.msra.mxu0 0.0
    %679 = vmatprep.subr.mxu0 0.0
    %680 = vmatpush2.msra.mxu0 0.0
    %681 = vmatprep.subr.mxu0 0.0
    %682 = vmatpush2.msra.mxu0 0.0
    %683 = vmatprep.subr.mxu0 0.0
    %684 = vmatpush2.msra.mxu0 0.0
    %685 = vmatprep.subr.mxu0 0.0
    %686 = vmatpush2.msra.mxu0 0.0
    %687 = vmatprep.subr.mxu0 0.0
    %688 = vmatpush2.msra.mxu0 0.0
    %689 = vmatprep.subr.mxu0 0.0
    %690 = vmatpush2.msra.mxu0 0.0
    %691 = vmatprep.subr.mxu0 0.0
    %692 = vmatpush2.msra.mxu0 0.0
    %693 = vmatprep.subr.mxu0 0.0
    %694 = vmatpush2.msra.mxu0 0.0
    %695 = vmatprep.subr.mxu0 0.0
    %696 = vmatpush2.msra.mxu0 0.0
    %697 = vmatprep.subr.mxu0 0.0
    %698 = vmatpush2.msra.mxu0 0.0
    %699 = vmatprep.subr.mxu0 0.0
    %700 = vmatpush2.msra.mxu0 0.0
    %701 = vmatprep.subr.mxu0 0.0
    %702 = vmatpush2.msra.mxu0 0.0
    %703 = vmatprep.subr.mxu0 0.0
    %704 = vmatpush2.msra.mxu0 0.0
    %705 = vmatprep.mubr.f32.mxu0 0.0
    %706 = vmatmul.mubr.f32.gmra.mxu0 %v636
    %v707 = vpop.f32.mrf.mxu0
    %v708 = vadd.f32 0.0, %v707
    %v709 = vpop.f32.mrf.mxu0
    %710 = vmatprep.mubr.f32.mxu0 0.0
    %711 = vmatmul.mubr.f32.gmra.mxu0 %v639
    %v712 = vpop.f32.mrf.mxu0
    %v713 = vadd.f32 0.0, %v712
    %v714 = vpop.f32.mrf.mxu0
    %715 = vdwg.mxu0
    %716 = vmatprep.subr.mxu0 0.0
    %717 = vmatpush1.msra.mxu0 0.0
    %718 = vmatprep.subr.mxu0 0.0
    %719 = vmatpush1.msra.mxu0 0.0
    %720 = vmatprep.subr.mxu0 0.0
    %721 = vmatpush1.msra.mxu0 0.0
    %722 = vmatprep.subr.mxu0 0.0
    %723 = vmatpush1.msra.mxu0 0.0
    %724 = vmatprep.subr.mxu0 0.0
    %725 = vmatpush1.msra.mxu0 0.0
    %726 = vmatprep.subr.mxu0 0.0
    %727 = vmatpush1.msra.mxu0 0.0
    %728 = vmatprep.subr.mxu0 0.0
    %729 = vmatpush1.msra.mxu0 0.0
    %730 = vmatprep.subr.mxu0 0.0
    %731 = vmatpush1.msra.mxu0 0.0
    %732 = vmatprep.subr.mxu0 0.0
    %733 = vmatpush1.msra.mxu0 %v596
    %734 = vmatprep.subr.mxu0 0.0
    %735 = vmatpush1.msra.mxu0 %v595
    %736 = vmatprep.subr.mxu0 0.0
    %737 = vmatpush1.msra.mxu0 %v594
    %738 = vmatprep.subr.mxu0 0.0
    %739 = vmatpush1.msra.mxu0 %v593
    %740 = vmatprep.subr.mxu0 0.0
    %741 = vmatpush1.msra.mxu0 %v592
    %742 = vmatprep.subr.mxu0 0.0
    %743 = vmatpush1.msra.mxu0 %v591
    %744 = vmatprep.subr.mxu0 0.0
    %745 = vmatpush1.msra.mxu0 %v590
    %746 = vmatprep.subr.mxu0 0.0
    %747 = vmatpush1.msra.mxu0 %v589
    %748 = vmatprep.subr.mxu0 0.0
    %749 = vmatpush2.msra.mxu0 0.0
    %750 = vmatprep.subr.mxu0 0.0
    %751 = vmatpush2.msra.mxu0 0.0
    %752 = vmatprep.subr.mxu0 0.0
    %753 = vmatpush2.msra.mxu0 0.0
    %754 = vmatprep.subr.mxu0 0.0
    %755 = vmatpush2.msra.mxu0 0.0
    %756 = vmatprep.subr.mxu0 0.0
    %757 = vmatpush2.msra.mxu0 0.0
    %758 = vmatprep.subr.mxu0 0.0
    %759 = vmatpush2.msra.mxu0 0.0
    %760 = vmatprep.subr.mxu0 0.0
    %761 = vmatpush2.msra.mxu0 0.0
    %762 = vmatprep.subr.mxu0 0.0
    %763 = vmatpush2.msra.mxu0 0.0
    %764 = vmatprep.subr.mxu0 0.0
    %765 = vmatpush2.msra.mxu0 0.0
    %766 = vmatprep.subr.mxu0 0.0
    %767 = vmatpush2.msra.mxu0 0.0
    %768 = vmatprep.subr.mxu0 0.0
    %769 = vmatpush2.msra.mxu0 0.0
    %770 = vmatprep.subr.mxu0 0.0
    %771 = vmatpush2.msra.mxu0 0.0
    %772 = vmatprep.subr.mxu0 0.0
    %773 = vmatpush2.msra.mxu0 0.0
    %774 = vmatprep.subr.mxu0 0.0
    %775 = vmatpush2.msra.mxu0 0.0
    %776 = vmatprep.subr.mxu0 0.0
    %777 = vmatpush2.msra.mxu0 0.0
    %778 = vmatprep.subr.mxu0 0.0
    %779 = vmatpush2.msra.mxu0 0.0
    %780 = vmatprep.mubr.f32.mxu0 0.0
    %781 = vmatmul.mubr.f32.gmra.mxu0 %v636
    %v782 = vpop.f32.mrf.mxu0
    %v783 = vadd.f32 0.0, %v782
    %v784 = vpop.f32.mrf.mxu0
    %785 = vmatprep.mubr.f32.mxu0 0.0
    %786 = vmatmul.mubr.f32.gmra.mxu0 %v639
    %v787 = vpop.f32.mrf.mxu0
    %v788 = vadd.f32 0.0, %v787
    %v789 = vpop.f32.mrf.mxu0
    %790 = vdwg.mxu0
    %vm791 = vcmask 130048
    %v793 = vsel %vm791, %v227, 0
    %v796 = vsel %vm791, %v228, 0
    %v799 = vsel %vm791, %v229, 0
    %v802 = vsel %vm791, %v230, 0
    %804 = vmatprep.subr.mxu0 0.0
    %805 = vmatpush1.msra.mxu0 0.0
    %806 = vmatprep.subr.mxu0 0.0
    %807 = vmatpush1.msra.mxu0 0.0
    %808 = vmatprep.subr.mxu0 0.0
    %809 = vmatpush1.msra.mxu0 0.0
    %810 = vmatprep.subr.mxu0 0.0
    %811 = vmatpush1.msra.mxu0 0.0
    %812 = vmatprep.subr.mxu0 0.0
    %813 = vmatpush1.msra.mxu0 0.0
    %814 = vmatprep.subr.mxu0 0.0
    %815 = vmatpush1.msra.mxu0 0.0
    %816 = vmatprep.subr.mxu0 0.0
    %817 = vmatpush1.msra.mxu0 0.0
    %818 = vmatprep.subr.mxu0 0.0
    %819 = vmatpush1.msra.mxu0 0.0
    %820 = vmatprep.subr.mxu0 0.0
    %821 = vmatpush1.msra.mxu0 0.0
    %822 = vmatprep.subr.mxu0 0.0
    %823 = vmatpush1.msra.mxu0 0.0
    %824 = vmatprep.subr.mxu0 0.0
    %825 = vmatpush1.msra.mxu0 0.0
    %826 = vmatprep.subr.mxu0 0.0
    %827 = vmatpush1.msra.mxu0 0.0
    %828 = vmatprep.subr.mxu0 0.0
    %829 = vmatpush1.msra.mxu0 0.0
    %830 = vmatprep.subr.mxu0 0.0
    %831 = vmatpush1.msra.mxu0 0.0
    %832 = vmatprep.subr.mxu0 0.0
    %833 = vmatpush1.msra.mxu0 %v788
    %834 = vmatprep.subr.mxu0 0.0
    %835 = vmatpush1.msra.mxu0 %v783
    %836 = vmatprep.subr.mxu0 0.0
    %837 = vmatpush2.msra.mxu0 0.0
    %838 = vmatprep.subr.mxu0 0.0
    %839 = vmatpush2.msra.mxu0 0.0
    %840 = vmatprep.subr.mxu0 0.0
    %841 = vmatpush2.msra.mxu0 0.0
    %842 = vmatprep.subr.mxu0 0.0
    %843 = vmatpush2.msra.mxu0 0.0
    %844 = vmatprep.subr.mxu0 0.0
    %845 = vmatpush2.msra.mxu0 0.0
    %846 = vmatprep.subr.mxu0 0.0
    %847 = vmatpush2.msra.mxu0 0.0
    %848 = vmatprep.subr.mxu0 0.0
    %849 = vmatpush2.msra.mxu0 0.0
    %850 = vmatprep.subr.mxu0 0.0
    %851 = vmatpush2.msra.mxu0 0.0
    %852 = vmatprep.subr.mxu0 0.0
    %853 = vmatpush2.msra.mxu0 0.0
    %854 = vmatprep.subr.mxu0 0.0
    %855 = vmatpush2.msra.mxu0 0.0
    %856 = vmatprep.subr.mxu0 0.0
    %857 = vmatpush2.msra.mxu0 0.0
    %858 = vmatprep.subr.mxu0 0.0
    %859 = vmatpush2.msra.mxu0 0.0
    %860 = vmatprep.subr.mxu0 0.0
    %861 = vmatpush2.msra.mxu0 0.0
    %862 = vmatprep.subr.mxu0 0.0
    %863 = vmatpush2.msra.mxu0 0.0
    %864 = vmatprep.subr.mxu0 0.0
    %865 = vmatpush2.msra.mxu0 0.0
    %866 = vmatprep.subr.mxu0 0.0
    %867 = vmatpush2.msra.mxu0 0.0
    %868 = vmatprep.mubr.f32.mxu0 0.0
    %869 = vmatmul.mubr.f32.gmra.mxu0 %v793
    %v870 = vpop.f32.mrf.mxu0
    %v871 = vadd.f32 0.0, %v870
    %v872 = vpop.f32.mrf.mxu0
    %873 = vmatprep.mubr.f32.mxu0 0.0
    %874 = vmatmul.mubr.f32.gmra.mxu0 %v796
    %v875 = vpop.f32.mrf.mxu0
    %v876 = vadd.f32 0.0, %v875
    %v877 = vpop.f32.mrf.mxu0
    %878 = vmatprep.mubr.f32.mxu0 0.0
    %879 = vmatmul.mubr.f32.gmra.mxu0 %v799
    %v880 = vpop.f32.mrf.mxu0
    %v881 = vadd.f32 0.0, %v880
    %v882 = vpop.f32.mrf.mxu0
    %883 = vmatprep.mubr.f32.mxu0 0.0
    %884 = vmatmul.mubr.f32.gmra.mxu0 %v802
    %v885 = vpop.f32.mrf.mxu0
    %v886 = vadd.f32 0.0, %v885
    %v887 = vpop.f32.mrf.mxu0
    %888 = vdwg.mxu0
    %v890 = vsel %vm791, %v255, 0
    %v893 = vsel %vm791, %v256, 0
    %v896 = vsel %vm791, %v257, 0
    %v899 = vsel %vm791, %v258, 0
    %901 = vmatprep.subr.mxu0 0.0
    %902 = vmatpush1.msra.mxu0 0.0
    %903 = vmatprep.subr.mxu0 0.0
    %904 = vmatpush1.msra.mxu0 0.0
    %905 = vmatprep.subr.mxu0 0.0
    %906 = vmatpush1.msra.mxu0 0.0
    %907 = vmatprep.subr.mxu0 0.0
    %908 = vmatpush1.msra.mxu0 0.0
    %909 = vmatprep.subr.mxu0 0.0
    %910 = vmatpush1.msra.mxu0 0.0
    %911 = vmatprep.subr.mxu0 0.0
    %912 = vmatpush1.msra.mxu0 0.0
    %913 = vmatprep.subr.mxu0 0.0
    %914 = vmatpush1.msra.mxu0 0.0
    %915 = vmatprep.subr.mxu0 0.0
    %916 = vmatpush1.msra.mxu0 0.0
    %917 = vmatprep.subr.mxu0 0.0
    %918 = vmatpush1.msra.mxu0 0.0
    %919 = vmatprep.subr.mxu0 0.0
    %920 = vmatpush1.msra.mxu0 0.0
    %921 = vmatprep.subr.mxu0 0.0
    %922 = vmatpush1.msra.mxu0 0.0
    %923 = vmatprep.subr.mxu0 0.0
    %924 = vmatpush1.msra.mxu0 0.0
    %925 = vmatprep.subr.mxu0 0.0
    %926 = vmatpush1.msra.mxu0 0.0
    %927 = vmatprep.subr.mxu0 0.0
    %928 = vmatpush1.msra.mxu0 0.0
    %929 = vmatprep.subr.mxu0 0.0
    %930 = vmatpush1.msra.mxu0 %v713
    %931 = vmatprep.subr.mxu0 0.0
    %932 = vmatpush1.msra.mxu0 %v708
    %933 = vmatprep.subr.mxu0 0.0
    %934 = vmatpush2.msra.mxu0 0.0
    %935 = vmatprep.subr.mxu0 0.0
    %936 = vmatpush2.msra.mxu0 0.0
    %937 = vmatprep.subr.mxu0 0.0
    %938 = vmatpush2.msra.mxu0 0.0
    %939 = vmatprep.subr.mxu0 0.0
    %940 = vmatpush2.msra.mxu0 0.0
    %941 = vmatprep.subr.mxu0 0.0
    %942 = vmatpush2.msra.mxu0 0.0
    %943 = vmatprep.subr.mxu0 0.0
    %944 = vmatpush2.msra.mxu0 0.0
    %945 = vmatprep.subr.mxu0 0.0
    %946 = vmatpush2.msra.mxu0 0.0
    %947 = vmatprep.subr.mxu0 0.0
    %948 = vmatpush2.msra.mxu0 0.0
    %949 = vmatprep.subr.mxu0 0.0
    %950 = vmatpush2.msra.mxu0 0.0
    %951 = vmatprep.subr.mxu0 0.0
    %952 = vmatpush2.msra.mxu0 0.0
    %953 = vmatprep.subr.mxu0 0.0
    %954 = vmatpush2.msra.mxu0 0.0
    %955 = vmatprep.subr.mxu0 0.0
    %956 = vmatpush2.msra.mxu0 0.0
    %957 = vmatprep.subr.mxu0 0.0
    %958 = vmatpush2.msra.mxu0 0.0
    %959 = vmatprep.subr.mxu0 0.0
    %960 = vmatpush2.msra.mxu0 0.0
    %961 = vmatprep.subr.mxu0 0.0
    %962 = vmatpush2.msra.mxu0 0.0
    %963 = vmatprep.subr.mxu0 0.0
    %964 = vmatpush2.msra.mxu0 0.0
    %965 = vmatprep.mubr.f32.mxu0 0.0
    %966 = vmatmul.mubr.f32.gmra.mxu0 %v890
    %v967 = vpop.f32.mrf.mxu0
    %v968 = vadd.f32 %v871, %v967
    %v969 = vpop.f32.mrf.mxu0
    %970 = vmatprep.mubr.f32.mxu0 0.0
    %971 = vmatmul.mubr.f32.gmra.mxu0 %v893
    %v972 = vpop.f32.mrf.mxu0
    %v973 = vadd.f32 %v876, %v972
    %v974 = vpop.f32.mrf.mxu0
    %975 = vmatprep.mubr.f32.mxu0 0.0
    %976 = vmatmul.mubr.f32.gmra.mxu0 %v896
    %v977 = vpop.f32.mrf.mxu0
    %v978 = vadd.f32 %v881, %v977
    %v979 = vpop.f32.mrf.mxu0
    %980 = vmatprep.mubr.f32.mxu0 0.0
    %981 = vmatmul.mubr.f32.gmra.mxu0 %v899
    %v982 = vpop.f32.mrf.mxu0
    %v983 = vadd.f32 %v886, %v982
    %v984 = vpop.f32.mrf.mxu0
    %985 = vdwg.mxu0
    %v986 = vadd.f32 %v968, %v372
    %v987 = vadd.f32 %v973, %v378
    %v988 = vadd.f32 %v978, %v384
    %v989 = vadd.f32 %v983, %v390
    %v990 = vlaneseq
    %v991 = vshrl.u32 %v990, 7
    %v992 = vsub.s32 0, %v991
    %v993 = vrot.slane %v633, %v992
    %v994 = vadd.f32 %v986, %v993
    %v995 = vadd.f32 %v987, %v993
    %v996 = vadd.f32 %v988, %v993
    %v997 = vadd.f32 %v989, %v993
    %v998 = vmax.f32 %v994, 0.0
    %v999 = vmax.f32 %v995, 0.0
    %v1000 = vmax.f32 %v996, 0.0
    %v1001 = vmax.f32 %v997, 0.0
    %v1002 = vlaneseq
    %v1003 = vshrl.u32 %v1002, 7
    %v1004 = vsub.s32 1, %v1003
    %v1005 = vrot.slane %v633, %v1004
    %v1007 = vsel %vm634, %v998, 0
    %v1010 = vsel %vm634, %v999, 0
    %v1013 = vsel %vm634, %v1000, 0
    %v1016 = vsel %vm634, %v1001, 0
    %1018 = vmatprep.subr.mxu0 0.0
    %1019 = vmatpush1.msra.mxu0 0.0
    %1020 = vmatprep.subr.mxu0 0.0
    %1021 = vmatpush1.msra.mxu0 0.0
    %1022 = vmatprep.subr.mxu0 0.0
    %1023 = vmatpush1.msra.mxu0 0.0
    %1024 = vmatprep.subr.mxu0 0.0
    %1025 = vmatpush1.msra.mxu0 0.0
    %1026 = vmatprep.subr.mxu0 0.0
    %1027 = vmatpush1.msra.mxu0 0.0
    %1028 = vmatprep.subr.mxu0 0.0
    %1029 = vmatpush1.msra.mxu0 0.0
    %1030 = vmatprep.subr.mxu0 0.0
    %1031 = vmatpush1.msra.mxu0 0.0
    %1032 = vmatprep.subr.mxu0 0.0
    %1033 = vmatpush1.msra.mxu0 0.0
    %1034 = vmatprep.subr.mxu0 0.0
    %1035 = vmatpush1.msra.mxu0 %v605
    %1036 = vmatprep.subr.mxu0 0.0
    %1037 = vmatpush1.msra.mxu0 %v604
    %1038 = vmatprep.subr.mxu0 0.0
    %1039 = vmatpush1.msra.mxu0 %v603
    %1040 = vmatprep.subr.mxu0 0.0
    %1041 = vmatpush1.msra.mxu0 %v602
    %1042 = vmatprep.subr.mxu0 0.0
    %1043 = vmatpush1.msra.mxu0 %v601
    %1044 = vmatprep.subr.mxu0 0.0
    %1045 = vmatpush1.msra.mxu0 %v600
    %1046 = vmatprep.subr.mxu0 0.0
    %1047 = vmatpush1.msra.mxu0 %v599
    %1048 = vmatprep.subr.mxu0 0.0
    %1049 = vmatpush1.msra.mxu0 %v598
    %1050 = vmatprep.subr.mxu0 0.0
    %1051 = vmatpush2.msra.mxu0 0.0
    %1052 = vmatprep.subr.mxu0 0.0
    %1053 = vmatpush2.msra.mxu0 0.0
    %1054 = vmatprep.subr.mxu0 0.0
    %1055 = vmatpush2.msra.mxu0 0.0
    %1056 = vmatprep.subr.mxu0 0.0
    %1057 = vmatpush2.msra.mxu0 0.0
    %1058 = vmatprep.subr.mxu0 0.0
    %1059 = vmatpush2.msra.mxu0 0.0
    %1060 = vmatprep.subr.mxu0 0.0
    %1061 = vmatpush2.msra.mxu0 0.0
    %1062 = vmatprep.subr.mxu0 0.0
    %1063 = vmatpush2.msra.mxu0 0.0
    %1064 = vmatprep.subr.mxu0 0.0
    %1065 = vmatpush2.msra.mxu0 0.0
    %1066 = vmatprep.subr.mxu0 0.0
    %1067 = vmatpush2.msra.mxu0 0.0
    %1068 = vmatprep.subr.mxu0 0.0
    %1069 = vmatpush2.msra.mxu0 0.0
    %1070 = vmatprep.subr.mxu0 0.0
    %1071 = vmatpush2.msra.mxu0 0.0
    %1072 = vmatprep.subr.mxu0 0.0
    %1073 = vmatpush2.msra.mxu0 0.0
    %1074 = vmatprep.subr.mxu0 0.0
    %1075 = vmatpush2.msra.mxu0 0.0
    %1076 = vmatprep.subr.mxu0 0.0
    %1077 = vmatpush2.msra.mxu0 0.0
    %1078 = vmatprep.subr.mxu0 0.0
    %1079 = vmatpush2.msra.mxu0 0.0
    %1080 = vmatprep.subr.mxu0 0.0
    %1081 = vmatpush2.msra.mxu0 0.0
    %1082 = vmatprep.mubr.f32.mxu0 0.0
    %1083 = vmatmul.mubr.f32.gmra.mxu0 %v1007
    %v1084 = vpop.f32.mrf.mxu0
    %v1085 = vadd.f32 %v1005, %v1084
    %v1086 = vpop.f32.mrf.mxu0
    %1087 = vmatprep.mubr.f32.mxu0 0.0
    %1088 = vmatmul.mubr.f32.gmra.mxu0 %v1010
    %v1089 = vpop.f32.mrf.mxu0
    %v1090 = vadd.f32 %v1005, %v1089
    %v1091 = vpop.f32.mrf.mxu0
    %1092 = vmatprep.mubr.f32.mxu0 0.0
    %1093 = vmatmul.mubr.f32.gmra.mxu0 %v1013
    %v1094 = vpop.f32.mrf.mxu0
    %v1095 = vadd.f32 %v1005, %v1094
    %v1096 = vpop.f32.mrf.mxu0
    %1097 = vmatprep.mubr.f32.mxu0 0.0
    %1098 = vmatmul.mubr.f32.gmra.mxu0 %v1016
    %v1099 = vpop.f32.mrf.mxu0
    %v1100 = vadd.f32 %v1005, %v1099
    %v1101 = vpop.f32.mrf.mxu0
    %1102 = vdwg.mxu0
    %v1103 = vmax.f32 %v1085, 0.0
    %v1104 = vmax.f32 %v1090, 0.0
    %v1105 = vmax.f32 %v1095, 0.0
    %v1106 = vmax.f32 %v1100, 0.0
    %vm1107 = vcmask 261120
    %v1109 = vsel %vm1107, %v271, 0
    %v1112 = vsel %vm1107, %v272, 0
    %1114 = vmatprep.subr.mxu0 0.0
    %1115 = vmatpush1.msra.mxu0 0.0
    %1116 = vmatprep.subr.mxu0 0.0
    %1117 = vmatpush1.msra.mxu0 0.0
    %1118 = vmatprep.subr.mxu0 0.0
    %1119 = vmatpush1.msra.mxu0 0.0
    %1120 = vmatprep.subr.mxu0 0.0
    %1121 = vmatpush1.msra.mxu0 0.0
    %1122 = vmatprep.subr.mxu0 0.0
    %1123 = vmatpush1.msra.mxu0 0.0
    %1124 = vmatprep.subr.mxu0 0.0
    %1125 = vmatpush1.msra.mxu0 0.0
    %1126 = vmatprep.subr.mxu0 0.0
    %1127 = vmatpush1.msra.mxu0 0.0
    %1128 = vmatprep.subr.mxu0 0.0
    %1129 = vmatpush1.msra.mxu0 0.0
    %1130 = vmatprep.subr.mxu0 0.0
    %1131 = vmatpush1.msra.mxu0 0.0
    %1132 = vmatprep.subr.mxu0 0.0
    %1133 = vmatpush1.msra.mxu0 0.0
    %1134 = vmatprep.subr.mxu0 0.0
    %1135 = vmatpush1.msra.mxu0 0.0
    %1136 = vmatprep.subr.mxu0 0.0
    %1137 = vmatpush1.msra.mxu0 0.0
    %1138 = vmatprep.subr.mxu0 0.0
    %1139 = vmatpush1.msra.mxu0 %v1106
    %1140 = vmatprep.subr.mxu0 0.0
    %1141 = vmatpush1.msra.mxu0 %v1105
    %1142 = vmatprep.subr.mxu0 0.0
    %1143 = vmatpush1.msra.mxu0 %v1104
    %1144 = vmatprep.subr.mxu0 0.0
    %1145 = vmatpush1.msra.mxu0 %v1103
    %1146 = vmatprep.subr.mxu0 0.0
    %1147 = vmatpush2.msra.mxu0 0.0
    %1148 = vmatprep.subr.mxu0 0.0
    %1149 = vmatpush2.msra.mxu0 0.0
    %1150 = vmatprep.subr.mxu0 0.0
    %1151 = vmatpush2.msra.mxu0 0.0
    %1152 = vmatprep.subr.mxu0 0.0
    %1153 = vmatpush2.msra.mxu0 0.0
    %1154 = vmatprep.subr.mxu0 0.0
    %1155 = vmatpush2.msra.mxu0 0.0
    %1156 = vmatprep.subr.mxu0 0.0
    %1157 = vmatpush2.msra.mxu0 0.0
    %1158 = vmatprep.subr.mxu0 0.0
    %1159 = vmatpush2.msra.mxu0 0.0
    %1160 = vmatprep.subr.mxu0 0.0
    %1161 = vmatpush2.msra.mxu0 0.0
    %1162 = vmatprep.subr.mxu0 0.0
    %1163 = vmatpush2.msra.mxu0 0.0
    %1164 = vmatprep.subr.mxu0 0.0
    %1165 = vmatpush2.msra.mxu0 0.0
    %1166 = vmatprep.subr.mxu0 0.0
    %1167 = vmatpush2.msra.mxu0 0.0
    %1168 = vmatprep.subr.mxu0 0.0
    %1169 = vmatpush2.msra.mxu0 0.0
    %1170 = vmatprep.subr.mxu0 0.0
    %1171 = vmatpush2.msra.mxu0 0.0
    %1172 = vmatprep.subr.mxu0 0.0
    %1173 = vmatpush2.msra.mxu0 0.0
    %1174 = vmatprep.subr.mxu0 0.0
    %1175 = vmatpush2.msra.mxu0 0.0
    %1176 = vmatprep.subr.mxu0 0.0
    %1177 = vmatpush2.msra.mxu0 0.0
    %1178 = vmatprep.mubr.f32.mxu0 0.0
    %1179 = vmatmul.mubr.f32.gmra.mxu0 %v1109
    %v1180 = vpop.f32.mrf.mxu0
    %v1181 = vadd.f32 0.0, %v1180
    %v1182 = vpop.f32.mrf.mxu0
    %1183 = vmatprep.mubr.f32.mxu0 0.0
    %1184 = vmatmul.mubr.f32.gmra.mxu0 %v1112
    %v1185 = vpop.f32.mrf.mxu0
    %v1186 = vadd.f32 0.0, %v1185
    %v1187 = vpop.f32.mrf.mxu0
    %1188 = vdwg.mxu0
    %v1190 = vsel %vm634, %v1181, 0
    %v1193 = vsel %vm634, %v1186, 0
    %1195 = vmatprep.subr.mxu0 0.0
    %1196 = vmatpush1.msra.mxu0 0.0
    %1197 = vmatprep.subr.mxu0 0.0
    %1198 = vmatpush1.msra.mxu0 0.0
    %1199 = vmatprep.subr.mxu0 0.0
    %1200 = vmatpush1.msra.mxu0 0.0
    %1201 = vmatprep.subr.mxu0 0.0
    %1202 = vmatpush1.msra.mxu0 0.0
    %1203 = vmatprep.subr.mxu0 0.0
    %1204 = vmatpush1.msra.mxu0 0.0
    %1205 = vmatprep.subr.mxu0 0.0
    %1206 = vmatpush1.msra.mxu0 0.0
    %1207 = vmatprep.subr.mxu0 0.0
    %1208 = vmatpush1.msra.mxu0 0.0
    %1209 = vmatprep.subr.mxu0 0.0
    %1210 = vmatpush1.msra.mxu0 0.0
    %1211 = vmatprep.subr.mxu0 0.0
    %1212 = vmatpush1.msra.mxu0 %v623
    %1213 = vmatprep.subr.mxu0 0.0
    %1214 = vmatpush1.msra.mxu0 %v622
    %1215 = vmatprep.subr.mxu0 0.0
    %1216 = vmatpush1.msra.mxu0 %v621
    %1217 = vmatprep.subr.mxu0 0.0
    %1218 = vmatpush1.msra.mxu0 %v620
    %1219 = vmatprep.subr.mxu0 0.0
    %1220 = vmatpush1.msra.mxu0 %v619
    %1221 = vmatprep.subr.mxu0 0.0
    %1222 = vmatpush1.msra.mxu0 %v618
    %1223 = vmatprep.subr.mxu0 0.0
    %1224 = vmatpush1.msra.mxu0 %v617
    %1225 = vmatprep.subr.mxu0 0.0
    %1226 = vmatpush1.msra.mxu0 %v616
    %1227 = vmatprep.subr.mxu0 0.0
    %1228 = vmatpush2.msra.mxu0 0.0
    %1229 = vmatprep.subr.mxu0 0.0
    %1230 = vmatpush2.msra.mxu0 0.0
    %1231 = vmatprep.subr.mxu0 0.0
    %1232 = vmatpush2.msra.mxu0 0.0
    %1233 = vmatprep.subr.mxu0 0.0
    %1234 = vmatpush2.msra.mxu0 0.0
    %1235 = vmatprep.subr.mxu0 0.0
    %1236 = vmatpush2.msra.mxu0 0.0
    %1237 = vmatprep.subr.mxu0 0.0
    %1238 = vmatpush2.msra.mxu0 0.0
    %1239 = vmatprep.subr.mxu0 0.0
    %1240 = vmatpush2.msra.mxu0 0.0
    %1241 = vmatprep.subr.mxu0 0.0
    %1242 = vmatpush2.msra.mxu0 0.0
    %1243 = vmatprep.subr.mxu0 0.0
    %1244 = vmatpush2.msra.mxu0 0.0
    %1245 = vmatprep.subr.mxu0 0.0
    %1246 = vmatpush2.msra.mxu0 0.0
    %1247 = vmatprep.subr.mxu0 0.0
    %1248 = vmatpush2.msra.mxu0 0.0
    %1249 = vmatprep.subr.mxu0 0.0
    %1250 = vmatpush2.msra.mxu0 0.0
    %1251 = vmatprep.subr.mxu0 0.0
    %1252 = vmatpush2.msra.mxu0 0.0
    %1253 = vmatprep.subr.mxu0 0.0
    %1254 = vmatpush2.msra.mxu0 0.0
    %1255 = vmatprep.subr.mxu0 0.0
    %1256 = vmatpush2.msra.mxu0 0.0
    %1257 = vmatprep.subr.mxu0 0.0
    %1258 = vmatpush2.msra.mxu0 0.0
    %1259 = vmatprep.mubr.f32.mxu0 0.0
    %1260 = vmatmul.mubr.f32.gmra.mxu0 %v1190
    %v1261 = vpop.f32.mrf.mxu0
    %v1262 = vadd.f32 0.0, %v1261
    %v1263 = vpop.f32.mrf.mxu0
    %1264 = vmatprep.mubr.f32.mxu0 0.0
    %1265 = vmatmul.mubr.f32.gmra.mxu0 %v1193
    %v1266 = vpop.f32.mrf.mxu0
    %v1267 = vadd.f32 0.0, %v1266
    %v1268 = vpop.f32.mrf.mxu0
    %1269 = vdwg.mxu0
    %1270 = vmatprep.subr.mxu0 0.0
    %1271 = vmatpush1.msra.mxu0 0.0
    %1272 = vmatprep.subr.mxu0 0.0
    %1273 = vmatpush1.msra.mxu0 0.0
    %1274 = vmatprep.subr.mxu0 0.0
    %1275 = vmatpush1.msra.mxu0 0.0
    %1276 = vmatprep.subr.mxu0 0.0
    %1277 = vmatpush1.msra.mxu0 0.0
    %1278 = vmatprep.subr.mxu0 0.0
    %1279 = vmatpush1.msra.mxu0 0.0
    %1280 = vmatprep.subr.mxu0 0.0
    %1281 = vmatpush1.msra.mxu0 0.0
    %1282 = vmatprep.subr.mxu0 0.0
    %1283 = vmatpush1.msra.mxu0 0.0
    %1284 = vmatprep.subr.mxu0 0.0
    %1285 = vmatpush1.msra.mxu0 0.0
    %1286 = vmatprep.subr.mxu0 0.0
    %1287 = vmatpush1.msra.mxu0 %v614
    %1288 = vmatprep.subr.mxu0 0.0
    %1289 = vmatpush1.msra.mxu0 %v613
    %1290 = vmatprep.subr.mxu0 0.0
    %1291 = vmatpush1.msra.mxu0 %v612
    %1292 = vmatprep.subr.mxu0 0.0
    %1293 = vmatpush1.msra.mxu0 %v611
    %1294 = vmatprep.subr.mxu0 0.0
    %1295 = vmatpush1.msra.mxu0 %v610
    %1296 = vmatprep.subr.mxu0 0.0
    %1297 = vmatpush1.msra.mxu0 %v609
    %1298 = vmatprep.subr.mxu0 0.0
    %1299 = vmatpush1.msra.mxu0 %v608
    %1300 = vmatprep.subr.mxu0 0.0
    %1301 = vmatpush1.msra.mxu0 %v607
    %1302 = vmatprep.subr.mxu0 0.0
    %1303 = vmatpush2.msra.mxu0 0.0
    %1304 = vmatprep.subr.mxu0 0.0
    %1305 = vmatpush2.msra.mxu0 0.0
    %1306 = vmatprep.subr.mxu0 0.0
    %1307 = vmatpush2.msra.mxu0 0.0
    %1308 = vmatprep.subr.mxu0 0.0
    %1309 = vmatpush2.msra.mxu0 0.0
    %1310 = vmatprep.subr.mxu0 0.0
    %1311 = vmatpush2.msra.mxu0 0.0
    %1312 = vmatprep.subr.mxu0 0.0
    %1313 = vmatpush2.msra.mxu0 0.0
    %1314 = vmatprep.subr.mxu0 0.0
    %1315 = vmatpush2.msra.mxu0 0.0
    %1316 = vmatprep.subr.mxu0 0.0
    %1317 = vmatpush2.msra.mxu0 0.0
    %1318 = vmatprep.subr.mxu0 0.0
    %1319 = vmatpush2.msra.mxu0 0.0
    %1320 = vmatprep.subr.mxu0 0.0
    %1321 = vmatpush2.msra.mxu0 0.0
    %1322 = vmatprep.subr.mxu0 0.0
    %1323 = vmatpush2.msra.mxu0 0.0
    %1324 = vmatprep.subr.mxu0 0.0
    %1325 = vmatpush2.msra.mxu0 0.0
    %1326 = vmatprep.subr.mxu0 0.0
    %1327 = vmatpush2.msra.mxu0 0.0
    %1328 = vmatprep.subr.mxu0 0.0
    %1329 = vmatpush2.msra.mxu0 0.0
    %1330 = vmatprep.subr.mxu0 0.0
    %1331 = vmatpush2.msra.mxu0 0.0
    %1332 = vmatprep.subr.mxu0 0.0
    %1333 = vmatpush2.msra.mxu0 0.0
    %1334 = vmatprep.mubr.f32.mxu0 0.0
    %1335 = vmatmul.mubr.f32.gmra.mxu0 %v636
    %v1336 = vpop.f32.mrf.mxu0
    %v1337 = vadd.f32 %v1262, %v1336
    %v1338 = vpop.f32.mrf.mxu0
    %1339 = vmatprep.mubr.f32.mxu0 0.0
    %1340 = vmatmul.mubr.f32.gmra.mxu0 %v639
    %v1341 = vpop.f32.mrf.mxu0
    %v1342 = vadd.f32 %v1267, %v1341
    %v1343 = vpop.f32.mrf.mxu0
    %1344 = vdwg.mxu0
    %v1345 = vlaneseq
    %v1346 = vshrl.u32 %v1345, 7
    %v1347 = vsub.s32 2, %v1346
    %v1348 = vrot.slane %v633, %v1347
    %v1349 = vadd.f32 %v1337, %v1348
    %v1350 = vadd.f32 %v1342, %v1348
    %v1351 = vmax.f32 %v1349, 0.0
    %v1352 = vmax.f32 %v1350, 0.0
    %v1353 = vlaneseq
    %v1354 = vshrl.u32 %v1353, 7
    %v1355 = vsub.s32 3, %v1354
    %v1356 = vrot.slane %v633, %v1355
    %v1358 = vsel %vm634, %v1351, 0
    %v1361 = vsel %vm634, %v1352, 0
    %1363 = vmatprep.subr.mxu0 0.0
    %1364 = vmatpush1.msra.mxu0 0.0
    %1365 = vmatprep.subr.mxu0 0.0
    %1366 = vmatpush1.msra.mxu0 0.0
    %1367 = vmatprep.subr.mxu0 0.0
    %1368 = vmatpush1.msra.mxu0 0.0
    %1369 = vmatprep.subr.mxu0 0.0
    %1370 = vmatpush1.msra.mxu0 0.0
    %1371 = vmatprep.subr.mxu0 0.0
    %1372 = vmatpush1.msra.mxu0 0.0
    %1373 = vmatprep.subr.mxu0 0.0
    %1374 = vmatpush1.msra.mxu0 0.0
    %1375 = vmatprep.subr.mxu0 0.0
    %1376 = vmatpush1.msra.mxu0 0.0
    %1377 = vmatprep.subr.mxu0 0.0
    %1378 = vmatpush1.msra.mxu0 0.0
    %1379 = vmatprep.subr.mxu0 0.0
    %1380 = vmatpush1.msra.mxu0 %v632
    %1381 = vmatprep.subr.mxu0 0.0
    %1382 = vmatpush1.msra.mxu0 %v631
    %1383 = vmatprep.subr.mxu0 0.0
    %1384 = vmatpush1.msra.mxu0 %v630
    %1385 = vmatprep.subr.mxu0 0.0
    %1386 = vmatpush1.msra.mxu0 %v629
    %1387 = vmatprep.subr.mxu0 0.0
    %1388 = vmatpush1.msra.mxu0 %v628
    %1389 = vmatprep.subr.mxu0 0.0
    %1390 = vmatpush1.msra.mxu0 %v627
    %1391 = vmatprep.subr.mxu0 0.0
    %1392 = vmatpush1.msra.mxu0 %v626
    %1393 = vmatprep.subr.mxu0 0.0
    %1394 = vmatpush1.msra.mxu0 %v625
    %1395 = vmatprep.subr.mxu0 0.0
    %1396 = vmatpush2.msra.mxu0 0.0
    %1397 = vmatprep.subr.mxu0 0.0
    %1398 = vmatpush2.msra.mxu0 0.0
    %1399 = vmatprep.subr.mxu0 0.0
    %1400 = vmatpush2.msra.mxu0 0.0
    %1401 = vmatprep.subr.mxu0 0.0
    %1402 = vmatpush2.msra.mxu0 0.0
    %1403 = vmatprep.subr.mxu0 0.0
    %1404 = vmatpush2.msra.mxu0 0.0
    %1405 = vmatprep.subr.mxu0 0.0
    %1406 = vmatpush2.msra.mxu0 0.0
    %1407 = vmatprep.subr.mxu0 0.0
    %1408 = vmatpush2.msra.mxu0 0.0
    %1409 = vmatprep.subr.mxu0 0.0
    %1410 = vmatpush2.msra.mxu0 0.0
    %1411 = vmatprep.subr.mxu0 0.0
    %1412 = vmatpush2.msra.mxu0 0.0
    %1413 = vmatprep.subr.mxu0 0.0
    %1414 = vmatpush2.msra.mxu0 0.0
    %1415 = vmatprep.subr.mxu0 0.0
    %1416 = vmatpush2.msra.mxu0 0.0
    %1417 = vmatprep.subr.mxu0 0.0
    %1418 = vmatpush2.msra.mxu0 0.0
    %1419 = vmatprep.subr.mxu0 0.0
    %1420 = vmatpush2.msra.mxu0 0.0
    %1421 = vmatprep.subr.mxu0 0.0
    %1422 = vmatpush2.msra.mxu0 0.0
    %1423 = vmatprep.subr.mxu0 0.0
    %1424 = vmatpush2.msra.mxu0 0.0
    %1425 = vmatprep.subr.mxu0 0.0
    %1426 = vmatpush2.msra.mxu0 0.0
    %1427 = vmatprep.mubr.f32.mxu0 0.0
    %1428 = vmatmul.mubr.f32.gmra.mxu0 %v1358
    %v1429 = vpop.f32.mrf.mxu0
    %v1430 = vadd.f32 %v1356, %v1429
    %v1431 = vpop.f32.mrf.mxu0
    %1432 = vmatprep.mubr.f32.mxu0 0.0
    %1433 = vmatmul.mubr.f32.gmra.mxu0 %v1361
    %v1434 = vpop.f32.mrf.mxu0
    %v1435 = vadd.f32 %v1356, %v1434
    %v1436 = vpop.f32.mrf.mxu0
    %1437 = vdwg.mxu0
    %v1438 = vmax.f32 %v1430, 0.0
    %v1439 = vmax.f32 %v1435, 0.0
    %v1440 = vadd.f32 %v572, %v1438
    %v1441 = vadd.f32 %v577, %v1439
    %s1442 = scalar_lea.vmem [#allocation15], 384
    %v1443 = vld [vmem:[%s1442] sm:$0xff]
    %v1444 = vld [vmem:[%s1442 + $0x8] sm:$0xff]
    %v1445 = vld [vmem:[%s1442 + $0x10] sm:$0xff]
    %v1446 = vld [vmem:[%s1442 + $0x18] sm:$0xff]
    %v1447 = vld [vmem:[%s1442 + $0x20] sm:$0xff]
    %v1448 = vld [vmem:[%s1442 + $0x28] sm:$0xff]
    %v1449 = vld [vmem:[%s1442 + $0x30] sm:$0xff]
    %v1450 = vld [vmem:[%s1442 + $0x38] sm:$0xff]
    %s1451 = scalar_lea.vmem [#allocation15], 448
    %v1452 = vld [vmem:[%s1451] sm:$0xff]
    %v1453 = vld [vmem:[%s1451 + $0x8] sm:$0xff]
    %v1454 = vld [vmem:[%s1451 + $0x10] sm:$0xff]
    %v1455 = vld [vmem:[%s1451 + $0x18] sm:$0xff]
    %v1456 = vld [vmem:[%s1451 + $0x20] sm:$0xff]
    %v1457 = vld [vmem:[%s1451 + $0x28] sm:$0xff]
    %v1458 = vld [vmem:[%s1451 + $0x30] sm:$0xff]
    %v1459 = vld [vmem:[%s1451 + $0x38] sm:$0xff]
    %s1460 = scalar_lea.vmem [#allocation15], 512
    %v1461 = vld [vmem:[%s1460] sm:$0xff]
    %v1462 = vld [vmem:[%s1460 + $0x8] sm:$0xff]
    %v1463 = vld [vmem:[%s1460 + $0x10] sm:$0xff]
    %v1464 = vld [vmem:[%s1460 + $0x18] sm:$0xff]
    %v1465 = vld [vmem:[%s1460 + $0x20] sm:$0xff]
    %v1466 = vld [vmem:[%s1460 + $0x28] sm:$0xff]
    %v1467 = vld [vmem:[%s1460 + $0x30] sm:$0xff]
    %v1468 = vld [vmem:[%s1460 + $0x38] sm:$0xff]
    %s1469 = scalar_lea.vmem [#allocation15], 576
    %v1470 = vld [vmem:[%s1469] sm:$0xff]
    %v1471 = vld [vmem:[%s1469 + $0x8] sm:$0xff]
    %v1472 = vld [vmem:[%s1469 + $0x10] sm:$0xff]
    %v1473 = vld [vmem:[%s1469 + $0x18] sm:$0xff]
    %v1474 = vld [vmem:[%s1469 + $0x20] sm:$0xff]
    %v1475 = vld [vmem:[%s1469 + $0x28] sm:$0xff]
    %v1476 = vld [vmem:[%s1469 + $0x30] sm:$0xff]
    %v1477 = vld [vmem:[%s1469 + $0x38] sm:$0xff]
    %s1478 = scalar_lea.vmem [#allocation15], 640
    %v1479 = vld [vmem:[%s1478] sm:$0xff]
    %v1480 = vld [vmem:[%s1478 + $0x8] sm:$0xff]
    %v1481 = vld [vmem:[%s1478 + $0x10] sm:$0xff]
    %v1482 = vld [vmem:[%s1478 + $0x18] sm:$0xff]
    %v1483 = vld [vmem:[%s1478 + $0x20] sm:$0xff]
    %v1484 = vld [vmem:[%s1478 + $0x28] sm:$0xff]
    %v1485 = vld [vmem:[%s1478 + $0x30] sm:$0xff]
    %v1486 = vld [vmem:[%s1478 + $0x38] sm:$0xff]
    %s1487 = scalar_lea.vmem [#allocation15], 704
    %v1488 = vld [vmem:[%s1487] sm:$0xff]
    %v1489 = vld [vmem:[%s1487 + $0x8] sm:$0xff]
    %v1490 = vld [vmem:[%s1487 + $0x10] sm:$0xff]
    %v1491 = vld [vmem:[%s1487 + $0x18] sm:$0xff]
    %v1492 = vld [vmem:[%s1487 + $0x20] sm:$0xff]
    %v1493 = vld [vmem:[%s1487 + $0x28] sm:$0xff]
    %v1494 = vld [vmem:[%s1487 + $0x30] sm:$0xff]
    %v1495 = vld [vmem:[%s1487 + $0x38] sm:$0xff]
    %s1496 = scalar_lea.vmem [#allocation18], 4
    %v1497 = vld [vmem:[%s1496] sm:$0xf]
    %v1499 = vsel %vm634, %v1440, 0
    %v1502 = vsel %vm634, %v1441, 0
    %1504 = vmatprep.subr.mxu0 0.0
    %1505 = vmatpush1.msra.mxu0 0.0
    %1506 = vmatprep.subr.mxu0 0.0
    %1507 = vmatpush1.msra.mxu0 0.0
    %1508 = vmatprep.subr.mxu0 0.0
    %1509 = vmatpush1.msra.mxu0 0.0
    %1510 = vmatprep.subr.mxu0 0.0
    %1511 = vmatpush1.msra.mxu0 0.0
    %1512 = vmatprep.subr.mxu0 0.0
    %1513 = vmatpush1.msra.mxu0 0.0
    %1514 = vmatprep.subr.mxu0 0.0
    %1515 = vmatpush1.msra.mxu0 0.0
    %1516 = vmatprep.subr.mxu0 0.0
    %1517 = vmatpush1.msra.mxu0 0.0
    %1518 = vmatprep.subr.mxu0 0.0
    %1519 = vmatpush1.msra.mxu0 0.0
    %1520 = vmatprep.subr.mxu0 0.0
    %1521 = vmatpush1.msra.mxu0 %v1450
    %1522 = vmatprep.subr.mxu0 0.0
    %1523 = vmatpush1.msra.mxu0 %v1449
    %1524 = vmatprep.subr.mxu0 0.0
    %1525 = vmatpush1.msra.mxu0 %v1448
    %1526 = vmatprep.subr.mxu0 0.0
    %1527 = vmatpush1.msra.mxu0 %v1447
    %1528 = vmatprep.subr.mxu0 0.0
    %1529 = vmatpush1.msra.mxu0 %v1446
    %1530 = vmatprep.subr.mxu0 0.0
    %1531 = vmatpush1.msra.mxu0 %v1445
    %1532 = vmatprep.subr.mxu0 0.0
    %1533 = vmatpush1.msra.mxu0 %v1444
    %1534 = vmatprep.subr.mxu0 0.0
    %1535 = vmatpush1.msra.mxu0 %v1443
    %1536 = vmatprep.subr.mxu0 0.0
    %1537 = vmatpush2.msra.mxu0 0.0
    %1538 = vmatprep.subr.mxu0 0.0
    %1539 = vmatpush2.msra.mxu0 0.0
    %1540 = vmatprep.subr.mxu0 0.0
    %1541 = vmatpush2.msra.mxu0 0.0
    %1542 = vmatprep.subr.mxu0 0.0
    %1543 = vmatpush2.msra.mxu0 0.0
    %1544 = vmatprep.subr.mxu0 0.0
    %1545 = vmatpush2.msra.mxu0 0.0
    %1546 = vmatprep.subr.mxu0 0.0
    %1547 = vmatpush2.msra.mxu0 0.0
    %1548 = vmatprep.subr.mxu0 0.0
    %1549 = vmatpush2.msra.mxu0 0.0
    %1550 = vmatprep.subr.mxu0 0.0
    %1551 = vmatpush2.msra.mxu0 0.0
    %1552 = vmatprep.subr.mxu0 0.0
    %1553 = vmatpush2.msra.mxu0 0.0
    %1554 = vmatprep.subr.mxu0 0.0
    %1555 = vmatpush2.msra.mxu0 0.0
    %1556 = vmatprep.subr.mxu0 0.0
    %1557 = vmatpush2.msra.mxu0 0.0
    %1558 = vmatprep.subr.mxu0 0.0
    %1559 = vmatpush2.msra.mxu0 0.0
    %1560 = vmatprep.subr.mxu0 0.0
    %1561 = vmatpush2.msra.mxu0 0.0
    %1562 = vmatprep.subr.mxu0 0.0
    %1563 = vmatpush2.msra.mxu0 0.0
    %1564 = vmatprep.subr.mxu0 0.0
    %1565 = vmatpush2.msra.mxu0 0.0
    %1566 = vmatprep.subr.mxu0 0.0
    %1567 = vmatpush2.msra.mxu0 0.0
    %1568 = vmatprep.mubr.f32.mxu0 0.0
    %1569 = vmatmul.mubr.f32.gmra.mxu0 %v1499
    %v1570 = vpop.f32.mrf.mxu0
    %v1571 = vadd.f32 0.0, %v1570
    %v1572 = vpop.f32.mrf.mxu0
    %1573 = vmatprep.mubr.f32.mxu0 0.0
    %1574 = vmatmul.mubr.f32.gmra.mxu0 %v1502
    %v1575 = vpop.f32.mrf.mxu0
    %v1576 = vadd.f32 0.0, %v1575
    %v1577 = vpop.f32.mrf.mxu0
    %1578 = vdwg.mxu0
    %1579 = vmatprep.subr.mxu0 0.0
    %1580 = vmatpush1.msra.mxu0 0.0
    %1581 = vmatprep.subr.mxu0 0.0
    %1582 = vmatpush1.msra.mxu0 0.0
    %1583 = vmatprep.subr.mxu0 0.0
    %1584 = vmatpush1.msra.mxu0 0.0
    %1585 = vmatprep.subr.mxu0 0.0
    %1586 = vmatpush1.msra.mxu0 0.0
    %1587 = vmatprep.subr.mxu0 0.0
    %1588 = vmatpush1.msra.mxu0 0.0
    %1589 = vmatprep.subr.mxu0 0.0
    %1590 = vmatpush1.msra.mxu0 0.0
    %1591 = vmatprep.subr.mxu0 0.0
    %1592 = vmatpush1.msra.mxu0 0.0
    %1593 = vmatprep.subr.mxu0 0.0
    %1594 = vmatpush1.msra.mxu0 0.0
    %1595 = vmatprep.subr.mxu0 0.0
    %1596 = vmatpush1.msra.mxu0 %v1459
    %1597 = vmatprep.subr.mxu0 0.0
    %1598 = vmatpush1.msra.mxu0 %v1458
    %1599 = vmatprep.subr.mxu0 0.0
    %1600 = vmatpush1.msra.mxu0 %v1457
    %1601 = vmatprep.subr.mxu0 0.0
    %1602 = vmatpush1.msra.mxu0 %v1456
    %1603 = vmatprep.subr.mxu0 0.0
    %1604 = vmatpush1.msra.mxu0 %v1455
    %1605 = vmatprep.subr.mxu0 0.0
    %1606 = vmatpush1.msra.mxu0 %v1454
    %1607 = vmatprep.subr.mxu0 0.0
    %1608 = vmatpush1.msra.mxu0 %v1453
    %1609 = vmatprep.subr.mxu0 0.0
    %1610 = vmatpush1.msra.mxu0 %v1452
    %1611 = vmatprep.subr.mxu0 0.0
    %1612 = vmatpush2.msra.mxu0 0.0
    %1613 = vmatprep.subr.mxu0 0.0
    %1614 = vmatpush2.msra.mxu0 0.0
    %1615 = vmatprep.subr.mxu0 0.0
    %1616 = vmatpush2.msra.mxu0 0.0
    %1617 = vmatprep.subr.mxu0 0.0
    %1618 = vmatpush2.msra.mxu0 0.0
    %1619 = vmatprep.subr.mxu0 0.0
    %1620 = vmatpush2.msra.mxu0 0.0
    %1621 = vmatprep.subr.mxu0 0.0
    %1622 = vmatpush2.msra.mxu0 0.0
    %1623 = vmatprep.subr.mxu0 0.0
    %1624 = vmatpush2.msra.mxu0 0.0
    %1625 = vmatprep.subr.mxu0 0.0
    %1626 = vmatpush2.msra.mxu0 0.0
    %1627 = vmatprep.subr.mxu0 0.0
    %1628 = vmatpush2.msra.mxu0 0.0
    %1629 = vmatprep.subr.mxu0 0.0
    %1630 = vmatpush2.msra.mxu0 0.0
    %1631 = vmatprep.subr.mxu0 0.0
    %1632 = vmatpush2.msra.mxu0 0.0
    %1633 = vmatprep.subr.mxu0 0.0
    %1634 = vmatpush2.msra.mxu0 0.0
    %1635 = vmatprep.subr.mxu0 0.0
    %1636 = vmatpush2.msra.mxu0 0.0
    %1637 = vmatprep.subr.mxu0 0.0
    %1638 = vmatpush2.msra.mxu0 0.0
    %1639 = vmatprep.subr.mxu0 0.0
    %1640 = vmatpush2.msra.mxu0 0.0
    %1641 = vmatprep.subr.mxu0 0.0
    %1642 = vmatpush2.msra.mxu0 0.0
    %1643 = vmatprep.mubr.f32.mxu0 0.0
    %1644 = vmatmul.mubr.f32.gmra.mxu0 %v1499
    %v1645 = vpop.f32.mrf.mxu0
    %v1646 = vadd.f32 0.0, %v1645
    %v1647 = vpop.f32.mrf.mxu0
    %1648 = vmatprep.mubr.f32.mxu0 0.0
    %1649 = vmatmul.mubr.f32.gmra.mxu0 %v1502
    %v1650 = vpop.f32.mrf.mxu0
    %v1651 = vadd.f32 0.0, %v1650
    %v1652 = vpop.f32.mrf.mxu0
    %1653 = vdwg.mxu0
    %1654 = vmatprep.subr.mxu0 0.0
    %1655 = vmatpush1.msra.mxu0 0.0
    %1656 = vmatprep.subr.mxu0 0.0
    %1657 = vmatpush1.msra.mxu0 0.0
    %1658 = vmatprep.subr.mxu0 0.0
    %1659 = vmatpush1.msra.mxu0 0.0
    %1660 = vmatprep.subr.mxu0 0.0
    %1661 = vmatpush1.msra.mxu0 0.0
    %1662 = vmatprep.subr.mxu0 0.0
    %1663 = vmatpush1.msra.mxu0 0.0
    %1664 = vmatprep.subr.mxu0 0.0
    %1665 = vmatpush1.msra.mxu0 0.0
    %1666 = vmatprep.subr.mxu0 0.0
    %1667 = vmatpush1.msra.mxu0 0.0
    %1668 = vmatprep.subr.mxu0 0.0
    %1669 = vmatpush1.msra.mxu0 0.0
    %1670 = vmatprep.subr.mxu0 0.0
    %1671 = vmatpush1.msra.mxu0 0.0
    %1672 = vmatprep.subr.mxu0 0.0
    %1673 = vmatpush1.msra.mxu0 0.0
    %1674 = vmatprep.subr.mxu0 0.0
    %1675 = vmatpush1.msra.mxu0 0.0
    %1676 = vmatprep.subr.mxu0 0.0
    %1677 = vmatpush1.msra.mxu0 0.0
    %1678 = vmatprep.subr.mxu0 0.0
    %1679 = vmatpush1.msra.mxu0 0.0
    %1680 = vmatprep.subr.mxu0 0.0
    %1681 = vmatpush1.msra.mxu0 0.0
    %1682 = vmatprep.subr.mxu0 0.0
    %1683 = vmatpush1.msra.mxu0 %v1651
    %1684 = vmatprep.subr.mxu0 0.0
    %1685 = vmatpush1.msra.mxu0 %v1646
    %1686 = vmatprep.subr.mxu0 0.0
    %1687 = vmatpush2.msra.mxu0 0.0
    %1688 = vmatprep.subr.mxu0 0.0
    %1689 = vmatpush2.msra.mxu0 0.0
    %1690 = vmatprep.subr.mxu0 0.0
    %1691 = vmatpush2.msra.mxu0 0.0
    %1692 = vmatprep.subr.mxu0 0.0
    %1693 = vmatpush2.msra.mxu0 0.0
    %1694 = vmatprep.subr.mxu0 0.0
    %1695 = vmatpush2.msra.mxu0 0.0
    %1696 = vmatprep.subr.mxu0 0.0
    %1697 = vmatpush2.msra.mxu0 0.0
    %1698 = vmatprep.subr.mxu0 0.0
    %1699 = vmatpush2.msra.mxu0 0.0
    %1700 = vmatprep.subr.mxu0 0.0
    %1701 = vmatpush2.msra.mxu0 0.0
    %1702 = vmatprep.subr.mxu0 0.0
    %1703 = vmatpush2.msra.mxu0 0.0
    %1704 = vmatprep.subr.mxu0 0.0
    %1705 = vmatpush2.msra.mxu0 0.0
    %1706 = vmatprep.subr.mxu0 0.0
    %1707 = vmatpush2.msra.mxu0 0.0
    %1708 = vmatprep.subr.mxu0 0.0
    %1709 = vmatpush2.msra.mxu0 0.0
    %1710 = vmatprep.subr.mxu0 0.0
    %1711 = vmatpush2.msra.mxu0 0.0
    %1712 = vmatprep.subr.mxu0 0.0
    %1713 = vmatpush2.msra.mxu0 0.0
    %1714 = vmatprep.subr.mxu0 0.0
    %1715 = vmatpush2.msra.mxu0 0.0
    %1716 = vmatprep.subr.mxu0 0.0
    %1717 = vmatpush2.msra.mxu0 0.0
    %1718 = vmatprep.mubr.f32.mxu0 0.0
    %1719 = vmatmul.mubr.f32.gmra.mxu0 %v793
    %v1720 = vpop.f32.mrf.mxu0
    %v1721 = vadd.f32 0.0, %v1720
    %v1722 = vpop.f32.mrf.mxu0
    %1723 = vmatprep.mubr.f32.mxu0 0.0
    %1724 = vmatmul.mubr.f32.gmra.mxu0 %v796
    %v1725 = vpop.f32.mrf.mxu0
    %v1726 = vadd.f32 0.0, %v1725
    %v1727 = vpop.f32.mrf.mxu0
    %1728 = vmatprep.mubr.f32.mxu0 0.0
    %1729 = vmatmul.mubr.f32.gmra.mxu0 %v799
    %v1730 = vpop.f32.mrf.mxu0
    %v1731 = vadd.f32 0.0, %v1730
    %v1732 = vpop.f32.mrf.mxu0
    %1733 = vmatprep.mubr.f32.mxu0 0.0
    %1734 = vmatmul.mubr.f32.gmra.mxu0 %v802
    %v1735 = vpop.f32.mrf.mxu0
    %v1736 = vadd.f32 0.0, %v1735
    %v1737 = vpop.f32.mrf.mxu0
    %1738 = vdwg.mxu0
    %1739 = vmatprep.subr.mxu0 0.0
    %1740 = vmatpush1.msra.mxu0 0.0
    %1741 = vmatprep.subr.mxu0 0.0
    %1742 = vmatpush1.msra.mxu0 0.0
    %1743 = vmatprep.subr.mxu0 0.0
    %1744 = vmatpush1.msra.mxu0 0.0
    %1745 = vmatprep.subr.mxu0 0.0
    %1746 = vmatpush1.msra.mxu0 0.0
    %1747 = vmatprep.subr.mxu0 0.0
    %1748 = vmatpush1.msra.mxu0 0.0
    %1749 = vmatprep.subr.mxu0 0.0
    %1750 = vmatpush1.msra.mxu0 0.0
    %1751 = vmatprep.subr.mxu0 0.0
    %1752 = vmatpush1.msra.mxu0 0.0
    %1753 = vmatprep.subr.mxu0 0.0
    %1754 = vmatpush1.msra.mxu0 0.0
    %1755 = vmatprep.subr.mxu0 0.0
    %1756 = vmatpush1.msra.mxu0 0.0
    %1757 = vmatprep.subr.mxu0 0.0
    %1758 = vmatpush1.msra.mxu0 0.0
    %1759 = vmatprep.subr.mxu0 0.0
    %1760 = vmatpush1.msra.mxu0 0.0
    %1761 = vmatprep.subr.mxu0 0.0
    %1762 = vmatpush1.msra.mxu0 0.0
    %1763 = vmatprep.subr.mxu0 0.0
    %1764 = vmatpush1.msra.mxu0 0.0
    %1765 = vmatprep.subr.mxu0 0.0
    %1766 = vmatpush1.msra.mxu0 0.0
    %1767 = vmatprep.subr.mxu0 0.0
    %1768 = vmatpush1.msra.mxu0 %v1576
    %1769 = vmatprep.subr.mxu0 0.0
    %1770 = vmatpush1.msra.mxu0 %v1571
    %1771 = vmatprep.subr.mxu0 0.0
    %1772 = vmatpush2.msra.mxu0 0.0
    %1773 = vmatprep.subr.mxu0 0.0
    %1774 = vmatpush2.msra.mxu0 0.0
    %1775 = vmatprep.subr.mxu0 0.0
    %1776 = vmatpush2.msra.mxu0 0.0
    %1777 = vmatprep.subr.mxu0 0.0
    %1778 = vmatpush2.msra.mxu0 0.0
    %1779 = vmatprep.subr.mxu0 0.0
    %1780 = vmatpush2.msra.mxu0 0.0
    %1781 = vmatprep.subr.mxu0 0.0
    %1782 = vmatpush2.msra.mxu0 0.0
    %1783 = vmatprep.subr.mxu0 0.0
    %1784 = vmatpush2.msra.mxu0 0.0
    %1785 = vmatprep.subr.mxu0 0.0
    %1786 = vmatpush2.msra.mxu0 0.0
    %1787 = vmatprep.subr.mxu0 0.0
    %1788 = vmatpush2.msra.mxu0 0.0
    %1789 = vmatprep.subr.mxu0 0.0
    %1790 = vmatpush2.msra.mxu0 0.0
    %1791 = vmatprep.subr.mxu0 0.0
    %1792 = vmatpush2.msra.mxu0 0.0
    %1793 = vmatprep.subr.mxu0 0.0
    %1794 = vmatpush2.msra.mxu0 0.0
    %1795 = vmatprep.subr.mxu0 0.0
    %1796 = vmatpush2.msra.mxu0 0.0
    %1797 = vmatprep.subr.mxu0 0.0
    %1798 = vmatpush2.msra.mxu0 0.0
    %1799 = vmatprep.subr.mxu0 0.0
    %1800 = vmatpush2.msra.mxu0 0.0
    %1801 = vmatprep.subr.mxu0 0.0
    %1802 = vmatpush2.msra.mxu0 0.0
    %1803 = vmatprep.mubr.f32.mxu0 0.0
    %1804 = vmatmul.mubr.f32.gmra.mxu0 %v890
    %v1805 = vpop.f32.mrf.mxu0
    %v1806 = vadd.f32 %v1721, %v1805
    %v1807 = vpop.f32.mrf.mxu0
    %1808 = vmatprep.mubr.f32.mxu0 0.0
    %1809 = vmatmul.mubr.f32.gmra.mxu0 %v893
    %v1810 = vpop.f32.mrf.mxu0
    %v1811 = vadd.f32 %v1726, %v1810
    %v1812 = vpop.f32.mrf.mxu0
    %1813 = vmatprep.mubr.f32.mxu0 0.0
    %1814 = vmatmul.mubr.f32.gmra.mxu0 %v896
    %v1815 = vpop.f32.mrf.mxu0
    %v1816 = vadd.f32 %v1731, %v1815
    %v1817 = vpop.f32.mrf.mxu0
    %1818 = vmatprep.mubr.f32.mxu0 0.0
    %1819 = vmatmul.mubr.f32.gmra.mxu0 %v899
    %v1820 = vpop.f32.mrf.mxu0
    %v1821 = vadd.f32 %v1736, %v1820
    %v1822 = vpop.f32.mrf.mxu0
    %1823 = vdwg.mxu0
    %v1824 = vadd.f32 %v1806, %v374
    %v1825 = vadd.f32 %v1811, %v380
    %v1826 = vadd.f32 %v1816, %v386
    %v1827 = vadd.f32 %v1821, %v392
    %v1828 = vlaneseq
    %v1829 = vshrl.u32 %v1828, 7
    %v1830 = vsub.s32 0, %v1829
    %v1831 = vrot.slane %v1497, %v1830
    %v1832 = vadd.f32 %v1824, %v1831
    %v1833 = vadd.f32 %v1825, %v1831
    %v1834 = vadd.f32 %v1826, %v1831
    %v1835 = vadd.f32 %v1827, %v1831
    %v1836 = vmax.f32 %v1832, 0.0
    %v1837 = vmax.f32 %v1833, 0.0
    %v1838 = vmax.f32 %v1834, 0.0
    %v1839 = vmax.f32 %v1835, 0.0
    %v1840 = vlaneseq
    %v1841 = vshrl.u32 %v1840, 7
    %v1842 = vsub.s32 1, %v1841
    %v1843 = vrot.slane %v1497, %v1842
    %v1845 = vsel %vm634, %v1836, 0
    %v1848 = vsel %vm634, %v1837, 0
    %v1851 = vsel %vm634, %v1838, 0
    %v1854 = vsel %vm634, %v1839, 0
    %1856 = vmatprep.subr.mxu0 0.0
    %1857 = vmatpush1.msra.mxu0 0.0
    %1858 = vmatprep.subr.mxu0 0.0
    %1859 = vmatpush1.msra.mxu0 0.0
    %1860 = vmatprep.subr.mxu0 0.0
    %1861 = vmatpush1.msra.mxu0 0.0
    %1862 = vmatprep.subr.mxu0 0.0
    %1863 = vmatpush1.msra.mxu0 0.0
    %1864 = vmatprep.subr.mxu0 0.0
    %1865 = vmatpush1.msra.mxu0 0.0
    %1866 = vmatprep.subr.mxu0 0.0
    %1867 = vmatpush1.msra.mxu0 0.0
    %1868 = vmatprep.subr.mxu0 0.0
    %1869 = vmatpush1.msra.mxu0 0.0
    %1870 = vmatprep.subr.mxu0 0.0
    %1871 = vmatpush1.msra.mxu0 0.0
    %1872 = vmatprep.subr.mxu0 0.0
    %1873 = vmatpush1.msra.mxu0 %v1468
    %1874 = vmatprep.subr.mxu0 0.0
    %1875 = vmatpush1.msra.mxu0 %v1467
    %1876 = vmatprep.subr.mxu0 0.0
    %1877 = vmatpush1.msra.mxu0 %v1466
    %1878 = vmatprep.subr.mxu0 0.0
    %1879 = vmatpush1.msra.mxu0 %v1465
    %1880 = vmatprep.subr.mxu0 0.0
    %1881 = vmatpush1.msra.mxu0 %v1464
    %1882 = vmatprep.subr.mxu0 0.0
    %1883 = vmatpush1.msra.mxu0 %v1463
    %1884 = vmatprep.subr.mxu0 0.0
    %1885 = vmatpush1.msra.mxu0 %v1462
    %1886 = vmatprep.subr.mxu0 0.0
    %1887 = vmatpush1.msra.mxu0 %v1461
    %1888 = vmatprep.subr.mxu0 0.0
    %1889 = vmatpush2.msra.mxu0 0.0
    %1890 = vmatprep.subr.mxu0 0.0
    %1891 = vmatpush2.msra.mxu0 0.0
    %1892 = vmatprep.subr.mxu0 0.0
    %1893 = vmatpush2.msra.mxu0 0.0
    %1894 = vmatprep.subr.mxu0 0.0
    %1895 = vmatpush2.msra.mxu0 0.0
    %1896 = vmatprep.subr.mxu0 0.0
    %1897 = vmatpush2.msra.mxu0 0.0
    %1898 = vmatprep.subr.mxu0 0.0
    %1899 = vmatpush2.msra.mxu0 0.0
    %1900 = vmatprep.subr.mxu0 0.0
    %1901 = vmatpush2.msra.mxu0 0.0
    %1902 = vmatprep.subr.mxu0 0.0
    %1903 = vmatpush2.msra.mxu0 0.0
    %1904 = vmatprep.subr.mxu0 0.0
    %1905 = vmatpush2.msra.mxu0 0.0
    %1906 = vmatprep.subr.mxu0 0.0
    %1907 = vmatpush2.msra.mxu0 0.0
    %1908 = vmatprep.subr.mxu0 0.0
    %1909 = vmatpush2.msra.mxu0 0.0
    %1910 = vmatprep.subr.mxu0 0.0
    %1911 = vmatpush2.msra.mxu0 0.0
    %1912 = vmatprep.subr.mxu0 0.0
    %1913 = vmatpush2.msra.mxu0 0.0
    %1914 = vmatprep.subr.mxu0 0.0
    %1915 = vmatpush2.msra.mxu0 0.0
    %1916 = vmatprep.subr.mxu0 0.0
    %1917 = vmatpush2.msra.mxu0 0.0
    %1918 = vmatprep.subr.mxu0 0.0
    %1919 = vmatpush2.msra.mxu0 0.0
    %1920 = vmatprep.mubr.f32.mxu0 0.0
    %1921 = vmatmul.mubr.f32.gmra.mxu0 %v1845
    %v1922 = vpop.f32.mrf.mxu0
    %v1923 = vadd.f32 %v1843, %v1922
    %v1924 = vpop.f32.mrf.mxu0
    %1925 = vmatprep.mubr.f32.mxu0 0.0
    %1926 = vmatmul.mubr.f32.gmra.mxu0 %v1848
    %v1927 = vpop.f32.mrf.mxu0
    %v1928 = vadd.f32 %v1843, %v1927
    %v1929 = vpop.f32.mrf.mxu0
    %1930 = vmatprep.mubr.f32.mxu0 0.0
    %1931 = vmatmul.mubr.f32.gmra.mxu0 %v1851
    %v1932 = vpop.f32.mrf.mxu0
    %v1933 = vadd.f32 %v1843, %v1932
    %v1934 = vpop.f32.mrf.mxu0
    %1935 = vmatprep.mubr.f32.mxu0 0.0
    %1936 = vmatmul.mubr.f32.gmra.mxu0 %v1854
    %v1937 = vpop.f32.mrf.mxu0
    %v1938 = vadd.f32 %v1843, %v1937
    %v1939 = vpop.f32.mrf.mxu0
    %1940 = vdwg.mxu0
    %v1941 = vmax.f32 %v1923, 0.0
    %v1942 = vmax.f32 %v1928, 0.0
    %v1943 = vmax.f32 %v1933, 0.0
    %v1944 = vmax.f32 %v1938, 0.0
    %1945 = vmatprep.subr.mxu0 0.0
    %1946 = vmatpush1.msra.mxu0 0.0
    %1947 = vmatprep.subr.mxu0 0.0
    %1948 = vmatpush1.msra.mxu0 0.0
    %1949 = vmatprep.subr.mxu0 0.0
    %1950 = vmatpush1.msra.mxu0 0.0
    %1951 = vmatprep.subr.mxu0 0.0
    %1952 = vmatpush1.msra.mxu0 0.0
    %1953 = vmatprep.subr.mxu0 0.0
    %1954 = vmatpush1.msra.mxu0 0.0
    %1955 = vmatprep.subr.mxu0 0.0
    %1956 = vmatpush1.msra.mxu0 0.0
    %1957 = vmatprep.subr.mxu0 0.0
    %1958 = vmatpush1.msra.mxu0 0.0
    %1959 = vmatprep.subr.mxu0 0.0
    %1960 = vmatpush1.msra.mxu0 0.0
    %1961 = vmatprep.subr.mxu0 0.0
    %1962 = vmatpush1.msra.mxu0 0.0
    %1963 = vmatprep.subr.mxu0 0.0
    %1964 = vmatpush1.msra.mxu0 0.0
    %1965 = vmatprep.subr.mxu0 0.0
    %1966 = vmatpush1.msra.mxu0 0.0
    %1967 = vmatprep.subr.mxu0 0.0
    %1968 = vmatpush1.msra.mxu0 0.0
    %1969 = vmatprep.subr.mxu0 0.0
    %1970 = vmatpush1.msra.mxu0 %v1944
    %1971 = vmatprep.subr.mxu0 0.0
    %1972 = vmatpush1.msra.mxu0 %v1943
    %1973 = vmatprep.subr.mxu0 0.0
    %1974 = vmatpush1.msra.mxu0 %v1942
    %1975 = vmatprep.subr.mxu0 0.0
    %1976 = vmatpush1.msra.mxu0 %v1941
    %1977 = vmatprep.subr.mxu0 0.0
    %1978 = vmatpush2.msra.mxu0 0.0
    %1979 = vmatprep.subr.mxu0 0.0
    %1980 = vmatpush2.msra.mxu0 0.0
    %1981 = vmatprep.subr.mxu0 0.0
    %1982 = vmatpush2.msra.mxu0 0.0
    %1983 = vmatprep.subr.mxu0 0.0
    %1984 = vmatpush2.msra.mxu0 0.0
    %1985 = vmatprep.subr.mxu0 0.0
    %1986 = vmatpush2.msra.mxu0 0.0
    %1987 = vmatprep.subr.mxu0 0.0
    %1988 = vmatpush2.msra.mxu0 0.0
    %1989 = vmatprep.subr.mxu0 0.0
    %1990 = vmatpush2.msra.mxu0 0.0
    %1991 = vmatprep.subr.mxu0 0.0
    %1992 = vmatpush2.msra.mxu0 0.0
    %1993 = vmatprep.subr.mxu0 0.0
    %1994 = vmatpush2.msra.mxu0 0.0
    %1995 = vmatprep.subr.mxu0 0.0
    %1996 = vmatpush2.msra.mxu0 0.0
    %1997 = vmatprep.subr.mxu0 0.0
    %1998 = vmatpush2.msra.mxu0 0.0
    %1999 = vmatprep.subr.mxu0 0.0
    %2000 = vmatpush2.msra.mxu0 0.0
    %2001 = vmatprep.subr.mxu0 0.0
    %2002 = vmatpush2.msra.mxu0 0.0
    %2003 = vmatprep.subr.mxu0 0.0
    %2004 = vmatpush2.msra.mxu0 0.0
    %2005 = vmatprep.subr.mxu0 0.0
    %2006 = vmatpush2.msra.mxu0 0.0
    %2007 = vmatprep.subr.mxu0 0.0
    %2008 = vmatpush2.msra.mxu0 0.0
    %2009 = vmatprep.mubr.f32.mxu0 0.0
    %2010 = vmatmul.mubr.f32.gmra.mxu0 %v1109
    %v2011 = vpop.f32.mrf.mxu0
    %v2012 = vadd.f32 0.0, %v2011
    %v2013 = vpop.f32.mrf.mxu0
    %2014 = vmatprep.mubr.f32.mxu0 0.0
    %2015 = vmatmul.mubr.f32.gmra.mxu0 %v1112
    %v2016 = vpop.f32.mrf.mxu0
    %v2017 = vadd.f32 0.0, %v2016
    %v2018 = vpop.f32.mrf.mxu0
    %2019 = vdwg.mxu0
    %v2021 = vsel %vm634, %v2012, 0
    %v2024 = vsel %vm634, %v2017, 0
    %2026 = vmatprep.subr.mxu0 0.0
    %2027 = vmatpush1.msra.mxu0 0.0
    %2028 = vmatprep.subr.mxu0 0.0
    %2029 = vmatpush1.msra.mxu0 0.0
    %2030 = vmatprep.subr.mxu0 0.0
    %2031 = vmatpush1.msra.mxu0 0.0
    %2032 = vmatprep.subr.mxu0 0.0
    %2033 = vmatpush1.msra.mxu0 0.0
    %2034 = vmatprep.subr.mxu0 0.0
    %2035 = vmatpush1.msra.mxu0 0.0
    %2036 = vmatprep.subr.mxu0 0.0
    %2037 = vmatpush1.msra.mxu0 0.0
    %2038 = vmatprep.subr.mxu0 0.0
    %2039 = vmatpush1.msra.mxu0 0.0
    %2040 = vmatprep.subr.mxu0 0.0
    %2041 = vmatpush1.msra.mxu0 0.0
    %2042 = vmatprep.subr.mxu0 0.0
    %2043 = vmatpush1.msra.mxu0 %v1486
    %2044 = vmatprep.subr.mxu0 0.0
    %2045 = vmatpush1.msra.mxu0 %v1485
    %2046 = vmatprep.subr.mxu0 0.0
    %2047 = vmatpush1.msra.mxu0 %v1484
    %2048 = vmatprep.subr.mxu0 0.0
    %2049 = vmatpush1.msra.mxu0 %v1483
    %2050 = vmatprep.subr.mxu0 0.0
    %2051 = vmatpush1.msra.mxu0 %v1482
    %2052 = vmatprep.subr.mxu0 0.0
    %2053 = vmatpush1.msra.mxu0 %v1481
    %2054 = vmatprep.subr.mxu0 0.0
    %2055 = vmatpush1.msra.mxu0 %v1480
    %2056 = vmatprep.subr.mxu0 0.0
    %2057 = vmatpush1.msra.mxu0 %v1479
    %2058 = vmatprep.subr.mxu0 0.0
    %2059 = vmatpush2.msra.mxu0 0.0
    %2060 = vmatprep.subr.mxu0 0.0
    %2061 = vmatpush2.msra.mxu0 0.0
    %2062 = vmatprep.subr.mxu0 0.0
    %2063 = vmatpush2.msra.mxu0 0.0
    %2064 = vmatprep.subr.mxu0 0.0
    %2065 = vmatpush2.msra.mxu0 0.0
    %2066 = vmatprep.subr.mxu0 0.0
    %2067 = vmatpush2.msra.mxu0 0.0
    %2068 = vmatprep.subr.mxu0 0.0
    %2069 = vmatpush2.msra.mxu0 0.0
    %2070 = vmatprep.subr.mxu0 0.0
    %2071 = vmatpush2.msra.mxu0 0.0
    %2072 = vmatprep.subr.mxu0 0.0
    %2073 = vmatpush2.msra.mxu0 0.0
    %2074 = vmatprep.subr.mxu0 0.0
    %2075 = vmatpush2.msra.mxu0 0.0
    %2076 = vmatprep.subr.mxu0 0.0
    %2077 = vmatpush2.msra.mxu0 0.0
    %2078 = vmatprep.subr.mxu0 0.0
    %2079 = vmatpush2.msra.mxu0 0.0
    %2080 = vmatprep.subr.mxu0 0.0
    %2081 = vmatpush2.msra.mxu0 0.0
    %2082 = vmatprep.subr.mxu0 0.0
    %2083 = vmatpush2.msra.mxu0 0.0
    %2084 = vmatprep.subr.mxu0 0.0
    %2085 = vmatpush2.msra.mxu0 0.0
    %2086 = vmatprep.subr.mxu0 0.0
    %2087 = vmatpush2.msra.mxu0 0.0
    %2088 = vmatprep.subr.mxu0 0.0
    %2089 = vmatpush2.msra.mxu0 0.0
    %2090 = vmatprep.mubr.f32.mxu0 0.0
    %2091 = vmatmul.mubr.f32.gmra.mxu0 %v2021
    %v2092 = vpop.f32.mrf.mxu0
    %v2093 = vadd.f32 0.0, %v2092
    %v2094 = vpop.f32.mrf.mxu0
    %2095 = vmatprep.mubr.f32.mxu0 0.0
    %2096 = vmatmul.mubr.f32.gmra.mxu0 %v2024
    %v2097 = vpop.f32.mrf.mxu0
    %v2098 = vadd.f32 0.0, %v2097
    %v2099 = vpop.f32.mrf.mxu0
    %2100 = vdwg.mxu0
    %2101 = vmatprep.subr.mxu0 0.0
    %2102 = vmatpush1.msra.mxu0 0.0
    %2103 = vmatprep.subr.mxu0 0.0
    %2104 = vmatpush1.msra.mxu0 0.0
    %2105 = vmatprep.subr.mxu0 0.0
    %2106 = vmatpush1.msra.mxu0 0.0
    %2107 = vmatprep.subr.mxu0 0.0
    %2108 = vmatpush1.msra.mxu0 0.0
    %2109 = vmatprep.subr.mxu0 0.0
    %2110 = vmatpush1.msra.mxu0 0.0
    %2111 = vmatprep.subr.mxu0 0.0
    %2112 = vmatpush1.msra.mxu0 0.0
    %2113 = vmatprep.subr.mxu0 0.0
    %2114 = vmatpush1.msra.mxu0 0.0
    %2115 = vmatprep.subr.mxu0 0.0
    %2116 = vmatpush1.msra.mxu0 0.0
    %2117 = vmatprep.subr.mxu0 0.0
    %2118 = vmatpush1.msra.mxu0 %v1477
    %2119 = vmatprep.subr.mxu0 0.0
    %2120 = vmatpush1.msra.mxu0 %v1476
    %2121 = vmatprep.subr.mxu0 0.0
    %2122 = vmatpush1.msra.mxu0 %v1475
    %2123 = vmatprep.subr.mxu0 0.0
    %2124 = vmatpush1.msra.mxu0 %v1474
    %2125 = vmatprep.subr.mxu0 0.0
    %2126 = vmatpush1.msra.mxu0 %v1473
    %2127 = vmatprep.subr.mxu0 0.0
    %2128 = vmatpush1.msra.mxu0 %v1472
    %2129 = vmatprep.subr.mxu0 0.0
    %2130 = vmatpush1.msra.mxu0 %v1471
    %2131 = vmatprep.subr.mxu0 0.0
    %2132 = vmatpush1.msra.mxu0 %v1470
    %2133 = vmatprep.subr.mxu0 0.0
    %2134 = vmatpush2.msra.mxu0 0.0
    %2135 = vmatprep.subr.mxu0 0.0
    %2136 = vmatpush2.msra.mxu0 0.0
    %2137 = vmatprep.subr.mxu0 0.0
    %2138 = vmatpush2.msra.mxu0 0.0
    %2139 = vmatprep.subr.mxu0 0.0
    %2140 = vmatpush2.msra.mxu0 0.0
    %2141 = vmatprep.subr.mxu0 0.0
    %2142 = vmatpush2.msra.mxu0 0.0
    %2143 = vmatprep.subr.mxu0 0.0
    %2144 = vmatpush2.msra.mxu0 0.0
    %2145 = vmatprep.subr.mxu0 0.0
    %2146 = vmatpush2.msra.mxu0 0.0
    %2147 = vmatprep.subr.mxu0 0.0
    %2148 = vmatpush2.msra.mxu0 0.0
    %2149 = vmatprep.subr.mxu0 0.0
    %2150 = vmatpush2.msra.mxu0 0.0
    %2151 = vmatprep.subr.mxu0 0.0
    %2152 = vmatpush2.msra.mxu0 0.0
    %2153 = vmatprep.subr.mxu0 0.0
    %2154 = vmatpush2.msra.mxu0 0.0
    %2155 = vmatprep.subr.mxu0 0.0
    %2156 = vmatpush2.msra.mxu0 0.0
    %2157 = vmatprep.subr.mxu0 0.0
    %2158 = vmatpush2.msra.mxu0 0.0
    %2159 = vmatprep.subr.mxu0 0.0
    %2160 = vmatpush2.msra.mxu0 0.0
    %2161 = vmatprep.subr.mxu0 0.0
    %2162 = vmatpush2.msra.mxu0 0.0
    %2163 = vmatprep.subr.mxu0 0.0
    %2164 = vmatpush2.msra.mxu0 0.0
    %2165 = vmatprep.mubr.f32.mxu0 0.0
    %2166 = vmatmul.mubr.f32.gmra.mxu0 %v1499
    %v2167 = vpop.f32.mrf.mxu0
    %v2168 = vadd.f32 %v2093, %v2167
    %v2169 = vpop.f32.mrf.mxu0
    %2170 = vmatprep.mubr.f32.mxu0 0.0
    %2171 = vmatmul.mubr.f32.gmra.mxu0 %v1502
    %v2172 = vpop.f32.mrf.mxu0
    %v2173 = vadd.f32 %v2098, %v2172
    %v2174 = vpop.f32.mrf.mxu0
    %2175 = vdwg.mxu0
    %v2176 = vlaneseq
    %v2177 = vshrl.u32 %v2176, 7
    %v2178 = vsub.s32 2, %v2177
    %v2179 = vrot.slane %v1497, %v2178
    %v2180 = vadd.f32 %v2168, %v2179
    %v2181 = vadd.f32 %v2173, %v2179
    %v2182 = vmax.f32 %v2180, 0.0
    %v2183 = vmax.f32 %v2181, 0.0
    %v2184 = vlaneseq
    %v2185 = vshrl.u32 %v2184, 7
    %v2186 = vsub.s32 3, %v2185
    %v2187 = vrot.slane %v1497, %v2186
    %v2189 = vsel %vm634, %v2182, 0
    %v2192 = vsel %vm634, %v2183, 0
    %2194 = vmatprep.subr.mxu0 0.0
    %2195 = vmatpush1.msra.mxu0 0.0
    %2196 = vmatprep.subr.mxu0 0.0
    %2197 = vmatpush1.msra.mxu0 0.0
    %2198 = vmatprep.subr.mxu0 0.0
    %2199 = vmatpush1.msra.mxu0 0.0
    %2200 = vmatprep.subr.mxu0 0.0
    %2201 = vmatpush1.msra.mxu0 0.0
    %2202 = vmatprep.subr.mxu0 0.0
    %2203 = vmatpush1.msra.mxu0 0.0
    %2204 = vmatprep.subr.mxu0 0.0
    %2205 = vmatpush1.msra.mxu0 0.0
    %2206 = vmatprep.subr.mxu0 0.0
    %2207 = vmatpush1.msra.mxu0 0.0
    %2208 = vmatprep.subr.mxu0 0.0
    %2209 = vmatpush1.msra.mxu0 0.0
    %2210 = vmatprep.subr.mxu0 0.0
    %2211 = vmatpush1.msra.mxu0 %v1495
    %2212 = vmatprep.subr.mxu0 0.0
    %2213 = vmatpush1.msra.mxu0 %v1494
    %2214 = vmatprep.subr.mxu0 0.0
    %2215 = vmatpush1.msra.mxu0 %v1493
    %2216 = vmatprep.subr.mxu0 0.0
    %2217 = vmatpush1.msra.mxu0 %v1492
    %2218 = vmatprep.subr.mxu0 0.0
    %2219 = vmatpush1.msra.mxu0 %v1491
    %2220 = vmatprep.subr.mxu0 0.0
    %2221 = vmatpush1.msra.mxu0 %v1490
    %2222 = vmatprep.subr.mxu0 0.0
    %2223 = vmatpush1.msra.mxu0 %v1489
    %2224 = vmatprep.subr.mxu0 0.0
    %2225 = vmatpush1.msra.mxu0 %v1488
    %2226 = vmatprep.subr.mxu0 0.0
    %2227 = vmatpush2.msra.mxu0 0.0
    %2228 = vmatprep.subr.mxu0 0.0
    %2229 = vmatpush2.msra.mxu0 0.0
    %2230 = vmatprep.subr.mxu0 0.0
    %2231 = vmatpush2.msra.mxu0 0.0
    %2232 = vmatprep.subr.mxu0 0.0
    %2233 = vmatpush2.msra.mxu0 0.0
    %2234 = vmatprep.subr.mxu0 0.0
    %2235 = vmatpush2.msra.mxu0 0.0
    %2236 = vmatprep.subr.mxu0 0.0
    %2237 = vmatpush2.msra.mxu0 0.0
    %2238 = vmatprep.subr.mxu0 0.0
    %2239 = vmatpush2.msra.mxu0 0.0
    %2240 = vmatprep.subr.mxu0 0.0
    %2241 = vmatpush2.msra.mxu0 0.0
    %2242 = vmatprep.subr.mxu0 0.0
    %2243 = vmatpush2.msra.mxu0 0.0
    %2244 = vmatprep.subr.mxu0 0.0
    %2245 = vmatpush2.msra.mxu0 0.0
    %2246 = vmatprep.subr.mxu0 0.0
    %2247 = vmatpush2.msra.mxu0 0.0
    %2248 = vmatprep.subr.mxu0 0.0
    %2249 = vmatpush2.msra.mxu0 0.0
    %2250 = vmatprep.subr.mxu0 0.0
    %2251 = vmatpush2.msra.mxu0 0.0
    %2252 = vmatprep.subr.mxu0 0.0
    %2253 = vmatpush2.msra.mxu0 0.0
    %2254 = vmatprep.subr.mxu0 0.0
    %2255 = vmatpush2.msra.mxu0 0.0
    %2256 = vmatprep.subr.mxu0 0.0
    %2257 = vmatpush2.msra.mxu0 0.0
    %2258 = vmatprep.mubr.f32.mxu0 0.0
    %2259 = vmatmul.mubr.f32.gmra.mxu0 %v2189
    %v2260 = vpop.f32.mrf.mxu0
    %v2261 = vadd.f32 %v2187, %v2260
    %v2262 = vpop.f32.mrf.mxu0
    %2263 = vmatprep.mubr.f32.mxu0 0.0
    %2264 = vmatmul.mubr.f32.gmra.mxu0 %v2192
    %v2265 = vpop.f32.mrf.mxu0
    %v2266 = vadd.f32 %v2187, %v2265
    %v2267 = vpop.f32.mrf.mxu0
    %2268 = vdwg.mxu0
    %v2269 = vmax.f32 %v2261, 0.0
    %v2270 = vmax.f32 %v2266, 0.0
    %v2271 = vadd.f32 %v1440, %v2269
    %v2272 = vadd.f32 %v1441, %v2270
    %s2273 = scalar_lea.vmem [#allocation15], 768
    %v2274 = vld [vmem:[%s2273] sm:$0xff]
    %v2275 = vld [vmem:[%s2273 + $0x8] sm:$0xff]
    %v2276 = vld [vmem:[%s2273 + $0x10] sm:$0xff]
    %v2277 = vld [vmem:[%s2273 + $0x18] sm:$0xff]
    %v2278 = vld [vmem:[%s2273 + $0x20] sm:$0xff]
    %v2279 = vld [vmem:[%s2273 + $0x28] sm:$0xff]
    %v2280 = vld [vmem:[%s2273 + $0x30] sm:$0xff]
    %v2281 = vld [vmem:[%s2273 + $0x38] sm:$0xff]
    %s2282 = scalar_lea.vmem [#allocation15], 832
    %v2283 = vld [vmem:[%s2282] sm:$0xff]
    %v2284 = vld [vmem:[%s2282 + $0x8] sm:$0xff]
    %v2285 = vld [vmem:[%s2282 + $0x10] sm:$0xff]
    %v2286 = vld [vmem:[%s2282 + $0x18] sm:$0xff]
    %v2287 = vld [vmem:[%s2282 + $0x20] sm:$0xff]
    %v2288 = vld [vmem:[%s2282 + $0x28] sm:$0xff]
    %v2289 = vld [vmem:[%s2282 + $0x30] sm:$0xff]
    %v2290 = vld [vmem:[%s2282 + $0x38] sm:$0xff]
    %s2291 = scalar_lea.vmem [#allocation15], 896
    %v2292 = vld [vmem:[%s2291] sm:$0xff]
    %v2293 = vld [vmem:[%s2291 + $0x8] sm:$0xff]
    %v2294 = vld [vmem:[%s2291 + $0x10] sm:$0xff]
    %v2295 = vld [vmem:[%s2291 + $0x18] sm:$0xff]
    %v2296 = vld [vmem:[%s2291 + $0x20] sm:$0xff]
    %v2297 = vld [vmem:[%s2291 + $0x28] sm:$0xff]
    %v2298 = vld [vmem:[%s2291 + $0x30] sm:$0xff]
    %v2299 = vld [vmem:[%s2291 + $0x38] sm:$0xff]
    %s2300 = scalar_lea.vmem [#allocation15], 960
    %v2301 = vld [vmem:[%s2300] sm:$0xff]
    %v2302 = vld [vmem:[%s2300 + $0x8] sm:$0xff]
    %v2303 = vld [vmem:[%s2300 + $0x10] sm:$0xff]
    %v2304 = vld [vmem:[%s2300 + $0x18] sm:$0xff]
    %v2305 = vld [vmem:[%s2300 + $0x20] sm:$0xff]
    %v2306 = vld [vmem:[%s2300 + $0x28] sm:$0xff]
    %v2307 = vld [vmem:[%s2300 + $0x30] sm:$0xff]
    %v2308 = vld [vmem:[%s2300 + $0x38] sm:$0xff]
    %s2309 = scalar_lea.vmem [#allocation15], 1024
    %v2310 = vld [vmem:[%s2309] sm:$0xff]
    %v2311 = vld [vmem:[%s2309 + $0x8] sm:$0xff]
    %v2312 = vld [vmem:[%s2309 + $0x10] sm:$0xff]
    %v2313 = vld [vmem:[%s2309 + $0x18] sm:$0xff]
    %v2314 = vld [vmem:[%s2309 + $0x20] sm:$0xff]
    %v2315 = vld [vmem:[%s2309 + $0x28] sm:$0xff]
    %v2316 = vld [vmem:[%s2309 + $0x30] sm:$0xff]
    %v2317 = vld [vmem:[%s2309 + $0x38] sm:$0xff]
    %s2318 = scalar_lea.vmem [#allocation15], 1088
    %v2319 = vld [vmem:[%s2318] sm:$0xff]
    %v2320 = vld [vmem:[%s2318 + $0x8] sm:$0xff]
    %v2321 = vld [vmem:[%s2318 + $0x10] sm:$0xff]
    %v2322 = vld [vmem:[%s2318 + $0x18] sm:$0xff]
    %v2323 = vld [vmem:[%s2318 + $0x20] sm:$0xff]
    %v2324 = vld [vmem:[%s2318 + $0x28] sm:$0xff]
    %v2325 = vld [vmem:[%s2318 + $0x30] sm:$0xff]
    %v2326 = vld [vmem:[%s2318 + $0x38] sm:$0xff]
    %s2327 = scalar_lea.vmem [#allocation18], 8
    %v2328 = vld [vmem:[%s2327] sm:$0xf]
    %v2330 = vsel %vm634, %v2271, 0
    %v2333 = vsel %vm634, %v2272, 0
    %2335 = vmatprep.subr.mxu0 0.0
    %2336 = vmatpush1.msra.mxu0 0.0
    %2337 = vmatprep.subr.mxu0 0.0
    %2338 = vmatpush1.msra.mxu0 0.0
    %2339 = vmatprep.subr.mxu0 0.0
    %2340 = vmatpush1.msra.mxu0 0.0
    %2341 = vmatprep.subr.mxu0 0.0
    %2342 = vmatpush1.msra.mxu0 0.0
    %2343 = vmatprep.subr.mxu0 0.0
    %2344 = vmatpush1.msra.mxu0 0.0
    %2345 = vmatprep.subr.mxu0 0.0
    %2346 = vmatpush1.msra.mxu0 0.0
    %2347 = vmatprep.subr.mxu0 0.0
    %2348 = vmatpush1.msra.mxu0 0.0
    %2349 = vmatprep.subr.mxu0 0.0
    %2350 = vmatpush1.msra.mxu0 0.0
    %2351 = vmatprep.subr.mxu0 0.0
    %2352 = vmatpush1.msra.mxu0 %v2281
    %2353 = vmatprep.subr.mxu0 0.0
    %2354 = vmatpush1.msra.mxu0 %v2280
    %2355 = vmatprep.subr.mxu0 0.0
    %2356 = vmatpush1.msra.mxu0 %v2279
    %2357 = vmatprep.subr.mxu0 0.0
    %2358 = vmatpush1.msra.mxu0 %v2278
    %2359 = vmatprep.subr.mxu0 0.0
    %2360 = vmatpush1.msra.mxu0 %v2277
    %2361 = vmatprep.subr.mxu0 0.0
    %2362 = vmatpush1.msra.mxu0 %v2276
    %2363 = vmatprep.subr.mxu0 0.0
    %2364 = vmatpush1.msra.mxu0 %v2275
    %2365 = vmatprep.subr.mxu0 0.0
    %2366 = vmatpush1.msra.mxu0 %v2274
    %2367 = vmatprep.subr.mxu0 0.0
    %2368 = vmatpush2.msra.mxu0 0.0
    %2369 = vmatprep.subr.mxu0 0.0
    %2370 = vmatpush2.msra.mxu0 0.0
    %2371 = vmatprep.subr.mxu0 0.0
    %2372 = vmatpush2.msra.mxu0 0.0
    %2373 = vmatprep.subr.mxu0 0.0
    %2374 = vmatpush2.msra.mxu0 0.0
    %2375 = vmatprep.subr.mxu0 0.0
    %2376 = vmatpush2.msra.mxu0 0.0
    %2377 = vmatprep.subr.mxu0 0.0
    %2378 = vmatpush2.msra.mxu0 0.0
    %2379 = vmatprep.subr.mxu0 0.0
    %2380 = vmatpush2.msra.mxu0 0.0
    %2381 = vmatprep.subr.mxu0 0.0
    %2382 = vmatpush2.msra.mxu0 0.0
    %2383 = vmatprep.subr.mxu0 0.0
    %2384 = vmatpush2.msra.mxu0 0.0
    %2385 = vmatprep.subr.mxu0 0.0
    %2386 = vmatpush2.msra.mxu0 0.0
    %2387 = vmatprep.subr.mxu0 0.0
    %2388 = vmatpush2.msra.mxu0 0.0
    %2389 = vmatprep.subr.mxu0 0.0
    %2390 = vmatpush2.msra.mxu0 0.0
    %2391 = vmatprep.subr.mxu0 0.0
    %2392 = vmatpush2.msra.mxu0 0.0
    %2393 = vmatprep.subr.mxu0 0.0
    %2394 = vmatpush2.msra.mxu0 0.0
    %2395 = vmatprep.subr.mxu0 0.0
    %2396 = vmatpush2.msra.mxu0 0.0
    %2397 = vmatprep.subr.mxu0 0.0
    %2398 = vmatpush2.msra.mxu0 0.0
    %2399 = vmatprep.mubr.f32.mxu0 0.0
    %2400 = vmatmul.mubr.f32.gmra.mxu0 %v2330
    %v2401 = vpop.f32.mrf.mxu0
    %v2402 = vadd.f32 0.0, %v2401
    %v2403 = vpop.f32.mrf.mxu0
    %2404 = vmatprep.mubr.f32.mxu0 0.0
    %2405 = vmatmul.mubr.f32.gmra.mxu0 %v2333
    %v2406 = vpop.f32.mrf.mxu0
    %v2407 = vadd.f32 0.0, %v2406
    %v2408 = vpop.f32.mrf.mxu0
    %2409 = vdwg.mxu0
    %2410 = vmatprep.subr.mxu0 0.0
    %2411 = vmatpush1.msra.mxu0 0.0
    %2412 = vmatprep.subr.mxu0 0.0
    %2413 = vmatpush1.msra.mxu0 0.0
    %2414 = vmatprep.subr.mxu0 0.0
    %2415 = vmatpush1.msra.mxu0 0.0
    %2416 = vmatprep.subr.mxu0 0.0
    %2417 = vmatpush1.msra.mxu0 0.0
    %2418 = vmatprep.subr.mxu0 0.0
    %2419 = vmatpush1.msra.mxu0 0.0
    %2420 = vmatprep.subr.mxu0 0.0
    %2421 = vmatpush1.msra.mxu0 0.0
    %2422 = vmatprep.subr.mxu0 0.0
    %2423 = vmatpush1.msra.mxu0 0.0
    %2424 = vmatprep.subr.mxu0 0.0
    %2425 = vmatpush1.msra.mxu0 0.0
    %2426 = vmatprep.subr.mxu0 0.0
    %2427 = vmatpush1.msra.mxu0 %v2290
    %2428 = vmatprep.subr.mxu0 0.0
    %2429 = vmatpush1.msra.mxu0 %v2289
    %2430 = vmatprep.subr.mxu0 0.0
    %2431 = vmatpush1.msra.mxu0 %v2288
    %2432 = vmatprep.subr.mxu0 0.0
    %2433 = vmatpush1.msra.mxu0 %v2287
    %2434 = vmatprep.subr.mxu0 0.0
    %2435 = vmatpush1.msra.mxu0 %v2286
    %2436 = vmatprep.subr.mxu0 0.0
    %2437 = vmatpush1.msra.mxu0 %v2285
    %2438 = vmatprep.subr.mxu0 0.0
    %2439 = vmatpush1.msra.mxu0 %v2284
    %2440 = vmatprep.subr.mxu0 0.0
    %2441 = vmatpush1.msra.mxu0 %v2283
    %2442 = vmatprep.subr.mxu0 0.0
    %2443 = vmatpush2.msra.mxu0 0.0
    %2444 = vmatprep.subr.mxu0 0.0
    %2445 = vmatpush2.msra.mxu0 0.0
    %2446 = vmatprep.subr.mxu0 0.0
    %2447 = vmatpush2.msra.mxu0 0.0
    %2448 = vmatprep.subr.mxu0 0.0
    %2449 = vmatpush2.msra.mxu0 0.0
    %2450 = vmatprep.subr.mxu0 0.0
    %2451 = vmatpush2.msra.mxu0 0.0
    %2452 = vmatprep.subr.mxu0 0.0
    %2453 = vmatpush2.msra.mxu0 0.0
    %2454 = vmatprep.subr.mxu0 0.0
    %2455 = vmatpush2.msra.mxu0 0.0
    %2456 = vmatprep.subr.mxu0 0.0
    %2457 = vmatpush2.msra.mxu0 0.0
    %2458 = vmatprep.subr.mxu0 0.0
    %2459 = vmatpush2.msra.mxu0 0.0
    %2460 = vmatprep.subr.mxu0 0.0
    %2461 = vmatpush2.msra.mxu0 0.0
    %2462 = vmatprep.subr.mxu0 0.0
    %2463 = vmatpush2.msra.mxu0 0.0
    %2464 = vmatprep.subr.mxu0 0.0
    %2465 = vmatpush2.msra.mxu0 0.0
    %2466 = vmatprep.subr.mxu0 0.0
    %2467 = vmatpush2.msra.mxu0 0.0
    %2468 = vmatprep.subr.mxu0 0.0
    %2469 = vmatpush2.msra.mxu0 0.0
    %2470 = vmatprep.subr.mxu0 0.0
    %2471 = vmatpush2.msra.mxu0 0.0
    %2472 = vmatprep.subr.mxu0 0.0
    %2473 = vmatpush2.msra.mxu0 0.0
    %2474 = vmatprep.mubr.f32.mxu0 0.0
    %2475 = vmatmul.mubr.f32.gmra.mxu0 %v2330
    %v2476 = vpop.f32.mrf.mxu0
    %v2477 = vadd.f32 0.0, %v2476
    %v2478 = vpop.f32.mrf.mxu0
    %2479 = vmatprep.mubr.f32.mxu0 0.0
    %2480 = vmatmul.mubr.f32.gmra.mxu0 %v2333
    %v2481 = vpop.f32.mrf.mxu0
    %v2482 = vadd.f32 0.0, %v2481
    %v2483 = vpop.f32.mrf.mxu0
    %2484 = vdwg.mxu0
    %2485 = vmatprep.subr.mxu0 0.0
    %2486 = vmatpush1.msra.mxu0 0.0
    %2487 = vmatprep.subr.mxu0 0.0
    %2488 = vmatpush1.msra.mxu0 0.0
    %2489 = vmatprep.subr.mxu0 0.0
    %2490 = vmatpush1.msra.mxu0 0.0
    %2491 = vmatprep.subr.mxu0 0.0
    %2492 = vmatpush1.msra.mxu0 0.0
    %2493 = vmatprep.subr.mxu0 0.0
    %2494 = vmatpush1.msra.mxu0 0.0
    %2495 = vmatprep.subr.mxu0 0.0
    %2496 = vmatpush1.msra.mxu0 0.0
    %2497 = vmatprep.subr.mxu0 0.0
    %2498 = vmatpush1.msra.mxu0 0.0
    %2499 = vmatprep.subr.mxu0 0.0
    %2500 = vmatpush1.msra.mxu0 0.0
    %2501 = vmatprep.subr.mxu0 0.0
    %2502 = vmatpush1.msra.mxu0 0.0
    %2503 = vmatprep.subr.mxu0 0.0
    %2504 = vmatpush1.msra.mxu0 0.0
    %2505 = vmatprep.subr.mxu0 0.0
    %2506 = vmatpush1.msra.mxu0 0.0
    %2507 = vmatprep.subr.mxu0 0.0
    %2508 = vmatpush1.msra.mxu0 0.0
    %2509 = vmatprep.subr.mxu0 0.0
    %2510 = vmatpush1.msra.mxu0 0.0
    %2511 = vmatprep.subr.mxu0 0.0
    %2512 = vmatpush1.msra.mxu0 0.0
    %2513 = vmatprep.subr.mxu0 0.0
    %2514 = vmatpush1.msra.mxu0 %v2482
    %2515 = vmatprep.subr.mxu0 0.0
    %2516 = vmatpush1.msra.mxu0 %v2477
    %2517 = vmatprep.subr.mxu0 0.0
    %2518 = vmatpush2.msra.mxu0 0.0
    %2519 = vmatprep.subr.mxu0 0.0
    %2520 = vmatpush2.msra.mxu0 0.0
    %2521 = vmatprep.subr.mxu0 0.0
    %2522 = vmatpush2.msra.mxu0 0.0
    %2523 = vmatprep.subr.mxu0 0.0
    %2524 = vmatpush2.msra.mxu0 0.0
    %2525 = vmatprep.subr.mxu0 0.0
    %2526 = vmatpush2.msra.mxu0 0.0
    %2527 = vmatprep.subr.mxu0 0.0
    %2528 = vmatpush2.msra.mxu0 0.0
    %2529 = vmatprep.subr.mxu0 0.0
    %2530 = vmatpush2.msra.mxu0 0.0
    %2531 = vmatprep.subr.mxu0 0.0
    %2532 = vmatpush2.msra.mxu0 0.0
    %2533 = vmatprep.subr.mxu0 0.0
    %2534 = vmatpush2.msra.mxu0 0.0
    %2535 = vmatprep.subr.mxu0 0.0
    %2536 = vmatpush2.msra.mxu0 0.0
    %2537 = vmatprep.subr.mxu0 0.0
    %2538 = vmatpush2.msra.mxu0 0.0
    %2539 = vmatprep.subr.mxu0 0.0
    %2540 = vmatpush2.msra.mxu0 0.0
    %2541 = vmatprep.subr.mxu0 0.0
    %2542 = vmatpush2.msra.mxu0 0.0
    %2543 = vmatprep.subr.mxu0 0.0
    %2544 = vmatpush2.msra.mxu0 0.0
    %2545 = vmatprep.subr.mxu0 0.0
    %2546 = vmatpush2.msra.mxu0 0.0
    %2547 = vmatprep.subr.mxu0 0.0
    %2548 = vmatpush2.msra.mxu0 0.0
    %2549 = vmatprep.mubr.f32.mxu0 0.0
    %2550 = vmatmul.mubr.f32.gmra.mxu0 %v793
    %v2551 = vpop.f32.mrf.mxu0
    %v2552 = vadd.f32 0.0, %v2551
    %v2553 = vpop.f32.mrf.mxu0
    %2554 = vmatprep.mubr.f32.mxu0 0.0
    %2555 = vmatmul.mubr.f32.gmra.mxu0 %v796
    %v2556 = vpop.f32.mrf.mxu0
    %v2557 = vadd.f32 0.0, %v2556
    %v2558 = vpop.f32.mrf.mxu0
    %2559 = vmatprep.mubr.f32.mxu0 0.0
    %2560 = vmatmul.mubr.f32.gmra.mxu0 %v799
    %v2561 = vpop.f32.mrf.mxu0
    %v2562 = vadd.f32 0.0, %v2561
    %v2563 = vpop.f32.mrf.mxu0
    %2564 = vmatprep.mubr.f32.mxu0 0.0
    %2565 = vmatmul.mubr.f32.gmra.mxu0 %v802
    %v2566 = vpop.f32.mrf.mxu0
    %v2567 = vadd.f32 0.0, %v2566
    %v2568 = vpop.f32.mrf.mxu0
    %2569 = vdwg.mxu0
    %2570 = vmatprep.subr.mxu0 0.0
    %2571 = vmatpush1.msra.mxu0 0.0
    %2572 = vmatprep.subr.mxu0 0.0
    %2573 = vmatpush1.msra.mxu0 0.0
    %2574 = vmatprep.subr.mxu0 0.0
    %2575 = vmatpush1.msra.mxu0 0.0
    %2576 = vmatprep.subr.mxu0 0.0
    %2577 = vmatpush1.msra.mxu0 0.0
    %2578 = vmatprep.subr.mxu0 0.0
    %2579 = vmatpush1.msra.mxu0 0.0
    %2580 = vmatprep.subr.mxu0 0.0
    %2581 = vmatpush1.msra.mxu0 0.0
    %2582 = vmatprep.subr.mxu0 0.0
    %2583 = vmatpush1.msra.mxu0 0.0
    %2584 = vmatprep.subr.mxu0 0.0
    %2585 = vmatpush1.msra.mxu0 0.0
    %2586 = vmatprep.subr.mxu0 0.0
    %2587 = vmatpush1.msra.mxu0 0.0
    %2588 = vmatprep.subr.mxu0 0.0
    %2589 = vmatpush1.msra.mxu0 0.0
    %2590 = vmatprep.subr.mxu0 0.0
    %2591 = vmatpush1.msra.mxu0 0.0
    %2592 = vmatprep.subr.mxu0 0.0
    %2593 = vmatpush1.msra.mxu0 0.0
    %2594 = vmatprep.subr.mxu0 0.0
    %2595 = vmatpush1.msra.mxu0 0.0
    %2596 = vmatprep.subr.mxu0 0.0
    %2597 = vmatpush1.msra.mxu0 0.0
    %2598 = vmatprep.subr.mxu0 0.0
    %2599 = vmatpush1.msra.mxu0 %v2407
    %2600 = vmatprep.subr.mxu0 0.0
    %2601 = vmatpush1.msra.mxu0 %v2402
    %2602 = vmatprep.subr.mxu0 0.0
    %2603 = vmatpush2.msra.mxu0 0.0
    %2604 = vmatprep.subr.mxu0 0.0
    %2605 = vmatpush2.msra.mxu0 0.0
    %2606 = vmatprep.subr.mxu0 0.0
    %2607 = vmatpush2.msra.mxu0 0.0
    %2608 = vmatprep.subr.mxu0 0.0
    %2609 = vmatpush2.msra.mxu0 0.0
    %2610 = vmatprep.subr.mxu0 0.0
    %2611 = vmatpush2.msra.mxu0 0.0
    %2612 = vmatprep.subr.mxu0 0.0
    %2613 = vmatpush2.msra.mxu0 0.0
    %2614 = vmatprep.subr.mxu0 0.0
    %2615 = vmatpush2.msra.mxu0 0.0
    %2616 = vmatprep.subr.mxu0 0.0
    %2617 = vmatpush2.msra.mxu0 0.0
    %2618 = vmatprep.subr.mxu0 0.0
    %2619 = vmatpush2.msra.mxu0 0.0
    %2620 = vmatprep.subr.mxu0 0.0
    %2621 = vmatpush2.msra.mxu0 0.0
    %2622 = vmatprep.subr.mxu0 0.0
    %2623 = vmatpush2.msra.mxu0 0.0
    %2624 = vmatprep.subr.mxu0 0.0
    %2625 = vmatpush2.msra.mxu0 0.0
    %2626 = vmatprep.subr.mxu0 0.0
    %2627 = vmatpush2.msra.mxu0 0.0
    %2628 = vmatprep.subr.mxu0 0.0
    %2629 = vmatpush2.msra.mxu0 0.0
    %2630 = vmatprep.subr.mxu0 0.0
    %2631 = vmatpush2.msra.mxu0 0.0
    %2632 = vmatprep.subr.mxu0 0.0
    %2633 = vmatpush2.msra.mxu0 0.0
    %2634 = vmatprep.mubr.f32.mxu0 0.0
    %2635 = vmatmul.mubr.f32.gmra.mxu0 %v890
    %v2636 = vpop.f32.mrf.mxu0
    %v2637 = vadd.f32 %v2552, %v2636
    %v2638 = vpop.f32.mrf.mxu0
    %2639 = vmatprep.mubr.f32.mxu0 0.0
    %2640 = vmatmul.mubr.f32.gmra.mxu0 %v893
    %v2641 = vpop.f32.mrf.mxu0
    %v2642 = vadd.f32 %v2557, %v2641
    %v2643 = vpop.f32.mrf.mxu0
    %2644 = vmatprep.mubr.f32.mxu0 0.0
    %2645 = vmatmul.mubr.f32.gmra.mxu0 %v896
    %v2646 = vpop.f32.mrf.mxu0
    %v2647 = vadd.f32 %v2562, %v2646
    %v2648 = vpop.f32.mrf.mxu0
    %2649 = vmatprep.mubr.f32.mxu0 0.0
    %2650 = vmatmul.mubr.f32.gmra.mxu0 %v899
    %v2651 = vpop.f32.mrf.mxu0
    %v2652 = vadd.f32 %v2567, %v2651
    %v2653 = vpop.f32.mrf.mxu0
    %2654 = vdwg.mxu0
    %v2655 = vadd.f32 %v2637, %v461
    %v2656 = vadd.f32 %v2642, %v467
    %v2657 = vadd.f32 %v2647, %v473
    %v2658 = vadd.f32 %v2652, %v479
    %v2659 = vlaneseq
    %v2660 = vshrl.u32 %v2659, 7
    %v2661 = vsub.s32 0, %v2660
    %v2662 = vrot.slane %v2328, %v2661
    %v2663 = vadd.f32 %v2655, %v2662
    %v2664 = vadd.f32 %v2656, %v2662
    %v2665 = vadd.f32 %v2657, %v2662
    %v2666 = vadd.f32 %v2658, %v2662
    %v2667 = vmax.f32 %v2663, 0.0
    %v2668 = vmax.f32 %v2664, 0.0
    %v2669 = vmax.f32 %v2665, 0.0
    %v2670 = vmax.f32 %v2666, 0.0
    %v2671 = vlaneseq
    %v2672 = vshrl.u32 %v2671, 7
    %v2673 = vsub.s32 1, %v2672
    %v2674 = vrot.slane %v2328, %v2673
    %v2676 = vsel %vm634, %v2667, 0
    %v2679 = vsel %vm634, %v2668, 0
    %v2682 = vsel %vm634, %v2669, 0
    %v2685 = vsel %vm634, %v2670, 0
    %2687 = vmatprep.subr.mxu0 0.0
    %2688 = vmatpush1.msra.mxu0 0.0
    %2689 = vmatprep.subr.mxu0 0.0
    %2690 = vmatpush1.msra.mxu0 0.0
    %2691 = vmatprep.subr.mxu0 0.0
    %2692 = vmatpush1.msra.mxu0 0.0
    %2693 = vmatprep.subr.mxu0 0.0
    %2694 = vmatpush1.msra.mxu0 0.0
    %2695 = vmatprep.subr.mxu0 0.0
    %2696 = vmatpush1.msra.mxu0 0.0
    %2697 = vmatprep.subr.mxu0 0.0
    %2698 = vmatpush1.msra.mxu0 0.0
    %2699 = vmatprep.subr.mxu0 0.0
    %2700 = vmatpush1.msra.mxu0 0.0
    %2701 = vmatprep.subr.mxu0 0.0
    %2702 = vmatpush1.msra.mxu0 0.0
    %2703 = vmatprep.subr.mxu0 0.0
    %2704 = vmatpush1.msra.mxu0 %v2299
    %2705 = vmatprep.subr.mxu0 0.0
    %2706 = vmatpush1.msra.mxu0 %v2298
    %2707 = vmatprep.subr.mxu0 0.0
    %2708 = vmatpush1.msra.mxu0 %v2297
    %2709 = vmatprep.subr.mxu0 0.0
    %2710 = vmatpush1.msra.mxu0 %v2296
    %2711 = vmatprep.subr.mxu0 0.0
    %2712 = vmatpush1.msra.mxu0 %v2295
    %2713 = vmatprep.subr.mxu0 0.0
    %2714 = vmatpush1.msra.mxu0 %v2294
    %2715 = vmatprep.subr.mxu0 0.0
    %2716 = vmatpush1.msra.mxu0 %v2293
    %2717 = vmatprep.subr.mxu0 0.0
    %2718 = vmatpush1.msra.mxu0 %v2292
    %2719 = vmatprep.subr.mxu0 0.0
    %2720 = vmatpush2.msra.mxu0 0.0
    %2721 = vmatprep.subr.mxu0 0.0
    %2722 = vmatpush2.msra.mxu0 0.0
    %2723 = vmatprep.subr.mxu0 0.0
    %2724 = vmatpush2.msra.mxu0 0.0
    %2725 = vmatprep.subr.mxu0 0.0
    %2726 = vmatpush2.msra.mxu0 0.0
    %2727 = vmatprep.subr.mxu0 0.0
    %2728 = vmatpush2.msra.mxu0 0.0
    %2729 = vmatprep.subr.mxu0 0.0
    %2730 = vmatpush2.msra.mxu0 0.0
    %2731 = vmatprep.subr.mxu0 0.0
    %2732 = vmatpush2.msra.mxu0 0.0
    %2733 = vmatprep.subr.mxu0 0.0
    %2734 = vmatpush2.msra.mxu0 0.0
    %2735 = vmatprep.subr.mxu0 0.0
    %2736 = vmatpush2.msra.mxu0 0.0
    %2737 = vmatprep.subr.mxu0 0.0
    %2738 = vmatpush2.msra.mxu0 0.0
    %2739 = vmatprep.subr.mxu0 0.0
    %2740 = vmatpush2.msra.mxu0 0.0
    %2741 = vmatprep.subr.mxu0 0.0
    %2742 = vmatpush2.msra.mxu0 0.0
    %2743 = vmatprep.subr.mxu0 0.0
    %2744 = vmatpush2.msra.mxu0 0.0
    %2745 = vmatprep.subr.mxu0 0.0
    %2746 = vmatpush2.msra.mxu0 0.0
    %2747 = vmatprep.subr.mxu0 0.0
    %2748 = vmatpush2.msra.mxu0 0.0
    %2749 = vmatprep.subr.mxu0 0.0
    %2750 = vmatpush2.msra.mxu0 0.0
    %2751 = vmatprep.mubr.f32.mxu0 0.0
    %2752 = vmatmul.mubr.f32.gmra.mxu0 %v2676
    %v2753 = vpop.f32.mrf.mxu0
    %v2754 = vadd.f32 %v2674, %v2753
    %v2755 = vpop.f32.mrf.mxu0
    %2756 = vmatprep.mubr.f32.mxu0 0.0
    %2757 = vmatmul.mubr.f32.gmra.mxu0 %v2679
    %v2758 = vpop.f32.mrf.mxu0
    %v2759 = vadd.f32 %v2674, %v2758
    %v2760 = vpop.f32.mrf.mxu0
    %2761 = vmatprep.mubr.f32.mxu0 0.0
    %2762 = vmatmul.mubr.f32.gmra.mxu0 %v2682
    %v2763 = vpop.f32.mrf.mxu0
    %v2764 = vadd.f32 %v2674, %v2763
    %v2765 = vpop.f32.mrf.mxu0
    %2766 = vmatprep.mubr.f32.mxu0 0.0
    %2767 = vmatmul.mubr.f32.gmra.mxu0 %v2685
    %v2768 = vpop.f32.mrf.mxu0
    %v2769 = vadd.f32 %v2674, %v2768
    %v2770 = vpop.f32.mrf.mxu0
    %2771 = vdwg.mxu0
    %v2772 = vmax.f32 %v2754, 0.0
    %v2773 = vmax.f32 %v2759, 0.0
    %v2774 = vmax.f32 %v2764, 0.0
    %v2775 = vmax.f32 %v2769, 0.0
    %2776 = vmatprep.subr.mxu0 0.0
    %2777 = vmatpush1.msra.mxu0 0.0
    %2778 = vmatprep.subr.mxu0 0.0
    %2779 = vmatpush1.msra.mxu0 0.0
    %2780 = vmatprep.subr.mxu0 0.0
    %2781 = vmatpush1.msra.mxu0 0.0
    %2782 = vmatprep.subr.mxu0 0.0
    %2783 = vmatpush1.msra.mxu0 0.0
    %2784 = vmatprep.subr.mxu0 0.0
    %2785 = vmatpush1.msra.mxu0 0.0
    %2786 = vmatprep.subr.mxu0 0.0
    %2787 = vmatpush1.msra.mxu0 0.0
    %2788 = vmatprep.subr.mxu0 0.0
    %2789 = vmatpush1.msra.mxu0 0.0
    %2790 = vmatprep.subr.mxu0 0.0
    %2791 = vmatpush1.msra.mxu0 0.0
    %2792 = vmatprep.subr.mxu0 0.0
    %2793 = vmatpush1.msra.mxu0 0.0
    %2794 = vmatprep.subr.mxu0 0.0
    %2795 = vmatpush1.msra.mxu0 0.0
    %2796 = vmatprep.subr.mxu0 0.0
    %2797 = vmatpush1.msra.mxu0 0.0
    %2798 = vmatprep.subr.mxu0 0.0
    %2799 = vmatpush1.msra.mxu0 0.0
    %2800 = vmatprep.subr.mxu0 0.0
    %2801 = vmatpush1.msra.mxu0 %v2775
    %2802 = vmatprep.subr.mxu0 0.0
    %2803 = vmatpush1.msra.mxu0 %v2774
    %2804 = vmatprep.subr.mxu0 0.0
    %2805 = vmatpush1.msra.mxu0 %v2773
    %2806 = vmatprep.subr.mxu0 0.0
    %2807 = vmatpush1.msra.mxu0 %v2772
    %2808 = vmatprep.subr.mxu0 0.0
    %2809 = vmatpush2.msra.mxu0 0.0
    %2810 = vmatprep.subr.mxu0 0.0
    %2811 = vmatpush2.msra.mxu0 0.0
    %2812 = vmatprep.subr.mxu0 0.0
    %2813 = vmatpush2.msra.mxu0 0.0
    %2814 = vmatprep.subr.mxu0 0.0
    %2815 = vmatpush2.msra.mxu0 0.0
    %2816 = vmatprep.subr.mxu0 0.0
    %2817 = vmatpush2.msra.mxu0 0.0
    %2818 = vmatprep.subr.mxu0 0.0
    %2819 = vmatpush2.msra.mxu0 0.0
    %2820 = vmatprep.subr.mxu0 0.0
    %2821 = vmatpush2.msra.mxu0 0.0
    %2822 = vmatprep.subr.mxu0 0.0
    %2823 = vmatpush2.msra.mxu0 0.0
    %2824 = vmatprep.subr.mxu0 0.0
    %2825 = vmatpush2.msra.mxu0 0.0
    %2826 = vmatprep.subr.mxu0 0.0
    %2827 = vmatpush2.msra.mxu0 0.0
    %2828 = vmatprep.subr.mxu0 0.0
    %2829 = vmatpush2.msra.mxu0 0.0
    %2830 = vmatprep.subr.mxu0 0.0
    %2831 = vmatpush2.msra.mxu0 0.0
    %2832 = vmatprep.subr.mxu0 0.0
    %2833 = vmatpush2.msra.mxu0 0.0
    %2834 = vmatprep.subr.mxu0 0.0
    %2835 = vmatpush2.msra.mxu0 0.0
    %2836 = vmatprep.subr.mxu0 0.0
    %2837 = vmatpush2.msra.mxu0 0.0
    %2838 = vmatprep.subr.mxu0 0.0
    %2839 = vmatpush2.msra.mxu0 0.0
    %2840 = vmatprep.mubr.f32.mxu0 0.0
    %2841 = vmatmul.mubr.f32.gmra.mxu0 %v1109
    %v2842 = vpop.f32.mrf.mxu0
    %v2843 = vadd.f32 0.0, %v2842
    %v2844 = vpop.f32.mrf.mxu0
    %2845 = vmatprep.mubr.f32.mxu0 0.0
    %2846 = vmatmul.mubr.f32.gmra.mxu0 %v1112
    %v2847 = vpop.f32.mrf.mxu0
    %v2848 = vadd.f32 0.0, %v2847
    %v2849 = vpop.f32.mrf.mxu0
    %2850 = vdwg.mxu0
    %v2852 = vsel %vm634, %v2843, 0
    %v2855 = vsel %vm634, %v2848, 0
    %2857 = vmatprep.subr.mxu0 0.0
    %2858 = vmatpush1.msra.mxu0 0.0
    %2859 = vmatprep.subr.mxu0 0.0
    %2860 = vmatpush1.msra.mxu0 0.0
    %2861 = vmatprep.subr.mxu0 0.0
    %2862 = vmatpush1.msra.mxu0 0.0
    %2863 = vmatprep.subr.mxu0 0.0
    %2864 = vmatpush1.msra.mxu0 0.0
    %2865 = vmatprep.subr.mxu0 0.0
    %2866 = vmatpush1.msra.mxu0 0.0
    %2867 = vmatprep.subr.mxu0 0.0
    %2868 = vmatpush1.msra.mxu0 0.0
    %2869 = vmatprep.subr.mxu0 0.0
    %2870 = vmatpush1.msra.mxu0 0.0
    %2871 = vmatprep.subr.mxu0 0.0
    %2872 = vmatpush1.msra.mxu0 0.0
    %2873 = vmatprep.subr.mxu0 0.0
    %2874 = vmatpush1.msra.mxu0 %v2317
    %2875 = vmatprep.subr.mxu0 0.0
    %2876 = vmatpush1.msra.mxu0 %v2316
    %2877 = vmatprep.subr.mxu0 0.0
    %2878 = vmatpush1.msra.mxu0 %v2315
    %2879 = vmatprep.subr.mxu0 0.0
    %2880 = vmatpush1.msra.mxu0 %v2314
    %2881 = vmatprep.subr.mxu0 0.0
    %2882 = vmatpush1.msra.mxu0 %v2313
    %2883 = vmatprep.subr.mxu0 0.0
    %2884 = vmatpush1.msra.mxu0 %v2312
    %2885 = vmatprep.subr.mxu0 0.0
    %2886 = vmatpush1.msra.mxu0 %v2311
    %2887 = vmatprep.subr.mxu0 0.0
    %2888 = vmatpush1.msra.mxu0 %v2310
    %2889 = vmatprep.subr.mxu0 0.0
    %2890 = vmatpush2.msra.mxu0 0.0
    %2891 = vmatprep.subr.mxu0 0.0
    %2892 = vmatpush2.msra.mxu0 0.0
    %2893 = vmatprep.subr.mxu0 0.0
    %2894 = vmatpush2.msra.mxu0 0.0
    %2895 = vmatprep.subr.mxu0 0.0
    %2896 = vmatpush2.msra.mxu0 0.0
    %2897 = vmatprep.subr.mxu0 0.0
    %2898 = vmatpush2.msra.mxu0 0.0
    %2899 = vmatprep.subr.mxu0 0.0
    %2900 = vmatpush2.msra.mxu0 0.0
    %2901 = vmatprep.subr.mxu0 0.0
    %2902 = vmatpush2.msra.mxu0 0.0
    %2903 = vmatprep.subr.mxu0 0.0
    %2904 = vmatpush2.msra.mxu0 0.0
    %2905 = vmatprep.subr.mxu0 0.0
    %2906 = vmatpush2.msra.mxu0 0.0
    %2907 = vmatprep.subr.mxu0 0.0
    %2908 = vmatpush2.msra.mxu0 0.0
    %2909 = vmatprep.subr.mxu0 0.0
    %2910 = vmatpush2.msra.mxu0 0.0
    %2911 = vmatprep.subr.mxu0 0.0
    %2912 = vmatpush2.msra.mxu0 0.0
    %2913 = vmatprep.subr.mxu0 0.0
    %2914 = vmatpush2.msra.mxu0 0.0
    %2915 = vmatprep.subr.mxu0 0.0
    %2916 = vmatpush2.msra.mxu0 0.0
    %2917 = vmatprep.subr.mxu0 0.0
    %2918 = vmatpush2.msra.mxu0 0.0
    %2919 = vmatprep.subr.mxu0 0.0
    %2920 = vmatpush2.msra.mxu0 0.0
    %2921 = vmatprep.mubr.f32.mxu0 0.0
    %2922 = vmatmul.mubr.f32.gmra.mxu0 %v2852
    %v2923 = vpop.f32.mrf.mxu0
    %v2924 = vadd.f32 0.0, %v2923
    %v2925 = vpop.f32.mrf.mxu0
    %2926 = vmatprep.mubr.f32.mxu0 0.0
    %2927 = vmatmul.mubr.f32.gmra.mxu0 %v2855
    %v2928 = vpop.f32.mrf.mxu0
    %v2929 = vadd.f32 0.0, %v2928
    %v2930 = vpop.f32.mrf.mxu0
    %2931 = vdwg.mxu0
    %2932 = vmatprep.subr.mxu0 0.0
    %2933 = vmatpush1.msra.mxu0 0.0
    %2934 = vmatprep.subr.mxu0 0.0
    %2935 = vmatpush1.msra.mxu0 0.0
    %2936 = vmatprep.subr.mxu0 0.0
    %2937 = vmatpush1.msra.mxu0 0.0
    %2938 = vmatprep.subr.mxu0 0.0
    %2939 = vmatpush1.msra.mxu0 0.0
    %2940 = vmatprep.subr.mxu0 0.0
    %2941 = vmatpush1.msra.mxu0 0.0
    %2942 = vmatprep.subr.mxu0 0.0
    %2943 = vmatpush1.msra.mxu0 0.0
    %2944 = vmatprep.subr.mxu0 0.0
    %2945 = vmatpush1.msra.mxu0 0.0
    %2946 = vmatprep.subr.mxu0 0.0
    %2947 = vmatpush1.msra.mxu0 0.0
    %2948 = vmatprep.subr.mxu0 0.0
    %2949 = vmatpush1.msra.mxu0 %v2308
    %2950 = vmatprep.subr.mxu0 0.0
    %2951 = vmatpush1.msra.mxu0 %v2307
    %2952 = vmatprep.subr.mxu0 0.0
    %2953 = vmatpush1.msra.mxu0 %v2306
    %2954 = vmatprep.subr.mxu0 0.0
    %2955 = vmatpush1.msra.mxu0 %v2305
    %2956 = vmatprep.subr.mxu0 0.0
    %2957 = vmatpush1.msra.mxu0 %v2304
    %2958 = vmatprep.subr.mxu0 0.0
    %2959 = vmatpush1.msra.mxu0 %v2303
    %2960 = vmatprep.subr.mxu0 0.0
    %2961 = vmatpush1.msra.mxu0 %v2302
    %2962 = vmatprep.subr.mxu0 0.0
    %2963 = vmatpush1.msra.mxu0 %v2301
    %2964 = vmatprep.subr.mxu0 0.0
    %2965 = vmatpush2.msra.mxu0 0.0
    %2966 = vmatprep.subr.mxu0 0.0
    %2967 = vmatpush2.msra.mxu0 0.0
    %2968 = vmatprep.subr.mxu0 0.0
    %2969 = vmatpush2.msra.mxu0 0.0
    %2970 = vmatprep.subr.mxu0 0.0
    %2971 = vmatpush2.msra.mxu0 0.0
    %2972 = vmatprep.subr.mxu0 0.0
    %2973 = vmatpush2.msra.mxu0 0.0
    %2974 = vmatprep.subr.mxu0 0.0
    %2975 = vmatpush2.msra.mxu0 0.0
    %2976 = vmatprep.subr.mxu0 0.0
    %2977 = vmatpush2.msra.mxu0 0.0
    %2978 = vmatprep.subr.mxu0 0.0
    %2979 = vmatpush2.msra.mxu0 0.0
    %2980 = vmatprep.subr.mxu0 0.0
    %2981 = vmatpush2.msra.mxu0 0.0
    %2982 = vmatprep.subr.mxu0 0.0
    %2983 = vmatpush2.msra.mxu0 0.0
    %2984 = vmatprep.subr.mxu0 0.0
    %2985 = vmatpush2.msra.mxu0 0.0
    %2986 = vmatprep.subr.mxu0 0.0
    %2987 = vmatpush2.msra.mxu0 0.0
    %2988 = vmatprep.subr.mxu0 0.0
    %2989 = vmatpush2.msra.mxu0 0.0
    %2990 = vmatprep.subr.mxu0 0.0
    %2991 = vmatpush2.msra.mxu0 0.0
    %2992 = vmatprep.subr.mxu0 0.0
    %2993 = vmatpush2.msra.mxu0 0.0
    %2994 = vmatprep.subr.mxu0 0.0
    %2995 = vmatpush2.msra.mxu0 0.0
    %2996 = vmatprep.mubr.f32.mxu0 0.0
    %2997 = vmatmul.mubr.f32.gmra.mxu0 %v2330
    %v2998 = vpop.f32.mrf.mxu0
    %v2999 = vadd.f32 %v2924, %v2998
    %v3000 = vpop.f32.mrf.mxu0
    %3001 = vmatprep.mubr.f32.mxu0 0.0
    %3002 = vmatmul.mubr.f32.gmra.mxu0 %v2333
    %v3003 = vpop.f32.mrf.mxu0
    %v3004 = vadd.f32 %v2929, %v3003
    %v3005 = vpop.f32.mrf.mxu0
    %3006 = vdwg.mxu0
    %v3007 = vlaneseq
    %v3008 = vshrl.u32 %v3007, 7
    %v3009 = vsub.s32 2, %v3008
    %v3010 = vrot.slane %v2328, %v3009
    %v3011 = vadd.f32 %v2999, %v3010
    %v3012 = vadd.f32 %v3004, %v3010
    %v3013 = vmax.f32 %v3011, 0.0
    %v3014 = vmax.f32 %v3012, 0.0
    %v3015 = vlaneseq
    %v3016 = vshrl.u32 %v3015, 7
    %v3017 = vsub.s32 3, %v3016
    %v3018 = vrot.slane %v2328, %v3017
    %v3020 = vsel %vm634, %v3013, 0
    %v3023 = vsel %vm634, %v3014, 0
    %3025 = vmatprep.subr.mxu0 0.0
    %3026 = vmatpush1.msra.mxu0 0.0
    %3027 = vmatprep.subr.mxu0 0.0
    %3028 = vmatpush1.msra.mxu0 0.0
    %3029 = vmatprep.subr.mxu0 0.0
    %3030 = vmatpush1.msra.mxu0 0.0
    %3031 = vmatprep.subr.mxu0 0.0
    %3032 = vmatpush1.msra.mxu0 0.0
    %3033 = vmatprep.subr.mxu0 0.0
    %3034 = vmatpush1.msra.mxu0 0.0
    %3035 = vmatprep.subr.mxu0 0.0
    %3036 = vmatpush1.msra.mxu0 0.0
    %3037 = vmatprep.subr.mxu0 0.0
    %3038 = vmatpush1.msra.mxu0 0.0
    %3039 = vmatprep.subr.mxu0 0.0
    %3040 = vmatpush1.msra.mxu0 0.0
    %3041 = vmatprep.subr.mxu0 0.0
    %3042 = vmatpush1.msra.mxu0 %v2326
    %3043 = vmatprep.subr.mxu0 0.0
    %3044 = vmatpush1.msra.mxu0 %v2325
    %3045 = vmatprep.subr.mxu0 0.0
    %3046 = vmatpush1.msra.mxu0 %v2324
    %3047 = vmatprep.subr.mxu0 0.0
    %3048 = vmatpush1.msra.mxu0 %v2323
    %3049 = vmatprep.subr.mxu0 0.0
    %3050 = vmatpush1.msra.mxu0 %v2322
    %3051 = vmatprep.subr.mxu0 0.0
    %3052 = vmatpush1.msra.mxu0 %v2321
    %3053 = vmatprep.subr.mxu0 0.0
    %3054 = vmatpush1.msra.mxu0 %v2320
    %3055 = vmatprep.subr.mxu0 0.0
    %3056 = vmatpush1.msra.mxu0 %v2319
    %3057 = vmatprep.subr.mxu0 0.0
    %3058 = vmatpush2.msra.mxu0 0.0
    %3059 = vmatprep.subr.mxu0 0.0
    %3060 = vmatpush2.msra.mxu0 0.0
    %3061 = vmatprep.subr.mxu0 0.0
    %3062 = vmatpush2.msra.mxu0 0.0
    %3063 = vmatprep.subr.mxu0 0.0
    %3064 = vmatpush2.msra.mxu0 0.0
    %3065 = vmatprep.subr.mxu0 0.0
    %3066 = vmatpush2.msra.mxu0 0.0
    %3067 = vmatprep.subr.mxu0 0.0
    %3068 = vmatpush2.msra.mxu0 0.0
    %3069 = vmatprep.subr.mxu0 0.0
    %3070 = vmatpush2.msra.mxu0 0.0
    %3071 = vmatprep.subr.mxu0 0.0
    %3072 = vmatpush2.msra.mxu0 0.0
    %3073 = vmatprep.subr.mxu0 0.0
    %3074 = vmatpush2.msra.mxu0 0.0
    %3075 = vmatprep.subr.mxu0 0.0
    %3076 = vmatpush2.msra.mxu0 0.0
    %3077 = vmatprep.subr.mxu0 0.0
    %3078 = vmatpush2.msra.mxu0 0.0
    %3079 = vmatprep.subr.mxu0 0.0
    %3080 = vmatpush2.msra.mxu0 0.0
    %3081 = vmatprep.subr.mxu0 0.0
    %3082 = vmatpush2.msra.mxu0 0.0
    %3083 = vmatprep.subr.mxu0 0.0
    %3084 = vmatpush2.msra.mxu0 0.0
    %3085 = vmatprep.subr.mxu0 0.0
    %3086 = vmatpush2.msra.mxu0 0.0
    %3087 = vmatprep.subr.mxu0 0.0
    %3088 = vmatpush2.msra.mxu0 0.0
    %3089 = vmatprep.mubr.f32.mxu0 0.0
    %3090 = vmatmul.mubr.f32.gmra.mxu0 %v3020
    %v3091 = vpop.f32.mrf.mxu0
    %v3092 = vadd.f32 %v3018, %v3091
    %v3093 = vpop.f32.mrf.mxu0
    %3094 = vmatprep.mubr.f32.mxu0 0.0
    %3095 = vmatmul.mubr.f32.gmra.mxu0 %v3023
    %v3096 = vpop.f32.mrf.mxu0
    %v3097 = vadd.f32 %v3018, %v3096
    %v3098 = vpop.f32.mrf.mxu0
    %3099 = vdwg.mxu0
    %v3100 = vmax.f32 %v3092, 0.0
    %v3101 = vmax.f32 %v3097, 0.0
    %v3102 = vadd.f32 %v2271, %v3100
    %v3103 = vadd.f32 %v2272, %v3101
    %s3104 = scalar_lea.vmem [#allocation15], 1152
    %v3105 = vld [vmem:[%s3104] sm:$0xff]
    %v3106 = vld [vmem:[%s3104 + $0x8] sm:$0xff]
    %v3107 = vld [vmem:[%s3104 + $0x10] sm:$0xff]
    %v3108 = vld [vmem:[%s3104 + $0x18] sm:$0xff]
    %v3109 = vld [vmem:[%s3104 + $0x20] sm:$0xff]
    %v3110 = vld [vmem:[%s3104 + $0x28] sm:$0xff]
    %v3111 = vld [vmem:[%s3104 + $0x30] sm:$0xff]
    %v3112 = vld [vmem:[%s3104 + $0x38] sm:$0xff]
    %s3113 = scalar_lea.vmem [#allocation15], 1216
    %v3114 = vld [vmem:[%s3113] sm:$0xff]
    %v3115 = vld [vmem:[%s3113 + $0x8] sm:$0xff]
    %v3116 = vld [vmem:[%s3113 + $0x10] sm:$0xff]
    %v3117 = vld [vmem:[%s3113 + $0x18] sm:$0xff]
    %v3118 = vld [vmem:[%s3113 + $0x20] sm:$0xff]
    %v3119 = vld [vmem:[%s3113 + $0x28] sm:$0xff]
    %v3120 = vld [vmem:[%s3113 + $0x30] sm:$0xff]
    %v3121 = vld [vmem:[%s3113 + $0x38] sm:$0xff]
    %s3122 = scalar_lea.vmem [#allocation15], 1280
    %v3123 = vld [vmem:[%s3122] sm:$0xff]
    %v3124 = vld [vmem:[%s3122 + $0x8] sm:$0xff]
    %v3125 = vld [vmem:[%s3122 + $0x10] sm:$0xff]
    %v3126 = vld [vmem:[%s3122 + $0x18] sm:$0xff]
    %v3127 = vld [vmem:[%s3122 + $0x20] sm:$0xff]
    %v3128 = vld [vmem:[%s3122 + $0x28] sm:$0xff]
    %v3129 = vld [vmem:[%s3122 + $0x30] sm:$0xff]
    %v3130 = vld [vmem:[%s3122 + $0x38] sm:$0xff]
    %s3131 = scalar_lea.vmem [#allocation15], 1344
    %v3132 = vld [vmem:[%s3131] sm:$0xff]
    %v3133 = vld [vmem:[%s3131 + $0x8] sm:$0xff]
    %v3134 = vld [vmem:[%s3131 + $0x10] sm:$0xff]
    %v3135 = vld [vmem:[%s3131 + $0x18] sm:$0xff]
    %v3136 = vld [vmem:[%s3131 + $0x20] sm:$0xff]
    %v3137 = vld [vmem:[%s3131 + $0x28] sm:$0xff]
    %v3138 = vld [vmem:[%s3131 + $0x30] sm:$0xff]
    %v3139 = vld [vmem:[%s3131 + $0x38] sm:$0xff]
    %s3140 = scalar_lea.vmem [#allocation15], 1408
    %v3141 = vld [vmem:[%s3140] sm:$0xff]
    %v3142 = vld [vmem:[%s3140 + $0x8] sm:$0xff]
    %v3143 = vld [vmem:[%s3140 + $0x10] sm:$0xff]
    %v3144 = vld [vmem:[%s3140 + $0x18] sm:$0xff]
    %v3145 = vld [vmem:[%s3140 + $0x20] sm:$0xff]
    %v3146 = vld [vmem:[%s3140 + $0x28] sm:$0xff]
    %v3147 = vld [vmem:[%s3140 + $0x30] sm:$0xff]
    %v3148 = vld [vmem:[%s3140 + $0x38] sm:$0xff]
    %s3149 = scalar_lea.vmem [#allocation15], 1472
    %v3150 = vld [vmem:[%s3149] sm:$0xff]
    %v3151 = vld [vmem:[%s3149 + $0x8] sm:$0xff]
    %v3152 = vld [vmem:[%s3149 + $0x10] sm:$0xff]
    %v3153 = vld [vmem:[%s3149 + $0x18] sm:$0xff]
    %v3154 = vld [vmem:[%s3149 + $0x20] sm:$0xff]
    %v3155 = vld [vmem:[%s3149 + $0x28] sm:$0xff]
    %v3156 = vld [vmem:[%s3149 + $0x30] sm:$0xff]
    %v3157 = vld [vmem:[%s3149 + $0x38] sm:$0xff]
    %s3158 = scalar_lea.vmem [#allocation18], 12
    %v3159 = vld [vmem:[%s3158] sm:$0xf]
    %v3161 = vsel %vm634, %v3102, 0
    %v3164 = vsel %vm634, %v3103, 0
    %3166 = vmatprep.subr.mxu0 0.0
    %3167 = vmatpush1.msra.mxu0 0.0
    %3168 = vmatprep.subr.mxu0 0.0
    %3169 = vmatpush1.msra.mxu0 0.0
    %3170 = vmatprep.subr.mxu0 0.0
    %3171 = vmatpush1.msra.mxu0 0.0
    %3172 = vmatprep.subr.mxu0 0.0
    %3173 = vmatpush1.msra.mxu0 0.0
    %3174 = vmatprep.subr.mxu0 0.0
    %3175 = vmatpush1.msra.mxu0 0.0
    %3176 = vmatprep.subr.mxu0 0.0
    %3177 = vmatpush1.msra.mxu0 0.0
    %3178 = vmatprep.subr.mxu0 0.0
    %3179 = vmatpush1.msra.mxu0 0.0
    %3180 = vmatprep.subr.mxu0 0.0
    %3181 = vmatpush1.msra.mxu0 0.0
    %3182 = vmatprep.subr.mxu0 0.0
    %3183 = vmatpush1.msra.mxu0 %v3112
    %3184 = vmatprep.subr.mxu0 0.0
    %3185 = vmatpush1.msra.mxu0 %v3111
    %3186 = vmatprep.subr.mxu0 0.0
    %3187 = vmatpush1.msra.mxu0 %v3110
    %3188 = vmatprep.subr.mxu0 0.0
    %3189 = vmatpush1.msra.mxu0 %v3109
    %3190 = vmatprep.subr.mxu0 0.0
    %3191 = vmatpush1.msra.mxu0 %v3108
    %3192 = vmatprep.subr.mxu0 0.0
    %3193 = vmatpush1.msra.mxu0 %v3107
    %3194 = vmatprep.subr.mxu0 0.0
    %3195 = vmatpush1.msra.mxu0 %v3106
    %3196 = vmatprep.subr.mxu0 0.0
    %3197 = vmatpush1.msra.mxu0 %v3105
    %3198 = vmatprep.subr.mxu0 0.0
    %3199 = vmatpush2.msra.mxu0 0.0
    %3200 = vmatprep.subr.mxu0 0.0
    %3201 = vmatpush2.msra.mxu0 0.0
    %3202 = vmatprep.subr.mxu0 0.0
    %3203 = vmatpush2.msra.mxu0 0.0
    %3204 = vmatprep.subr.mxu0 0.0
    %3205 = vmatpush2.msra.mxu0 0.0
    %3206 = vmatprep.subr.mxu0 0.0
    %3207 = vmatpush2.msra.mxu0 0.0
    %3208 = vmatprep.subr.mxu0 0.0
    %3209 = vmatpush2.msra.mxu0 0.0
    %3210 = vmatprep.subr.mxu0 0.0
    %3211 = vmatpush2.msra.mxu0 0.0
    %3212 = vmatprep.subr.mxu0 0.0
    %3213 = vmatpush2.msra.mxu0 0.0
    %3214 = vmatprep.subr.mxu0 0.0
    %3215 = vmatpush2.msra.mxu0 0.0
    %3216 = vmatprep.subr.mxu0 0.0
    %3217 = vmatpush2.msra.mxu0 0.0
    %3218 = vmatprep.subr.mxu0 0.0
    %3219 = vmatpush2.msra.mxu0 0.0
    %3220 = vmatprep.subr.mxu0 0.0
    %3221 = vmatpush2.msra.mxu0 0.0
    %3222 = vmatprep.subr.mxu0 0.0
    %3223 = vmatpush2.msra.mxu0 0.0
    %3224 = vmatprep.subr.mxu0 0.0
    %3225 = vmatpush2.msra.mxu0 0.0
    %3226 = vmatprep.subr.mxu0 0.0
    %3227 = vmatpush2.msra.mxu0 0.0
    %3228 = vmatprep.subr.mxu0 0.0
    %3229 = vmatpush2.msra.mxu0 0.0
    %3230 = vmatprep.mubr.f32.mxu0 0.0
    %3231 = vmatmul.mubr.f32.gmra.mxu0 %v3161
    %v3232 = vpop.f32.mrf.mxu0
    %v3233 = vadd.f32 0.0, %v3232
    %v3234 = vpop.f32.mrf.mxu0
    %3235 = vmatprep.mubr.f32.mxu0 0.0
    %3236 = vmatmul.mubr.f32.gmra.mxu0 %v3164
    %v3237 = vpop.f32.mrf.mxu0
    %v3238 = vadd.f32 0.0, %v3237
    %v3239 = vpop.f32.mrf.mxu0
    %3240 = vdwg.mxu0
    %3241 = vmatprep.subr.mxu0 0.0
    %3242 = vmatpush1.msra.mxu0 0.0
    %3243 = vmatprep.subr.mxu0 0.0
    %3244 = vmatpush1.msra.mxu0 0.0
    %3245 = vmatprep.subr.mxu0 0.0
    %3246 = vmatpush1.msra.mxu0 0.0
    %3247 = vmatprep.subr.mxu0 0.0
    %3248 = vmatpush1.msra.mxu0 0.0
    %3249 = vmatprep.subr.mxu0 0.0
    %3250 = vmatpush1.msra.mxu0 0.0
    %3251 = vmatprep.subr.mxu0 0.0
    %3252 = vmatpush1.msra.mxu0 0.0
    %3253 = vmatprep.subr.mxu0 0.0
    %3254 = vmatpush1.msra.mxu0 0.0
    %3255 = vmatprep.subr.mxu0 0.0
    %3256 = vmatpush1.msra.mxu0 0.0
    %3257 = vmatprep.subr.mxu0 0.0
    %3258 = vmatpush1.msra.mxu0 %v3121
    %3259 = vmatprep.subr.mxu0 0.0
    %3260 = vmatpush1.msra.mxu0 %v3120
    %3261 = vmatprep.subr.mxu0 0.0
    %3262 = vmatpush1.msra.mxu0 %v3119
    %3263 = vmatprep.subr.mxu0 0.0
    %3264 = vmatpush1.msra.mxu0 %v3118
    %3265 = vmatprep.subr.mxu0 0.0
    %3266 = vmatpush1.msra.mxu0 %v3117
    %3267 = vmatprep.subr.mxu0 0.0
    %3268 = vmatpush1.msra.mxu0 %v3116
    %3269 = vmatprep.subr.mxu0 0.0
    %3270 = vmatpush1.msra.mxu0 %v3115
    %3271 = vmatprep.subr.mxu0 0.0
    %3272 = vmatpush1.msra.mxu0 %v3114
    %3273 = vmatprep.subr.mxu0 0.0
    %3274 = vmatpush2.msra.mxu0 0.0
    %3275 = vmatprep.subr.mxu0 0.0
    %3276 = vmatpush2.msra.mxu0 0.0
    %3277 = vmatprep.subr.mxu0 0.0
    %3278 = vmatpush2.msra.mxu0 0.0
    %3279 = vmatprep.subr.mxu0 0.0
    %3280 = vmatpush2.msra.mxu0 0.0
    %3281 = vmatprep.subr.mxu0 0.0
    %3282 = vmatpush2.msra.mxu0 0.0
    %3283 = vmatprep.subr.mxu0 0.0
    %3284 = vmatpush2.msra.mxu0 0.0
    %3285 = vmatprep.subr.mxu0 0.0
    %3286 = vmatpush2.msra.mxu0 0.0
    %3287 = vmatprep.subr.mxu0 0.0
    %3288 = vmatpush2.msra.mxu0 0.0
    %3289 = vmatprep.subr.mxu0 0.0
    %3290 = vmatpush2.msra.mxu0 0.0
    %3291 = vmatprep.subr.mxu0 0.0
    %3292 = vmatpush2.msra.mxu0 0.0
    %3293 = vmatprep.subr.mxu0 0.0
    %3294 = vmatpush2.msra.mxu0 0.0
    %3295 = vmatprep.subr.mxu0 0.0
    %3296 = vmatpush2.msra.mxu0 0.0
    %3297 = vmatprep.subr.mxu0 0.0
    %3298 = vmatpush2.msra.mxu0 0.0
    %3299 = vmatprep.subr.mxu0 0.0
    %3300 = vmatpush2.msra.mxu0 0.0
    %3301 = vmatprep.subr.mxu0 0.0
    %3302 = vmatpush2.msra.mxu0 0.0
    %3303 = vmatprep.subr.mxu0 0.0
    %3304 = vmatpush2.msra.mxu0 0.0
    %3305 = vmatprep.mubr.f32.mxu0 0.0
    %3306 = vmatmul.mubr.f32.gmra.mxu0 %v3161
    %v3307 = vpop.f32.mrf.mxu0
    %v3308 = vadd.f32 0.0, %v3307
    %v3309 = vpop.f32.mrf.mxu0
    %3310 = vmatprep.mubr.f32.mxu0 0.0
    %3311 = vmatmul.mubr.f32.gmra.mxu0 %v3164
    %v3312 = vpop.f32.mrf.mxu0
    %v3313 = vadd.f32 0.0, %v3312
    %v3314 = vpop.f32.mrf.mxu0
    %3315 = vdwg.mxu0
    %3316 = vmatprep.subr.mxu0 0.0
    %3317 = vmatpush1.msra.mxu0 0.0
    %3318 = vmatprep.subr.mxu0 0.0
    %3319 = vmatpush1.msra.mxu0 0.0
    %3320 = vmatprep.subr.mxu0 0.0
    %3321 = vmatpush1.msra.mxu0 0.0
    %3322 = vmatprep.subr.mxu0 0.0
    %3323 = vmatpush1.msra.mxu0 0.0
    %3324 = vmatprep.subr.mxu0 0.0
    %3325 = vmatpush1.msra.mxu0 0.0
    %3326 = vmatprep.subr.mxu0 0.0
    %3327 = vmatpush1.msra.mxu0 0.0
    %3328 = vmatprep.subr.mxu0 0.0
    %3329 = vmatpush1.msra.mxu0 0.0
    %3330 = vmatprep.subr.mxu0 0.0
    %3331 = vmatpush1.msra.mxu0 0.0
    %3332 = vmatprep.subr.mxu0 0.0
    %3333 = vmatpush1.msra.mxu0 0.0
    %3334 = vmatprep.subr.mxu0 0.0
    %3335 = vmatpush1.msra.mxu0 0.0
    %3336 = vmatprep.subr.mxu0 0.0
    %3337 = vmatpush1.msra.mxu0 0.0
    %3338 = vmatprep.subr.mxu0 0.0
    %3339 = vmatpush1.msra.mxu0 0.0
    %3340 = vmatprep.subr.mxu0 0.0
    %3341 = vmatpush1.msra.mxu0 0.0
    %3342 = vmatprep.subr.mxu0 0.0
    %3343 = vmatpush1.msra.mxu0 0.0
    %3344 = vmatprep.subr.mxu0 0.0
    %3345 = vmatpush1.msra.mxu0 %v3313
    %3346 = vmatprep.subr.mxu0 0.0
    %3347 = vmatpush1.msra.mxu0 %v3308
    %3348 = vmatprep.subr.mxu0 0.0
    %3349 = vmatpush2.msra.mxu0 0.0
    %3350 = vmatprep.subr.mxu0 0.0
    %3351 = vmatpush2.msra.mxu0 0.0
    %3352 = vmatprep.subr.mxu0 0.0
    %3353 = vmatpush2.msra.mxu0 0.0
    %3354 = vmatprep.subr.mxu0 0.0
    %3355 = vmatpush2.msra.mxu0 0.0
    %3356 = vmatprep.subr.mxu0 0.0
    %3357 = vmatpush2.msra.mxu0 0.0
    %3358 = vmatprep.subr.mxu0 0.0
    %3359 = vmatpush2.msra.mxu0 0.0
    %3360 = vmatprep.subr.mxu0 0.0
    %3361 = vmatpush2.msra.mxu0 0.0
    %3362 = vmatprep.subr.mxu0 0.0
    %3363 = vmatpush2.msra.mxu0 0.0
    %3364 = vmatprep.subr.mxu0 0.0
    %3365 = vmatpush2.msra.mxu0 0.0
    %3366 = vmatprep.subr.mxu0 0.0
    %3367 = vmatpush2.msra.mxu0 0.0
    %3368 = vmatprep.subr.mxu0 0.0
    %3369 = vmatpush2.msra.mxu0 0.0
    %3370 = vmatprep.subr.mxu0 0.0
    %3371 = vmatpush2.msra.mxu0 0.0
    %3372 = vmatprep.subr.mxu0 0.0
    %3373 = vmatpush2.msra.mxu0 0.0
    %3374 = vmatprep.subr.mxu0 0.0
    %3375 = vmatpush2.msra.mxu0 0.0
    %3376 = vmatprep.subr.mxu0 0.0
    %3377 = vmatpush2.msra.mxu0 0.0
    %3378 = vmatprep.subr.mxu0 0.0
    %3379 = vmatpush2.msra.mxu0 0.0
    %3380 = vmatprep.mubr.f32.mxu0 0.0
    %3381 = vmatmul.mubr.f32.gmra.mxu0 %v793
    %v3382 = vpop.f32.mrf.mxu0
    %v3383 = vadd.f32 0.0, %v3382
    %v3384 = vpop.f32.mrf.mxu0
    %3385 = vmatprep.mubr.f32.mxu0 0.0
    %3386 = vmatmul.mubr.f32.gmra.mxu0 %v796
    %v3387 = vpop.f32.mrf.mxu0
    %v3388 = vadd.f32 0.0, %v3387
    %v3389 = vpop.f32.mrf.mxu0
    %3390 = vmatprep.mubr.f32.mxu0 0.0
    %3391 = vmatmul.mubr.f32.gmra.mxu0 %v799
    %v3392 = vpop.f32.mrf.mxu0
    %v3393 = vadd.f32 0.0, %v3392
    %v3394 = vpop.f32.mrf.mxu0
    %3395 = vmatprep.mubr.f32.mxu0 0.0
    %3396 = vmatmul.mubr.f32.gmra.mxu0 %v802
    %v3397 = vpop.f32.mrf.mxu0
    %v3398 = vadd.f32 0.0, %v3397
    %v3399 = vpop.f32.mrf.mxu0
    %3400 = vdwg.mxu0
    %3401 = vmatprep.subr.mxu0 0.0
    %3402 = vmatpush1.msra.mxu0 0.0
    %3403 = vmatprep.subr.mxu0 0.0
    %3404 = vmatpush1.msra.mxu0 0.0
    %3405 = vmatprep.subr.mxu0 0.0
    %3406 = vmatpush1.msra.mxu0 0.0
    %3407 = vmatprep.subr.mxu0 0.0
    %3408 = vmatpush1.msra.mxu0 0.0
    %3409 = vmatprep.subr.mxu0 0.0
    %3410 = vmatpush1.msra.mxu0 0.0
    %3411 = vmatprep.subr.mxu0 0.0
    %3412 = vmatpush1.msra.mxu0 0.0
    %3413 = vmatprep.subr.mxu0 0.0
    %3414 = vmatpush1.msra.mxu0 0.0
    %3415 = vmatprep.subr.mxu0 0.0
    %3416 = vmatpush1.msra.mxu0 0.0
    %3417 = vmatprep.subr.mxu0 0.0
    %3418 = vmatpush1.msra.mxu0 0.0
    %3419 = vmatprep.subr.mxu0 0.0
    %3420 = vmatpush1.msra.mxu0 0.0
    %3421 = vmatprep.subr.mxu0 0.0
    %3422 = vmatpush1.msra.mxu0 0.0
    %3423 = vmatprep.subr.mxu0 0.0
    %3424 = vmatpush1.msra.mxu0 0.0
    %3425 = vmatprep.subr.mxu0 0.0
    %3426 = vmatpush1.msra.mxu0 0.0
    %3427 = vmatprep.subr.mxu0 0.0
    %3428 = vmatpush1.msra.mxu0 0.0
    %3429 = vmatprep.subr.mxu0 0.0
    %3430 = vmatpush1.msra.mxu0 %v3238
    %3431 = vmatprep.subr.mxu0 0.0
    %3432 = vmatpush1.msra.mxu0 %v3233
    %3433 = vmatprep.subr.mxu0 0.0
    %3434 = vmatpush2.msra.mxu0 0.0
    %3435 = vmatprep.subr.mxu0 0.0
    %3436 = vmatpush2.msra.mxu0 0.0
    %3437 = vmatprep.subr.mxu0 0.0
    %3438 = vmatpush2.msra.mxu0 0.0
    %3439 = vmatprep.subr.mxu0 0.0
    %3440 = vmatpush2.msra.mxu0 0.0
    %3441 = vmatprep.subr.mxu0 0.0
    %3442 = vmatpush2.msra.mxu0 0.0
    %3443 = vmatprep.subr.mxu0 0.0
    %3444 = vmatpush2.msra.mxu0 0.0
    %3445 = vmatprep.subr.mxu0 0.0
    %3446 = vmatpush2.msra.mxu0 0.0
    %3447 = vmatprep.subr.mxu0 0.0
    %3448 = vmatpush2.msra.mxu0 0.0
    %3449 = vmatprep.subr.mxu0 0.0
    %3450 = vmatpush2.msra.mxu0 0.0
    %3451 = vmatprep.subr.mxu0 0.0
    %3452 = vmatpush2.msra.mxu0 0.0
    %3453 = vmatprep.subr.mxu0 0.0
    %3454 = vmatpush2.msra.mxu0 0.0
    %3455 = vmatprep.subr.mxu0 0.0
    %3456 = vmatpush2.msra.mxu0 0.0
    %3457 = vmatprep.subr.mxu0 0.0
    %3458 = vmatpush2.msra.mxu0 0.0
    %3459 = vmatprep.subr.mxu0 0.0
    %3460 = vmatpush2.msra.mxu0 0.0
    %3461 = vmatprep.subr.mxu0 0.0
    %3462 = vmatpush2.msra.mxu0 0.0
    %3463 = vmatprep.subr.mxu0 0.0
    %3464 = vmatpush2.msra.mxu0 0.0
    %3465 = vmatprep.mubr.f32.mxu0 0.0
    %3466 = vmatmul.mubr.f32.gmra.mxu0 %v890
    %v3467 = vpop.f32.mrf.mxu0
    %v3468 = vadd.f32 %v3383, %v3467
    %v3469 = vpop.f32.mrf.mxu0
    %3470 = vmatprep.mubr.f32.mxu0 0.0
    %3471 = vmatmul.mubr.f32.gmra.mxu0 %v893
    %v3472 = vpop.f32.mrf.mxu0
    %v3473 = vadd.f32 %v3388, %v3472
    %v3474 = vpop.f32.mrf.mxu0
    %3475 = vmatprep.mubr.f32.mxu0 0.0
    %3476 = vmatmul.mubr.f32.gmra.mxu0 %v896
    %v3477 = vpop.f32.mrf.mxu0
    %v3478 = vadd.f32 %v3393, %v3477
    %v3479 = vpop.f32.mrf.mxu0
    %3480 = vmatprep.mubr.f32.mxu0 0.0
    %3481 = vmatmul.mubr.f32.gmra.mxu0 %v899
    %v3482 = vpop.f32.mrf.mxu0
    %v3483 = vadd.f32 %v3398, %v3482
    %v3484 = vpop.f32.mrf.mxu0
    %3485 = vdwg.mxu0
    %v3486 = vadd.f32 %v3468, %v463
    %v3487 = vadd.f32 %v3473, %v469
    %v3488 = vadd.f32 %v3478, %v475
    %v3489 = vadd.f32 %v3483, %v481
    %v3490 = vlaneseq
    %v3491 = vshrl.u32 %v3490, 7
    %v3492 = vsub.s32 0, %v3491
    %v3493 = vrot.slane %v3159, %v3492
    %v3494 = vadd.f32 %v3486, %v3493
    %v3495 = vadd.f32 %v3487, %v3493
    %v3496 = vadd.f32 %v3488, %v3493
    %v3497 = vadd.f32 %v3489, %v3493
    %v3498 = vmax.f32 %v3494, 0.0
    %v3499 = vmax.f32 %v3495, 0.0
    %v3500 = vmax.f32 %v3496, 0.0
    %v3501 = vmax.f32 %v3497, 0.0
    %v3502 = vlaneseq
    %v3503 = vshrl.u32 %v3502, 7
    %v3504 = vsub.s32 1, %v3503
    %v3505 = vrot.slane %v3159, %v3504
    %v3507 = vsel %vm634, %v3498, 0
    %v3510 = vsel %vm634, %v3499, 0
    %v3513 = vsel %vm634, %v3500, 0
    %v3516 = vsel %vm634, %v3501, 0
    %3518 = vmatprep.subr.mxu0 0.0
    %3519 = vmatpush1.msra.mxu0 0.0
    %3520 = vmatprep.subr.mxu0 0.0
    %3521 = vmatpush1.msra.mxu0 0.0
    %3522 = vmatprep.subr.mxu0 0.0
    %3523 = vmatpush1.msra.mxu0 0.0
    %3524 = vmatprep.subr.mxu0 0.0
    %3525 = vmatpush1.msra.mxu0 0.0
    %3526 = vmatprep.subr.mxu0 0.0
    %3527 = vmatpush1.msra.mxu0 0.0
    %3528 = vmatprep.subr.mxu0 0.0
    %3529 = vmatpush1.msra.mxu0 0.0
    %3530 = vmatprep.subr.mxu0 0.0
    %3531 = vmatpush1.msra.mxu0 0.0
    %3532 = vmatprep.subr.mxu0 0.0
    %3533 = vmatpush1.msra.mxu0 0.0
    %3534 = vmatprep.subr.mxu0 0.0
    %3535 = vmatpush1.msra.mxu0 %v3130
    %3536 = vmatprep.subr.mxu0 0.0
    %3537 = vmatpush1.msra.mxu0 %v3129
    %3538 = vmatprep.subr.mxu0 0.0
    %3539 = vmatpush1.msra.mxu0 %v3128
    %3540 = vmatprep.subr.mxu0 0.0
    %3541 = vmatpush1.msra.mxu0 %v3127
    %3542 = vmatprep.subr.mxu0 0.0
    %3543 = vmatpush1.msra.mxu0 %v3126
    %3544 = vmatprep.subr.mxu0 0.0
    %3545 = vmatpush1.msra.mxu0 %v3125
    %3546 = vmatprep.subr.mxu0 0.0
    %3547 = vmatpush1.msra.mxu0 %v3124
    %3548 = vmatprep.subr.mxu0 0.0
    %3549 = vmatpush1.msra.mxu0 %v3123
    %3550 = vmatprep.subr.mxu0 0.0
    %3551 = vmatpush2.msra.mxu0 0.0
    %3552 = vmatprep.subr.mxu0 0.0
    %3553 = vmatpush2.msra.mxu0 0.0
    %3554 = vmatprep.subr.mxu0 0.0
    %3555 = vmatpush2.msra.mxu0 0.0
    %3556 = vmatprep.subr.mxu0 0.0
    %3557 = vmatpush2.msra.mxu0 0.0
    %3558 = vmatprep.subr.mxu0 0.0
    %3559 = vmatpush2.msra.mxu0 0.0
    %3560 = vmatprep.subr.mxu0 0.0
    %3561 = vmatpush2.msra.mxu0 0.0
    %3562 = vmatprep.subr.mxu0 0.0
    %3563 = vmatpush2.msra.mxu0 0.0
    %3564 = vmatprep.subr.mxu0 0.0
    %3565 = vmatpush2.msra.mxu0 0.0
    %3566 = vmatprep.subr.mxu0 0.0
    %3567 = vmatpush2.msra.mxu0 0.0
    %3568 = vmatprep.subr.mxu0 0.0
    %3569 = vmatpush2.msra.mxu0 0.0
    %3570 = vmatprep.subr.mxu0 0.0
    %3571 = vmatpush2.msra.mxu0 0.0
    %3572 = vmatprep.subr.mxu0 0.0
    %3573 = vmatpush2.msra.mxu0 0.0
    %3574 = vmatprep.subr.mxu0 0.0
    %3575 = vmatpush2.msra.mxu0 0.0
    %3576 = vmatprep.subr.mxu0 0.0
    %3577 = vmatpush2.msra.mxu0 0.0
    %3578 = vmatprep.subr.mxu0 0.0
    %3579 = vmatpush2.msra.mxu0 0.0
    %3580 = vmatprep.subr.mxu0 0.0
    %3581 = vmatpush2.msra.mxu0 0.0
    %3582 = vmatprep.mubr.f32.mxu0 0.0
    %3583 = vmatmul.mubr.f32.gmra.mxu0 %v3507
    %v3584 = vpop.f32.mrf.mxu0
    %v3585 = vadd.f32 %v3505, %v3584
    %v3586 = vpop.f32.mrf.mxu0
    %3587 = vmatprep.mubr.f32.mxu0 0.0
    %3588 = vmatmul.mubr.f32.gmra.mxu0 %v3510
    %v3589 = vpop.f32.mrf.mxu0
    %v3590 = vadd.f32 %v3505, %v3589
    %v3591 = vpop.f32.mrf.mxu0
    %3592 = vmatprep.mubr.f32.mxu0 0.0
    %3593 = vmatmul.mubr.f32.gmra.mxu0 %v3513
    %v3594 = vpop.f32.mrf.mxu0
    %v3595 = vadd.f32 %v3505, %v3594
    %v3596 = vpop.f32.mrf.mxu0
    %3597 = vmatprep.mubr.f32.mxu0 0.0
    %3598 = vmatmul.mubr.f32.gmra.mxu0 %v3516
    %v3599 = vpop.f32.mrf.mxu0
    %v3600 = vadd.f32 %v3505, %v3599
    %v3601 = vpop.f32.mrf.mxu0
    %3602 = vdwg.mxu0
    %v3603 = vmax.f32 %v3585, 0.0
    %v3604 = vmax.f32 %v3590, 0.0
    %v3605 = vmax.f32 %v3595, 0.0
    %v3606 = vmax.f32 %v3600, 0.0
    %3607 = vmatprep.subr.mxu0 0.0
    %3608 = vmatpush1.msra.mxu0 0.0
    %3609 = vmatprep.subr.mxu0 0.0
    %3610 = vmatpush1.msra.mxu0 0.0
    %3611 = vmatprep.subr.mxu0 0.0
    %3612 = vmatpush1.msra.mxu0 0.0
    %3613 = vmatprep.subr.mxu0 0.0
    %3614 = vmatpush1.msra.mxu0 0.0
    %3615 = vmatprep.subr.mxu0 0.0
    %3616 = vmatpush1.msra.mxu0 0.0
    %3617 = vmatprep.subr.mxu0 0.0
    %3618 = vmatpush1.msra.mxu0 0.0
    %3619 = vmatprep.subr.mxu0 0.0
    %3620 = vmatpush1.msra.mxu0 0.0
    %3621 = vmatprep.subr.mxu0 0.0
    %3622 = vmatpush1.msra.mxu0 0.0
    %3623 = vmatprep.subr.mxu0 0.0
    %3624 = vmatpush1.msra.mxu0 0.0
    %3625 = vmatprep.subr.mxu0 0.0
    %3626 = vmatpush1.msra.mxu0 0.0
    %3627 = vmatprep.subr.mxu0 0.0
    %3628 = vmatpush1.msra.mxu0 0.0
    %3629 = vmatprep.subr.mxu0 0.0
    %3630 = vmatpush1.msra.mxu0 0.0
    %3631 = vmatprep.subr.mxu0 0.0
    %3632 = vmatpush1.msra.mxu0 %v3606
    %3633 = vmatprep.subr.mxu0 0.0
    %3634 = vmatpush1.msra.mxu0 %v3605
    %3635 = vmatprep.subr.mxu0 0.0
    %3636 = vmatpush1.msra.mxu0 %v3604
    %3637 = vmatprep.subr.mxu0 0.0
    %3638 = vmatpush1.msra.mxu0 %v3603
    %3639 = vmatprep.subr.mxu0 0.0
    %3640 = vmatpush2.msra.mxu0 0.0
    %3641 = vmatprep.subr.mxu0 0.0
    %3642 = vmatpush2.msra.mxu0 0.0
    %3643 = vmatprep.subr.mxu0 0.0
    %3644 = vmatpush2.msra.mxu0 0.0
    %3645 = vmatprep.subr.mxu0 0.0
    %3646 = vmatpush2.msra.mxu0 0.0
    %3647 = vmatprep.subr.mxu0 0.0
    %3648 = vmatpush2.msra.mxu0 0.0
    %3649 = vmatprep.subr.mxu0 0.0
    %3650 = vmatpush2.msra.mxu0 0.0
    %3651 = vmatprep.subr.mxu0 0.0
    %3652 = vmatpush2.msra.mxu0 0.0
    %3653 = vmatprep.subr.mxu0 0.0
    %3654 = vmatpush2.msra.mxu0 0.0
    %3655 = vmatprep.subr.mxu0 0.0
    %3656 = vmatpush2.msra.mxu0 0.0
    %3657 = vmatprep.subr.mxu0 0.0
    %3658 = vmatpush2.msra.mxu0 0.0
    %3659 = vmatprep.subr.mxu0 0.0
    %3660 = vmatpush2.msra.mxu0 0.0
    %3661 = vmatprep.subr.mxu0 0.0
    %3662 = vmatpush2.msra.mxu0 0.0
    %3663 = vmatprep.subr.mxu0 0.0
    %3664 = vmatpush2.msra.mxu0 0.0
    %3665 = vmatprep.subr.mxu0 0.0
    %3666 = vmatpush2.msra.mxu0 0.0
    %3667 = vmatprep.subr.mxu0 0.0
    %3668 = vmatpush2.msra.mxu0 0.0
    %3669 = vmatprep.subr.mxu0 0.0
    %3670 = vmatpush2.msra.mxu0 0.0
    %3671 = vmatprep.mubr.f32.mxu0 0.0
    %3672 = vmatmul.mubr.f32.gmra.mxu0 %v1109
    %v3673 = vpop.f32.mrf.mxu0
    %v3674 = vadd.f32 0.0, %v3673
    %v3675 = vpop.f32.mrf.mxu0
    %3676 = vmatprep.mubr.f32.mxu0 0.0
    %3677 = vmatmul.mubr.f32.gmra.mxu0 %v1112
    %v3678 = vpop.f32.mrf.mxu0
    %v3679 = vadd.f32 0.0, %v3678
    %v3680 = vpop.f32.mrf.mxu0
    %3681 = vdwg.mxu0
    %v3683 = vsel %vm634, %v3674, 0
    %v3686 = vsel %vm634, %v3679, 0
    %3688 = vmatprep.subr.mxu0 0.0
    %3689 = vmatpush1.msra.mxu0 0.0
    %3690 = vmatprep.subr.mxu0 0.0
    %3691 = vmatpush1.msra.mxu0 0.0
    %3692 = vmatprep.subr.mxu0 0.0
    %3693 = vmatpush1.msra.mxu0 0.0
    %3694 = vmatprep.subr.mxu0 0.0
    %3695 = vmatpush1.msra.mxu0 0.0
    %3696 = vmatprep.subr.mxu0 0.0
    %3697 = vmatpush1.msra.mxu0 0.0
    %3698 = vmatprep.subr.mxu0 0.0
    %3699 = vmatpush1.msra.mxu0 0.0
    %3700 = vmatprep.subr.mxu0 0.0
    %3701 = vmatpush1.msra.mxu0 0.0
    %3702 = vmatprep.subr.mxu0 0.0
    %3703 = vmatpush1.msra.mxu0 0.0
    %3704 = vmatprep.subr.mxu0 0.0
    %3705 = vmatpush1.msra.mxu0 %v3148
    %3706 = vmatprep.subr.mxu0 0.0
    %3707 = vmatpush1.msra.mxu0 %v3147
    %3708 = vmatprep.subr.mxu0 0.0
    %3709 = vmatpush1.msra.mxu0 %v3146
    %3710 = vmatprep.subr.mxu0 0.0
    %3711 = vmatpush1.msra.mxu0 %v3145
    %3712 = vmatprep.subr.mxu0 0.0
    %3713 = vmatpush1.msra.mxu0 %v3144
    %3714 = vmatprep.subr.mxu0 0.0
    %3715 = vmatpush1.msra.mxu0 %v3143
    %3716 = vmatprep.subr.mxu0 0.0
    %3717 = vmatpush1.msra.mxu0 %v3142
    %3718 = vmatprep.subr.mxu0 0.0
    %3719 = vmatpush1.msra.mxu0 %v3141
    %3720 = vmatprep.subr.mxu0 0.0
    %3721 = vmatpush2.msra.mxu0 0.0
    %3722 = vmatprep.subr.mxu0 0.0
    %3723 = vmatpush2.msra.mxu0 0.0
    %3724 = vmatprep.subr.mxu0 0.0
    %3725 = vmatpush2.msra.mxu0 0.0
    %3726 = vmatprep.subr.mxu0 0.0
    %3727 = vmatpush2.msra.mxu0 0.0
    %3728 = vmatprep.subr.mxu0 0.0
    %3729 = vmatpush2.msra.mxu0 0.0
    %3730 = vmatprep.subr.mxu0 0.0
    %3731 = vmatpush2.msra.mxu0 0.0
    %3732 = vmatprep.subr.mxu0 0.0
    %3733 = vmatpush2.msra.mxu0 0.0
    %3734 = vmatprep.subr.mxu0 0.0
    %3735 = vmatpush2.msra.mxu0 0.0
    %3736 = vmatprep.subr.mxu0 0.0
    %3737 = vmatpush2.msra.mxu0 0.0
    %3738 = vmatprep.subr.mxu0 0.0
    %3739 = vmatpush2.msra.mxu0 0.0
    %3740 = vmatprep.subr.mxu0 0.0
    %3741 = vmatpush2.msra.mxu0 0.0
    %3742 = vmatprep.subr.mxu0 0.0
    %3743 = vmatpush2.msra.mxu0 0.0
    %3744 = vmatprep.subr.mxu0 0.0
    %3745 = vmatpush2.msra.mxu0 0.0
    %3746 = vmatprep.subr.mxu0 0.0
    %3747 = vmatpush2.msra.mxu0 0.0
    %3748 = vmatprep.subr.mxu0 0.0
    %3749 = vmatpush2.msra.mxu0 0.0
    %3750 = vmatprep.subr.mxu0 0.0
    %3751 = vmatpush2.msra.mxu0 0.0
    %3752 = vmatprep.mubr.f32.mxu0 0.0
    %3753 = vmatmul.mubr.f32.gmra.mxu0 %v3683
    %v3754 = vpop.f32.mrf.mxu0
    %v3755 = vadd.f32 0.0, %v3754
    %v3756 = vpop.f32.mrf.mxu0
    %3757 = vmatprep.mubr.f32.mxu0 0.0
    %3758 = vmatmul.mubr.f32.gmra.mxu0 %v3686
    %v3759 = vpop.f32.mrf.mxu0
    %v3760 = vadd.f32 0.0, %v3759
    %v3761 = vpop.f32.mrf.mxu0
    %3762 = vdwg.mxu0
    %3763 = vmatprep.subr.mxu0 0.0
    %3764 = vmatpush1.msra.mxu0 0.0
    %3765 = vmatprep.subr.mxu0 0.0
    %3766 = vmatpush1.msra.mxu0 0.0
    %3767 = vmatprep.subr.mxu0 0.0
    %3768 = vmatpush1.msra.mxu0 0.0
    %3769 = vmatprep.subr.mxu0 0.0
    %3770 = vmatpush1.msra.mxu0 0.0
    %3771 = vmatprep.subr.mxu0 0.0
    %3772 = vmatpush1.msra.mxu0 0.0
    %3773 = vmatprep.subr.mxu0 0.0
    %3774 = vmatpush1.msra.mxu0 0.0
    %3775 = vmatprep.subr.mxu0 0.0
    %3776 = vmatpush1.msra.mxu0 0.0
    %3777 = vmatprep.subr.mxu0 0.0
    %3778 = vmatpush1.msra.mxu0 0.0
    %3779 = vmatprep.subr.mxu0 0.0
    %3780 = vmatpush1.msra.mxu0 %v3139
    %3781 = vmatprep.subr.mxu0 0.0
    %3782 = vmatpush1.msra.mxu0 %v3138
    %3783 = vmatprep.subr.mxu0 0.0
    %3784 = vmatpush1.msra.mxu0 %v3137
    %3785 = vmatprep.subr.mxu0 0.0
    %3786 = vmatpush1.msra.mxu0 %v3136
    %3787 = vmatprep.subr.mxu0 0.0
    %3788 = vmatpush1.msra.mxu0 %v3135
    %3789 = vmatprep.subr.mxu0 0.0
    %3790 = vmatpush1.msra.mxu0 %v3134
    %3791 = vmatprep.subr.mxu0 0.0
    %3792 = vmatpush1.msra.mxu0 %v3133
    %3793 = vmatprep.subr.mxu0 0.0
    %3794 = vmatpush1.msra.mxu0 %v3132
    %3795 = vmatprep.subr.mxu0 0.0
    %3796 = vmatpush2.msra.mxu0 0.0
    %3797 = vmatprep.subr.mxu0 0.0
    %3798 = vmatpush2.msra.mxu0 0.0
    %3799 = vmatprep.subr.mxu0 0.0
    %3800 = vmatpush2.msra.mxu0 0.0
    %3801 = vmatprep.subr.mxu0 0.0
    %3802 = vmatpush2.msra.mxu0 0.0
    %3803 = vmatprep.subr.mxu0 0.0
    %3804 = vmatpush2.msra.mxu0 0.0
    %3805 = vmatprep.subr.mxu0 0.0
    %3806 = vmatpush2.msra.mxu0 0.0
    %3807 = vmatprep.subr.mxu0 0.0
    %3808 = vmatpush2.msra.mxu0 0.0
    %3809 = vmatprep.subr.mxu0 0.0
    %3810 = vmatpush2.msra.mxu0 0.0
    %3811 = vmatprep.subr.mxu0 0.0
    %3812 = vmatpush2.msra.mxu0 0.0
    %3813 = vmatprep.subr.mxu0 0.0
    %3814 = vmatpush2.msra.mxu0 0.0
    %3815 = vmatprep.subr.mxu0 0.0
    %3816 = vmatpush2.msra.mxu0 0.0
    %3817 = vmatprep.subr.mxu0 0.0
    %3818 = vmatpush2.msra.mxu0 0.0
    %3819 = vmatprep.subr.mxu0 0.0
    %3820 = vmatpush2.msra.mxu0 0.0
    %3821 = vmatprep.subr.mxu0 0.0
    %3822 = vmatpush2.msra.mxu0 0.0
    %3823 = vmatprep.subr.mxu0 0.0
    %3824 = vmatpush2.msra.mxu0 0.0
    %3825 = vmatprep.subr.mxu0 0.0
    %3826 = vmatpush2.msra.mxu0 0.0
    %3827 = vmatprep.mubr.f32.mxu0 0.0
    %3828 = vmatmul.mubr.f32.gmra.mxu0 %v3161
    %v3829 = vpop.f32.mrf.mxu0
    %v3830 = vadd.f32 %v3755, %v3829
    %v3831 = vpop.f32.mrf.mxu0
    %3832 = vmatprep.mubr.f32.mxu0 0.0
    %3833 = vmatmul.mubr.f32.gmra.mxu0 %v3164
    %v3834 = vpop.f32.mrf.mxu0
    %v3835 = vadd.f32 %v3760, %v3834
    %v3836 = vpop.f32.mrf.mxu0
    %3837 = vdwg.mxu0
    %v3838 = vlaneseq
    %v3839 = vshrl.u32 %v3838, 7
    %v3840 = vsub.s32 2, %v3839
    %v3841 = vrot.slane %v3159, %v3840
    %v3842 = vadd.f32 %v3830, %v3841
    %v3843 = vadd.f32 %v3835, %v3841
    %v3844 = vmax.f32 %v3842, 0.0
    %v3845 = vmax.f32 %v3843, 0.0
    %v3846 = vlaneseq
    %v3847 = vshrl.u32 %v3846, 7
    %v3848 = vsub.s32 3, %v3847
    %v3849 = vrot.slane %v3159, %v3848
    %v3851 = vsel %vm634, %v3844, 0
    %v3854 = vsel %vm634, %v3845, 0
    %3856 = vmatprep.subr.mxu0 0.0
    %3857 = vmatpush1.msra.mxu0 0.0
    %3858 = vmatprep.subr.mxu0 0.0
    %3859 = vmatpush1.msra.mxu0 0.0
    %3860 = vmatprep.subr.mxu0 0.0
    %3861 = vmatpush1.msra.mxu0 0.0
    %3862 = vmatprep.subr.mxu0 0.0
    %3863 = vmatpush1.msra.mxu0 0.0
    %3864 = vmatprep.subr.mxu0 0.0
    %3865 = vmatpush1.msra.mxu0 0.0
    %3866 = vmatprep.subr.mxu0 0.0
    %3867 = vmatpush1.msra.mxu0 0.0
    %3868 = vmatprep.subr.mxu0 0.0
    %3869 = vmatpush1.msra.mxu0 0.0
    %3870 = vmatprep.subr.mxu0 0.0
    %3871 = vmatpush1.msra.mxu0 0.0
    %3872 = vmatprep.subr.mxu0 0.0
    %3873 = vmatpush1.msra.mxu0 %v3157
    %3874 = vmatprep.subr.mxu0 0.0
    %3875 = vmatpush1.msra.mxu0 %v3156
    %3876 = vmatprep.subr.mxu0 0.0
    %3877 = vmatpush1.msra.mxu0 %v3155
    %3878 = vmatprep.subr.mxu0 0.0
    %3879 = vmatpush1.msra.mxu0 %v3154
    %3880 = vmatprep.subr.mxu0 0.0
    %3881 = vmatpush1.msra.mxu0 %v3153
    %3882 = vmatprep.subr.mxu0 0.0
    %3883 = vmatpush1.msra.mxu0 %v3152
    %3884 = vmatprep.subr.mxu0 0.0
    %3885 = vmatpush1.msra.mxu0 %v3151
    %3886 = vmatprep.subr.mxu0 0.0
    %3887 = vmatpush1.msra.mxu0 %v3150
    %3888 = vmatprep.subr.mxu0 0.0
    %3889 = vmatpush2.msra.mxu0 0.0
    %3890 = vmatprep.subr.mxu0 0.0
    %3891 = vmatpush2.msra.mxu0 0.0
    %3892 = vmatprep.subr.mxu0 0.0
    %3893 = vmatpush2.msra.mxu0 0.0
    %3894 = vmatprep.subr.mxu0 0.0
    %3895 = vmatpush2.msra.mxu0 0.0
    %3896 = vmatprep.subr.mxu0 0.0
    %3897 = vmatpush2.msra.mxu0 0.0
    %3898 = vmatprep.subr.mxu0 0.0
    %3899 = vmatpush2.msra.mxu0 0.0
    %3900 = vmatprep.subr.mxu0 0.0
    %3901 = vmatpush2.msra.mxu0 0.0
    %3902 = vmatprep.subr.mxu0 0.0
    %3903 = vmatpush2.msra.mxu0 0.0
    %3904 = vmatprep.subr.mxu0 0.0
    %3905 = vmatpush2.msra.mxu0 0.0
    %3906 = vmatprep.subr.mxu0 0.0
    %3907 = vmatpush2.msra.mxu0 0.0
    %3908 = vmatprep.subr.mxu0 0.0
    %3909 = vmatpush2.msra.mxu0 0.0
    %3910 = vmatprep.subr.mxu0 0.0
    %3911 = vmatpush2.msra.mxu0 0.0
    %3912 = vmatprep.subr.mxu0 0.0
    %3913 = vmatpush2.msra.mxu0 0.0
    %3914 = vmatprep.subr.mxu0 0.0
    %3915 = vmatpush2.msra.mxu0 0.0
    %3916 = vmatprep.subr.mxu0 0.0
    %3917 = vmatpush2.msra.mxu0 0.0
    %3918 = vmatprep.subr.mxu0 0.0
    %3919 = vmatpush2.msra.mxu0 0.0
    %3920 = vmatprep.mubr.f32.mxu0 0.0
    %3921 = vmatmul.mubr.f32.gmra.mxu0 %v3851
    %v3922 = vpop.f32.mrf.mxu0
    %v3923 = vadd.f32 %v3849, %v3922
    %v3924 = vpop.f32.mrf.mxu0
    %3925 = vmatprep.mubr.f32.mxu0 0.0
    %3926 = vmatmul.mubr.f32.gmra.mxu0 %v3854
    %v3927 = vpop.f32.mrf.mxu0
    %v3928 = vadd.f32 %v3849, %v3927
    %v3929 = vpop.f32.mrf.mxu0
    %3930 = vdwg.mxu0
    %v3931 = vmax.f32 %v3923, 0.0
    %v3932 = vmax.f32 %v3928, 0.0
    %v3933 = vadd.f32 %v3102, %v3931
    %v3934 = vadd.f32 %v3103, %v3932
    %v3935 = vld [vmem:[#allocation7] sm:$0x1]
    %v3936 = vlaneseq
    %v3937 = vshrl.u32 %v3936, 7
    %v3938 = vsub.s32 0, %v3937
    %v3939 = vrot.slane %v3935, %v3938
    %vm3940 = vcmp.eq.s32.totalorder %v260, %v3939
    %v3941 = vsel %vm3940, 1, 0
    %v3942 = vcvt.s32.f32 %v3941
    %vm3943 = vcmask 123904
    %v3944 = vsel %vm3943, %v3942, 0.0
    %3945 = vadd.xlane.f32.xlu0 %v3944
    %v3946 = vpop.xlane.xlu0 %3945
    %v3947 = vmax.f32 %v3946, 1.0
    %v3948 = vrcp.pop %v3947
    %v3949 = vmul.f32 %v3942, %v3948
    %v3951 = vsel %vm791, %v3949, 0
    %3953 = vmatprep.subr.mxu0 0.0
    %3954 = vmatpush1.msra.mxu0 0.0
    %3955 = vmatprep.subr.mxu0 0.0
    %3956 = vmatpush1.msra.mxu0 0.0
    %3957 = vmatprep.subr.mxu0 0.0
    %3958 = vmatpush1.msra.mxu0 0.0
    %3959 = vmatprep.subr.mxu0 0.0
    %3960 = vmatpush1.msra.mxu0 0.0
    %3961 = vmatprep.subr.mxu0 0.0
    %3962 = vmatpush1.msra.mxu0 0.0
    %3963 = vmatprep.subr.mxu0 0.0
    %3964 = vmatpush1.msra.mxu0 0.0
    %3965 = vmatprep.subr.mxu0 0.0
    %3966 = vmatpush1.msra.mxu0 0.0
    %3967 = vmatprep.subr.mxu0 0.0
    %3968 = vmatpush1.msra.mxu0 0.0
    %3969 = vmatprep.subr.mxu0 0.0
    %3970 = vmatpush1.msra.mxu0 0.0
    %3971 = vmatprep.subr.mxu0 0.0
    %3972 = vmatpush1.msra.mxu0 0.0
    %3973 = vmatprep.subr.mxu0 0.0
    %3974 = vmatpush1.msra.mxu0 0.0
    %3975 = vmatprep.subr.mxu0 0.0
    %3976 = vmatpush1.msra.mxu0 0.0
    %3977 = vmatprep.subr.mxu0 0.0
    %3978 = vmatpush1.msra.mxu0 0.0
    %3979 = vmatprep.subr.mxu0 0.0
    %3980 = vmatpush1.msra.mxu0 0.0
    %3981 = vmatprep.subr.mxu0 0.0
    %3982 = vmatpush1.msra.mxu0 %v3934
    %3983 = vmatprep.subr.mxu0 0.0
    %3984 = vmatpush1.msra.mxu0 %v3933
    %3985 = vmatprep.subr.mxu0 0.0
    %3986 = vmatpush2.msra.mxu0 0.0
    %3987 = vmatprep.subr.mxu0 0.0
    %3988 = vmatpush2.msra.mxu0 0.0
    %3989 = vmatprep.subr.mxu0 0.0
    %3990 = vmatpush2.msra.mxu0 0.0
    %3991 = vmatprep.subr.mxu0 0.0
    %3992 = vmatpush2.msra.mxu0 0.0
    %3993 = vmatprep.subr.mxu0 0.0
    %3994 = vmatpush2.msra.mxu0 0.0
    %3995 = vmatprep.subr.mxu0 0.0
    %3996 = vmatpush2.msra.mxu0 0.0
    %3997 = vmatprep.subr.mxu0 0.0
    %3998 = vmatpush2.msra.mxu0 0.0
    %3999 = vmatprep.subr.mxu0 0.0
    %4000 = vmatpush2.msra.mxu0 0.0
    %4001 = vmatprep.subr.mxu0 0.0
    %4002 = vmatpush2.msra.mxu0 0.0
    %4003 = vmatprep.subr.mxu0 0.0
    %4004 = vmatpush2.msra.mxu0 0.0
    %4005 = vmatprep.subr.mxu0 0.0
    %4006 = vmatpush2.msra.mxu0 0.0
    %4007 = vmatprep.subr.mxu0 0.0
    %4008 = vmatpush2.msra.mxu0 0.0
    %4009 = vmatprep.subr.mxu0 0.0
    %4010 = vmatpush2.msra.mxu0 0.0
    %4011 = vmatprep.subr.mxu0 0.0
    %4012 = vmatpush2.msra.mxu0 0.0
    %4013 = vmatprep.subr.mxu0 0.0
    %4014 = vmatpush2.msra.mxu0 0.0
    %4015 = vmatprep.subr.mxu0 0.0
    %4016 = vmatpush2.msra.mxu0 0.0
    %4017 = vmatprep.mubr.f32.mxu0 0.0
    %4018 = vmatmul.mubr.f32.gmra.mxu0 %v3951
    %v4019 = vpop.f32.mrf.mxu0
    %v4020 = vadd.f32 0.0, %v4019
    %v4021 = vpop.f32.mrf.mxu0
    %4022 = vdwg.mxu0
    %s4023 = smul.u32 4, 8
    %s4024 = smul.u32 %s4023, 8
    %s4025 = sshll.u32 %s4024, 4
    %4026 = dma.done [#allocation6], %s4025
    %s4027 = smul.u32 4, 128
    %s4028 = smul.u32 %s4027, 8
    %s4029 = sshll.u32 %s4028, 4
    %4030 = dma.done %s165, %s4029
    %s4031 = smul.u32 %s4027, 4
    %s4032 = sshll.u32 %s4031, 4
    %4033 = dma.done %s177, %s4032
    %s4034 = smul.u32 4, 64
    %s4035 = smul.u32 %s4034, 1
    %s4036 = sshll.u32 %s4035, 4
    %4037 = dma.done %s189, %s4036
    %v4038 = vld [vmem:[#allocation19] sm:$0xff]
    %v4039 = vld [vmem:[#allocation19 + $0x8] sm:$0xff]
    %v4040 = vld [vmem:[#allocation19 + $0x10] sm:$0xff]
    %v4041 = vld [vmem:[#allocation19 + $0x18] sm:$0xff]
    %v4042 = vpack.c.bf16 %v4020, %v4020
    %v4043 = vld [vmem:[#allocation2] sm:$0xff]
    %v4044 = vld [vmem:[#allocation2 + $0x8] sm:$0xff]
    %v4045 = vld [vmem:[#allocation2 + $0x10] sm:$0xff]
    %v4046 = vld [vmem:[#allocation2 + $0x18] sm:$0xff]
    %v4047 = vld [vmem:[#allocation2 + $0x20] sm:$0xff]
    %v4048 = vld [vmem:[#allocation2 + $0x28] sm:$0xff]
    %v4049 = vld [vmem:[#allocation2 + $0x30] sm:$0xff]
    %v4050 = vld [vmem:[#allocation2 + $0x38] sm:$0xff]
    %v4051 = vld [vmem:[#allocation2 + $0x40] sm:$0xff]
    %v4052 = vld [vmem:[#allocation2 + $0x48] sm:$0xff]
    %v4053 = vld [vmem:[#allocation2 + $0x50] sm:$0xff]
    %v4054 = vld [vmem:[#allocation2 + $0x58] sm:$0xff]
    %v4055 = vld [vmem:[#allocation2 + $0x60] sm:$0xff]
    %v4056 = vld [vmem:[#allocation2 + $0x68] sm:$0xff]
    %v4057 = vld [vmem:[#allocation2 + $0x70] sm:$0xff]
    %v4058 = vld [vmem:[#allocation2 + $0x78] sm:$0xff]
    %v4059 = vld [vmem:[#allocation2 + $0x80] sm:$0xff]
    %v4060 = vld [vmem:[#allocation2 + $0x88] sm:$0xff]
    %v4061 = vld [vmem:[#allocation2 + $0x90] sm:$0xff]
    %v4062 = vld [vmem:[#allocation2 + $0x98] sm:$0xff]
    %v4063 = vld [vmem:[#allocation2 + $0xa0] sm:$0xff]
    %v4064 = vld [vmem:[#allocation2 + $0xa8] sm:$0xff]
    %v4065 = vld [vmem:[#allocation2 + $0xb0] sm:$0xff]
    %v4066 = vld [vmem:[#allocation2 + $0xb8] sm:$0xff]
    %v4067 = vld [vmem:[#allocation2 + $0xc0] sm:$0xff]
    %v4068 = vld [vmem:[#allocation2 + $0xc8] sm:$0xff]
    %v4069 = vld [vmem:[#allocation2 + $0xd0] sm:$0xff]
    %v4070 = vld [vmem:[#allocation2 + $0xd8] sm:$0xff]
    %v4071 = vld [vmem:[#allocation2 + $0xe0] sm:$0xff]
    %v4072 = vld [vmem:[#allocation2 + $0xe8] sm:$0xff]
    %v4073 = vld [vmem:[#allocation2 + $0xf0] sm:$0xff]
    %v4074 = vld [vmem:[#allocation2 + $0xf8] sm:$0xff]
    %v4079 = vlaneseq
    %v4080 = vshrl.u32 %v4079, 7
    %v4081 = vsub.s32 0, %v4080
    %v4082 = vrot.slane %v4038, %v4081
    %v4083 = vlaneseq
    %v4084 = vshrl.u32 %v4083, 7
    %v4085 = vsub.s32 4, %v4084
    %v4086 = vrot.slane %v4038, %v4085
    %v4087 = vlaneseq
    %v4088 = vshrl.u32 %v4087, 7
    %v4089 = vsub.s32 0, %v4088
    %v4090 = vrot.slane %v4039, %v4089
    %v4091 = vlaneseq
    %v4092 = vshrl.u32 %v4091, 7
    %v4093 = vsub.s32 4, %v4092
    %v4094 = vrot.slane %v4039, %v4093
    %v4095 = vlaneseq
    %v4096 = vshrl.u32 %v4095, 7
    %v4097 = vsub.s32 0, %v4096
    %v4098 = vrot.slane %v4040, %v4097
    %v4099 = vlaneseq
    %v4100 = vshrl.u32 %v4099, 7
    %v4101 = vsub.s32 4, %v4100
    %v4102 = vrot.slane %v4040, %v4101
    %v4103 = vlaneseq
    %v4104 = vshrl.u32 %v4103, 7
    %v4105 = vsub.s32 0, %v4104
    %v4106 = vrot.slane %v4041, %v4105
    %v4107 = vlaneseq
    %v4108 = vshrl.u32 %v4107, 7
    %v4109 = vsub.s32 4, %v4108
    %v4110 = vrot.slane %v4041, %v4109
    %v4119 = vlaneseq
    %v4120 = vshrl.u32 %v4119, 7
    %v4121 = vsub.s32 0, %v4120
    %v4122 = vrot.slane %v4082, %v4121
    %v4123 = vlaneseq
    %v4124 = vshrl.u32 %v4123, 7
    %v4125 = vsub.s32 0, %v4124
    %v4126 = vrot.slane %v4086, %v4125
    %v4127 = vlaneseq
    %v4128 = vshrl.u32 %v4127, 7
    %v4129 = vsub.s32 0, %v4128
    %v4130 = vrot.slane %v4090, %v4129
    %v4131 = vlaneseq
    %v4132 = vshrl.u32 %v4131, 7
    %v4133 = vsub.s32 0, %v4132
    %v4134 = vrot.slane %v4094, %v4133
    %v4135 = vlaneseq
    %v4136 = vshrl.u32 %v4135, 7
    %v4137 = vsub.s32 0, %v4136
    %v4138 = vrot.slane %v4098, %v4137
    %v4139 = vlaneseq
    %v4140 = vshrl.u32 %v4139, 7
    %v4141 = vsub.s32 0, %v4140
    %v4142 = vrot.slane %v4102, %v4141
    %v4143 = vlaneseq
    %v4144 = vshrl.u32 %v4143, 7
    %v4145 = vsub.s32 0, %v4144
    %v4146 = vrot.slane %v4106, %v4145
    %v4147 = vlaneseq
    %v4148 = vshrl.u32 %v4147, 7
    %v4149 = vsub.s32 0, %v4148
    %v4150 = vrot.slane %v4110, %v4149
    %v4183 = vunpack.c.l.b16 %v4043
    %v4184 = vunpack.c.h.b16 %v4043
    %v4185 = vunpack.c.l.b16 %v4044
    %v4186 = vunpack.c.h.b16 %v4044
    %v4187 = vunpack.c.l.b16 %v4045
    %v4188 = vunpack.c.h.b16 %v4045
    %v4189 = vunpack.c.l.b16 %v4046
    %v4190 = vunpack.c.h.b16 %v4046
    %v4191 = vunpack.c.l.b16 %v4047
    %v4192 = vunpack.c.h.b16 %v4047
    %v4193 = vunpack.c.l.b16 %v4048
    %v4194 = vunpack.c.h.b16 %v4048
    %v4195 = vunpack.c.l.b16 %v4049
    %v4196 = vunpack.c.h.b16 %v4049
    %v4197 = vunpack.c.l.b16 %v4050
    %v4198 = vunpack.c.h.b16 %v4050
    %v4199 = vunpack.c.l.b16 %v4051
    %v4200 = vunpack.c.h.b16 %v4051
    %v4201 = vunpack.c.l.b16 %v4052
    %v4202 = vunpack.c.h.b16 %v4052
    %v4203 = vunpack.c.l.b16 %v4053
    %v4204 = vunpack.c.h.b16 %v4053
    %v4205 = vunpack.c.l.b16 %v4054
    %v4206 = vunpack.c.h.b16 %v4054
    %v4207 = vunpack.c.l.b16 %v4055
    %v4208 = vunpack.c.h.b16 %v4055
    %v4209 = vunpack.c.l.b16 %v4056
    %v4210 = vunpack.c.h.b16 %v4056
    %v4211 = vunpack.c.l.b16 %v4057
    %v4212 = vunpack.c.h.b16 %v4057
    %v4213 = vunpack.c.l.b16 %v4058
    %v4214 = vunpack.c.h.b16 %v4058
    %v4215 = vunpack.c.l.b16 %v4059
    %v4216 = vunpack.c.h.b16 %v4059
    %v4217 = vunpack.c.l.b16 %v4060
    %v4218 = vunpack.c.h.b16 %v4060
    %v4219 = vunpack.c.l.b16 %v4061
    %v4220 = vunpack.c.h.b16 %v4061
    %v4221 = vunpack.c.l.b16 %v4062
    %v4222 = vunpack.c.h.b16 %v4062
    %v4223 = vunpack.c.l.b16 %v4063
    %v4224 = vunpack.c.h.b16 %v4063
    %v4225 = vunpack.c.l.b16 %v4064
    %v4226 = vunpack.c.h.b16 %v4064
    %v4227 = vunpack.c.l.b16 %v4065
    %v4228 = vunpack.c.h.b16 %v4065
    %v4229 = vunpack.c.l.b16 %v4066
    %v4230 = vunpack.c.h.b16 %v4066
    %v4231 = vunpack.c.l.b16 %v4067
    %v4232 = vunpack.c.h.b16 %v4067
    %v4233 = vunpack.c.l.b16 %v4068
    %v4234 = vunpack.c.h.b16 %v4068
    %v4235 = vunpack.c.l.b16 %v4069
    %v4236 = vunpack.c.h.b16 %v4069
    %v4237 = vunpack.c.l.b16 %v4070
    %v4238 = vunpack.c.h.b16 %v4070
    %v4239 = vunpack.c.l.b16 %v4071
    %v4240 = vunpack.c.h.b16 %v4071
    %v4241 = vunpack.c.l.b16 %v4072
    %v4242 = vunpack.c.h.b16 %v4072
    %v4243 = vunpack.c.l.b16 %v4073
    %v4244 = vunpack.c.h.b16 %v4073
    %v4245 = vunpack.c.l.b16 %v4074
    %v4246 = vunpack.c.h.b16 %v4074
    %v4247 = vpack.c.b16 %v4191, %v4183
    %v4248 = vpack.c.b16 %v4192, %v4184
    %v4249 = vpack.c.b16 %v4193, %v4185
    %v4250 = vpack.c.b16 %v4194, %v4186
    %v4251 = vpack.c.b16 %v4195, %v4187
    %v4252 = vpack.c.b16 %v4196, %v4188
    %v4253 = vpack.c.b16 %v4197, %v4189
    %v4254 = vpack.c.b16 %v4198, %v4190
    %v4255 = vpack.c.b16 %v4207, %v4199
    %v4256 = vpack.c.b16 %v4208, %v4200
    %v4257 = vpack.c.b16 %v4209, %v4201
    %v4258 = vpack.c.b16 %v4210, %v4202
    %v4259 = vpack.c.b16 %v4211, %v4203
    %v4260 = vpack.c.b16 %v4212, %v4204
    %v4261 = vpack.c.b16 %v4213, %v4205
    %v4262 = vpack.c.b16 %v4214, %v4206
    %v4263 = vpack.c.b16 %v4223, %v4215
    %v4264 = vpack.c.b16 %v4224, %v4216
    %v4265 = vpack.c.b16 %v4225, %v4217
    %v4266 = vpack.c.b16 %v4226, %v4218
    %v4267 = vpack.c.b16 %v4227, %v4219
    %v4268 = vpack.c.b16 %v4228, %v4220
    %v4269 = vpack.c.b16 %v4229, %v4221
    %v4270 = vpack.c.b16 %v4230, %v4222
    %v4271 = vpack.c.b16 %v4239, %v4231
    %v4272 = vpack.c.b16 %v4240, %v4232
    %v4273 = vpack.c.b16 %v4241, %v4233
    %v4274 = vpack.c.b16 %v4242, %v4234
    %v4275 = vpack.c.b16 %v4243, %v4235
    %v4276 = vpack.c.b16 %v4244, %v4236
    %v4277 = vpack.c.b16 %v4245, %v4237
    %v4278 = vpack.c.b16 %v4246, %v4238
    %v4312 = vsel %vm634, %v4042, 0
    %4314 = vmatprep.subr.bf16.mxu0 0
    %4315 = vmatpush1.bf16.msra.mxu0 0
    %4316 = vmatprep.subr.bf16.mxu0 0
    %4317 = vmatpush1.bf16.msra.mxu0 0
    %4318 = vmatprep.subr.bf16.mxu0 0
    %4319 = vmatpush1.bf16.msra.mxu0 0
    %4320 = vmatprep.subr.bf16.mxu0 0
    %4321 = vmatpush1.bf16.msra.mxu0 0
    %4322 = vmatprep.subr.bf16.mxu0 %v4272
    %4323 = vmatpush1.bf16.msra.mxu0 %v4271
    %4324 = vmatprep.subr.bf16.mxu0 %v4264
    %4325 = vmatpush1.bf16.msra.mxu0 %v4263
    %4326 = vmatprep.subr.bf16.mxu0 %v4256
    %4327 = vmatpush1.bf16.msra.mxu0 %v4255
    %4328 = vmatprep.subr.bf16.mxu0 %v4248
    %4329 = vmatpush1.bf16.msra.mxu0 %v4247
    %4330 = vmatprep.subr.bf16.mxu0 0
    %4331 = vmatpush2.bf16.msra.mxu0 0
    %4332 = vmatprep.subr.bf16.mxu0 0
    %4333 = vmatpush2.bf16.msra.mxu0 0
    %4334 = vmatprep.subr.bf16.mxu0 0
    %4335 = vmatpush2.bf16.msra.mxu0 0
    %4336 = vmatprep.subr.bf16.mxu0 0
    %4337 = vmatpush2.bf16.msra.mxu0 0
    %4338 = vmatprep.subr.bf16.mxu0 0
    %4339 = vmatpush2.bf16.msra.mxu0 0
    %4340 = vmatprep.subr.bf16.mxu0 0
    %4341 = vmatpush2.bf16.msra.mxu0 0
    %4342 = vmatprep.subr.bf16.mxu0 0
    %4343 = vmatpush2.bf16.msra.mxu0 0
    %4344 = vmatprep.subr.bf16.mxu0 0
    %4345 = vmatpush2.bf16.msra.mxu0 0
    %4346 = vmatprep.mubr.bf16.mxu0 0
    %4347 = vmatmul.mubr.bf16.gmra.mxu0 %v4312
    %v4348 = vpop.f32.mrf.mxu0
    %v4349 = vadd.f32 %v4122, %v4348
    %v4350 = vpop.f32.mrf.mxu0
    %v4351 = vadd.f32 %v4126, %v4350
    %v4352 = vpop.f32.mrf.mxu0
    %v4353 = vpop.f32.mrf.mxu0
    %4354 = vdwg.mxu0
    %4355 = vmatprep.subr.bf16.mxu0 0
    %4356 = vmatpush1.bf16.msra.mxu0 0
    %4357 = vmatprep.subr.bf16.mxu0 0
    %4358 = vmatpush1.bf16.msra.mxu0 0
    %4359 = vmatprep.subr.bf16.mxu0 0
    %4360 = vmatpush1.bf16.msra.mxu0 0
    %4361 = vmatprep.subr.bf16.mxu0 0
    %4362 = vmatpush1.bf16.msra.mxu0 0
    %4363 = vmatprep.subr.bf16.mxu0 %v4274
    %4364 = vmatpush1.bf16.msra.mxu0 %v4273
    %4365 = vmatprep.subr.bf16.mxu0 %v4266
    %4366 = vmatpush1.bf16.msra.mxu0 %v4265
    %4367 = vmatprep.subr.bf16.mxu0 %v4258
    %4368 = vmatpush1.bf16.msra.mxu0 %v4257
    %4369 = vmatprep.subr.bf16.mxu0 %v4250
    %4370 = vmatpush1.bf16.msra.mxu0 %v4249
    %4371 = vmatprep.subr.bf16.mxu0 0
    %4372 = vmatpush2.bf16.msra.mxu0 0
    %4373 = vmatprep.subr.bf16.mxu0 0
    %4374 = vmatpush2.bf16.msra.mxu0 0
    %4375 = vmatprep.subr.bf16.mxu0 0
    %4376 = vmatpush2.bf16.msra.mxu0 0
    %4377 = vmatprep.subr.bf16.mxu0 0
    %4378 = vmatpush2.bf16.msra.mxu0 0
    %4379 = vmatprep.subr.bf16.mxu0 0
    %4380 = vmatpush2.bf16.msra.mxu0 0
    %4381 = vmatprep.subr.bf16.mxu0 0
    %4382 = vmatpush2.bf16.msra.mxu0 0
    %4383 = vmatprep.subr.bf16.mxu0 0
    %4384 = vmatpush2.bf16.msra.mxu0 0
    %4385 = vmatprep.subr.bf16.mxu0 0
    %4386 = vmatpush2.bf16.msra.mxu0 0
    %4387 = vmatprep.mubr.bf16.mxu0 0
    %4388 = vmatmul.mubr.bf16.gmra.mxu0 %v4312
    %v4389 = vpop.f32.mrf.mxu0
    %v4390 = vadd.f32 %v4130, %v4389
    %v4391 = vpop.f32.mrf.mxu0
    %v4392 = vadd.f32 %v4134, %v4391
    %v4393 = vpop.f32.mrf.mxu0
    %v4394 = vpop.f32.mrf.mxu0
    %4395 = vdwg.mxu0
    %4396 = vmatprep.subr.bf16.mxu0 0
    %4397 = vmatpush1.bf16.msra.mxu0 0
    %4398 = vmatprep.subr.bf16.mxu0 0
    %4399 = vmatpush1.bf16.msra.mxu0 0
    %4400 = vmatprep.subr.bf16.mxu0 0
    %4401 = vmatpush1.bf16.msra.mxu0 0
    %4402 = vmatprep.subr.bf16.mxu0 0
    %4403 = vmatpush1.bf16.msra.mxu0 0
    %4404 = vmatprep.subr.bf16.mxu0 %v4276
    %4405 = vmatpush1.bf16.msra.mxu0 %v4275
    %4406 = vmatprep.subr.bf16.mxu0 %v4268
    %4407 = vmatpush1.bf16.msra.mxu0 %v4267
    %4408 = vmatprep.subr.bf16.mxu0 %v4260
    %4409 = vmatpush1.bf16.msra.mxu0 %v4259
    %4410 = vmatprep.subr.bf16.mxu0 %v4252
    %4411 = vmatpush1.bf16.msra.mxu0 %v4251
    %4412 = vmatprep.subr.bf16.mxu0 0
    %4413 = vmatpush2.bf16.msra.mxu0 0
    %4414 = vmatprep.subr.bf16.mxu0 0
    %4415 = vmatpush2.bf16.msra.mxu0 0
    %4416 = vmatprep.subr.bf16.mxu0 0
    %4417 = vmatpush2.bf16.msra.mxu0 0
    %4418 = vmatprep.subr.bf16.mxu0 0
    %4419 = vmatpush2.bf16.msra.mxu0 0
    %4420 = vmatprep.subr.bf16.mxu0 0
    %4421 = vmatpush2.bf16.msra.mxu0 0
    %4422 = vmatprep.subr.bf16.mxu0 0
    %4423 = vmatpush2.bf16.msra.mxu0 0
    %4424 = vmatprep.subr.bf16.mxu0 0
    %4425 = vmatpush2.bf16.msra.mxu0 0
    %4426 = vmatprep.subr.bf16.mxu0 0
    %4427 = vmatpush2.bf16.msra.mxu0 0
    %4428 = vmatprep.mubr.bf16.mxu0 0
    %4429 = vmatmul.mubr.bf16.gmra.mxu0 %v4312
    %v4430 = vpop.f32.mrf.mxu0
    %v4431 = vadd.f32 %v4138, %v4430
    %v4432 = vpop.f32.mrf.mxu0
    %v4433 = vadd.f32 %v4142, %v4432
    %v4434 = vpop.f32.mrf.mxu0
    %v4435 = vpop.f32.mrf.mxu0
    %4436 = vdwg.mxu0
    %4437 = vmatprep.subr.bf16.mxu0 0
    %4438 = vmatpush1.bf16.msra.mxu0 0
    %4439 = vmatprep.subr.bf16.mxu0 0
    %4440 = vmatpush1.bf16.msra.mxu0 0
    %4441 = vmatprep.subr.bf16.mxu0 0
    %4442 = vmatpush1.bf16.msra.mxu0 0
    %4443 = vmatprep.subr.bf16.mxu0 0
    %4444 = vmatpush1.bf16.msra.mxu0 0
    %4445 = vmatprep.subr.bf16.mxu0 %v4278
    %4446 = vmatpush1.bf16.msra.mxu0 %v4277
    %4447 = vmatprep.subr.bf16.mxu0 %v4270
    %4448 = vmatpush1.bf16.msra.mxu0 %v4269
    %4449 = vmatprep.subr.bf16.mxu0 %v4262
    %4450 = vmatpush1.bf16.msra.mxu0 %v4261
    %4451 = vmatprep.subr.bf16.mxu0 %v4254
    %4452 = vmatpush1.bf16.msra.mxu0 %v4253
    %4453 = vmatprep.subr.bf16.mxu0 0
    %4454 = vmatpush2.bf16.msra.mxu0 0
    %4455 = vmatprep.subr.bf16.mxu0 0
    %4456 = vmatpush2.bf16.msra.mxu0 0
    %4457 = vmatprep.subr.bf16.mxu0 0
    %4458 = vmatpush2.bf16.msra.mxu0 0
    %4459 = vmatprep.subr.bf16.mxu0 0
    %4460 = vmatpush2.bf16.msra.mxu0 0
    %4461 = vmatprep.subr.bf16.mxu0 0
    %4462 = vmatpush2.bf16.msra.mxu0 0
    %4463 = vmatprep.subr.bf16.mxu0 0
    %4464 = vmatpush2.bf16.msra.mxu0 0
    %4465 = vmatprep.subr.bf16.mxu0 0
    %4466 = vmatpush2.bf16.msra.mxu0 0
    %4467 = vmatprep.subr.bf16.mxu0 0
    %4468 = vmatpush2.bf16.msra.mxu0 0
    %4469 = vmatprep.mubr.bf16.mxu0 0
    %4470 = vmatmul.mubr.bf16.gmra.mxu0 %v4312
    %v4471 = vpop.f32.mrf.mxu0
    %v4472 = vadd.f32 %v4146, %v4471
    %v4473 = vpop.f32.mrf.mxu0
    %v4474 = vadd.f32 %v4150, %v4473
    %v4475 = vpop.f32.mrf.mxu0
    %v4476 = vpop.f32.mrf.mxu0
    %4477 = vdwg.mxu0
    %v4478 = vmax.f32 %v4349, 0.0
    %v4479 = vmax.f32 %v4351, 0.0
    %v4480 = vmax.f32 %v4390, 0.0
    %v4481 = vmax.f32 %v4392, 0.0
    %v4482 = vmax.f32 %v4431, 0.0
    %v4483 = vmax.f32 %v4433, 0.0
    %v4484 = vmax.f32 %v4472, 0.0
    %v4485 = vmax.f32 %v4474, 0.0
    %v4486 = vpack.c.bf16 %v4478, %v4478
    %v4487 = vpack.c.bf16 %v4479, %v4479
    %v4488 = vpack.c.bf16 %v4480, %v4480
    %v4489 = vpack.c.bf16 %v4481, %v4481
    %v4490 = vpack.c.bf16 %v4482, %v4482
    %v4491 = vpack.c.bf16 %v4483, %v4483
    %v4492 = vpack.c.bf16 %v4484, %v4484
    %v4493 = vpack.c.bf16 %v4485, %v4485
    %v4494 = vld [vmem:[#allocation3] sm:$0xff]
    %v4495 = vld [vmem:[#allocation3 + $0x8] sm:$0xff]
    %v4496 = vld [vmem:[#allocation3 + $0x10] sm:$0xff]
    %v4497 = vld [vmem:[#allocation3 + $0x18] sm:$0xff]
    %v4498 = vld [vmem:[#allocation3 + $0x20] sm:$0xff]
    %v4499 = vld [vmem:[#allocation3 + $0x28] sm:$0xff]
    %v4500 = vld [vmem:[#allocation3 + $0x30] sm:$0xff]
    %v4501 = vld [vmem:[#allocation3 + $0x38] sm:$0xff]
    %v4502 = vld [vmem:[#allocation3 + $0x40] sm:$0xff]
    %v4503 = vld [vmem:[#allocation3 + $0x48] sm:$0xff]
    %v4504 = vld [vmem:[#allocation3 + $0x50] sm:$0xff]
    %v4505 = vld [vmem:[#allocation3 + $0x58] sm:$0xff]
    %v4506 = vld [vmem:[#allocation3 + $0x60] sm:$0xff]
    %v4507 = vld [vmem:[#allocation3 + $0x68] sm:$0xff]
    %v4508 = vld [vmem:[#allocation3 + $0x70] sm:$0xff]
    %v4509 = vld [vmem:[#allocation3 + $0x78] sm:$0xff]
    %v4510 = vld [vmem:[#allocation3 + $0x80] sm:$0xff]
    %v4511 = vld [vmem:[#allocation3 + $0x88] sm:$0xff]
    %v4512 = vld [vmem:[#allocation3 + $0x90] sm:$0xff]
    %v4513 = vld [vmem:[#allocation3 + $0x98] sm:$0xff]
    %v4514 = vld [vmem:[#allocation3 + $0xa0] sm:$0xff]
    %v4515 = vld [vmem:[#allocation3 + $0xa8] sm:$0xff]
    %v4516 = vld [vmem:[#allocation3 + $0xb0] sm:$0xff]
    %v4517 = vld [vmem:[#allocation3 + $0xb8] sm:$0xff]
    %v4518 = vld [vmem:[#allocation3 + $0xc0] sm:$0xff]
    %v4519 = vld [vmem:[#allocation3 + $0xc8] sm:$0xff]
    %v4520 = vld [vmem:[#allocation3 + $0xd0] sm:$0xff]
    %v4521 = vld [vmem:[#allocation3 + $0xd8] sm:$0xff]
    %v4522 = vld [vmem:[#allocation3 + $0xe0] sm:$0xff]
    %v4523 = vld [vmem:[#allocation3 + $0xe8] sm:$0xff]
    %v4524 = vld [vmem:[#allocation3 + $0xf0] sm:$0xff]
    %v4525 = vld [vmem:[#allocation3 + $0xf8] sm:$0xff]
    %v4526 = vld [vmem:[#allocation3 + $0x100] sm:$0xff]
    %v4527 = vld [vmem:[#allocation3 + $0x108] sm:$0xff]
    %v4528 = vld [vmem:[#allocation3 + $0x110] sm:$0xff]
    %v4529 = vld [vmem:[#allocation3 + $0x118] sm:$0xff]
    %v4530 = vld [vmem:[#allocation3 + $0x120] sm:$0xff]
    %v4531 = vld [vmem:[#allocation3 + $0x128] sm:$0xff]
    %v4532 = vld [vmem:[#allocation3 + $0x130] sm:$0xff]
    %v4533 = vld [vmem:[#allocation3 + $0x138] sm:$0xff]
    %v4534 = vld [vmem:[#allocation3 + $0x140] sm:$0xff]
    %v4535 = vld [vmem:[#allocation3 + $0x148] sm:$0xff]
    %v4536 = vld [vmem:[#allocation3 + $0x150] sm:$0xff]
    %v4537 = vld [vmem:[#allocation3 + $0x158] sm:$0xff]
    %v4538 = vld [vmem:[#allocation3 + $0x160] sm:$0xff]
    %v4539 = vld [vmem:[#allocation3 + $0x168] sm:$0xff]
    %v4540 = vld [vmem:[#allocation3 + $0x170] sm:$0xff]
    %v4541 = vld [vmem:[#allocation3 + $0x178] sm:$0xff]
    %v4542 = vld [vmem:[#allocation3 + $0x180] sm:$0xff]
    %v4543 = vld [vmem:[#allocation3 + $0x188] sm:$0xff]
    %v4544 = vld [vmem:[#allocation3 + $0x190] sm:$0xff]
    %v4545 = vld [vmem:[#allocation3 + $0x198] sm:$0xff]
    %v4546 = vld [vmem:[#allocation3 + $0x1a0] sm:$0xff]
    %v4547 = vld [vmem:[#allocation3 + $0x1a8] sm:$0xff]
    %v4548 = vld [vmem:[#allocation3 + $0x1b0] sm:$0xff]
    %v4549 = vld [vmem:[#allocation3 + $0x1b8] sm:$0xff]
    %v4550 = vld [vmem:[#allocation3 + $0x1c0] sm:$0xff]
    %v4551 = vld [vmem:[#allocation3 + $0x1c8] sm:$0xff]
    %v4552 = vld [vmem:[#allocation3 + $0x1d0] sm:$0xff]
    %v4553 = vld [vmem:[#allocation3 + $0x1d8] sm:$0xff]
    %v4554 = vld [vmem:[#allocation3 + $0x1e0] sm:$0xff]
    %v4555 = vld [vmem:[#allocation3 + $0x1e8] sm:$0xff]
    %v4556 = vld [vmem:[#allocation3 + $0x1f0] sm:$0xff]
    %v4557 = vld [vmem:[#allocation3 + $0x1f8] sm:$0xff]
    %v4558 = vld [vmem:[#allocation3 + $0x200] sm:$0xff]
    %v4559 = vld [vmem:[#allocation3 + $0x208] sm:$0xff]
    %v4560 = vld [vmem:[#allocation3 + $0x210] sm:$0xff]
    %v4561 = vld [vmem:[#allocation3 + $0x218] sm:$0xff]
    %v4562 = vld [vmem:[#allocation3 + $0x220] sm:$0xff]
    %v4563 = vld [vmem:[#allocation3 + $0x228] sm:$0xff]
    %v4564 = vld [vmem:[#allocation3 + $0x230] sm:$0xff]
    %v4565 = vld [vmem:[#allocation3 + $0x238] sm:$0xff]
    %v4566 = vld [vmem:[#allocation3 + $0x240] sm:$0xff]
    %v4567 = vld [vmem:[#allocation3 + $0x248] sm:$0xff]
    %v4568 = vld [vmem:[#allocation3 + $0x250] sm:$0xff]
    %v4569 = vld [vmem:[#allocation3 + $0x258] sm:$0xff]
    %v4570 = vld [vmem:[#allocation3 + $0x260] sm:$0xff]
    %v4571 = vld [vmem:[#allocation3 + $0x268] sm:$0xff]
    %v4572 = vld [vmem:[#allocation3 + $0x270] sm:$0xff]
    %v4573 = vld [vmem:[#allocation3 + $0x278] sm:$0xff]
    %v4574 = vld [vmem:[#allocation3 + $0x280] sm:$0xff]
    %v4575 = vld [vmem:[#allocation3 + $0x288] sm:$0xff]
    %v4576 = vld [vmem:[#allocation3 + $0x290] sm:$0xff]
    %v4577 = vld [vmem:[#allocation3 + $0x298] sm:$0xff]
    %v4578 = vld [vmem:[#allocation3 + $0x2a0] sm:$0xff]
    %v4579 = vld [vmem:[#allocation3 + $0x2a8] sm:$0xff]
    %v4580 = vld [vmem:[#allocation3 + $0x2b0] sm:$0xff]
    %v4581 = vld [vmem:[#allocation3 + $0x2b8] sm:$0xff]
    %v4582 = vld [vmem:[#allocation3 + $0x2c0] sm:$0xff]
    %v4583 = vld [vmem:[#allocation3 + $0x2c8] sm:$0xff]
    %v4584 = vld [vmem:[#allocation3 + $0x2d0] sm:$0xff]
    %v4585 = vld [vmem:[#allocation3 + $0x2d8] sm:$0xff]
    %v4586 = vld [vmem:[#allocation3 + $0x2e0] sm:$0xff]
    %v4587 = vld [vmem:[#allocation3 + $0x2e8] sm:$0xff]
    %v4588 = vld [vmem:[#allocation3 + $0x2f0] sm:$0xff]
    %v4589 = vld [vmem:[#allocation3 + $0x2f8] sm:$0xff]
    %v4590 = vld [vmem:[#allocation3 + $0x300] sm:$0xff]
    %v4591 = vld [vmem:[#allocation3 + $0x308] sm:$0xff]
    %v4592 = vld [vmem:[#allocation3 + $0x310] sm:$0xff]
    %v4593 = vld [vmem:[#allocation3 + $0x318] sm:$0xff]
    %v4594 = vld [vmem:[#allocation3 + $0x320] sm:$0xff]
    %v4595 = vld [vmem:[#allocation3 + $0x328] sm:$0xff]
    %v4596 = vld [vmem:[#allocation3 + $0x330] sm:$0xff]
    %v4597 = vld [vmem:[#allocation3 + $0x338] sm:$0xff]
    %v4598 = vld [vmem:[#allocation3 + $0x340] sm:$0xff]
    %v4599 = vld [vmem:[#allocation3 + $0x348] sm:$0xff]
    %v4600 = vld [vmem:[#allocation3 + $0x350] sm:$0xff]
    %v4601 = vld [vmem:[#allocation3 + $0x358] sm:$0xff]
    %v4602 = vld [vmem:[#allocation3 + $0x360] sm:$0xff]
    %v4603 = vld [vmem:[#allocation3 + $0x368] sm:$0xff]
    %v4604 = vld [vmem:[#allocation3 + $0x370] sm:$0xff]
    %v4605 = vld [vmem:[#allocation3 + $0x378] sm:$0xff]
    %v4606 = vld [vmem:[#allocation3 + $0x380] sm:$0xff]
    %v4607 = vld [vmem:[#allocation3 + $0x388] sm:$0xff]
    %v4608 = vld [vmem:[#allocation3 + $0x390] sm:$0xff]
    %v4609 = vld [vmem:[#allocation3 + $0x398] sm:$0xff]
    %v4610 = vld [vmem:[#allocation3 + $0x3a0] sm:$0xff]
    %v4611 = vld [vmem:[#allocation3 + $0x3a8] sm:$0xff]
    %v4612 = vld [vmem:[#allocation3 + $0x3b0] sm:$0xff]
    %v4613 = vld [vmem:[#allocation3 + $0x3b8] sm:$0xff]
    %v4614 = vld [vmem:[#allocation3 + $0x3c0] sm:$0xff]
    %v4615 = vld [vmem:[#allocation3 + $0x3c8] sm:$0xff]
    %v4616 = vld [vmem:[#allocation3 + $0x3d0] sm:$0xff]
    %v4617 = vld [vmem:[#allocation3 + $0x3d8] sm:$0xff]
    %v4618 = vld [vmem:[#allocation3 + $0x3e0] sm:$0xff]
    %v4619 = vld [vmem:[#allocation3 + $0x3e8] sm:$0xff]
    %v4620 = vld [vmem:[#allocation3 + $0x3f0] sm:$0xff]
    %v4621 = vld [vmem:[#allocation3 + $0x3f8] sm:$0xff]
    %v4622 = vld [vmem:[#allocation3 + $0x400] sm:$0xff]
    %v4623 = vld [vmem:[#allocation3 + $0x408] sm:$0xff]
    %v4624 = vld [vmem:[#allocation3 + $0x410] sm:$0xff]
    %v4625 = vld [vmem:[#allocation3 + $0x418] sm:$0xff]
    %v4626 = vld [vmem:[#allocation3 + $0x420] sm:$0xff]
    %v4627 = vld [vmem:[#allocation3 + $0x428] sm:$0xff]
    %v4628 = vld [vmem:[#allocation3 + $0x430] sm:$0xff]
    %v4629 = vld [vmem:[#allocation3 + $0x438] sm:$0xff]
    %v4630 = vld [vmem:[#allocation3 + $0x440] sm:$0xff]
    %v4631 = vld [vmem:[#allocation3 + $0x448] sm:$0xff]
    %v4632 = vld [vmem:[#allocation3 + $0x450] sm:$0xff]
    %v4633 = vld [vmem:[#allocation3 + $0x458] sm:$0xff]
    %v4634 = vld [vmem:[#allocation3 + $0x460] sm:$0xff]
    %v4635 = vld [vmem:[#allocation3 + $0x468] sm:$0xff]
    %v4636 = vld [vmem:[#allocation3 + $0x470] sm:$0xff]
    %v4637 = vld [vmem:[#allocation3 + $0x478] sm:$0xff]
    %v4638 = vld [vmem:[#allocation3 + $0x480] sm:$0xff]
    %v4639 = vld [vmem:[#allocation3 + $0x488] sm:$0xff]
    %v4640 = vld [vmem:[#allocation3 + $0x490] sm:$0xff]
    %v4641 = vld [vmem:[#allocation3 + $0x498] sm:$0xff]
    %v4642 = vld [vmem:[#allocation3 + $0x4a0] sm:$0xff]
    %v4643 = vld [vmem:[#allocation3 + $0x4a8] sm:$0xff]
    %v4644 = vld [vmem:[#allocation3 + $0x4b0] sm:$0xff]
    %v4645 = vld [vmem:[#allocation3 + $0x4b8] sm:$0xff]
    %v4646 = vld [vmem:[#allocation3 + $0x4c0] sm:$0xff]
    %v4647 = vld [vmem:[#allocation3 + $0x4c8] sm:$0xff]
    %v4648 = vld [vmem:[#allocation3 + $0x4d0] sm:$0xff]
    %v4649 = vld [vmem:[#allocation3 + $0x4d8] sm:$0xff]
    %v4650 = vld [vmem:[#allocation3 + $0x4e0] sm:$0xff]
    %v4651 = vld [vmem:[#allocation3 + $0x4e8] sm:$0xff]
    %v4652 = vld [vmem:[#allocation3 + $0x4f0] sm:$0xff]
    %v4653 = vld [vmem:[#allocation3 + $0x4f8] sm:$0xff]
    %v4654 = vld [vmem:[#allocation3 + $0x500] sm:$0xff]
    %v4655 = vld [vmem:[#allocation3 + $0x508] sm:$0xff]
    %v4656 = vld [vmem:[#allocation3 + $0x510] sm:$0xff]
    %v4657 = vld [vmem:[#allocation3 + $0x518] sm:$0xff]
    %v4658 = vld [vmem:[#allocation3 + $0x520] sm:$0xff]
    %v4659 = vld [vmem:[#allocation3 + $0x528] sm:$0xff]
    %v4660 = vld [vmem:[#allocation3 + $0x530] sm:$0xff]
    %v4661 = vld [vmem:[#allocation3 + $0x538] sm:$0xff]
    %v4662 = vld [vmem:[#allocation3 + $0x540] sm:$0xff]
    %v4663 = vld [vmem:[#allocation3 + $0x548] sm:$0xff]
    %v4664 = vld [vmem:[#allocation3 + $0x550] sm:$0xff]
    %v4665 = vld [vmem:[#allocation3 + $0x558] sm:$0xff]
    %v4666 = vld [vmem:[#allocation3 + $0x560] sm:$0xff]
    %v4667 = vld [vmem:[#allocation3 + $0x568] sm:$0xff]
    %v4668 = vld [vmem:[#allocation3 + $0x570] sm:$0xff]
    %v4669 = vld [vmem:[#allocation3 + $0x578] sm:$0xff]
    %v4670 = vld [vmem:[#allocation3 + $0x580] sm:$0xff]
    %v4671 = vld [vmem:[#allocation3 + $0x588] sm:$0xff]
    %v4672 = vld [vmem:[#allocation3 + $0x590] sm:$0xff]
    %v4673 = vld [vmem:[#allocation3 + $0x598] sm:$0xff]
    %v4674 = vld [vmem:[#allocation3 + $0x5a0] sm:$0xff]
    %v4675 = vld [vmem:[#allocation3 + $0x5a8] sm:$0xff]
    %v4676 = vld [vmem:[#allocation3 + $0x5b0] sm:$0xff]
    %v4677 = vld [vmem:[#allocation3 + $0x5b8] sm:$0xff]
    %v4678 = vld [vmem:[#allocation3 + $0x5c0] sm:$0xff]
    %v4679 = vld [vmem:[#allocation3 + $0x5c8] sm:$0xff]
    %v4680 = vld [vmem:[#allocation3 + $0x5d0] sm:$0xff]
    %v4681 = vld [vmem:[#allocation3 + $0x5d8] sm:$0xff]
    %v4682 = vld [vmem:[#allocation3 + $0x5e0] sm:$0xff]
    %v4683 = vld [vmem:[#allocation3 + $0x5e8] sm:$0xff]
    %v4684 = vld [vmem:[#allocation3 + $0x5f0] sm:$0xff]
    %v4685 = vld [vmem:[#allocation3 + $0x5f8] sm:$0xff]
    %v4686 = vld [vmem:[#allocation3 + $0x600] sm:$0xff]
    %v4687 = vld [vmem:[#allocation3 + $0x608] sm:$0xff]
    %v4688 = vld [vmem:[#allocation3 + $0x610] sm:$0xff]
    %v4689 = vld [vmem:[#allocation3 + $0x618] sm:$0xff]
    %v4690 = vld [vmem:[#allocation3 + $0x620] sm:$0xff]
    %v4691 = vld [vmem:[#allocation3 + $0x628] sm:$0xff]
    %v4692 = vld [vmem:[#allocation3 + $0x630] sm:$0xff]
    %v4693 = vld [vmem:[#allocation3 + $0x638] sm:$0xff]
    %v4694 = vld [vmem:[#allocation3 + $0x640] sm:$0xff]
    %v4695 = vld [vmem:[#allocation3 + $0x648] sm:$0xff]
    %v4696 = vld [vmem:[#allocation3 + $0x650] sm:$0xff]
    %v4697 = vld [vmem:[#allocation3 + $0x658] sm:$0xff]
    %v4698 = vld [vmem:[#allocation3 + $0x660] sm:$0xff]
    %v4699 = vld [vmem:[#allocation3 + $0x668] sm:$0xff]
    %v4700 = vld [vmem:[#allocation3 + $0x670] sm:$0xff]
    %v4701 = vld [vmem:[#allocation3 + $0x678] sm:$0xff]
    %v4702 = vld [vmem:[#allocation3 + $0x680] sm:$0xff]
    %v4703 = vld [vmem:[#allocation3 + $0x688] sm:$0xff]
    %v4704 = vld [vmem:[#allocation3 + $0x690] sm:$0xff]
    %v4705 = vld [vmem:[#allocation3 + $0x698] sm:$0xff]
    %v4706 = vld [vmem:[#allocation3 + $0x6a0] sm:$0xff]
    %v4707 = vld [vmem:[#allocation3 + $0x6a8] sm:$0xff]
    %v4708 = vld [vmem:[#allocation3 + $0x6b0] sm:$0xff]
    %v4709 = vld [vmem:[#allocation3 + $0x6b8] sm:$0xff]
    %v4710 = vld [vmem:[#allocation3 + $0x6c0] sm:$0xff]
    %v4711 = vld [vmem:[#allocation3 + $0x6c8] sm:$0xff]
    %v4712 = vld [vmem:[#allocation3 + $0x6d0] sm:$0xff]
    %v4713 = vld [vmem:[#allocation3 + $0x6d8] sm:$0xff]
    %v4714 = vld [vmem:[#allocation3 + $0x6e0] sm:$0xff]
    %v4715 = vld [vmem:[#allocation3 + $0x6e8] sm:$0xff]
    %v4716 = vld [vmem:[#allocation3 + $0x6f0] sm:$0xff]
    %v4717 = vld [vmem:[#allocation3 + $0x6f8] sm:$0xff]
    %v4718 = vld [vmem:[#allocation3 + $0x700] sm:$0xff]
    %v4719 = vld [vmem:[#allocation3 + $0x708] sm:$0xff]
    %v4720 = vld [vmem:[#allocation3 + $0x710] sm:$0xff]
    %v4721 = vld [vmem:[#allocation3 + $0x718] sm:$0xff]
    %v4722 = vld [vmem:[#allocation3 + $0x720] sm:$0xff]
    %v4723 = vld [vmem:[#allocation3 + $0x728] sm:$0xff]
    %v4724 = vld [vmem:[#allocation3 + $0x730] sm:$0xff]
    %v4725 = vld [vmem:[#allocation3 + $0x738] sm:$0xff]
    %v4726 = vld [vmem:[#allocation3 + $0x740] sm:$0xff]
    %v4727 = vld [vmem:[#allocation3 + $0x748] sm:$0xff]
    %v4728 = vld [vmem:[#allocation3 + $0x750] sm:$0xff]
    %v4729 = vld [vmem:[#allocation3 + $0x758] sm:$0xff]
    %v4730 = vld [vmem:[#allocation3 + $0x760] sm:$0xff]
    %v4731 = vld [vmem:[#allocation3 + $0x768] sm:$0xff]
    %v4732 = vld [vmem:[#allocation3 + $0x770] sm:$0xff]
    %v4733 = vld [vmem:[#allocation3 + $0x778] sm:$0xff]
    %v4734 = vld [vmem:[#allocation3 + $0x780] sm:$0xff]
    %v4735 = vld [vmem:[#allocation3 + $0x788] sm:$0xff]
    %v4736 = vld [vmem:[#allocation3 + $0x790] sm:$0xff]
    %v4737 = vld [vmem:[#allocation3 + $0x798] sm:$0xff]
    %v4738 = vld [vmem:[#allocation3 + $0x7a0] sm:$0xff]
    %v4739 = vld [vmem:[#allocation3 + $0x7a8] sm:$0xff]
    %v4740 = vld [vmem:[#allocation3 + $0x7b0] sm:$0xff]
    %v4741 = vld [vmem:[#allocation3 + $0x7b8] sm:$0xff]
    %v4742 = vld [vmem:[#allocation3 + $0x7c0] sm:$0xff]
    %v4743 = vld [vmem:[#allocation3 + $0x7c8] sm:$0xff]
    %v4744 = vld [vmem:[#allocation3 + $0x7d0] sm:$0xff]
    %v4745 = vld [vmem:[#allocation3 + $0x7d8] sm:$0xff]
    %v4746 = vld [vmem:[#allocation3 + $0x7e0] sm:$0xff]
    %v4747 = vld [vmem:[#allocation3 + $0x7e8] sm:$0xff]
    %v4748 = vld [vmem:[#allocation3 + $0x7f0] sm:$0xff]
    %v4749 = vld [vmem:[#allocation3 + $0x7f8] sm:$0xff]
    %v4750 = vld [vmem:[#allocation3 + $0x800] sm:$0xff]
    %v4751 = vld [vmem:[#allocation3 + $0x808] sm:$0xff]
    %v4752 = vld [vmem:[#allocation3 + $0x810] sm:$0xff]
    %v4753 = vld [vmem:[#allocation3 + $0x818] sm:$0xff]
    %v4754 = vld [vmem:[#allocation3 + $0x820] sm:$0xff]
    %v4755 = vld [vmem:[#allocation3 + $0x828] sm:$0xff]
    %v4756 = vld [vmem:[#allocation3 + $0x830] sm:$0xff]
    %v4757 = vld [vmem:[#allocation3 + $0x838] sm:$0xff]
    %v4758 = vld [vmem:[#allocation3 + $0x840] sm:$0xff]
    %v4759 = vld [vmem:[#allocation3 + $0x848] sm:$0xff]
    %v4760 = vld [vmem:[#allocation3 + $0x850] sm:$0xff]
    %v4761 = vld [vmem:[#allocation3 + $0x858] sm:$0xff]
    %v4762 = vld [vmem:[#allocation3 + $0x860] sm:$0xff]
    %v4763 = vld [vmem:[#allocation3 + $0x868] sm:$0xff]
    %v4764 = vld [vmem:[#allocation3 + $0x870] sm:$0xff]
    %v4765 = vld [vmem:[#allocation3 + $0x878] sm:$0xff]
    %v4766 = vld [vmem:[#allocation3 + $0x880] sm:$0xff]
    %v4767 = vld [vmem:[#allocation3 + $0x888] sm:$0xff]
    %v4768 = vld [vmem:[#allocation3 + $0x890] sm:$0xff]
    %v4769 = vld [vmem:[#allocation3 + $0x898] sm:$0xff]
    %v4770 = vld [vmem:[#allocation3 + $0x8a0] sm:$0xff]
    %v4771 = vld [vmem:[#allocation3 + $0x8a8] sm:$0xff]
    %v4772 = vld [vmem:[#allocation3 + $0x8b0] sm:$0xff]
    %v4773 = vld [vmem:[#allocation3 + $0x8b8] sm:$0xff]
    %v4774 = vld [vmem:[#allocation3 + $0x8c0] sm:$0xff]
    %v4775 = vld [vmem:[#allocation3 + $0x8c8] sm:$0xff]
    %v4776 = vld [vmem:[#allocation3 + $0x8d0] sm:$0xff]
    %v4777 = vld [vmem:[#allocation3 + $0x8d8] sm:$0xff]
    %v4778 = vld [vmem:[#allocation3 + $0x8e0] sm:$0xff]
    %v4779 = vld [vmem:[#allocation3 + $0x8e8] sm:$0xff]
    %v4780 = vld [vmem:[#allocation3 + $0x8f0] sm:$0xff]
    %v4781 = vld [vmem:[#allocation3 + $0x8f8] sm:$0xff]
    %v4782 = vld [vmem:[#allocation3 + $0x900] sm:$0xff]
    %v4783 = vld [vmem:[#allocation3 + $0x908] sm:$0xff]
    %v4784 = vld [vmem:[#allocation3 + $0x910] sm:$0xff]
    %v4785 = vld [vmem:[#allocation3 + $0x918] sm:$0xff]
    %v4786 = vld [vmem:[#allocation3 + $0x920] sm:$0xff]
    %v4787 = vld [vmem:[#allocation3 + $0x928] sm:$0xff]
    %v4788 = vld [vmem:[#allocation3 + $0x930] sm:$0xff]
    %v4789 = vld [vmem:[#allocation3 + $0x938] sm:$0xff]
    %v4790 = vld [vmem:[#allocation3 + $0x940] sm:$0xff]
    %v4791 = vld [vmem:[#allocation3 + $0x948] sm:$0xff]
    %v4792 = vld [vmem:[#allocation3 + $0x950] sm:$0xff]
    %v4793 = vld [vmem:[#allocation3 + $0x958] sm:$0xff]
    %v4794 = vld [vmem:[#allocation3 + $0x960] sm:$0xff]
    %v4795 = vld [vmem:[#allocation3 + $0x968] sm:$0xff]
    %v4796 = vld [vmem:[#allocation3 + $0x970] sm:$0xff]
    %v4797 = vld [vmem:[#allocation3 + $0x978] sm:$0xff]
    %v4798 = vld [vmem:[#allocation3 + $0x980] sm:$0xff]
    %v4799 = vld [vmem:[#allocation3 + $0x988] sm:$0xff]
    %v4800 = vld [vmem:[#allocation3 + $0x990] sm:$0xff]
    %v4801 = vld [vmem:[#allocation3 + $0x998] sm:$0xff]
    %v4802 = vld [vmem:[#allocation3 + $0x9a0] sm:$0xff]
    %v4803 = vld [vmem:[#allocation3 + $0x9a8] sm:$0xff]
    %v4804 = vld [vmem:[#allocation3 + $0x9b0] sm:$0xff]
    %v4805 = vld [vmem:[#allocation3 + $0x9b8] sm:$0xff]
    %v4806 = vld [vmem:[#allocation3 + $0x9c0] sm:$0xff]
    %v4807 = vld [vmem:[#allocation3 + $0x9c8] sm:$0xff]
    %v4808 = vld [vmem:[#allocation3 + $0x9d0] sm:$0xff]
    %v4809 = vld [vmem:[#allocation3 + $0x9d8] sm:$0xff]
    %v4810 = vld [vmem:[#allocation3 + $0x9e0] sm:$0xff]
    %v4811 = vld [vmem:[#allocation3 + $0x9e8] sm:$0xff]
    %v4812 = vld [vmem:[#allocation3 + $0x9f0] sm:$0xff]
    %v4813 = vld [vmem:[#allocation3 + $0x9f8] sm:$0xff]
    %v4814 = vld [vmem:[#allocation3 + $0xa00] sm:$0xff]
    %v4815 = vld [vmem:[#allocation3 + $0xa08] sm:$0xff]
    %v4816 = vld [vmem:[#allocation3 + $0xa10] sm:$0xff]
    %v4817 = vld [vmem:[#allocation3 + $0xa18] sm:$0xff]
    %v4818 = vld [vmem:[#allocation3 + $0xa20] sm:$0xff]
    %v4819 = vld [vmem:[#allocation3 + $0xa28] sm:$0xff]
    %v4820 = vld [vmem:[#allocation3 + $0xa30] sm:$0xff]
    %v4821 = vld [vmem:[#allocation3 + $0xa38] sm:$0xff]
    %v4822 = vld [vmem:[#allocation3 + $0xa40] sm:$0xff]
    %v4823 = vld [vmem:[#allocation3 + $0xa48] sm:$0xff]
    %v4824 = vld [vmem:[#allocation3 + $0xa50] sm:$0xff]
    %v4825 = vld [vmem:[#allocation3 + $0xa58] sm:$0xff]
    %v4826 = vld [vmem:[#allocation3 + $0xa60] sm:$0xff]
    %v4827 = vld [vmem:[#allocation3 + $0xa68] sm:$0xff]
    %v4828 = vld [vmem:[#allocation3 + $0xa70] sm:$0xff]
    %v4829 = vld [vmem:[#allocation3 + $0xa78] sm:$0xff]
    %v4830 = vld [vmem:[#allocation3 + $0xa80] sm:$0xff]
    %v4831 = vld [vmem:[#allocation3 + $0xa88] sm:$0xff]
    %v4832 = vld [vmem:[#allocation3 + $0xa90] sm:$0xff]
    %v4833 = vld [vmem:[#allocation3 + $0xa98] sm:$0xff]
    %v4834 = vld [vmem:[#allocation3 + $0xaa0] sm:$0xff]
    %v4835 = vld [vmem:[#allocation3 + $0xaa8] sm:$0xff]
    %v4836 = vld [vmem:[#allocation3 + $0xab0] sm:$0xff]
    %v4837 = vld [vmem:[#allocation3 + $0xab8] sm:$0xff]
    %v4838 = vld [vmem:[#allocation3 + $0xac0] sm:$0xff]
    %v4839 = vld [vmem:[#allocation3 + $0xac8] sm:$0xff]
    %v4840 = vld [vmem:[#allocation3 + $0xad0] sm:$0xff]
    %v4841 = vld [vmem:[#allocation3 + $0xad8] sm:$0xff]
    %v4842 = vld [vmem:[#allocation3 + $0xae0] sm:$0xff]
    %v4843 = vld [vmem:[#allocation3 + $0xae8] sm:$0xff]
    %v4844 = vld [vmem:[#allocation3 + $0xaf0] sm:$0xff]
    %v4845 = vld [vmem:[#allocation3 + $0xaf8] sm:$0xff]
    %v4846 = vld [vmem:[#allocation3 + $0xb00] sm:$0xff]
    %v4847 = vld [vmem:[#allocation3 + $0xb08] sm:$0xff]
    %v4848 = vld [vmem:[#allocation3 + $0xb10] sm:$0xff]
    %v4849 = vld [vmem:[#allocation3 + $0xb18] sm:$0xff]
    %v4850 = vld [vmem:[#allocation3 + $0xb20] sm:$0xff]
    %v4851 = vld [vmem:[#allocation3 + $0xb28] sm:$0xff]
    %v4852 = vld [vmem:[#allocation3 + $0xb30] sm:$0xff]
    %v4853 = vld [vmem:[#allocation3 + $0xb38] sm:$0xff]
    %v4854 = vld [vmem:[#allocation3 + $0xb40] sm:$0xff]
    %v4855 = vld [vmem:[#allocation3 + $0xb48] sm:$0xff]
    %v4856 = vld [vmem:[#allocation3 + $0xb50] sm:$0xff]
    %v4857 = vld [vmem:[#allocation3 + $0xb58] sm:$0xff]
    %v4858 = vld [vmem:[#allocation3 + $0xb60] sm:$0xff]
    %v4859 = vld [vmem:[#allocation3 + $0xb68] sm:$0xff]
    %v4860 = vld [vmem:[#allocation3 + $0xb70] sm:$0xff]
    %v4861 = vld [vmem:[#allocation3 + $0xb78] sm:$0xff]
    %v4862 = vld [vmem:[#allocation3 + $0xb80] sm:$0xff]
    %v4863 = vld [vmem:[#allocation3 + $0xb88] sm:$0xff]
    %v4864 = vld [vmem:[#allocation3 + $0xb90] sm:$0xff]
    %v4865 = vld [vmem:[#allocation3 + $0xb98] sm:$0xff]
    %v4866 = vld [vmem:[#allocation3 + $0xba0] sm:$0xff]
    %v4867 = vld [vmem:[#allocation3 + $0xba8] sm:$0xff]
    %v4868 = vld [vmem:[#allocation3 + $0xbb0] sm:$0xff]
    %v4869 = vld [vmem:[#allocation3 + $0xbb8] sm:$0xff]
    %v4870 = vld [vmem:[#allocation3 + $0xbc0] sm:$0xff]
    %v4871 = vld [vmem:[#allocation3 + $0xbc8] sm:$0xff]
    %v4872 = vld [vmem:[#allocation3 + $0xbd0] sm:$0xff]
    %v4873 = vld [vmem:[#allocation3 + $0xbd8] sm:$0xff]
    %v4874 = vld [vmem:[#allocation3 + $0xbe0] sm:$0xff]
    %v4875 = vld [vmem:[#allocation3 + $0xbe8] sm:$0xff]
    %v4876 = vld [vmem:[#allocation3 + $0xbf0] sm:$0xff]
    %v4877 = vld [vmem:[#allocation3 + $0xbf8] sm:$0xff]
    %v4878 = vld [vmem:[#allocation3 + $0xc00] sm:$0xff]
    %v4879 = vld [vmem:[#allocation3 + $0xc08] sm:$0xff]
    %v4880 = vld [vmem:[#allocation3 + $0xc10] sm:$0xff]
    %v4881 = vld [vmem:[#allocation3 + $0xc18] sm:$0xff]
    %v4882 = vld [vmem:[#allocation3 + $0xc20] sm:$0xff]
    %v4883 = vld [vmem:[#allocation3 + $0xc28] sm:$0xff]
    %v4884 = vld [vmem:[#allocation3 + $0xc30] sm:$0xff]
    %v4885 = vld [vmem:[#allocation3 + $0xc38] sm:$0xff]
    %v4886 = vld [vmem:[#allocation3 + $0xc40] sm:$0xff]
    %v4887 = vld [vmem:[#allocation3 + $0xc48] sm:$0xff]
    %v4888 = vld [vmem:[#allocation3 + $0xc50] sm:$0xff]
    %v4889 = vld [vmem:[#allocation3 + $0xc58] sm:$0xff]
    %v4890 = vld [vmem:[#allocation3 + $0xc60] sm:$0xff]
    %v4891 = vld [vmem:[#allocation3 + $0xc68] sm:$0xff]
    %v4892 = vld [vmem:[#allocation3 + $0xc70] sm:$0xff]
    %v4893 = vld [vmem:[#allocation3 + $0xc78] sm:$0xff]
    %v4894 = vld [vmem:[#allocation3 + $0xc80] sm:$0xff]
    %v4895 = vld [vmem:[#allocation3 + $0xc88] sm:$0xff]
    %v4896 = vld [vmem:[#allocation3 + $0xc90] sm:$0xff]
    %v4897 = vld [vmem:[#allocation3 + $0xc98] sm:$0xff]
    %v4898 = vld [vmem:[#allocation3 + $0xca0] sm:$0xff]
    %v4899 = vld [vmem:[#allocation3 + $0xca8] sm:$0xff]
    %v4900 = vld [vmem:[#allocation3 + $0xcb0] sm:$0xff]
    %v4901 = vld [vmem:[#allocation3 + $0xcb8] sm:$0xff]
    %v4902 = vld [vmem:[#allocation3 + $0xcc0] sm:$0xff]
    %v4903 = vld [vmem:[#allocation3 + $0xcc8] sm:$0xff]
    %v4904 = vld [vmem:[#allocation3 + $0xcd0] sm:$0xff]
    %v4905 = vld [vmem:[#allocation3 + $0xcd8] sm:$0xff]
    %v4906 = vld [vmem:[#allocation3 + $0xce0] sm:$0xff]
    %v4907 = vld [vmem:[#allocation3 + $0xce8] sm:$0xff]
    %v4908 = vld [vmem:[#allocation3 + $0xcf0] sm:$0xff]
    %v4909 = vld [vmem:[#allocation3 + $0xcf8] sm:$0xff]
    %v4910 = vld [vmem:[#allocation3 + $0xd00] sm:$0xff]
    %v4911 = vld [vmem:[#allocation3 + $0xd08] sm:$0xff]
    %v4912 = vld [vmem:[#allocation3 + $0xd10] sm:$0xff]
    %v4913 = vld [vmem:[#allocation3 + $0xd18] sm:$0xff]
    %v4914 = vld [vmem:[#allocation3 + $0xd20] sm:$0xff]
    %v4915 = vld [vmem:[#allocation3 + $0xd28] sm:$0xff]
    %v4916 = vld [vmem:[#allocation3 + $0xd30] sm:$0xff]
    %v4917 = vld [vmem:[#allocation3 + $0xd38] sm:$0xff]
    %v4918 = vld [vmem:[#allocation3 + $0xd40] sm:$0xff]
    %v4919 = vld [vmem:[#allocation3 + $0xd48] sm:$0xff]
    %v4920 = vld [vmem:[#allocation3 + $0xd50] sm:$0xff]
    %v4921 = vld [vmem:[#allocation3 + $0xd58] sm:$0xff]
    %v4922 = vld [vmem:[#allocation3 + $0xd60] sm:$0xff]
    %v4923 = vld [vmem:[#allocation3 + $0xd68] sm:$0xff]
    %v4924 = vld [vmem:[#allocation3 + $0xd70] sm:$0xff]
    %v4925 = vld [vmem:[#allocation3 + $0xd78] sm:$0xff]
    %v4926 = vld [vmem:[#allocation3 + $0xd80] sm:$0xff]
    %v4927 = vld [vmem:[#allocation3 + $0xd88] sm:$0xff]
    %v4928 = vld [vmem:[#allocation3 + $0xd90] sm:$0xff]
    %v4929 = vld [vmem:[#allocation3 + $0xd98] sm:$0xff]
    %v4930 = vld [vmem:[#allocation3 + $0xda0] sm:$0xff]
    %v4931 = vld [vmem:[#allocation3 + $0xda8] sm:$0xff]
    %v4932 = vld [vmem:[#allocation3 + $0xdb0] sm:$0xff]
    %v4933 = vld [vmem:[#allocation3 + $0xdb8] sm:$0xff]
    %v4934 = vld [vmem:[#allocation3 + $0xdc0] sm:$0xff]
    %v4935 = vld [vmem:[#allocation3 + $0xdc8] sm:$0xff]
    %v4936 = vld [vmem:[#allocation3 + $0xdd0] sm:$0xff]
    %v4937 = vld [vmem:[#allocation3 + $0xdd8] sm:$0xff]
    %v4938 = vld [vmem:[#allocation3 + $0xde0] sm:$0xff]
    %v4939 = vld [vmem:[#allocation3 + $0xde8] sm:$0xff]
    %v4940 = vld [vmem:[#allocation3 + $0xdf0] sm:$0xff]
    %v4941 = vld [vmem:[#allocation3 + $0xdf8] sm:$0xff]
    %v4942 = vld [vmem:[#allocation3 + $0xe00] sm:$0xff]
    %v4943 = vld [vmem:[#allocation3 + $0xe08] sm:$0xff]
    %v4944 = vld [vmem:[#allocation3 + $0xe10] sm:$0xff]
    %v4945 = vld [vmem:[#allocation3 + $0xe18] sm:$0xff]
    %v4946 = vld [vmem:[#allocation3 + $0xe20] sm:$0xff]
    %v4947 = vld [vmem:[#allocation3 + $0xe28] sm:$0xff]
    %v4948 = vld [vmem:[#allocation3 + $0xe30] sm:$0xff]
    %v4949 = vld [vmem:[#allocation3 + $0xe38] sm:$0xff]
    %v4950 = vld [vmem:[#allocation3 + $0xe40] sm:$0xff]
    %v4951 = vld [vmem:[#allocation3 + $0xe48] sm:$0xff]
    %v4952 = vld [vmem:[#allocation3 + $0xe50] sm:$0xff]
    %v4953 = vld [vmem:[#allocation3 + $0xe58] sm:$0xff]
    %v4954 = vld [vmem:[#allocation3 + $0xe60] sm:$0xff]
    %v4955 = vld [vmem:[#allocation3 + $0xe68] sm:$0xff]
    %v4956 = vld [vmem:[#allocation3 + $0xe70] sm:$0xff]
    %v4957 = vld [vmem:[#allocation3 + $0xe78] sm:$0xff]
    %v4958 = vld [vmem:[#allocation3 + $0xe80] sm:$0xff]
    %v4959 = vld [vmem:[#allocation3 + $0xe88] sm:$0xff]
    %v4960 = vld [vmem:[#allocation3 + $0xe90] sm:$0xff]
    %v4961 = vld [vmem:[#allocation3 + $0xe98] sm:$0xff]
    %v4962 = vld [vmem:[#allocation3 + $0xea0] sm:$0xff]
    %v4963 = vld [vmem:[#allocation3 + $0xea8] sm:$0xff]
    %v4964 = vld [vmem:[#allocation3 + $0xeb0] sm:$0xff]
    %v4965 = vld [vmem:[#allocation3 + $0xeb8] sm:$0xff]
    %v4966 = vld [vmem:[#allocation3 + $0xec0] sm:$0xff]
    %v4967 = vld [vmem:[#allocation3 + $0xec8] sm:$0xff]
    %v4968 = vld [vmem:[#allocation3 + $0xed0] sm:$0xff]
    %v4969 = vld [vmem:[#allocation3 + $0xed8] sm:$0xff]
    %v4970 = vld [vmem:[#allocation3 + $0xee0] sm:$0xff]
    %v4971 = vld [vmem:[#allocation3 + $0xee8] sm:$0xff]
    %v4972 = vld [vmem:[#allocation3 + $0xef0] sm:$0xff]
    %v4973 = vld [vmem:[#allocation3 + $0xef8] sm:$0xff]
    %v4974 = vld [vmem:[#allocation3 + $0xf00] sm:$0xff]
    %v4975 = vld [vmem:[#allocation3 + $0xf08] sm:$0xff]
    %v4976 = vld [vmem:[#allocation3 + $0xf10] sm:$0xff]
    %v4977 = vld [vmem:[#allocation3 + $0xf18] sm:$0xff]
    %v4978 = vld [vmem:[#allocation3 + $0xf20] sm:$0xff]
    %v4979 = vld [vmem:[#allocation3 + $0xf28] sm:$0xff]
    %v4980 = vld [vmem:[#allocation3 + $0xf30] sm:$0xff]
    %v4981 = vld [vmem:[#allocation3 + $0xf38] sm:$0xff]
    %v4982 = vld [vmem:[#allocation3 + $0xf40] sm:$0xff]
    %v4983 = vld [vmem:[#allocation3 + $0xf48] sm:$0xff]
    %v4984 = vld [vmem:[#allocation3 + $0xf50] sm:$0xff]
    %v4985 = vld [vmem:[#allocation3 + $0xf58] sm:$0xff]
    %v4986 = vld [vmem:[#allocation3 + $0xf60] sm:$0xff]
    %v4987 = vld [vmem:[#allocation3 + $0xf68] sm:$0xff]
    %v4988 = vld [vmem:[#allocation3 + $0xf70] sm:$0xff]
    %v4989 = vld [vmem:[#allocation3 + $0xf78] sm:$0xff]
    %v4990 = vld [vmem:[#allocation3 + $0xf80] sm:$0xff]
    %v4991 = vld [vmem:[#allocation3 + $0xf88] sm:$0xff]
    %v4992 = vld [vmem:[#allocation3 + $0xf90] sm:$0xff]
    %v4993 = vld [vmem:[#allocation3 + $0xf98] sm:$0xff]
    %v4994 = vld [vmem:[#allocation3 + $0xfa0] sm:$0xff]
    %v4995 = vld [vmem:[#allocation3 + $0xfa8] sm:$0xff]
    %v4996 = vld [vmem:[#allocation3 + $0xfb0] sm:$0xff]
    %v4997 = vld [vmem:[#allocation3 + $0xfb8] sm:$0xff]
    %v4998 = vld [vmem:[#allocation3 + $0xfc0] sm:$0xff]
    %v4999 = vld [vmem:[#allocation3 + $0xfc8] sm:$0xff]
    %v5000 = vld [vmem:[#allocation3 + $0xfd0] sm:$0xff]
    %v5001 = vld [vmem:[#allocation3 + $0xfd8] sm:$0xff]
    %v5002 = vld [vmem:[#allocation3 + $0xfe0] sm:$0xff]
    %v5003 = vld [vmem:[#allocation3 + $0xfe8] sm:$0xff]
    %v5004 = vld [vmem:[#allocation3 + $0xff0] sm:$0xff]
    %v5005 = vld [vmem:[#allocation3 + $0xff8] sm:$0xff]
    %v5006 = vlaneseq
    %v5007 = vshrl.u32 %v5006, 7
    %v5008 = vsub.s32 1, %v5007
    %v5009 = vrot.slane %v4038, %v5008
    %v5010 = vlaneseq
    %v5011 = vshrl.u32 %v5010, 7
    %v5012 = vsub.s32 5, %v5011
    %v5013 = vrot.slane %v4038, %v5012
    %v5014 = vlaneseq
    %v5015 = vshrl.u32 %v5014, 7
    %v5016 = vsub.s32 1, %v5015
    %v5017 = vrot.slane %v4039, %v5016
    %v5018 = vlaneseq
    %v5019 = vshrl.u32 %v5018, 7
    %v5020 = vsub.s32 5, %v5019
    %v5021 = vrot.slane %v4039, %v5020
    %v5022 = vlaneseq
    %v5023 = vshrl.u32 %v5022, 7
    %v5024 = vsub.s32 1, %v5023
    %v5025 = vrot.slane %v4040, %v5024
    %v5026 = vlaneseq
    %v5027 = vshrl.u32 %v5026, 7
    %v5028 = vsub.s32 5, %v5027
    %v5029 = vrot.slane %v4040, %v5028
    %v5030 = vlaneseq
    %v5031 = vshrl.u32 %v5030, 7
    %v5032 = vsub.s32 1, %v5031
    %v5033 = vrot.slane %v4041, %v5032
    %v5034 = vlaneseq
    %v5035 = vshrl.u32 %v5034, 7
    %v5036 = vsub.s32 5, %v5035
    %v5037 = vrot.slane %v4041, %v5036
    %v5046 = vlaneseq
    %v5047 = vshrl.u32 %v5046, 7
    %v5048 = vsub.s32 1, %v5047
    %v5049 = vrot.slane %v5009, %v5048
    %v5050 = vlaneseq
    %v5051 = vshrl.u32 %v5050, 7
    %v5052 = vsub.s32 1, %v5051
    %v5053 = vrot.slane %v5013, %v5052
    %v5054 = vlaneseq
    %v5055 = vshrl.u32 %v5054, 7
    %v5056 = vsub.s32 1, %v5055
    %v5057 = vrot.slane %v5017, %v5056
    %v5058 = vlaneseq
    %v5059 = vshrl.u32 %v5058, 7
    %v5060 = vsub.s32 1, %v5059
    %v5061 = vrot.slane %v5021, %v5060
    %v5062 = vlaneseq
    %v5063 = vshrl.u32 %v5062, 7
    %v5064 = vsub.s32 1, %v5063
    %v5065 = vrot.slane %v5025, %v5064
    %v5066 = vlaneseq
    %v5067 = vshrl.u32 %v5066, 7
    %v5068 = vsub.s32 1, %v5067
    %v5069 = vrot.slane %v5029, %v5068
    %v5070 = vlaneseq
    %v5071 = vshrl.u32 %v5070, 7
    %v5072 = vsub.s32 1, %v5071
    %v5073 = vrot.slane %v5033, %v5072
    %v5074 = vlaneseq
    %v5075 = vshrl.u32 %v5074, 7
    %v5076 = vsub.s32 1, %v5075
    %v5077 = vrot.slane %v5037, %v5076
    %v5590 = vunpack.c.l.b16 %v4494
    %v5591 = vunpack.c.h.b16 %v4494
    %v5592 = vunpack.c.l.b16 %v4495
    %v5593 = vunpack.c.h.b16 %v4495
    %v5594 = vunpack.c.l.b16 %v4496
    %v5595 = vunpack.c.h.b16 %v4496
    %v5596 = vunpack.c.l.b16 %v4497
    %v5597 = vunpack.c.h.b16 %v4497
    %v5598 = vunpack.c.l.b16 %v4498
    %v5599 = vunpack.c.h.b16 %v4498
    %v5600 = vunpack.c.l.b16 %v4499
    %v5601 = vunpack.c.h.b16 %v4499
    %v5602 = vunpack.c.l.b16 %v4500
    %v5603 = vunpack.c.h.b16 %v4500
    %v5604 = vunpack.c.l.b16 %v4501
    %v5605 = vunpack.c.h.b16 %v4501
    %v5606 = vunpack.c.l.b16 %v4502
    %v5607 = vunpack.c.h.b16 %v4502
    %v5608 = vunpack.c.l.b16 %v4503
    %v5609 = vunpack.c.h.b16 %v4503
    %v5610 = vunpack.c.l.b16 %v4504
    %v5611 = vunpack.c.h.b16 %v4504
    %v5612 = vunpack.c.l.b16 %v4505
    %v5613 = vunpack.c.h.b16 %v4505
    %v5614 = vunpack.c.l.b16 %v4506
    %v5615 = vunpack.c.h.b16 %v4506
    %v5616 = vunpack.c.l.b16 %v4507
    %v5617 = vunpack.c.h.b16 %v4507
    %v5618 = vunpack.c.l.b16 %v4508
    %v5619 = vunpack.c.h.b16 %v4508
    %v5620 = vunpack.c.l.b16 %v4509
    %v5621 = vunpack.c.h.b16 %v4509
    %v5622 = vunpack.c.l.b16 %v4510
    %v5623 = vunpack.c.h.b16 %v4510
    %v5624 = vunpack.c.l.b16 %v4511
    %v5625 = vunpack.c.h.b16 %v4511
    %v5626 = vunpack.c.l.b16 %v4512
    %v5627 = vunpack.c.h.b16 %v4512
    %v5628 = vunpack.c.l.b16 %v4513
    %v5629 = vunpack.c.h.b16 %v4513
    %v5630 = vunpack.c.l.b16 %v4514
    %v5631 = vunpack.c.h.b16 %v4514
    %v5632 = vunpack.c.l.b16 %v4515
    %v5633 = vunpack.c.h.b16 %v4515
    %v5634 = vunpack.c.l.b16 %v4516
    %v5635 = vunpack.c.h.b16 %v4516
    %v5636 = vunpack.c.l.b16 %v4517
    %v5637 = vunpack.c.h.b16 %v4517
    %v5638 = vunpack.c.l.b16 %v4518
    %v5639 = vunpack.c.h.b16 %v4518
    %v5640 = vunpack.c.l.b16 %v4519
    %v5641 = vunpack.c.h.b16 %v4519
    %v5642 = vunpack.c.l.b16 %v4520
    %v5643 = vunpack.c.h.b16 %v4520
    %v5644 = vunpack.c.l.b16 %v4521
    %v5645 = vunpack.c.h.b16 %v4521
    %v5646 = vunpack.c.l.b16 %v4522
    %v5647 = vunpack.c.h.b16 %v4522
    %v5648 = vunpack.c.l.b16 %v4523
    %v5649 = vunpack.c.h.b16 %v4523
    %v5650 = vunpack.c.l.b16 %v4524
    %v5651 = vunpack.c.h.b16 %v4524
    %v5652 = vunpack.c.l.b16 %v4525
    %v5653 = vunpack.c.h.b16 %v4525
    %v5654 = vunpack.c.l.b16 %v4526
    %v5655 = vunpack.c.h.b16 %v4526
    %v5656 = vunpack.c.l.b16 %v4527
    %v5657 = vunpack.c.h.b16 %v4527
    %v5658 = vunpack.c.l.b16 %v4528
    %v5659 = vunpack.c.h.b16 %v4528
    %v5660 = vunpack.c.l.b16 %v4529
    %v5661 = vunpack.c.h.b16 %v4529
    %v5662 = vunpack.c.l.b16 %v4530
    %v5663 = vunpack.c.h.b16 %v4530
    %v5664 = vunpack.c.l.b16 %v4531
    %v5665 = vunpack.c.h.b16 %v4531
    %v5666 = vunpack.c.l.b16 %v4532
    %v5667 = vunpack.c.h.b16 %v4532
    %v5668 = vunpack.c.l.b16 %v4533
    %v5669 = vunpack.c.h.b16 %v4533
    %v5670 = vunpack.c.l.b16 %v4534
    %v5671 = vunpack.c.h.b16 %v4534
    %v5672 = vunpack.c.l.b16 %v4535
    %v5673 = vunpack.c.h.b16 %v4535
    %v5674 = vunpack.c.l.b16 %v4536
    %v5675 = vunpack.c.h.b16 %v4536
    %v5676 = vunpack.c.l.b16 %v4537
    %v5677 = vunpack.c.h.b16 %v4537
    %v5678 = vunpack.c.l.b16 %v4538
    %v5679 = vunpack.c.h.b16 %v4538
    %v5680 = vunpack.c.l.b16 %v4539
    %v5681 = vunpack.c.h.b16 %v4539
    %v5682 = vunpack.c.l.b16 %v4540
    %v5683 = vunpack.c.h.b16 %v4540
    %v5684 = vunpack.c.l.b16 %v4541
    %v5685 = vunpack.c.h.b16 %v4541
    %v5686 = vunpack.c.l.b16 %v4542
    %v5687 = vunpack.c.h.b16 %v4542
    %v5688 = vunpack.c.l.b16 %v4543
    %v5689 = vunpack.c.h.b16 %v4543
    %v5690 = vunpack.c.l.b16 %v4544
    %v5691 = vunpack.c.h.b16 %v4544
    %v5692 = vunpack.c.l.b16 %v4545
    %v5693 = vunpack.c.h.b16 %v4545
    %v5694 = vunpack.c.l.b16 %v4546
    %v5695 = vunpack.c.h.b16 %v4546
    %v5696 = vunpack.c.l.b16 %v4547
    %v5697 = vunpack.c.h.b16 %v4547
    %v5698 = vunpack.c.l.b16 %v4548
    %v5699 = vunpack.c.h.b16 %v4548
    %v5700 = vunpack.c.l.b16 %v4549
    %v5701 = vunpack.c.h.b16 %v4549
    %v5702 = vunpack.c.l.b16 %v4550
    %v5703 = vunpack.c.h.b16 %v4550
    %v5704 = vunpack.c.l.b16 %v4551
    %v5705 = vunpack.c.h.b16 %v4551
    %v5706 = vunpack.c.l.b16 %v4552
    %v5707 = vunpack.c.h.b16 %v4552
    %v5708 = vunpack.c.l.b16 %v4553
    %v5709 = vunpack.c.h.b16 %v4553
    %v5710 = vunpack.c.l.b16 %v4554
    %v5711 = vunpack.c.h.b16 %v4554
    %v5712 = vunpack.c.l.b16 %v4555
    %v5713 = vunpack.c.h.b16 %v4555
    %v5714 = vunpack.c.l.b16 %v4556
    %v5715 = vunpack.c.h.b16 %v4556
    %v5716 = vunpack.c.l.b16 %v4557
    %v5717 = vunpack.c.h.b16 %v4557
    %v5718 = vunpack.c.l.b16 %v4558
    %v5719 = vunpack.c.h.b16 %v4558
    %v5720 = vunpack.c.l.b16 %v4559
    %v5721 = vunpack.c.h.b16 %v4559
    %v5722 = vunpack.c.l.b16 %v4560
    %v5723 = vunpack.c.h.b16 %v4560
    %v5724 = vunpack.c.l.b16 %v4561
    %v5725 = vunpack.c.h.b16 %v4561
    %v5726 = vunpack.c.l.b16 %v4562
    %v5727 = vunpack.c.h.b16 %v4562
    %v5728 = vunpack.c.l.b16 %v4563
    %v5729 = vunpack.c.h.b16 %v4563
    %v5730 = vunpack.c.l.b16 %v4564
    %v5731 = vunpack.c.h.b16 %v4564
    %v5732 = vunpack.c.l.b16 %v4565
    %v5733 = vunpack.c.h.b16 %v4565
    %v5734 = vunpack.c.l.b16 %v4566
    %v5735 = vunpack.c.h.b16 %v4566
    %v5736 = vunpack.c.l.b16 %v4567
    %v5737 = vunpack.c.h.b16 %v4567
    %v5738 = vunpack.c.l.b16 %v4568
    %v5739 = vunpack.c.h.b16 %v4568
    %v5740 = vunpack.c.l.b16 %v4569
    %v5741 = vunpack.c.h.b16 %v4569
    %v5742 = vunpack.c.l.b16 %v4570
    %v5743 = vunpack.c.h.b16 %v4570
    %v5744 = vunpack.c.l.b16 %v4571
    %v5745 = vunpack.c.h.b16 %v4571
    %v5746 = vunpack.c.l.b16 %v4572
    %v5747 = vunpack.c.h.b16 %v4572
    %v5748 = vunpack.c.l.b16 %v4573
    %v5749 = vunpack.c.h.b16 %v4573
    %v5750 = vunpack.c.l.b16 %v4574
    %v5751 = vunpack.c.h.b16 %v4574
    %v5752 = vunpack.c.l.b16 %v4575
    %v5753 = vunpack.c.h.b16 %v4575
    %v5754 = vunpack.c.l.b16 %v4576
    %v5755 = vunpack.c.h.b16 %v4576
    %v5756 = vunpack.c.l.b16 %v4577
    %v5757 = vunpack.c.h.b16 %v4577
    %v5758 = vunpack.c.l.b16 %v4578
    %v5759 = vunpack.c.h.b16 %v4578
    %v5760 = vunpack.c.l.b16 %v4579
    %v5761 = vunpack.c.h.b16 %v4579
    %v5762 = vunpack.c.l.b16 %v4580
    %v5763 = vunpack.c.h.b16 %v4580
    %v5764 = vunpack.c.l.b16 %v4581
    %v5765 = vunpack.c.h.b16 %v4581
    %v5766 = vunpack.c.l.b16 %v4582
    %v5767 = vunpack.c.h.b16 %v4582
    %v5768 = vunpack.c.l.b16 %v4583
    %v5769 = vunpack.c.h.b16 %v4583
    %v5770 = vunpack.c.l.b16 %v4584
    %v5771 = vunpack.c.h.b16 %v4584
    %v5772 = vunpack.c.l.b16 %v4585
    %v5773 = vunpack.c.h.b16 %v4585
    %v5774 = vunpack.c.l.b16 %v4586
    %v5775 = vunpack.c.h.b16 %v4586
    %v5776 = vunpack.c.l.b16 %v4587
    %v5777 = vunpack.c.h.b16 %v4587
    %v5778 = vunpack.c.l.b16 %v4588
    %v5779 = vunpack.c.h.b16 %v4588
    %v5780 = vunpack.c.l.b16 %v4589
    %v5781 = vunpack.c.h.b16 %v4589
    %v5782 = vunpack.c.l.b16 %v4590
    %v5783 = vunpack.c.h.b16 %v4590
    %v5784 = vunpack.c.l.b16 %v4591
    %v5785 = vunpack.c.h.b16 %v4591
    %v5786 = vunpack.c.l.b16 %v4592
    %v5787 = vunpack.c.h.b16 %v4592
    %v5788 = vunpack.c.l.b16 %v4593
    %v5789 = vunpack.c.h.b16 %v4593
    %v5790 = vunpack.c.l.b16 %v4594
    %v5791 = vunpack.c.h.b16 %v4594
    %v5792 = vunpack.c.l.b16 %v4595
    %v5793 = vunpack.c.h.b16 %v4595
    %v5794 = vunpack.c.l.b16 %v4596
    %v5795 = vunpack.c.h.b16 %v4596
    %v5796 = vunpack.c.l.b16 %v4597
    %v5797 = vunpack.c.h.b16 %v4597
    %v5798 = vunpack.c.l.b16 %v4598
    %v5799 = vunpack.c.h.b16 %v4598
    %v5800 = vunpack.c.l.b16 %v4599
    %v5801 = vunpack.c.h.b16 %v4599
    %v5802 = vunpack.c.l.b16 %v4600
    %v5803 = vunpack.c.h.b16 %v4600
    %v5804 = vunpack.c.l.b16 %v4601
    %v5805 = vunpack.c.h.b16 %v4601
    %v5806 = vunpack.c.l.b16 %v4602
    %v5807 = vunpack.c.h.b16 %v4602
    %v5808 = vunpack.c.l.b16 %v4603
    %v5809 = vunpack.c.h.b16 %v4603
    %v5810 = vunpack.c.l.b16 %v4604
    %v5811 = vunpack.c.h.b16 %v4604
    %v5812 = vunpack.c.l.b16 %v4605
    %v5813 = vunpack.c.h.b16 %v4605
    %v5814 = vunpack.c.l.b16 %v4606
    %v5815 = vunpack.c.h.b16 %v4606
    %v5816 = vunpack.c.l.b16 %v4607
    %v5817 = vunpack.c.h.b16 %v4607
    %v5818 = vunpack.c.l.b16 %v4608
    %v5819 = vunpack.c.h.b16 %v4608
    %v5820 = vunpack.c.l.b16 %v4609
    %v5821 = vunpack.c.h.b16 %v4609
    %v5822 = vunpack.c.l.b16 %v4610
    %v5823 = vunpack.c.h.b16 %v4610
    %v5824 = vunpack.c.l.b16 %v4611
    %v5825 = vunpack.c.h.b16 %v4611
    %v5826 = vunpack.c.l.b16 %v4612
    %v5827 = vunpack.c.h.b16 %v4612
    %v5828 = vunpack.c.l.b16 %v4613
    %v5829 = vunpack.c.h.b16 %v4613
    %v5830 = vunpack.c.l.b16 %v4614
    %v5831 = vunpack.c.h.b16 %v4614
    %v5832 = vunpack.c.l.b16 %v4615
    %v5833 = vunpack.c.h.b16 %v4615
    %v5834 = vunpack.c.l.b16 %v4616
    %v5835 = vunpack.c.h.b16 %v4616
    %v5836 = vunpack.c.l.b16 %v4617
    %v5837 = vunpack.c.h.b16 %v4617
    %v5838 = vunpack.c.l.b16 %v4618
    %v5839 = vunpack.c.h.b16 %v4618
    %v5840 = vunpack.c.l.b16 %v4619
    %v5841 = vunpack.c.h.b16 %v4619
    %v5842 = vunpack.c.l.b16 %v4620
    %v5843 = vunpack.c.h.b16 %v4620
    %v5844 = vunpack.c.l.b16 %v4621
    %v5845 = vunpack.c.h.b16 %v4621
    %v5846 = vunpack.c.l.b16 %v4622
    %v5847 = vunpack.c.h.b16 %v4622
    %v5848 = vunpack.c.l.b16 %v4623
    %v5849 = vunpack.c.h.b16 %v4623
    %v5850 = vunpack.c.l.b16 %v4624
    %v5851 = vunpack.c.h.b16 %v4624
    %v5852 = vunpack.c.l.b16 %v4625
    %v5853 = vunpack.c.h.b16 %v4625
    %v5854 = vunpack.c.l.b16 %v4626
    %v5855 = vunpack.c.h.b16 %v4626
    %v5856 = vunpack.c.l.b16 %v4627
    %v5857 = vunpack.c.h.b16 %v4627
    %v5858 = vunpack.c.l.b16 %v4628
    %v5859 = vunpack.c.h.b16 %v4628
    %v5860 = vunpack.c.l.b16 %v4629
    %v5861 = vunpack.c.h.b16 %v4629
    %v5862 = vunpack.c.l.b16 %v4630
    %v5863 = vunpack.c.h.b16 %v4630
    %v5864 = vunpack.c.l.b16 %v4631
    %v5865 = vunpack.c.h.b16 %v4631
    %v5866 = vunpack.c.l.b16 %v4632
    %v5867 = vunpack.c.h.b16 %v4632
    %v5868 = vunpack.c.l.b16 %v4633
    %v5869 = vunpack.c.h.b16 %v4633
    %v5870 = vunpack.c.l.b16 %v4634
    %v5871 = vunpack.c.h.b16 %v4634
    %v5872 = vunpack.c.l.b16 %v4635
    %v5873 = vunpack.c.h.b16 %v4635
    %v5874 = vunpack.c.l.b16 %v4636
    %v5875 = vunpack.c.h.b16 %v4636
    %v5876 = vunpack.c.l.b16 %v4637
    %v5877 = vunpack.c.h.b16 %v4637
    %v5878 = vunpack.c.l.b16 %v4638
    %v5879 = vunpack.c.h.b16 %v4638
    %v5880 = vunpack.c.l.b16 %v4639
    %v5881 = vunpack.c.h.b16 %v4639
    %v5882 = vunpack.c.l.b16 %v4640
    %v5883 = vunpack.c.h.b16 %v4640
    %v5884 = vunpack.c.l.b16 %v4641
    %v5885 = vunpack.c.h.b16 %v4641
    %v5886 = vunpack.c.l.b16 %v4642
    %v5887 = vunpack.c.h.b16 %v4642
    %v5888 = vunpack.c.l.b16 %v4643
    %v5889 = vunpack.c.h.b16 %v4643
    %v5890 = vunpack.c.l.b16 %v4644
    %v5891 = vunpack.c.h.b16 %v4644
    %v5892 = vunpack.c.l.b16 %v4645
    %v5893 = vunpack.c.h.b16 %v4645
    %v5894 = vunpack.c.l.b16 %v4646
    %v5895 = vunpack.c.h.b16 %v4646
    %v5896 = vunpack.c.l.b16 %v4647
    %v5897 = vunpack.c.h.b16 %v4647
    %v5898 = vunpack.c.l.b16 %v4648
    %v5899 = vunpack.c.h.b16 %v4648
    %v5900 = vunpack.c.l.b16 %v4649
    %v5901 = vunpack.c.h.b16 %v4649
    %v5902 = vunpack.c.l.b16 %v4650
    %v5903 = vunpack.c.h.b16 %v4650
    %v5904 = vunpack.c.l.b16 %v4651
    %v5905 = vunpack.c.h.b16 %v4651
    %v5906 = vunpack.c.l.b16 %v4652
    %v5907 = vunpack.c.h.b16 %v4652
    %v5908 = vunpack.c.l.b16 %v4653
    %v5909 = vunpack.c.h.b16 %v4653
    %v5910 = vunpack.c.l.b16 %v4654
    %v5911 = vunpack.c.h.b16 %v4654
    %v5912 = vunpack.c.l.b16 %v4655
    %v5913 = vunpack.c.h.b16 %v4655
    %v5914 = vunpack.c.l.b16 %v4656
    %v5915 = vunpack.c.h.b16 %v4656
    %v5916 = vunpack.c.l.b16 %v4657
    %v5917 = vunpack.c.h.b16 %v4657
    %v5918 = vunpack.c.l.b16 %v4658
    %v5919 = vunpack.c.h.b16 %v4658
    %v5920 = vunpack.c.l.b16 %v4659
    %v5921 = vunpack.c.h.b16 %v4659
    %v5922 = vunpack.c.l.b16 %v4660
    %v5923 = vunpack.c.h.b16 %v4660
    %v5924 = vunpack.c.l.b16 %v4661
    %v5925 = vunpack.c.h.b16 %v4661
    %v5926 = vunpack.c.l.b16 %v4662
    %v5927 = vunpack.c.h.b16 %v4662
    %v5928 = vunpack.c.l.b16 %v4663
    %v5929 = vunpack.c.h.b16 %v4663
    %v5930 = vunpack.c.l.b16 %v4664
    %v5931 = vunpack.c.h.b16 %v4664
    %v5932 = vunpack.c.l.b16 %v4665
    %v5933 = vunpack.c.h.b16 %v4665
    %v5934 = vunpack.c.l.b16 %v4666
    %v5935 = vunpack.c.h.b16 %v4666
    %v5936 = vunpack.c.l.b16 %v4667
    %v5937 = vunpack.c.h.b16 %v4667
    %v5938 = vunpack.c.l.b16 %v4668
    %v5939 = vunpack.c.h.b16 %v4668
    %v5940 = vunpack.c.l.b16 %v4669
    %v5941 = vunpack.c.h.b16 %v4669
    %v5942 = vunpack.c.l.b16 %v4670
    %v5943 = vunpack.c.h.b16 %v4670
    %v5944 = vunpack.c.l.b16 %v4671
    %v5945 = vunpack.c.h.b16 %v4671
    %v5946 = vunpack.c.l.b16 %v4672
    %v5947 = vunpack.c.h.b16 %v4672
    %v5948 = vunpack.c.l.b16 %v4673
    %v5949 = vunpack.c.h.b16 %v4673
    %v5950 = vunpack.c.l.b16 %v4674
    %v5951 = vunpack.c.h.b16 %v4674
    %v5952 = vunpack.c.l.b16 %v4675
    %v5953 = vunpack.c.h.b16 %v4675
    %v5954 = vunpack.c.l.b16 %v4676
    %v5955 = vunpack.c.h.b16 %v4676
    %v5956 = vunpack.c.l.b16 %v4677
    %v5957 = vunpack.c.h.b16 %v4677
    %v5958 = vunpack.c.l.b16 %v4678
    %v5959 = vunpack.c.h.b16 %v4678
    %v5960 = vunpack.c.l.b16 %v4679
    %v5961 = vunpack.c.h.b16 %v4679
    %v5962 = vunpack.c.l.b16 %v4680
    %v5963 = vunpack.c.h.b16 %v4680
    %v5964 = vunpack.c.l.b16 %v4681
    %v5965 = vunpack.c.h.b16 %v4681
    %v5966 = vunpack.c.l.b16 %v4682
    %v5967 = vunpack.c.h.b16 %v4682
    %v5968 = vunpack.c.l.b16 %v4683
    %v5969 = vunpack.c.h.b16 %v4683
    %v5970 = vunpack.c.l.b16 %v4684
    %v5971 = vunpack.c.h.b16 %v4684
    %v5972 = vunpack.c.l.b16 %v4685
    %v5973 = vunpack.c.h.b16 %v4685
    %v5974 = vunpack.c.l.b16 %v4686
    %v5975 = vunpack.c.h.b16 %v4686
    %v5976 = vunpack.c.l.b16 %v4687
    %v5977 = vunpack.c.h.b16 %v4687
    %v5978 = vunpack.c.l.b16 %v4688
    %v5979 = vunpack.c.h.b16 %v4688
    %v5980 = vunpack.c.l.b16 %v4689
    %v5981 = vunpack.c.h.b16 %v4689
    %v5982 = vunpack.c.l.b16 %v4690
    %v5983 = vunpack.c.h.b16 %v4690
    %v5984 = vunpack.c.l.b16 %v4691
    %v5985 = vunpack.c.h.b16 %v4691
    %v5986 = vunpack.c.l.b16 %v4692
    %v5987 = vunpack.c.h.b16 %v4692
    %v5988 = vunpack.c.l.b16 %v4693
    %v5989 = vunpack.c.h.b16 %v4693
    %v5990 = vunpack.c.l.b16 %v4694
    %v5991 = vunpack.c.h.b16 %v4694
    %v5992 = vunpack.c.l.b16 %v4695
    %v5993 = vunpack.c.h.b16 %v4695
    %v5994 = vunpack.c.l.b16 %v4696
    %v5995 = vunpack.c.h.b16 %v4696
    %v5996 = vunpack.c.l.b16 %v4697
    %v5997 = vunpack.c.h.b16 %v4697
    %v5998 = vunpack.c.l.b16 %v4698
    %v5999 = vunpack.c.h.b16 %v4698
    %v6000 = vunpack.c.l.b16 %v4699
    %v6001 = vunpack.c.h.b16 %v4699
    %v6002 = vunpack.c.l.b16 %v4700
    %v6003 = vunpack.c.h.b16 %v4700
    %v6004 = vunpack.c.l.b16 %v4701
    %v6005 = vunpack.c.h.b16 %v4701
    %v6006 = vunpack.c.l.b16 %v4702
    %v6007 = vunpack.c.h.b16 %v4702
    %v6008 = vunpack.c.l.b16 %v4703
    %v6009 = vunpack.c.h.b16 %v4703
    %v6010 = vunpack.c.l.b16 %v4704
    %v6011 = vunpack.c.h.b16 %v4704
    %v6012 = vunpack.c.l.b16 %v4705
    %v6013 = vunpack.c.h.b16 %v4705
    %v6014 = vunpack.c.l.b16 %v4706
    %v6015 = vunpack.c.h.b16 %v4706
    %v6016 = vunpack.c.l.b16 %v4707
    %v6017 = vunpack.c.h.b16 %v4707
    %v6018 = vunpack.c.l.b16 %v4708
    %v6019 = vunpack.c.h.b16 %v4708
    %v6020 = vunpack.c.l.b16 %v4709
    %v6021 = vunpack.c.h.b16 %v4709
    %v6022 = vunpack.c.l.b16 %v4710
    %v6023 = vunpack.c.h.b16 %v4710
    %v6024 = vunpack.c.l.b16 %v4711
    %v6025 = vunpack.c.h.b16 %v4711
    %v6026 = vunpack.c.l.b16 %v4712
    %v6027 = vunpack.c.h.b16 %v4712
    %v6028 = vunpack.c.l.b16 %v4713
    %v6029 = vunpack.c.h.b16 %v4713
    %v6030 = vunpack.c.l.b16 %v4714
    %v6031 = vunpack.c.h.b16 %v4714
    %v6032 = vunpack.c.l.b16 %v4715
    %v6033 = vunpack.c.h.b16 %v4715
    %v6034 = vunpack.c.l.b16 %v4716
    %v6035 = vunpack.c.h.b16 %v4716
    %v6036 = vunpack.c.l.b16 %v4717
    %v6037 = vunpack.c.h.b16 %v4717
    %v6038 = vunpack.c.l.b16 %v4718
    %v6039 = vunpack.c.h.b16 %v4718
    %v6040 = vunpack.c.l.b16 %v4719
    %v6041 = vunpack.c.h.b16 %v4719
    %v6042 = vunpack.c.l.b16 %v4720
    %v6043 = vunpack.c.h.b16 %v4720
    %v6044 = vunpack.c.l.b16 %v4721
    %v6045 = vunpack.c.h.b16 %v4721
    %v6046 = vunpack.c.l.b16 %v4722
    %v6047 = vunpack.c.h.b16 %v4722
    %v6048 = vunpack.c.l.b16 %v4723
    %v6049 = vunpack.c.h.b16 %v4723
    %v6050 = vunpack.c.l.b16 %v4724
    %v6051 = vunpack.c.h.b16 %v4724
    %v6052 = vunpack.c.l.b16 %v4725
    %v6053 = vunpack.c.h.b16 %v4725
    %v6054 = vunpack.c.l.b16 %v4726
    %v6055 = vunpack.c.h.b16 %v4726
    %v6056 = vunpack.c.l.b16 %v4727
    %v6057 = vunpack.c.h.b16 %v4727
    %v6058 = vunpack.c.l.b16 %v4728
    %v6059 = vunpack.c.h.b16 %v4728
    %v6060 = vunpack.c.l.b16 %v4729
    %v6061 = vunpack.c.h.b16 %v4729
    %v6062 = vunpack.c.l.b16 %v4730
    %v6063 = vunpack.c.h.b16 %v4730
    %v6064 = vunpack.c.l.b16 %v4731
    %v6065 = vunpack.c.h.b16 %v4731
    %v6066 = vunpack.c.l.b16 %v4732
    %v6067 = vunpack.c.h.b16 %v4732
    %v6068 = vunpack.c.l.b16 %v4733
    %v6069 = vunpack.c.h.b16 %v4733
    %v6070 = vunpack.c.l.b16 %v4734
    %v6071 = vunpack.c.h.b16 %v4734
    %v6072 = vunpack.c.l.b16 %v4735
    %v6073 = vunpack.c.h.b16 %v4735
    %v6074 = vunpack.c.l.b16 %v4736
    %v6075 = vunpack.c.h.b16 %v4736
    %v6076 = vunpack.c.l.b16 %v4737
    %v6077 = vunpack.c.h.b16 %v4737
    %v6078 = vunpack.c.l.b16 %v4738
    %v6079 = vunpack.c.h.b16 %v4738
    %v6080 = vunpack.c.l.b16 %v4739
    %v6081 = vunpack.c.h.b16 %v4739
    %v6082 = vunpack.c.l.b16 %v4740
    %v6083 = vunpack.c.h.b16 %v4740
    %v6084 = vunpack.c.l.b16 %v4741
    %v6085 = vunpack.c.h.b16 %v4741
    %v6086 = vunpack.c.l.b16 %v4742
    %v6087 = vunpack.c.h.b16 %v4742
    %v6088 = vunpack.c.l.b16 %v4743
    %v6089 = vunpack.c.h.b16 %v4743
    %v6090 = vunpack.c.l.b16 %v4744
    %v6091 = vunpack.c.h.b16 %v4744
    %v6092 = vunpack.c.l.b16 %v4745
    %v6093 = vunpack.c.h.b16 %v4745
    %v6094 = vunpack.c.l.b16 %v4746
    %v6095 = vunpack.c.h.b16 %v4746
    %v6096 = vunpack.c.l.b16 %v4747
    %v6097 = vunpack.c.h.b16 %v4747
    %v6098 = vunpack.c.l.b16 %v4748
    %v6099 = vunpack.c.h.b16 %v4748
    %v6100 = vunpack.c.l.b16 %v4749
    %v6101 = vunpack.c.h.b16 %v4749
    %v6102 = vunpack.c.l.b16 %v4750
    %v6103 = vunpack.c.h.b16 %v4750
    %v6104 = vunpack.c.l.b16 %v4751
    %v6105 = vunpack.c.h.b16 %v4751
    %v6106 = vunpack.c.l.b16 %v4752
    %v6107 = vunpack.c.h.b16 %v4752
    %v6108 = vunpack.c.l.b16 %v4753
    %v6109 = vunpack.c.h.b16 %v4753
    %v6110 = vunpack.c.l.b16 %v4754
    %v6111 = vunpack.c.h.b16 %v4754
    %v6112 = vunpack.c.l.b16 %v4755
    %v6113 = vunpack.c.h.b16 %v4755
    %v6114 = vunpack.c.l.b16 %v4756
    %v6115 = vunpack.c.h.b16 %v4756
    %v6116 = vunpack.c.l.b16 %v4757
    %v6117 = vunpack.c.h.b16 %v4757
    %v6118 = vunpack.c.l.b16 %v4758
    %v6119 = vunpack.c.h.b16 %v4758
    %v6120 = vunpack.c.l.b16 %v4759
    %v6121 = vunpack.c.h.b16 %v4759
    %v6122 = vunpack.c.l.b16 %v4760
    %v6123 = vunpack.c.h.b16 %v4760
    %v6124 = vunpack.c.l.b16 %v4761
    %v6125 = vunpack.c.h.b16 %v4761
    %v6126 = vunpack.c.l.b16 %v4762
    %v6127 = vunpack.c.h.b16 %v4762
    %v6128 = vunpack.c.l.b16 %v4763
    %v6129 = vunpack.c.h.b16 %v4763
    %v6130 = vunpack.c.l.b16 %v4764
    %v6131 = vunpack.c.h.b16 %v4764
    %v6132 = vunpack.c.l.b16 %v4765
    %v6133 = vunpack.c.h.b16 %v4765
    %v6134 = vunpack.c.l.b16 %v4766
    %v6135 = vunpack.c.h.b16 %v4766
    %v6136 = vunpack.c.l.b16 %v4767
    %v6137 = vunpack.c.h.b16 %v4767
    %v6138 = vunpack.c.l.b16 %v4768
    %v6139 = vunpack.c.h.b16 %v4768
    %v6140 = vunpack.c.l.b16 %v4769
    %v6141 = vunpack.c.h.b16 %v4769
    %v6142 = vunpack.c.l.b16 %v4770
    %v6143 = vunpack.c.h.b16 %v4770
    %v6144 = vunpack.c.l.b16 %v4771
    %v6145 = vunpack.c.h.b16 %v4771
    %v6146 = vunpack.c.l.b16 %v4772
    %v6147 = vunpack.c.h.b16 %v4772
    %v6148 = vunpack.c.l.b16 %v4773
    %v6149 = vunpack.c.h.b16 %v4773
    %v6150 = vunpack.c.l.b16 %v4774
    %v6151 = vunpack.c.h.b16 %v4774
    %v6152 = vunpack.c.l.b16 %v4775
    %v6153 = vunpack.c.h.b16 %v4775
    %v6154 = vunpack.c.l.b16 %v4776
    %v6155 = vunpack.c.h.b16 %v4776
    %v6156 = vunpack.c.l.b16 %v4777
    %v6157 = vunpack.c.h.b16 %v4777
    %v6158 = vunpack.c.l.b16 %v4778
    %v6159 = vunpack.c.h.b16 %v4778
    %v6160 = vunpack.c.l.b16 %v4779
    %v6161 = vunpack.c.h.b16 %v4779
    %v6162 = vunpack.c.l.b16 %v4780
    %v6163 = vunpack.c.h.b16 %v4780
    %v6164 = vunpack.c.l.b16 %v4781
    %v6165 = vunpack.c.h.b16 %v4781
    %v6166 = vunpack.c.l.b16 %v4782
    %v6167 = vunpack.c.h.b16 %v4782
    %v6168 = vunpack.c.l.b16 %v4783
    %v6169 = vunpack.c.h.b16 %v4783
    %v6170 = vunpack.c.l.b16 %v4784
    %v6171 = vunpack.c.h.b16 %v4784
    %v6172 = vunpack.c.l.b16 %v4785
    %v6173 = vunpack.c.h.b16 %v4785
    %v6174 = vunpack.c.l.b16 %v4786
    %v6175 = vunpack.c.h.b16 %v4786
    %v6176 = vunpack.c.l.b16 %v4787
    %v6177 = vunpack.c.h.b16 %v4787
    %v6178 = vunpack.c.l.b16 %v4788
    %v6179 = vunpack.c.h.b16 %v4788
    %v6180 = vunpack.c.l.b16 %v4789
    %v6181 = vunpack.c.h.b16 %v4789
    %v6182 = vunpack.c.l.b16 %v4790
    %v6183 = vunpack.c.h.b16 %v4790
    %v6184 = vunpack.c.l.b16 %v4791
    %v6185 = vunpack.c.h.b16 %v4791
    %v6186 = vunpack.c.l.b16 %v4792
    %v6187 = vunpack.c.h.b16 %v4792
    %v6188 = vunpack.c.l.b16 %v4793
    %v6189 = vunpack.c.h.b16 %v4793
    %v6190 = vunpack.c.l.b16 %v4794
    %v6191 = vunpack.c.h.b16 %v4794
    %v6192 = vunpack.c.l.b16 %v4795
    %v6193 = vunpack.c.h.b16 %v4795
    %v6194 = vunpack.c.l.b16 %v4796
    %v6195 = vunpack.c.h.b16 %v4796
    %v6196 = vunpack.c.l.b16 %v4797
    %v6197 = vunpack.c.h.b16 %v4797
    %v6198 = vunpack.c.l.b16 %v4798
    %v6199 = vunpack.c.h.b16 %v4798
    %v6200 = vunpack.c.l.b16 %v4799
    %v6201 = vunpack.c.h.b16 %v4799
    %v6202 = vunpack.c.l.b16 %v4800
    %v6203 = vunpack.c.h.b16 %v4800
    %v6204 = vunpack.c.l.b16 %v4801
    %v6205 = vunpack.c.h.b16 %v4801
    %v6206 = vunpack.c.l.b16 %v4802
    %v6207 = vunpack.c.h.b16 %v4802
    %v6208 = vunpack.c.l.b16 %v4803
    %v6209 = vunpack.c.h.b16 %v4803
    %v6210 = vunpack.c.l.b16 %v4804
    %v6211 = vunpack.c.h.b16 %v4804
    %v6212 = vunpack.c.l.b16 %v4805
    %v6213 = vunpack.c.h.b16 %v4805
    %v6214 = vunpack.c.l.b16 %v4806
    %v6215 = vunpack.c.h.b16 %v4806
    %v6216 = vunpack.c.l.b16 %v4807
    %v6217 = vunpack.c.h.b16 %v4807
    %v6218 = vunpack.c.l.b16 %v4808
    %v6219 = vunpack.c.h.b16 %v4808
    %v6220 = vunpack.c.l.b16 %v4809
    %v6221 = vunpack.c.h.b16 %v4809
    %v6222 = vunpack.c.l.b16 %v4810
    %v6223 = vunpack.c.h.b16 %v4810
    %v6224 = vunpack.c.l.b16 %v4811
    %v6225 = vunpack.c.h.b16 %v4811
    %v6226 = vunpack.c.l.b16 %v4812
    %v6227 = vunpack.c.h.b16 %v4812
    %v6228 = vunpack.c.l.b16 %v4813
    %v6229 = vunpack.c.h.b16 %v4813
    %v6230 = vunpack.c.l.b16 %v4814
    %v6231 = vunpack.c.h.b16 %v4814
    %v6232 = vunpack.c.l.b16 %v4815
    %v6233 = vunpack.c.h.b16 %v4815
    %v6234 = vunpack.c.l.b16 %v4816
    %v6235 = vunpack.c.h.b16 %v4816
    %v6236 = vunpack.c.l.b16 %v4817
    %v6237 = vunpack.c.h.b16 %v4817
    %v6238 = vunpack.c.l.b16 %v4818
    %v6239 = vunpack.c.h.b16 %v4818
    %v6240 = vunpack.c.l.b16 %v4819
    %v6241 = vunpack.c.h.b16 %v4819
    %v6242 = vunpack.c.l.b16 %v4820
    %v6243 = vunpack.c.h.b16 %v4820
    %v6244 = vunpack.c.l.b16 %v4821
    %v6245 = vunpack.c.h.b16 %v4821
    %v6246 = vunpack.c.l.b16 %v4822
    %v6247 = vunpack.c.h.b16 %v4822
    %v6248 = vunpack.c.l.b16 %v4823
    %v6249 = vunpack.c.h.b16 %v4823
    %v6250 = vunpack.c.l.b16 %v4824
    %v6251 = vunpack.c.h.b16 %v4824
    %v6252 = vunpack.c.l.b16 %v4825
    %v6253 = vunpack.c.h.b16 %v4825
    %v6254 = vunpack.c.l.b16 %v4826
    %v6255 = vunpack.c.h.b16 %v4826
    %v6256 = vunpack.c.l.b16 %v4827
    %v6257 = vunpack.c.h.b16 %v4827
    %v6258 = vunpack.c.l.b16 %v4828
    %v6259 = vunpack.c.h.b16 %v4828
    %v6260 = vunpack.c.l.b16 %v4829
    %v6261 = vunpack.c.h.b16 %v4829
    %v6262 = vunpack.c.l.b16 %v4830
    %v6263 = vunpack.c.h.b16 %v4830
    %v6264 = vunpack.c.l.b16 %v4831
    %v6265 = vunpack.c.h.b16 %v4831
    %v6266 = vunpack.c.l.b16 %v4832
    %v6267 = vunpack.c.h.b16 %v4832
    %v6268 = vunpack.c.l.b16 %v4833
    %v6269 = vunpack.c.h.b16 %v4833
    %v6270 = vunpack.c.l.b16 %v4834
    %v6271 = vunpack.c.h.b16 %v4834
    %v6272 = vunpack.c.l.b16 %v4835
    %v6273 = vunpack.c.h.b16 %v4835
    %v6274 = vunpack.c.l.b16 %v4836
    %v6275 = vunpack.c.h.b16 %v4836
    %v6276 = vunpack.c.l.b16 %v4837
    %v6277 = vunpack.c.h.b16 %v4837
    %v6278 = vunpack.c.l.b16 %v4838
    %v6279 = vunpack.c.h.b16 %v4838
    %v6280 = vunpack.c.l.b16 %v4839
    %v6281 = vunpack.c.h.b16 %v4839
    %v6282 = vunpack.c.l.b16 %v4840
    %v6283 = vunpack.c.h.b16 %v4840
    %v6284 = vunpack.c.l.b16 %v4841
    %v6285 = vunpack.c.h.b16 %v4841
    %v6286 = vunpack.c.l.b16 %v4842
    %v6287 = vunpack.c.h.b16 %v4842
    %v6288 = vunpack.c.l.b16 %v4843
    %v6289 = vunpack.c.h.b16 %v4843
    %v6290 = vunpack.c.l.b16 %v4844
    %v6291 = vunpack.c.h.b16 %v4844
    %v6292 = vunpack.c.l.b16 %v4845
    %v6293 = vunpack.c.h.b16 %v4845
    %v6294 = vunpack.c.l.b16 %v4846
    %v6295 = vunpack.c.h.b16 %v4846
    %v6296 = vunpack.c.l.b16 %v4847
    %v6297 = vunpack.c.h.b16 %v4847
    %v6298 = vunpack.c.l.b16 %v4848
    %v6299 = vunpack.c.h.b16 %v4848
    %v6300 = vunpack.c.l.b16 %v4849
    %v6301 = vunpack.c.h.b16 %v4849
    %v6302 = vunpack.c.l.b16 %v4850
    %v6303 = vunpack.c.h.b16 %v4850
    %v6304 = vunpack.c.l.b16 %v4851
    %v6305 = vunpack.c.h.b16 %v4851
    %v6306 = vunpack.c.l.b16 %v4852
    %v6307 = vunpack.c.h.b16 %v4852
    %v6308 = vunpack.c.l.b16 %v4853
    %v6309 = vunpack.c.h.b16 %v4853
    %v6310 = vunpack.c.l.b16 %v4854
    %v6311 = vunpack.c.h.b16 %v4854
    %v6312 = vunpack.c.l.b16 %v4855
    %v6313 = vunpack.c.h.b16 %v4855
    %v6314 = vunpack.c.l.b16 %v4856
    %v6315 = vunpack.c.h.b16 %v4856
    %v6316 = vunpack.c.l.b16 %v4857
    %v6317 = vunpack.c.h.b16 %v4857
    %v6318 = vunpack.c.l.b16 %v4858
    %v6319 = vunpack.c.h.b16 %v4858
    %v6320 = vunpack.c.l.b16 %v4859
    %v6321 = vunpack.c.h.b16 %v4859
    %v6322 = vunpack.c.l.b16 %v4860
    %v6323 = vunpack.c.h.b16 %v4860
    %v6324 = vunpack.c.l.b16 %v4861
    %v6325 = vunpack.c.h.b16 %v4861
    %v6326 = vunpack.c.l.b16 %v4862
    %v6327 = vunpack.c.h.b16 %v4862
    %v6328 = vunpack.c.l.b16 %v4863
    %v6329 = vunpack.c.h.b16 %v4863
    %v6330 = vunpack.c.l.b16 %v4864
    %v6331 = vunpack.c.h.b16 %v4864
    %v6332 = vunpack.c.l.b16 %v4865
    %v6333 = vunpack.c.h.b16 %v4865
    %v6334 = vunpack.c.l.b16 %v4866
    %v6335 = vunpack.c.h.b16 %v4866
    %v6336 = vunpack.c.l.b16 %v4867
    %v6337 = vunpack.c.h.b16 %v4867
    %v6338 = vunpack.c.l.b16 %v4868
    %v6339 = vunpack.c.h.b16 %v4868
    %v6340 = vunpack.c.l.b16 %v4869
    %v6341 = vunpack.c.h.b16 %v4869
    %v6342 = vunpack.c.l.b16 %v4870
    %v6343 = vunpack.c.h.b16 %v4870
    %v6344 = vunpack.c.l.b16 %v4871
    %v6345 = vunpack.c.h.b16 %v4871
    %v6346 = vunpack.c.l.b16 %v4872
    %v6347 = vunpack.c.h.b16 %v4872
    %v6348 = vunpack.c.l.b16 %v4873
    %v6349 = vunpack.c.h.b16 %v4873
    %v6350 = vunpack.c.l.b16 %v4874
    %v6351 = vunpack.c.h.b16 %v4874
    %v6352 = vunpack.c.l.b16 %v4875
    %v6353 = vunpack.c.h.b16 %v4875
    %v6354 = vunpack.c.l.b16 %v4876
    %v6355 = vunpack.c.h.b16 %v4876
    %v6356 = vunpack.c.l.b16 %v4877
    %v6357 = vunpack.c.h.b16 %v4877
    %v6358 = vunpack.c.l.b16 %v4878
    %v6359 = vunpack.c.h.b16 %v4878
    %v6360 = vunpack.c.l.b16 %v4879
    %v6361 = vunpack.c.h.b16 %v4879
    %v6362 = vunpack.c.l.b16 %v4880
    %v6363 = vunpack.c.h.b16 %v4880
    %v6364 = vunpack.c.l.b16 %v4881
    %v6365 = vunpack.c.h.b16 %v4881
    %v6366 = vunpack.c.l.b16 %v4882
    %v6367 = vunpack.c.h.b16 %v4882
    %v6368 = vunpack.c.l.b16 %v4883
    %v6369 = vunpack.c.h.b16 %v4883
    %v6370 = vunpack.c.l.b16 %v4884
    %v6371 = vunpack.c.h.b16 %v4884
    %v6372 = vunpack.c.l.b16 %v4885
    %v6373 = vunpack.c.h.b16 %v4885
    %v6374 = vunpack.c.l.b16 %v4886
    %v6375 = vunpack.c.h.b16 %v4886
    %v6376 = vunpack.c.l.b16 %v4887
    %v6377 = vunpack.c.h.b16 %v4887
    %v6378 = vunpack.c.l.b16 %v4888
    %v6379 = vunpack.c.h.b16 %v4888
    %v6380 = vunpack.c.l.b16 %v4889
    %v6381 = vunpack.c.h.b16 %v4889
    %v6382 = vunpack.c.l.b16 %v4890
    %v6383 = vunpack.c.h.b16 %v4890
    %v6384 = vunpack.c.l.b16 %v4891
    %v6385 = vunpack.c.h.b16 %v4891
    %v6386 = vunpack.c.l.b16 %v4892
    %v6387 = vunpack.c.h.b16 %v4892
    %v6388 = vunpack.c.l.b16 %v4893
    %v6389 = vunpack.c.h.b16 %v4893
    %v6390 = vunpack.c.l.b16 %v4894
    %v6391 = vunpack.c.h.b16 %v4894
    %v6392 = vunpack.c.l.b16 %v4895
    %v6393 = vunpack.c.h.b16 %v4895
    %v6394 = vunpack.c.l.b16 %v4896
    %v6395 = vunpack.c.h.b16 %v4896
    %v6396 = vunpack.c.l.b16 %v4897
    %v6397 = vunpack.c.h.b16 %v4897
    %v6398 = vunpack.c.l.b16 %v4898
    %v6399 = vunpack.c.h.b16 %v4898
    %v6400 = vunpack.c.l.b16 %v4899
    %v6401 = vunpack.c.h.b16 %v4899
    %v6402 = vunpack.c.l.b16 %v4900
    %v6403 = vunpack.c.h.b16 %v4900
    %v6404 = vunpack.c.l.b16 %v4901
    %v6405 = vunpack.c.h.b16 %v4901
    %v6406 = vunpack.c.l.b16 %v4902
    %v6407 = vunpack.c.h.b16 %v4902
    %v6408 = vunpack.c.l.b16 %v4903
    %v6409 = vunpack.c.h.b16 %v4903
    %v6410 = vunpack.c.l.b16 %v4904
    %v6411 = vunpack.c.h.b16 %v4904
    %v6412 = vunpack.c.l.b16 %v4905
    %v6413 = vunpack.c.h.b16 %v4905
    %v6414 = vunpack.c.l.b16 %v4906
    %v6415 = vunpack.c.h.b16 %v4906
    %v6416 = vunpack.c.l.b16 %v4907
    %v6417 = vunpack.c.h.b16 %v4907
    %v6418 = vunpack.c.l.b16 %v4908
    %v6419 = vunpack.c.h.b16 %v4908
    %v6420 = vunpack.c.l.b16 %v4909
    %v6421 = vunpack.c.h.b16 %v4909
    %v6422 = vunpack.c.l.b16 %v4910
    %v6423 = vunpack.c.h.b16 %v4910
    %v6424 = vunpack.c.l.b16 %v4911
    %v6425 = vunpack.c.h.b16 %v4911
    %v6426 = vunpack.c.l.b16 %v4912
    %v6427 = vunpack.c.h.b16 %v4912
    %v6428 = vunpack.c.l.b16 %v4913
    %v6429 = vunpack.c.h.b16 %v4913
    %v6430 = vunpack.c.l.b16 %v4914
    %v6431 = vunpack.c.h.b16 %v4914
    %v6432 = vunpack.c.l.b16 %v4915
    %v6433 = vunpack.c.h.b16 %v4915
    %v6434 = vunpack.c.l.b16 %v4916
    %v6435 = vunpack.c.h.b16 %v4916
    %v6436 = vunpack.c.l.b16 %v4917
    %v6437 = vunpack.c.h.b16 %v4917
    %v6438 = vunpack.c.l.b16 %v4918
    %v6439 = vunpack.c.h.b16 %v4918
    %v6440 = vunpack.c.l.b16 %v4919
    %v6441 = vunpack.c.h.b16 %v4919
    %v6442 = vunpack.c.l.b16 %v4920
    %v6443 = vunpack.c.h.b16 %v4920
    %v6444 = vunpack.c.l.b16 %v4921
    %v6445 = vunpack.c.h.b16 %v4921
    %v6446 = vunpack.c.l.b16 %v4922
    %v6447 = vunpack.c.h.b16 %v4922
    %v6448 = vunpack.c.l.b16 %v4923
    %v6449 = vunpack.c.h.b16 %v4923
    %v6450 = vunpack.c.l.b16 %v4924
    %v6451 = vunpack.c.h.b16 %v4924
    %v6452 = vunpack.c.l.b16 %v4925
    %v6453 = vunpack.c.h.b16 %v4925
    %v6454 = vunpack.c.l.b16 %v4926
    %v6455 = vunpack.c.h.b16 %v4926
    %v6456 = vunpack.c.l.b16 %v4927
    %v6457 = vunpack.c.h.b16 %v4927
    %v6458 = vunpack.c.l.b16 %v4928
    %v6459 = vunpack.c.h.b16 %v4928
    %v6460 = vunpack.c.l.b16 %v4929
    %v6461 = vunpack.c.h.b16 %v4929
    %v6462 = vunpack.c.l.b16 %v4930
    %v6463 = vunpack.c.h.b16 %v4930
    %v6464 = vunpack.c.l.b16 %v4931
    %v6465 = vunpack.c.h.b16 %v4931
    %v6466 = vunpack.c.l.b16 %v4932
    %v6467 = vunpack.c.h.b16 %v4932
    %v6468 = vunpack.c.l.b16 %v4933
    %v6469 = vunpack.c.h.b16 %v4933
    %v6470 = vunpack.c.l.b16 %v4934
    %v6471 = vunpack.c.h.b16 %v4934
    %v6472 = vunpack.c.l.b16 %v4935
    %v6473 = vunpack.c.h.b16 %v4935
    %v6474 = vunpack.c.l.b16 %v4936
    %v6475 = vunpack.c.h.b16 %v4936
    %v6476 = vunpack.c.l.b16 %v4937
    %v6477 = vunpack.c.h.b16 %v4937
    %v6478 = vunpack.c.l.b16 %v4938
    %v6479 = vunpack.c.h.b16 %v4938
    %v6480 = vunpack.c.l.b16 %v4939
    %v6481 = vunpack.c.h.b16 %v4939
    %v6482 = vunpack.c.l.b16 %v4940
    %v6483 = vunpack.c.h.b16 %v4940
    %v6484 = vunpack.c.l.b16 %v4941
    %v6485 = vunpack.c.h.b16 %v4941
    %v6486 = vunpack.c.l.b16 %v4942
    %v6487 = vunpack.c.h.b16 %v4942
    %v6488 = vunpack.c.l.b16 %v4943
    %v6489 = vunpack.c.h.b16 %v4943
    %v6490 = vunpack.c.l.b16 %v4944
    %v6491 = vunpack.c.h.b16 %v4944
    %v6492 = vunpack.c.l.b16 %v4945
    %v6493 = vunpack.c.h.b16 %v4945
    %v6494 = vunpack.c.l.b16 %v4946
    %v6495 = vunpack.c.h.b16 %v4946
    %v6496 = vunpack.c.l.b16 %v4947
    %v6497 = vunpack.c.h.b16 %v4947
    %v6498 = vunpack.c.l.b16 %v4948
    %v6499 = vunpack.c.h.b16 %v4948
    %v6500 = vunpack.c.l.b16 %v4949
    %v6501 = vunpack.c.h.b16 %v4949
    %v6502 = vunpack.c.l.b16 %v4950
    %v6503 = vunpack.c.h.b16 %v4950
    %v6504 = vunpack.c.l.b16 %v4951
    %v6505 = vunpack.c.h.b16 %v4951
    %v6506 = vunpack.c.l.b16 %v4952
    %v6507 = vunpack.c.h.b16 %v4952
    %v6508 = vunpack.c.l.b16 %v4953
    %v6509 = vunpack.c.h.b16 %v4953
    %v6510 = vunpack.c.l.b16 %v4954
    %v6511 = vunpack.c.h.b16 %v4954
    %v6512 = vunpack.c.l.b16 %v4955
    %v6513 = vunpack.c.h.b16 %v4955
    %v6514 = vunpack.c.l.b16 %v4956
    %v6515 = vunpack.c.h.b16 %v4956
    %v6516 = vunpack.c.l.b16 %v4957
    %v6517 = vunpack.c.h.b16 %v4957
    %v6518 = vunpack.c.l.b16 %v4958
    %v6519 = vunpack.c.h.b16 %v4958
    %v6520 = vunpack.c.l.b16 %v4959
    %v6521 = vunpack.c.h.b16 %v4959
    %v6522 = vunpack.c.l.b16 %v4960
    %v6523 = vunpack.c.h.b16 %v4960
    %v6524 = vunpack.c.l.b16 %v4961
    %v6525 = vunpack.c.h.b16 %v4961
    %v6526 = vunpack.c.l.b16 %v4962
    %v6527 = vunpack.c.h.b16 %v4962
    %v6528 = vunpack.c.l.b16 %v4963
    %v6529 = vunpack.c.h.b16 %v4963
    %v6530 = vunpack.c.l.b16 %v4964
    %v6531 = vunpack.c.h.b16 %v4964
    %v6532 = vunpack.c.l.b16 %v4965
    %v6533 = vunpack.c.h.b16 %v4965
    %v6534 = vunpack.c.l.b16 %v4966
    %v6535 = vunpack.c.h.b16 %v4966
    %v6536 = vunpack.c.l.b16 %v4967
    %v6537 = vunpack.c.h.b16 %v4967
    %v6538 = vunpack.c.l.b16 %v4968
    %v6539 = vunpack.c.h.b16 %v4968
    %v6540 = vunpack.c.l.b16 %v4969
    %v6541 = vunpack.c.h.b16 %v4969
    %v6542 = vunpack.c.l.b16 %v4970
    %v6543 = vunpack.c.h.b16 %v4970
    %v6544 = vunpack.c.l.b16 %v4971
    %v6545 = vunpack.c.h.b16 %v4971
    %v6546 = vunpack.c.l.b16 %v4972
    %v6547 = vunpack.c.h.b16 %v4972
    %v6548 = vunpack.c.l.b16 %v4973
    %v6549 = vunpack.c.h.b16 %v4973
    %v6550 = vunpack.c.l.b16 %v4974
    %v6551 = vunpack.c.h.b16 %v4974
    %v6552 = vunpack.c.l.b16 %v4975
    %v6553 = vunpack.c.h.b16 %v4975
    %v6554 = vunpack.c.l.b16 %v4976
    %v6555 = vunpack.c.h.b16 %v4976
    %v6556 = vunpack.c.l.b16 %v4977
    %v6557 = vunpack.c.h.b16 %v4977
    %v6558 = vunpack.c.l.b16 %v4978
    %v6559 = vunpack.c.h.b16 %v4978
    %v6560 = vunpack.c.l.b16 %v4979
    %v6561 = vunpack.c.h.b16 %v4979
    %v6562 = vunpack.c.l.b16 %v4980
    %v6563 = vunpack.c.h.b16 %v4980
    %v6564 = vunpack.c.l.b16 %v4981
    %v6565 = vunpack.c.h.b16 %v4981
    %v6566 = vunpack.c.l.b16 %v4982
    %v6567 = vunpack.c.h.b16 %v4982
    %v6568 = vunpack.c.l.b16 %v4983
    %v6569 = vunpack.c.h.b16 %v4983
    %v6570 = vunpack.c.l.b16 %v4984
    %v6571 = vunpack.c.h.b16 %v4984
    %v6572 = vunpack.c.l.b16 %v4985
    %v6573 = vunpack.c.h.b16 %v4985
    %v6574 = vunpack.c.l.b16 %v4986
    %v6575 = vunpack.c.h.b16 %v4986
    %v6576 = vunpack.c.l.b16 %v4987
    %v6577 = vunpack.c.h.b16 %v4987
    %v6578 = vunpack.c.l.b16 %v4988
    %v6579 = vunpack.c.h.b16 %v4988
    %v6580 = vunpack.c.l.b16 %v4989
    %v6581 = vunpack.c.h.b16 %v4989
    %v6582 = vunpack.c.l.b16 %v4990
    %v6583 = vunpack.c.h.b16 %v4990
    %v6584 = vunpack.c.l.b16 %v4991
    %v6585 = vunpack.c.h.b16 %v4991
    %v6586 = vunpack.c.l.b16 %v4992
    %v6587 = vunpack.c.h.b16 %v4992
    %v6588 = vunpack.c.l.b16 %v4993
    %v6589 = vunpack.c.h.b16 %v4993
    %v6590 = vunpack.c.l.b16 %v4994
    %v6591 = vunpack.c.h.b16 %v4994
    %v6592 = vunpack.c.l.b16 %v4995
    %v6593 = vunpack.c.h.b16 %v4995
    %v6594 = vunpack.c.l.b16 %v4996
    %v6595 = vunpack.c.h.b16 %v4996
    %v6596 = vunpack.c.l.b16 %v4997
    %v6597 = vunpack.c.h.b16 %v4997
    %v6598 = vunpack.c.l.b16 %v4998
    %v6599 = vunpack.c.h.b16 %v4998
    %v6600 = vunpack.c.l.b16 %v4999
    %v6601 = vunpack.c.h.b16 %v4999
    %v6602 = vunpack.c.l.b16 %v5000
    %v6603 = vunpack.c.h.b16 %v5000
    %v6604 = vunpack.c.l.b16 %v5001
    %v6605 = vunpack.c.h.b16 %v5001
    %v6606 = vunpack.c.l.b16 %v5002
    %v6607 = vunpack.c.h.b16 %v5002
    %v6608 = vunpack.c.l.b16 %v5003
    %v6609 = vunpack.c.h.b16 %v5003
    %v6610 = vunpack.c.l.b16 %v5004
    %v6611 = vunpack.c.h.b16 %v5004
    %v6612 = vunpack.c.l.b16 %v5005
    %v6613 = vunpack.c.h.b16 %v5005
    %v6614 = vpack.c.b16 %v5598, %v5590
    %v6615 = vpack.c.b16 %v5599, %v5591
    %v6616 = vpack.c.b16 %v5600, %v5592
    %v6617 = vpack.c.b16 %v5601, %v5593
    %v6618 = vpack.c.b16 %v5602, %v5594
    %v6619 = vpack.c.b16 %v5603, %v5595
    %v6620 = vpack.c.b16 %v5604, %v5596
    %v6621 = vpack.c.b16 %v5605, %v5597
    %v6622 = vpack.c.b16 %v5614, %v5606
    %v6623 = vpack.c.b16 %v5615, %v5607
    %v6624 = vpack.c.b16 %v5616, %v5608
    %v6625 = vpack.c.b16 %v5617, %v5609
    %v6626 = vpack.c.b16 %v5618, %v5610
    %v6627 = vpack.c.b16 %v5619, %v5611
    %v6628 = vpack.c.b16 %v5620, %v5612
    %v6629 = vpack.c.b16 %v5621, %v5613
    %v6630 = vpack.c.b16 %v5630, %v5622
    %v6631 = vpack.c.b16 %v5631, %v5623
    %v6632 = vpack.c.b16 %v5632, %v5624
    %v6633 = vpack.c.b16 %v5633, %v5625
    %v6634 = vpack.c.b16 %v5634, %v5626
    %v6635 = vpack.c.b16 %v5635, %v5627
    %v6636 = vpack.c.b16 %v5636, %v5628
    %v6637 = vpack.c.b16 %v5637, %v5629
    %v6638 = vpack.c.b16 %v5646, %v5638
    %v6639 = vpack.c.b16 %v5647, %v5639
    %v6640 = vpack.c.b16 %v5648, %v5640
    %v6641 = vpack.c.b16 %v5649, %v5641
    %v6642 = vpack.c.b16 %v5650, %v5642
    %v6643 = vpack.c.b16 %v5651, %v5643
    %v6644 = vpack.c.b16 %v5652, %v5644
    %v6645 = vpack.c.b16 %v5653, %v5645
    %v6646 = vpack.c.b16 %v5662, %v5654
    %v6647 = vpack.c.b16 %v5663, %v5655
    %v6648 = vpack.c.b16 %v5664, %v5656
    %v6649 = vpack.c.b16 %v5665, %v5657
    %v6650 = vpack.c.b16 %v5666, %v5658
    %v6651 = vpack.c.b16 %v5667, %v5659
    %v6652 = vpack.c.b16 %v5668, %v5660
    %v6653 = vpack.c.b16 %v5669, %v5661
    %v6654 = vpack.c.b16 %v5678, %v5670
    %v6655 = vpack.c.b16 %v5679, %v5671
    %v6656 = vpack.c.b16 %v5680, %v5672
    %v6657 = vpack.c.b16 %v5681, %v5673
    %v6658 = vpack.c.b16 %v5682, %v5674
    %v6659 = vpack.c.b16 %v5683, %v5675
    %v6660 = vpack.c.b16 %v5684, %v5676
    %v6661 = vpack.c.b16 %v5685, %v5677
    %v6662 = vpack.c.b16 %v5694, %v5686
    %v6663 = vpack.c.b16 %v5695, %v5687
    %v6664 = vpack.c.b16 %v5696, %v5688
    %v6665 = vpack.c.b16 %v5697, %v5689
    %v6666 = vpack.c.b16 %v5698, %v5690
    %v6667 = vpack.c.b16 %v5699, %v5691
    %v6668 = vpack.c.b16 %v5700, %v5692
    %v6669 = vpack.c.b16 %v5701, %v5693
    %v6670 = vpack.c.b16 %v5710, %v5702
    %v6671 = vpack.c.b16 %v5711, %v5703
    %v6672 = vpack.c.b16 %v5712, %v5704
    %v6673 = vpack.c.b16 %v5713, %v5705
    %v6674 = vpack.c.b16 %v5714, %v5706
    %v6675 = vpack.c.b16 %v5715, %v5707
    %v6676 = vpack.c.b16 %v5716, %v5708
    %v6677 = vpack.c.b16 %v5717, %v5709
    %v6678 = vpack.c.b16 %v5726, %v5718
    %v6679 = vpack.c.b16 %v5727, %v5719
    %v6680 = vpack.c.b16 %v5728, %v5720
    %v6681 = vpack.c.b16 %v5729, %v5721
    %v6682 = vpack.c.b16 %v5730, %v5722
    %v6683 = vpack.c.b16 %v5731, %v5723
    %v6684 = vpack.c.b16 %v5732, %v5724
    %v6685 = vpack.c.b16 %v5733, %v5725
    %v6686 = vpack.c.b16 %v5742, %v5734
    %v6687 = vpack.c.b16 %v5743, %v5735
    %v6688 = vpack.c.b16 %v5744, %v5736
    %v6689 = vpack.c.b16 %v5745, %v5737
    %v6690 = vpack.c.b16 %v5746, %v5738
    %v6691 = vpack.c.b16 %v5747, %v5739
    %v6692 = vpack.c.b16 %v5748, %v5740
    %v6693 = vpack.c.b16 %v5749, %v5741
    %v6694 = vpack.c.b16 %v5758, %v5750
    %v6695 = vpack.c.b16 %v5759, %v5751
    %v6696 = vpack.c.b16 %v5760, %v5752
    %v6697 = vpack.c.b16 %v5761, %v5753
    %v6698 = vpack.c.b16 %v5762, %v5754
    %v6699 = vpack.c.b16 %v5763, %v5755
    %v6700 = vpack.c.b16 %v5764, %v5756
    %v6701 = vpack.c.b16 %v5765, %v5757
    %v6702 = vpack.c.b16 %v5774, %v5766
    %v6703 = vpack.c.b16 %v5775, %v5767
    %v6704 = vpack.c.b16 %v5776, %v5768
    %v6705 = vpack.c.b16 %v5777, %v5769
    %v6706 = vpack.c.b16 %v5778, %v5770
    %v6707 = vpack.c.b16 %v5779, %v5771
    %v6708 = vpack.c.b16 %v5780, %v5772
    %v6709 = vpack.c.b16 %v5781, %v5773
    %v6710 = vpack.c.b16 %v5790, %v5782
    %v6711 = vpack.c.b16 %v5791, %v5783
    %v6712 = vpack.c.b16 %v5792, %v5784
    %v6713 = vpack.c.b16 %v5793, %v5785
    %v6714 = vpack.c.b16 %v5794, %v5786
    %v6715 = vpack.c.b16 %v5795, %v5787
    %v6716 = vpack.c.b16 %v5796, %v5788
    %v6717 = vpack.c.b16 %v5797, %v5789
    %v6718 = vpack.c.b16 %v5806, %v5798
    %v6719 = vpack.c.b16 %v5807, %v5799
    %v6720 = vpack.c.b16 %v5808, %v5800
    %v6721 = vpack.c.b16 %v5809, %v5801
    %v6722 = vpack.c.b16 %v5810, %v5802
    %v6723 = vpack.c.b16 %v5811, %v5803
    %v6724 = vpack.c.b16 %v5812, %v5804
    %v6725 = vpack.c.b16 %v5813, %v5805
    %v6726 = vpack.c.b16 %v5822, %v5814
    %v6727 = vpack.c.b16 %v5823, %v5815
    %v6728 = vpack.c.b16 %v5824, %v5816
    %v6729 = vpack.c.b16 %v5825, %v5817
    %v6730 = vpack.c.b16 %v5826, %v5818
    %v6731 = vpack.c.b16 %v5827, %v5819
    %v6732 = vpack.c.b16 %v5828, %v5820
    %v6733 = vpack.c.b16 %v5829, %v5821
    %v6734 = vpack.c.b16 %v5838, %v5830
    %v6735 = vpack.c.b16 %v5839, %v5831
    %v6736 = vpack.c.b16 %v5840, %v5832
    %v6737 = vpack.c.b16 %v5841, %v5833
    %v6738 = vpack.c.b16 %v5842, %v5834
    %v6739 = vpack.c.b16 %v5843, %v5835
    %v6740 = vpack.c.b16 %v5844, %v5836
    %v6741 = vpack.c.b16 %v5845, %v5837
    %v6742 = vpack.c.b16 %v5854, %v5846
    %v6743 = vpack.c.b16 %v5855, %v5847
    %v6744 = vpack.c.b16 %v5856, %v5848
    %v6745 = vpack.c.b16 %v5857, %v5849
    %v6746 = vpack.c.b16 %v5858, %v5850
    %v6747 = vpack.c.b16 %v5859, %v5851
    %v6748 = vpack.c.b16 %v5860, %v5852
    %v6749 = vpack.c.b16 %v5861, %v5853
    %v6750 = vpack.c.b16 %v5870, %v5862
    %v6751 = vpack.c.b16 %v5871, %v5863
    %v6752 = vpack.c.b16 %v5872, %v5864
    %v6753 = vpack.c.b16 %v5873, %v5865
    %v6754 = vpack.c.b16 %v5874, %v5866
    %v6755 = vpack.c.b16 %v5875, %v5867
    %v6756 = vpack.c.b16 %v5876, %v5868
    %v6757 = vpack.c.b16 %v5877, %v5869
    %v6758 = vpack.c.b16 %v5886, %v5878
    %v6759 = vpack.c.b16 %v5887, %v5879
    %v6760 = vpack.c.b16 %v5888, %v5880
    %v6761 = vpack.c.b16 %v5889, %v5881
    %v6762 = vpack.c.b16 %v5890, %v5882
    %v6763 = vpack.c.b16 %v5891, %v5883
    %v6764 = vpack.c.b16 %v5892, %v5884
    %v6765 = vpack.c.b16 %v5893, %v5885
    %v6766 = vpack.c.b16 %v5902, %v5894
    %v6767 = vpack.c.b16 %v5903, %v5895
    %v6768 = vpack.c.b16 %v5904, %v5896
    %v6769 = vpack.c.b16 %v5905, %v5897
    %v6770 = vpack.c.b16 %v5906, %v5898
    %v6771 = vpack.c.b16 %v5907, %v5899
    %v6772 = vpack.c.b16 %v5908, %v5900
    %v6773 = vpack.c.b16 %v5909, %v5901
    %v6774 = vpack.c.b16 %v5918, %v5910
    %v6775 = vpack.c.b16 %v5919, %v5911
    %v6776 = vpack.c.b16 %v5920, %v5912
    %v6777 = vpack.c.b16 %v5921, %v5913
    %v6778 = vpack.c.b16 %v5922, %v5914
    %v6779 = vpack.c.b16 %v5923, %v5915
    %v6780 = vpack.c.b16 %v5924, %v5916
    %v6781 = vpack.c.b16 %v5925, %v5917
    %v6782 = vpack.c.b16 %v5934, %v5926
    %v6783 = vpack.c.b16 %v5935, %v5927
    %v6784 = vpack.c.b16 %v5936, %v5928
    %v6785 = vpack.c.b16 %v5937, %v5929
    %v6786 = vpack.c.b16 %v5938, %v5930
    %v6787 = vpack.c.b16 %v5939, %v5931
    %v6788 = vpack.c.b16 %v5940, %v5932
    %v6789 = vpack.c.b16 %v5941, %v5933
    %v6790 = vpack.c.b16 %v5950, %v5942
    %v6791 = vpack.c.b16 %v5951, %v5943
    %v6792 = vpack.c.b16 %v5952, %v5944
    %v6793 = vpack.c.b16 %v5953, %v5945
    %v6794 = vpack.c.b16 %v5954, %v5946
    %v6795 = vpack.c.b16 %v5955, %v5947
    %v6796 = vpack.c.b16 %v5956, %v5948
    %v6797 = vpack.c.b16 %v5957, %v5949
    %v6798 = vpack.c.b16 %v5966, %v5958
    %v6799 = vpack.c.b16 %v5967, %v5959
    %v6800 = vpack.c.b16 %v5968, %v5960
    %v6801 = vpack.c.b16 %v5969, %v5961
    %v6802 = vpack.c.b16 %v5970, %v5962
    %v6803 = vpack.c.b16 %v5971, %v5963
    %v6804 = vpack.c.b16 %v5972, %v5964
    %v6805 = vpack.c.b16 %v5973, %v5965
    %v6806 = vpack.c.b16 %v5982, %v5974
    %v6807 = vpack.c.b16 %v5983, %v5975
    %v6808 = vpack.c.b16 %v5984, %v5976
    %v6809 = vpack.c.b16 %v5985, %v5977
    %v6810 = vpack.c.b16 %v5986, %v5978
    %v6811 = vpack.c.b16 %v5987, %v5979
    %v6812 = vpack.c.b16 %v5988, %v5980
    %v6813 = vpack.c.b16 %v5989, %v5981
    %v6814 = vpack.c.b16 %v5998, %v5990
    %v6815 = vpack.c.b16 %v5999, %v5991
    %v6816 = vpack.c.b16 %v6000, %v5992
    %v6817 = vpack.c.b16 %v6001, %v5993
    %v6818 = vpack.c.b16 %v6002, %v5994
    %v6819 = vpack.c.b16 %v6003, %v5995
    %v6820 = vpack.c.b16 %v6004, %v5996
    %v6821 = vpack.c.b16 %v6005, %v5997
    %v6822 = vpack.c.b16 %v6014, %v6006
    %v6823 = vpack.c.b16 %v6015, %v6007
    %v6824 = vpack.c.b16 %v6016, %v6008
    %v6825 = vpack.c.b16 %v6017, %v6009
    %v6826 = vpack.c.b16 %v6018, %v6010
    %v6827 = vpack.c.b16 %v6019, %v6011
    %v6828 = vpack.c.b16 %v6020, %v6012
    %v6829 = vpack.c.b16 %v6021, %v6013
    %v6830 = vpack.c.b16 %v6030, %v6022
    %v6831 = vpack.c.b16 %v6031, %v6023
    %v6832 = vpack.c.b16 %v6032, %v6024
    %v6833 = vpack.c.b16 %v6033, %v6025
    %v6834 = vpack.c.b16 %v6034, %v6026
    %v6835 = vpack.c.b16 %v6035, %v6027
    %v6836 = vpack.c.b16 %v6036, %v6028
    %v6837 = vpack.c.b16 %v6037, %v6029
    %v6838 = vpack.c.b16 %v6046, %v6038
    %v6839 = vpack.c.b16 %v6047, %v6039
    %v6840 = vpack.c.b16 %v6048, %v6040
    %v6841 = vpack.c.b16 %v6049, %v6041
    %v6842 = vpack.c.b16 %v6050, %v6042
    %v6843 = vpack.c.b16 %v6051, %v6043
    %v6844 = vpack.c.b16 %v6052, %v6044
    %v6845 = vpack.c.b16 %v6053, %v6045
    %v6846 = vpack.c.b16 %v6062, %v6054
    %v6847 = vpack.c.b16 %v6063, %v6055
    %v6848 = vpack.c.b16 %v6064, %v6056
    %v6849 = vpack.c.b16 %v6065, %v6057
    %v6850 = vpack.c.b16 %v6066, %v6058
    %v6851 = vpack.c.b16 %v6067, %v6059
    %v6852 = vpack.c.b16 %v6068, %v6060
    %v6853 = vpack.c.b16 %v6069, %v6061
    %v6854 = vpack.c.b16 %v6078, %v6070
    %v6855 = vpack.c.b16 %v6079, %v6071
    %v6856 = vpack.c.b16 %v6080, %v6072
    %v6857 = vpack.c.b16 %v6081, %v6073
    %v6858 = vpack.c.b16 %v6082, %v6074
    %v6859 = vpack.c.b16 %v6083, %v6075
    %v6860 = vpack.c.b16 %v6084, %v6076
    %v6861 = vpack.c.b16 %v6085, %v6077
    %v6862 = vpack.c.b16 %v6094, %v6086
    %v6863 = vpack.c.b16 %v6095, %v6087
    %v6864 = vpack.c.b16 %v6096, %v6088
    %v6865 = vpack.c.b16 %v6097, %v6089
    %v6866 = vpack.c.b16 %v6098, %v6090
    %v6867 = vpack.c.b16 %v6099, %v6091
    %v6868 = vpack.c.b16 %v6100, %v6092
    %v6869 = vpack.c.b16 %v6101, %v6093
    %v6870 = vpack.c.b16 %v6110, %v6102
    %v6871 = vpack.c.b16 %v6111, %v6103
    %v6872 = vpack.c.b16 %v6112, %v6104
    %v6873 = vpack.c.b16 %v6113, %v6105
    %v6874 = vpack.c.b16 %v6114, %v6106
    %v6875 = vpack.c.b16 %v6115, %v6107
    %v6876 = vpack.c.b16 %v6116, %v6108
    %v6877 = vpack.c.b16 %v6117, %v6109
    %v6878 = vpack.c.b16 %v6126, %v6118
    %v6879 = vpack.c.b16 %v6127, %v6119
    %v6880 = vpack.c.b16 %v6128, %v6120
    %v6881 = vpack.c.b16 %v6129, %v6121
    %v6882 = vpack.c.b16 %v6130, %v6122
    %v6883 = vpack.c.b16 %v6131, %v6123
    %v6884 = vpack.c.b16 %v6132, %v6124
    %v6885 = vpack.c.b16 %v6133, %v6125
    %v6886 = vpack.c.b16 %v6142, %v6134
    %v6887 = vpack.c.b16 %v6143, %v6135
    %v6888 = vpack.c.b16 %v6144, %v6136
    %v6889 = vpack.c.b16 %v6145, %v6137
    %v6890 = vpack.c.b16 %v6146, %v6138
    %v6891 = vpack.c.b16 %v6147, %v6139
    %v6892 = vpack.c.b16 %v6148, %v6140
    %v6893 = vpack.c.b16 %v6149, %v6141
    %v6894 = vpack.c.b16 %v6158, %v6150
    %v6895 = vpack.c.b16 %v6159, %v6151
    %v6896 = vpack.c.b16 %v6160, %v6152
    %v6897 = vpack.c.b16 %v6161, %v6153
    %v6898 = vpack.c.b16 %v6162, %v6154
    %v6899 = vpack.c.b16 %v6163, %v6155
    %v6900 = vpack.c.b16 %v6164, %v6156
    %v6901 = vpack.c.b16 %v6165, %v6157
    %v6902 = vpack.c.b16 %v6174, %v6166
    %v6903 = vpack.c.b16 %v6175, %v6167
    %v6904 = vpack.c.b16 %v6176, %v6168
    %v6905 = vpack.c.b16 %v6177, %v6169
    %v6906 = vpack.c.b16 %v6178, %v6170
    %v6907 = vpack.c.b16 %v6179, %v6171
    %v6908 = vpack.c.b16 %v6180, %v6172
    %v6909 = vpack.c.b16 %v6181, %v6173
    %v6910 = vpack.c.b16 %v6190, %v6182
    %v6911 = vpack.c.b16 %v6191, %v6183
    %v6912 = vpack.c.b16 %v6192, %v6184
    %v6913 = vpack.c.b16 %v6193, %v6185
    %v6914 = vpack.c.b16 %v6194, %v6186
    %v6915 = vpack.c.b16 %v6195, %v6187
    %v6916 = vpack.c.b16 %v6196, %v6188
    %v6917 = vpack.c.b16 %v6197, %v6189
    %v6918 = vpack.c.b16 %v6206, %v6198
    %v6919 = vpack.c.b16 %v6207, %v6199
    %v6920 = vpack.c.b16 %v6208, %v6200
    %v6921 = vpack.c.b16 %v6209, %v6201
    %v6922 = vpack.c.b16 %v6210, %v6202
    %v6923 = vpack.c.b16 %v6211, %v6203
    %v6924 = vpack.c.b16 %v6212, %v6204
    %v6925 = vpack.c.b16 %v6213, %v6205
    %v6926 = vpack.c.b16 %v6222, %v6214
    %v6927 = vpack.c.b16 %v6223, %v6215
    %v6928 = vpack.c.b16 %v6224, %v6216
    %v6929 = vpack.c.b16 %v6225, %v6217
    %v6930 = vpack.c.b16 %v6226, %v6218
    %v6931 = vpack.c.b16 %v6227, %v6219
    %v6932 = vpack.c.b16 %v6228, %v6220
    %v6933 = vpack.c.b16 %v6229, %v6221
    %v6934 = vpack.c.b16 %v6238, %v6230
    %v6935 = vpack.c.b16 %v6239, %v6231
    %v6936 = vpack.c.b16 %v6240, %v6232
    %v6937 = vpack.c.b16 %v6241, %v6233
    %v6938 = vpack.c.b16 %v6242, %v6234
    %v6939 = vpack.c.b16 %v6243, %v6235
    %v6940 = vpack.c.b16 %v6244, %v6236
    %v6941 = vpack.c.b16 %v6245, %v6237
    %v6942 = vpack.c.b16 %v6254, %v6246
    %v6943 = vpack.c.b16 %v6255, %v6247
    %v6944 = vpack.c.b16 %v6256, %v6248
    %v6945 = vpack.c.b16 %v6257, %v6249
    %v6946 = vpack.c.b16 %v6258, %v6250
    %v6947 = vpack.c.b16 %v6259, %v6251
    %v6948 = vpack.c.b16 %v6260, %v6252
    %v6949 = vpack.c.b16 %v6261, %v6253
    %v6950 = vpack.c.b16 %v6270, %v6262
    %v6951 = vpack.c.b16 %v6271, %v6263
    %v6952 = vpack.c.b16 %v6272, %v6264
    %v6953 = vpack.c.b16 %v6273, %v6265
    %v6954 = vpack.c.b16 %v6274, %v6266
    %v6955 = vpack.c.b16 %v6275, %v6267
    %v6956 = vpack.c.b16 %v6276, %v6268
    %v6957 = vpack.c.b16 %v6277, %v6269
    %v6958 = vpack.c.b16 %v6286, %v6278
    %v6959 = vpack.c.b16 %v6287, %v6279
    %v6960 = vpack.c.b16 %v6288, %v6280
    %v6961 = vpack.c.b16 %v6289, %v6281
    %v6962 = vpack.c.b16 %v6290, %v6282
    %v6963 = vpack.c.b16 %v6291, %v6283
    %v6964 = vpack.c.b16 %v6292, %v6284
    %v6965 = vpack.c.b16 %v6293, %v6285
    %v6966 = vpack.c.b16 %v6302, %v6294
    %v6967 = vpack.c.b16 %v6303, %v6295
    %v6968 = vpack.c.b16 %v6304, %v6296
    %v6969 = vpack.c.b16 %v6305, %v6297
    %v6970 = vpack.c.b16 %v6306, %v6298
    %v6971 = vpack.c.b16 %v6307, %v6299
    %v6972 = vpack.c.b16 %v6308, %v6300
    %v6973 = vpack.c.b16 %v6309, %v6301
    %v6974 = vpack.c.b16 %v6318, %v6310
    %v6975 = vpack.c.b16 %v6319, %v6311
    %v6976 = vpack.c.b16 %v6320, %v6312
    %v6977 = vpack.c.b16 %v6321, %v6313
    %v6978 = vpack.c.b16 %v6322, %v6314
    %v6979 = vpack.c.b16 %v6323, %v6315
    %v6980 = vpack.c.b16 %v6324, %v6316
    %v6981 = vpack.c.b16 %v6325, %v6317
    %v6982 = vpack.c.b16 %v6334, %v6326
    %v6983 = vpack.c.b16 %v6335, %v6327
    %v6984 = vpack.c.b16 %v6336, %v6328
    %v6985 = vpack.c.b16 %v6337, %v6329
    %v6986 = vpack.c.b16 %v6338, %v6330
    %v6987 = vpack.c.b16 %v6339, %v6331
    %v6988 = vpack.c.b16 %v6340, %v6332
    %v6989 = vpack.c.b16 %v6341, %v6333
    %v6990 = vpack.c.b16 %v6350, %v6342
    %v6991 = vpack.c.b16 %v6351, %v6343
    %v6992 = vpack.c.b16 %v6352, %v6344
    %v6993 = vpack.c.b16 %v6353, %v6345
    %v6994 = vpack.c.b16 %v6354, %v6346
    %v6995 = vpack.c.b16 %v6355, %v6347
    %v6996 = vpack.c.b16 %v6356, %v6348
    %v6997 = vpack.c.b16 %v6357, %v6349
    %v6998 = vpack.c.b16 %v6366, %v6358
    %v6999 = vpack.c.b16 %v6367, %v6359
    %v7000 = vpack.c.b16 %v6368, %v6360
    %v7001 = vpack.c.b16 %v6369, %v6361
    %v7002 = vpack.c.b16 %v6370, %v6362
    %v7003 = vpack.c.b16 %v6371, %v6363
    %v7004 = vpack.c.b16 %v6372, %v6364
    %v7005 = vpack.c.b16 %v6373, %v6365
    %v7006 = vpack.c.b16 %v6382, %v6374
    %v7007 = vpack.c.b16 %v6383, %v6375
    %v7008 = vpack.c.b16 %v6384, %v6376
    %v7009 = vpack.c.b16 %v6385, %v6377
    %v7010 = vpack.c.b16 %v6386, %v6378
    %v7011 = vpack.c.b16 %v6387, %v6379
    %v7012 = vpack.c.b16 %v6388, %v6380
    %v7013 = vpack.c.b16 %v6389, %v6381
    %v7014 = vpack.c.b16 %v6398, %v6390
    %v7015 = vpack.c.b16 %v6399, %v6391
    %v7016 = vpack.c.b16 %v6400, %v6392
    %v7017 = vpack.c.b16 %v6401, %v6393
    %v7018 = vpack.c.b16 %v6402, %v6394
    %v7019 = vpack.c.b16 %v6403, %v6395
    %v7020 = vpack.c.b16 %v6404, %v6396
    %v7021 = vpack.c.b16 %v6405, %v6397
    %v7022 = vpack.c.b16 %v6414, %v6406
    %v7023 = vpack.c.b16 %v6415, %v6407
    %v7024 = vpack.c.b16 %v6416, %v6408
    %v7025 = vpack.c.b16 %v6417, %v6409
    %v7026 = vpack.c.b16 %v6418, %v6410
    %v7027 = vpack.c.b16 %v6419, %v6411
    %v7028 = vpack.c.b16 %v6420, %v6412
    %v7029 = vpack.c.b16 %v6421, %v6413
    %v7030 = vpack.c.b16 %v6430, %v6422
    %v7031 = vpack.c.b16 %v6431, %v6423
    %v7032 = vpack.c.b16 %v6432, %v6424
    %v7033 = vpack.c.b16 %v6433, %v6425
    %v7034 = vpack.c.b16 %v6434, %v6426
    %v7035 = vpack.c.b16 %v6435, %v6427
    %v7036 = vpack.c.b16 %v6436, %v6428
    %v7037 = vpack.c.b16 %v6437, %v6429
    %v7038 = vpack.c.b16 %v6446, %v6438
    %v7039 = vpack.c.b16 %v6447, %v6439
    %v7040 = vpack.c.b16 %v6448, %v6440
    %v7041 = vpack.c.b16 %v6449, %v6441
    %v7042 = vpack.c.b16 %v6450, %v6442
    %v7043 = vpack.c.b16 %v6451, %v6443
    %v7044 = vpack.c.b16 %v6452, %v6444
    %v7045 = vpack.c.b16 %v6453, %v6445
    %v7046 = vpack.c.b16 %v6462, %v6454
    %v7047 = vpack.c.b16 %v6463, %v6455
    %v7048 = vpack.c.b16 %v6464, %v6456
    %v7049 = vpack.c.b16 %v6465, %v6457
    %v7050 = vpack.c.b16 %v6466, %v6458
    %v7051 = vpack.c.b16 %v6467, %v6459
    %v7052 = vpack.c.b16 %v6468, %v6460
    %v7053 = vpack.c.b16 %v6469, %v6461
    %v7054 = vpack.c.b16 %v6478, %v6470
    %v7055 = vpack.c.b16 %v6479, %v6471
    %v7056 = vpack.c.b16 %v6480, %v6472
    %v7057 = vpack.c.b16 %v6481, %v6473
    %v7058 = vpack.c.b16 %v6482, %v6474
    %v7059 = vpack.c.b16 %v6483, %v6475
    %v7060 = vpack.c.b16 %v6484, %v6476
    %v7061 = vpack.c.b16 %v6485, %v6477
    %v7062 = vpack.c.b16 %v6494, %v6486
    %v7063 = vpack.c.b16 %v6495, %v6487
    %v7064 = vpack.c.b16 %v6496, %v6488
    %v7065 = vpack.c.b16 %v6497, %v6489
    %v7066 = vpack.c.b16 %v6498, %v6490
    %v7067 = vpack.c.b16 %v6499, %v6491
    %v7068 = vpack.c.b16 %v6500, %v6492
    %v7069 = vpack.c.b16 %v6501, %v6493
    %v7070 = vpack.c.b16 %v6510, %v6502
    %v7071 = vpack.c.b16 %v6511, %v6503
    %v7072 = vpack.c.b16 %v6512, %v6504
    %v7073 = vpack.c.b16 %v6513, %v6505
    %v7074 = vpack.c.b16 %v6514, %v6506
    %v7075 = vpack.c.b16 %v6515, %v6507
    %v7076 = vpack.c.b16 %v6516, %v6508
    %v7077 = vpack.c.b16 %v6517, %v6509
    %v7078 = vpack.c.b16 %v6526, %v6518
    %v7079 = vpack.c.b16 %v6527, %v6519
    %v7080 = vpack.c.b16 %v6528, %v6520
    %v7081 = vpack.c.b16 %v6529, %v6521
    %v7082 = vpack.c.b16 %v6530, %v6522
    %v7083 = vpack.c.b16 %v6531, %v6523
    %v7084 = vpack.c.b16 %v6532, %v6524
    %v7085 = vpack.c.b16 %v6533, %v6525
    %v7086 = vpack.c.b16 %v6542, %v6534
    %v7087 = vpack.c.b16 %v6543, %v6535
    %v7088 = vpack.c.b16 %v6544, %v6536
    %v7089 = vpack.c.b16 %v6545, %v6537
    %v7090 = vpack.c.b16 %v6546, %v6538
    %v7091 = vpack.c.b16 %v6547, %v6539
    %v7092 = vpack.c.b16 %v6548, %v6540
    %v7093 = vpack.c.b16 %v6549, %v6541
    %v7094 = vpack.c.b16 %v6558, %v6550
    %v7095 = vpack.c.b16 %v6559, %v6551
    %v7096 = vpack.c.b16 %v6560, %v6552
    %v7097 = vpack.c.b16 %v6561, %v6553
    %v7098 = vpack.c.b16 %v6562, %v6554
    %v7099 = vpack.c.b16 %v6563, %v6555
    %v7100 = vpack.c.b16 %v6564, %v6556
    %v7101 = vpack.c.b16 %v6565, %v6557
    %v7102 = vpack.c.b16 %v6574, %v6566
    %v7103 = vpack.c.b16 %v6575, %v6567
    %v7104 = vpack.c.b16 %v6576, %v6568
    %v7105 = vpack.c.b16 %v6577, %v6569
    %v7106 = vpack.c.b16 %v6578, %v6570
    %v7107 = vpack.c.b16 %v6579, %v6571
    %v7108 = vpack.c.b16 %v6580, %v6572
    %v7109 = vpack.c.b16 %v6581, %v6573
    %v7110 = vpack.c.b16 %v6590, %v6582
    %v7111 = vpack.c.b16 %v6591, %v6583
    %v7112 = vpack.c.b16 %v6592, %v6584
    %v7113 = vpack.c.b16 %v6593, %v6585
    %v7114 = vpack.c.b16 %v6594, %v6586
    %v7115 = vpack.c.b16 %v6595, %v6587
    %v7116 = vpack.c.b16 %v6596, %v6588
    %v7117 = vpack.c.b16 %v6597, %v6589
    %v7118 = vpack.c.b16 %v6606, %v6598
    %v7119 = vpack.c.b16 %v6607, %v6599
    %v7120 = vpack.c.b16 %v6608, %v6600
    %v7121 = vpack.c.b16 %v6609, %v6601
    %v7122 = vpack.c.b16 %v6610, %v6602
    %v7123 = vpack.c.b16 %v6611, %v6603
    %v7124 = vpack.c.b16 %v6612, %v6604
    %v7125 = vpack.c.b16 %v6613, %v6605
    %7638 = vmatprep.subr.bf16.mxu0 %v6671
    %7639 = vmatpush1.bf16.msra.mxu0 %v6670
    %7640 = vmatprep.subr.bf16.mxu0 %v6663
    %7641 = vmatpush1.bf16.msra.mxu0 %v6662
    %7642 = vmatprep.subr.bf16.mxu0 %v6655
    %7643 = vmatpush1.bf16.msra.mxu0 %v6654
    %7644 = vmatprep.subr.bf16.mxu0 %v6647
    %7645 = vmatpush1.bf16.msra.mxu0 %v6646
    %7646 = vmatprep.subr.bf16.mxu0 %v6639
    %7647 = vmatpush1.bf16.msra.mxu0 %v6638
    %7648 = vmatprep.subr.bf16.mxu0 %v6631
    %7649 = vmatpush1.bf16.msra.mxu0 %v6630
    %7650 = vmatprep.subr.bf16.mxu0 %v6623
    %7651 = vmatpush1.bf16.msra.mxu0 %v6622
    %7652 = vmatprep.subr.bf16.mxu0 %v6615
    %7653 = vmatpush1.bf16.msra.mxu0 %v6614
    %7654 = vmatprep.subr.bf16.mxu0 %v6735
    %7655 = vmatpush2.bf16.msra.mxu0 %v6734
    %7656 = vmatprep.subr.bf16.mxu0 %v6727
    %7657 = vmatpush2.bf16.msra.mxu0 %v6726
    %7658 = vmatprep.subr.bf16.mxu0 %v6719
    %7659 = vmatpush2.bf16.msra.mxu0 %v6718
    %7660 = vmatprep.subr.bf16.mxu0 %v6711
    %7661 = vmatpush2.bf16.msra.mxu0 %v6710
    %7662 = vmatprep.subr.bf16.mxu0 %v6703
    %7663 = vmatpush2.bf16.msra.mxu0 %v6702
    %7664 = vmatprep.subr.bf16.mxu0 %v6695
    %7665 = vmatpush2.bf16.msra.mxu0 %v6694
    %7666 = vmatprep.subr.bf16.mxu0 %v6687
    %7667 = vmatpush2.bf16.msra.mxu0 %v6686
    %7668 = vmatprep.subr.bf16.mxu0 %v6679
    %7669 = vmatpush2.bf16.msra.mxu0 %v6678
    %7670 = vmatprep.mubr.bf16.mxu0 %v4487
    %7671 = vmatmul.mubr.bf16.gmra.mxu0 %v4486
    %v7672 = vpop.f32.mrf.mxu0
    %v7673 = vadd.f32 %v5049, %v7672
    %v7674 = vpop.f32.mrf.mxu0
    %v7675 = vadd.f32 %v5053, %v7674
    %v7676 = vpop.f32.mrf.mxu0
    %v7677 = vpop.f32.mrf.mxu0
    %7678 = vdwg.mxu0
    %7679 = vmatprep.subr.bf16.mxu0 %v6799
    %7680 = vmatpush1.bf16.msra.mxu0 %v6798
    %7681 = vmatprep.subr.bf16.mxu0 %v6791
    %7682 = vmatpush1.bf16.msra.mxu0 %v6790
    %7683 = vmatprep.subr.bf16.mxu0 %v6783
    %7684 = vmatpush1.bf16.msra.mxu0 %v6782
    %7685 = vmatprep.subr.bf16.mxu0 %v6775
    %7686 = vmatpush1.bf16.msra.mxu0 %v6774
    %7687 = vmatprep.subr.bf16.mxu0 %v6767
    %7688 = vmatpush1.bf16.msra.mxu0 %v6766
    %7689 = vmatprep.subr.bf16.mxu0 %v6759
    %7690 = vmatpush1.bf16.msra.mxu0 %v6758
    %7691 = vmatprep.subr.bf16.mxu0 %v6751
    %7692 = vmatpush1.bf16.msra.mxu0 %v6750
    %7693 = vmatprep.subr.bf16.mxu0 %v6743
    %7694 = vmatpush1.bf16.msra.mxu0 %v6742
    %7695 = vmatprep.subr.bf16.mxu0 %v6863
    %7696 = vmatpush2.bf16.msra.mxu0 %v6862
    %7697 = vmatprep.subr.bf16.mxu0 %v6855
    %7698 = vmatpush2.bf16.msra.mxu0 %v6854
    %7699 = vmatprep.subr.bf16.mxu0 %v6847
    %7700 = vmatpush2.bf16.msra.mxu0 %v6846
    %7701 = vmatprep.subr.bf16.mxu0 %v6839
    %7702 = vmatpush2.bf16.msra.mxu0 %v6838
    %7703 = vmatprep.subr.bf16.mxu0 %v6831
    %7704 = vmatpush2.bf16.msra.mxu0 %v6830
    %7705 = vmatprep.subr.bf16.mxu0 %v6823
    %7706 = vmatpush2.bf16.msra.mxu0 %v6822
    %7707 = vmatprep.subr.bf16.mxu0 %v6815
    %7708 = vmatpush2.bf16.msra.mxu0 %v6814
    %7709 = vmatprep.subr.bf16.mxu0 %v6807
    %7710 = vmatpush2.bf16.msra.mxu0 %v6806
    %7711 = vmatprep.mubr.bf16.mxu0 %v4489
    %7712 = vmatmul.mubr.bf16.gmra.mxu0 %v4488
    %v7713 = vpop.f32.mrf.mxu0
    %v7714 = vadd.f32 %v7673, %v7713
    %v7715 = vpop.f32.mrf.mxu0
    %v7716 = vadd.f32 %v7675, %v7715
    %v7717 = vpop.f32.mrf.mxu0
    %v7718 = vpop.f32.mrf.mxu0
    %7719 = vdwg.mxu0
    %7720 = vmatprep.subr.bf16.mxu0 %v6927
    %7721 = vmatpush1.bf16.msra.mxu0 %v6926
    %7722 = vmatprep.subr.bf16.mxu0 %v6919
    %7723 = vmatpush1.bf16.msra.mxu0 %v6918
    %7724 = vmatprep.subr.bf16.mxu0 %v6911
    %7725 = vmatpush1.bf16.msra.mxu0 %v6910
    %7726 = vmatprep.subr.bf16.mxu0 %v6903
    %7727 = vmatpush1.bf16.msra.mxu0 %v6902
    %7728 = vmatprep.subr.bf16.mxu0 %v6895
    %7729 = vmatpush1.bf16.msra.mxu0 %v6894
    %7730 = vmatprep.subr.bf16.mxu0 %v6887
    %7731 = vmatpush1.bf16.msra.mxu0 %v6886
    %7732 = vmatprep.subr.bf16.mxu0 %v6879
    %7733 = vmatpush1.bf16.msra.mxu0 %v6878
    %7734 = vmatprep.subr.bf16.mxu0 %v6871
    %7735 = vmatpush1.bf16.msra.mxu0 %v6870
    %7736 = vmatprep.subr.bf16.mxu0 %v6991
    %7737 = vmatpush2.bf16.msra.mxu0 %v6990
    %7738 = vmatprep.subr.bf16.mxu0 %v6983
    %7739 = vmatpush2.bf16.msra.mxu0 %v6982
    %7740 = vmatprep.subr.bf16.mxu0 %v6975
    %7741 = vmatpush2.bf16.msra.mxu0 %v6974
    %7742 = vmatprep.subr.bf16.mxu0 %v6967
    %7743 = vmatpush2.bf16.msra.mxu0 %v6966
    %7744 = vmatprep.subr.bf16.mxu0 %v6959
    %7745 = vmatpush2.bf16.msra.mxu0 %v6958
    %7746 = vmatprep.subr.bf16.mxu0 %v6951
    %7747 = vmatpush2.bf16.msra.mxu0 %v6950
    %7748 = vmatprep.subr.bf16.mxu0 %v6943
    %7749 = vmatpush2.bf16.msra.mxu0 %v6942
    %7750 = vmatprep.subr.bf16.mxu0 %v6935
    %7751 = vmatpush2.bf16.msra.mxu0 %v6934
    %7752 = vmatprep.mubr.bf16.mxu0 %v4491
    %7753 = vmatmul.mubr.bf16.gmra.mxu0 %v4490
    %v7754 = vpop.f32.mrf.mxu0
    %v7755 = vadd.f32 %v7714, %v7754
    %v7756 = vpop.f32.mrf.mxu0
    %v7757 = vadd.f32 %v7716, %v7756
    %v7758 = vpop.f32.mrf.mxu0
    %v7759 = vpop.f32.mrf.mxu0
    %7760 = vdwg.mxu0
    %7761 = vmatprep.subr.bf16.mxu0 %v7055
    %7762 = vmatpush1.bf16.msra.mxu0 %v7054
    %7763 = vmatprep.subr.bf16.mxu0 %v7047
    %7764 = vmatpush1.bf16.msra.mxu0 %v7046
    %7765 = vmatprep.subr.bf16.mxu0 %v7039
    %7766 = vmatpush1.bf16.msra.mxu0 %v7038
    %7767 = vmatprep.subr.bf16.mxu0 %v7031
    %7768 = vmatpush1.bf16.msra.mxu0 %v7030
    %7769 = vmatprep.subr.bf16.mxu0 %v7023
    %7770 = vmatpush1.bf16.msra.mxu0 %v7022
    %7771 = vmatprep.subr.bf16.mxu0 %v7015
    %7772 = vmatpush1.bf16.msra.mxu0 %v7014
    %7773 = vmatprep.subr.bf16.mxu0 %v7007
    %7774 = vmatpush1.bf16.msra.mxu0 %v7006
    %7775 = vmatprep.subr.bf16.mxu0 %v6999
    %7776 = vmatpush1.bf16.msra.mxu0 %v6998
    %7777 = vmatprep.subr.bf16.mxu0 %v7119
    %7778 = vmatpush2.bf16.msra.mxu0 %v7118
    %7779 = vmatprep.subr.bf16.mxu0 %v7111
    %7780 = vmatpush2.bf16.msra.mxu0 %v7110
    %7781 = vmatprep.subr.bf16.mxu0 %v7103
    %7782 = vmatpush2.bf16.msra.mxu0 %v7102
    %7783 = vmatprep.subr.bf16.mxu0 %v7095
    %7784 = vmatpush2.bf16.msra.mxu0 %v7094
    %7785 = vmatprep.subr.bf16.mxu0 %v7087
    %7786 = vmatpush2.bf16.msra.mxu0 %v7086
    %7787 = vmatprep.subr.bf16.mxu0 %v7079
    %7788 = vmatpush2.bf16.msra.mxu0 %v7078
    %7789 = vmatprep.subr.bf16.mxu0 %v7071
    %7790 = vmatpush2.bf16.msra.mxu0 %v7070
    %7791 = vmatprep.subr.bf16.mxu0 %v7063
    %7792 = vmatpush2.bf16.msra.mxu0 %v7062
    %7793 = vmatprep.mubr.bf16.mxu0 %v4493
    %7794 = vmatmul.mubr.bf16.gmra.mxu0 %v4492
    %v7795 = vpop.f32.mrf.mxu0
    %v7796 = vadd.f32 %v7755, %v7795
    %v7797 = vpop.f32.mrf.mxu0
    %v7798 = vadd.f32 %v7757, %v7797
    %v7799 = vpop.f32.mrf.mxu0
    %v7800 = vpop.f32.mrf.mxu0
    %7801 = vdwg.mxu0
    %7802 = vmatprep.subr.bf16.mxu0 %v6673
    %7803 = vmatpush1.bf16.msra.mxu0 %v6672
    %7804 = vmatprep.subr.bf16.mxu0 %v6665
    %7805 = vmatpush1.bf16.msra.mxu0 %v6664
    %7806 = vmatprep.subr.bf16.mxu0 %v6657
    %7807 = vmatpush1.bf16.msra.mxu0 %v6656
    %7808 = vmatprep.subr.bf16.mxu0 %v6649
    %7809 = vmatpush1.bf16.msra.mxu0 %v6648
    %7810 = vmatprep.subr.bf16.mxu0 %v6641
    %7811 = vmatpush1.bf16.msra.mxu0 %v6640
    %7812 = vmatprep.subr.bf16.mxu0 %v6633
    %7813 = vmatpush1.bf16.msra.mxu0 %v6632
    %7814 = vmatprep.subr.bf16.mxu0 %v6625
    %7815 = vmatpush1.bf16.msra.mxu0 %v6624
    %7816 = vmatprep.subr.bf16.mxu0 %v6617
    %7817 = vmatpush1.bf16.msra.mxu0 %v6616
    %7818 = vmatprep.subr.bf16.mxu0 %v6737
    %7819 = vmatpush2.bf16.msra.mxu0 %v6736
    %7820 = vmatprep.subr.bf16.mxu0 %v6729
    %7821 = vmatpush2.bf16.msra.mxu0 %v6728
    %7822 = vmatprep.subr.bf16.mxu0 %v6721
    %7823 = vmatpush2.bf16.msra.mxu0 %v6720
    %7824 = vmatprep.subr.bf16.mxu0 %v6713
    %7825 = vmatpush2.bf16.msra.mxu0 %v6712
    %7826 = vmatprep.subr.bf16.mxu0 %v6705
    %7827 = vmatpush2.bf16.msra.mxu0 %v6704
    %7828 = vmatprep.subr.bf16.mxu0 %v6697
    %7829 = vmatpush2.bf16.msra.mxu0 %v6696
    %7830 = vmatprep.subr.bf16.mxu0 %v6689
    %7831 = vmatpush2.bf16.msra.mxu0 %v6688
    %7832 = vmatprep.subr.bf16.mxu0 %v6681
    %7833 = vmatpush2.bf16.msra.mxu0 %v6680
    %7834 = vmatprep.mubr.bf16.mxu0 %v4487
    %7835 = vmatmul.mubr.bf16.gmra.mxu0 %v4486
    %v7836 = vpop.f32.mrf.mxu0
    %v7837 = vadd.f32 %v5057, %v7836
    %v7838 = vpop.f32.mrf.mxu0
    %v7839 = vadd.f32 %v5061, %v7838
    %v7840 = vpop.f32.mrf.mxu0
    %v7841 = vpop.f32.mrf.mxu0
    %7842 = vdwg.mxu0
    %7843 = vmatprep.subr.bf16.mxu0 %v6801
    %7844 = vmatpush1.bf16.msra.mxu0 %v6800
    %7845 = vmatprep.subr.bf16.mxu0 %v6793
    %7846 = vmatpush1.bf16.msra.mxu0 %v6792
    %7847 = vmatprep.subr.bf16.mxu0 %v6785
    %7848 = vmatpush1.bf16.msra.mxu0 %v6784
    %7849 = vmatprep.subr.bf16.mxu0 %v6777
    %7850 = vmatpush1.bf16.msra.mxu0 %v6776
    %7851 = vmatprep.subr.bf16.mxu0 %v6769
    %7852 = vmatpush1.bf16.msra.mxu0 %v6768
    %7853 = vmatprep.subr.bf16.mxu0 %v6761
    %7854 = vmatpush1.bf16.msra.mxu0 %v6760
    %7855 = vmatprep.subr.bf16.mxu0 %v6753
    %7856 = vmatpush1.bf16.msra.mxu0 %v6752
    %7857 = vmatprep.subr.bf16.mxu0 %v6745
    %7858 = vmatpush1.bf16.msra.mxu0 %v6744
    %7859 = vmatprep.subr.bf16.mxu0 %v6865
    %7860 = vmatpush2.bf16.msra.mxu0 %v6864
    %7861 = vmatprep.subr.bf16.mxu0 %v6857
    %7862 = vmatpush2.bf16.msra.mxu0 %v6856
    %7863 = vmatprep.subr.bf16.mxu0 %v6849
    %7864 = vmatpush2.bf16.msra.mxu0 %v6848
    %7865 = vmatprep.subr.bf16.mxu0 %v6841
    %7866 = vmatpush2.bf16.msra.mxu0 %v6840
    %7867 = vmatprep.subr.bf16.mxu0 %v6833
    %7868 = vmatpush2.bf16.msra.mxu0 %v6832
    %7869 = vmatprep.subr.bf16.mxu0 %v6825
    %7870 = vmatpush2.bf16.msra.mxu0 %v6824
    %7871 = vmatprep.subr.bf16.mxu0 %v6817
    %7872 = vmatpush2.bf16.msra.mxu0 %v6816
    %7873 = vmatprep.subr.bf16.mxu0 %v6809
    %7874 = vmatpush2.bf16.msra.mxu0 %v6808
    %7875 = vmatprep.mubr.bf16.mxu0 %v4489
    %7876 = vmatmul.mubr.bf16.gmra.mxu0 %v4488
    %v7877 = vpop.f32.mrf.mxu0
    %v7878 = vadd.f32 %v7837, %v7877
    %v7879 = vpop.f32.mrf.mxu0
    %v7880 = vadd.f32 %v7839, %v7879
    %v7881 = vpop.f32.mrf.mxu0
    %v7882 = vpop.f32.mrf.mxu0
    %7883 = vdwg.mxu0
    %7884 = vmatprep.subr.bf16.mxu0 %v6929
    %7885 = vmatpush1.bf16.msra.mxu0 %v6928
    %7886 = vmatprep.subr.bf16.mxu0 %v6921
    %7887 = vmatpush1.bf16.msra.mxu0 %v6920
    %7888 = vmatprep.subr.bf16.mxu0 %v6913
    %7889 = vmatpush1.bf16.msra.mxu0 %v6912
    %7890 = vmatprep.subr.bf16.mxu0 %v6905
    %7891 = vmatpush1.bf16.msra.mxu0 %v6904
    %7892 = vmatprep.subr.bf16.mxu0 %v6897
    %7893 = vmatpush1.bf16.msra.mxu0 %v6896
    %7894 = vmatprep.subr.bf16.mxu0 %v6889
    %7895 = vmatpush1.bf16.msra.mxu0 %v6888
    %7896 = vmatprep.subr.bf16.mxu0 %v6881
    %7897 = vmatpush1.bf16.msra.mxu0 %v6880
    %7898 = vmatprep.subr.bf16.mxu0 %v6873
    %7899 = vmatpush1.bf16.msra.mxu0 %v6872
    %7900 = vmatprep.subr.bf16.mxu0 %v6993
    %7901 = vmatpush2.bf16.msra.mxu0 %v6992
    %7902 = vmatprep.subr.bf16.mxu0 %v6985
    %7903 = vmatpush2.bf16.msra.mxu0 %v6984
    %7904 = vmatprep.subr.bf16.mxu0 %v6977
    %7905 = vmatpush2.bf16.msra.mxu0 %v6976
    %7906 = vmatprep.subr.bf16.mxu0 %v6969
    %7907 = vmatpush2.bf16.msra.mxu0 %v6968
    %7908 = vmatprep.subr.bf16.mxu0 %v6961
    %7909 = vmatpush2.bf16.msra.mxu0 %v6960
    %7910 = vmatprep.subr.bf16.mxu0 %v6953
    %7911 = vmatpush2.bf16.msra.mxu0 %v6952
    %7912 = vmatprep.subr.bf16.mxu0 %v6945
    %7913 = vmatpush2.bf16.msra.mxu0 %v6944
    %7914 = vmatprep.subr.bf16.mxu0 %v6937
    %7915 = vmatpush2.bf16.msra.mxu0 %v6936
    %7916 = vmatprep.mubr.bf16.mxu0 %v4491
    %7917 = vmatmul.mubr.bf16.gmra.mxu0 %v4490
    %v7918 = vpop.f32.mrf.mxu0
    %v7919 = vadd.f32 %v7878, %v7918
    %v7920 = vpop.f32.mrf.mxu0
    %v7921 = vadd.f32 %v7880, %v7920
    %v7922 = vpop.f32.mrf.mxu0
    %v7923 = vpop.f32.mrf.mxu0
    %7924 = vdwg.mxu0
    %7925 = vmatprep.subr.bf16.mxu0 %v7057
    %7926 = vmatpush1.bf16.msra.mxu0 %v7056
    %7927 = vmatprep.subr.bf16.mxu0 %v7049
    %7928 = vmatpush1.bf16.msra.mxu0 %v7048
    %7929 = vmatprep.subr.bf16.mxu0 %v7041
    %7930 = vmatpush1.bf16.msra.mxu0 %v7040
    %7931 = vmatprep.subr.bf16.mxu0 %v7033
    %7932 = vmatpush1.bf16.msra.mxu0 %v7032
    %7933 = vmatprep.subr.bf16.mxu0 %v7025
    %7934 = vmatpush1.bf16.msra.mxu0 %v7024
    %7935 = vmatprep.subr.bf16.mxu0 %v7017
    %7936 = vmatpush1.bf16.msra.mxu0 %v7016
    %7937 = vmatprep.subr.bf16.mxu0 %v7009
    %7938 = vmatpush1.bf16.msra.mxu0 %v7008
    %7939 = vmatprep.subr.bf16.mxu0 %v7001
    %7940 = vmatpush1.bf16.msra.mxu0 %v7000
    %7941 = vmatprep.subr.bf16.mxu0 %v7121
    %7942 = vmatpush2.bf16.msra.mxu0 %v7120
    %7943 = vmatprep.subr.bf16.mxu0 %v7113
    %7944 = vmatpush2.bf16.msra.mxu0 %v7112
    %7945 = vmatprep.subr.bf16.mxu0 %v7105
    %7946 = vmatpush2.bf16.msra.mxu0 %v7104
    %7947 = vmatprep.subr.bf16.mxu0 %v7097
    %7948 = vmatpush2.bf16.msra.mxu0 %v7096
    %7949 = vmatprep.subr.bf16.mxu0 %v7089
    %7950 = vmatpush2.bf16.msra.mxu0 %v7088
    %7951 = vmatprep.subr.bf16.mxu0 %v7081
    %7952 = vmatpush2.bf16.msra.mxu0 %v7080
    %7953 = vmatprep.subr.bf16.mxu0 %v7073
    %7954 = vmatpush2.bf16.msra.mxu0 %v7072
    %7955 = vmatprep.subr.bf16.mxu0 %v7065
    %7956 = vmatpush2.bf16.msra.mxu0 %v7064
    %7957 = vmatprep.mubr.bf16.mxu0 %v4493
    %7958 = vmatmul.mubr.bf16.gmra.mxu0 %v4492
    %v7959 = vpop.f32.mrf.mxu0
    %v7960 = vadd.f32 %v7919, %v7959
    %v7961 = vpop.f32.mrf.mxu0
    %v7962 = vadd.f32 %v7921, %v7961
    %v7963 = vpop.f32.mrf.mxu0
    %v7964 = vpop.f32.mrf.mxu0
    %7965 = vdwg.mxu0
    %7966 = vmatprep.subr.bf16.mxu0 %v6675
    %7967 = vmatpush1.bf16.msra.mxu0 %v6674
    %7968 = vmatprep.subr.bf16.mxu0 %v6667
    %7969 = vmatpush1.bf16.msra.mxu0 %v6666
    %7970 = vmatprep.subr.bf16.mxu0 %v6659
    %7971 = vmatpush1.bf16.msra.mxu0 %v6658
    %7972 = vmatprep.subr.bf16.mxu0 %v6651
    %7973 = vmatpush1.bf16.msra.mxu0 %v6650
    %7974 = vmatprep.subr.bf16.mxu0 %v6643
    %7975 = vmatpush1.bf16.msra.mxu0 %v6642
    %7976 = vmatprep.subr.bf16.mxu0 %v6635
    %7977 = vmatpush1.bf16.msra.mxu0 %v6634
    %7978 = vmatprep.subr.bf16.mxu0 %v6627
    %7979 = vmatpush1.bf16.msra.mxu0 %v6626
    %7980 = vmatprep.subr.bf16.mxu0 %v6619
    %7981 = vmatpush1.bf16.msra.mxu0 %v6618
    %7982 = vmatprep.subr.bf16.mxu0 %v6739
    %7983 = vmatpush2.bf16.msra.mxu0 %v6738
    %7984 = vmatprep.subr.bf16.mxu0 %v6731
    %7985 = vmatpush2.bf16.msra.mxu0 %v6730
    %7986 = vmatprep.subr.bf16.mxu0 %v6723
    %7987 = vmatpush2.bf16.msra.mxu0 %v6722
    %7988 = vmatprep.subr.bf16.mxu0 %v6715
    %7989 = vmatpush2.bf16.msra.mxu0 %v6714
    %7990 = vmatprep.subr.bf16.mxu0 %v6707
    %7991 = vmatpush2.bf16.msra.mxu0 %v6706
    %7992 = vmatprep.subr.bf16.mxu0 %v6699
    %7993 = vmatpush2.bf16.msra.mxu0 %v6698
    %7994 = vmatprep.subr.bf16.mxu0 %v6691
    %7995 = vmatpush2.bf16.msra.mxu0 %v6690
    %7996 = vmatprep.subr.bf16.mxu0 %v6683
    %7997 = vmatpush2.bf16.msra.mxu0 %v6682
    %7998 = vmatprep.mubr.bf16.mxu0 %v4487
    %7999 = vmatmul.mubr.bf16.gmra.mxu0 %v4486
    %v8000 = vpop.f32.mrf.mxu0
    %v8001 = vadd.f32 %v5065, %v8000
    %v8002 = vpop.f32.mrf.mxu0
    %v8003 = vadd.f32 %v5069, %v8002
    %v8004 = vpop.f32.mrf.mxu0
    %v8005 = vpop.f32.mrf.mxu0
    %8006 = vdwg.mxu0
    %8007 = vmatprep.subr.bf16.mxu0 %v6803
    %8008 = vmatpush1.bf16.msra.mxu0 %v6802
    %8009 = vmatprep.subr.bf16.mxu0 %v6795
    %8010 = vmatpush1.bf16.msra.mxu0 %v6794
    %8011 = vmatprep.subr.bf16.mxu0 %v6787
    %8012 = vmatpush1.bf16.msra.mxu0 %v6786
    %8013 = vmatprep.subr.bf16.mxu0 %v6779
    %8014 = vmatpush1.bf16.msra.mxu0 %v6778
    %8015 = vmatprep.subr.bf16.mxu0 %v6771
    %8016 = vmatpush1.bf16.msra.mxu0 %v6770
    %8017 = vmatprep.subr.bf16.mxu0 %v6763
    %8018 = vmatpush1.bf16.msra.mxu0 %v6762
    %8019 = vmatprep.subr.bf16.mxu0 %v6755
    %8020 = vmatpush1.bf16.msra.mxu0 %v6754
    %8021 = vmatprep.subr.bf16.mxu0 %v6747
    %8022 = vmatpush1.bf16.msra.mxu0 %v6746
    %8023 = vmatprep.subr.bf16.mxu0 %v6867
    %8024 = vmatpush2.bf16.msra.mxu0 %v6866
    %8025 = vmatprep.subr.bf16.mxu0 %v6859
    %8026 = vmatpush2.bf16.msra.mxu0 %v6858
    %8027 = vmatprep.subr.bf16.mxu0 %v6851
    %8028 = vmatpush2.bf16.msra.mxu0 %v6850
    %8029 = vmatprep.subr.bf16.mxu0 %v6843
    %8030 = vmatpush2.bf16.msra.mxu0 %v6842
    %8031 = vmatprep.subr.bf16.mxu0 %v6835
    %8032 = vmatpush2.bf16.msra.mxu0 %v6834
    %8033 = vmatprep.subr.bf16.mxu0 %v6827
    %8034 = vmatpush2.bf16.msra.mxu0 %v6826
    %8035 = vmatprep.subr.bf16.mxu0 %v6819
    %8036 = vmatpush2.bf16.msra.mxu0 %v6818
    %8037 = vmatprep.subr.bf16.mxu0 %v6811
    %8038 = vmatpush2.bf16.msra.mxu0 %v6810
    %8039 = vmatprep.mubr.bf16.mxu0 %v4489
    %8040 = vmatmul.mubr.bf16.gmra.mxu0 %v4488
    %v8041 = vpop.f32.mrf.mxu0
    %v8042 = vadd.f32 %v8001, %v8041
    %v8043 = vpop.f32.mrf.mxu0
    %v8044 = vadd.f32 %v8003, %v8043
    %v8045 = vpop.f32.mrf.mxu0
    %v8046 = vpop.f32.mrf.mxu0
    %8047 = vdwg.mxu0
    %8048 = vmatprep.subr.bf16.mxu0 %v6931
    %8049 = vmatpush1.bf16.msra.mxu0 %v6930
    %8050 = vmatprep.subr.bf16.mxu0 %v6923
    %8051 = vmatpush1.bf16.msra.mxu0 %v6922
    %8052 = vmatprep.subr.bf16.mxu0 %v6915
    %8053 = vmatpush1.bf16.msra.mxu0 %v6914
    %8054 = vmatprep.subr.bf16.mxu0 %v6907
    %8055 = vmatpush1.bf16.msra.mxu0 %v6906
    %8056 = vmatprep.subr.bf16.mxu0 %v6899
    %8057 = vmatpush1.bf16.msra.mxu0 %v6898
    %8058 = vmatprep.subr.bf16.mxu0 %v6891
    %8059 = vmatpush1.bf16.msra.mxu0 %v6890
    %8060 = vmatprep.subr.bf16.mxu0 %v6883
    %8061 = vmatpush1.bf16.msra.mxu0 %v6882
    %8062 = vmatprep.subr.bf16.mxu0 %v6875
    %8063 = vmatpush1.bf16.msra.mxu0 %v6874
    %8064 = vmatprep.subr.bf16.mxu0 %v6995
    %8065 = vmatpush2.bf16.msra.mxu0 %v6994
    %8066 = vmatprep.subr.bf16.mxu0 %v6987
    %8067 = vmatpush2.bf16.msra.mxu0 %v6986
    %8068 = vmatprep.subr.bf16.mxu0 %v6979
    %8069 = vmatpush2.bf16.msra.mxu0 %v6978
    %8070 = vmatprep.subr.bf16.mxu0 %v6971
    %8071 = vmatpush2.bf16.msra.mxu0 %v6970
    %8072 = vmatprep.subr.bf16.mxu0 %v6963
    %8073 = vmatpush2.bf16.msra.mxu0 %v6962
    %8074 = vmatprep.subr.bf16.mxu0 %v6955
    %8075 = vmatpush2.bf16.msra.mxu0 %v6954
    %8076 = vmatprep.subr.bf16.mxu0 %v6947
    %8077 = vmatpush2.bf16.msra.mxu0 %v6946
    %8078 = vmatprep.subr.bf16.mxu0 %v6939
    %8079 = vmatpush2.bf16.msra.mxu0 %v6938
    %8080 = vmatprep.mubr.bf16.mxu0 %v4491
    %8081 = vmatmul.mubr.bf16.gmra.mxu0 %v4490
    %v8082 = vpop.f32.mrf.mxu0
    %v8083 = vadd.f32 %v8042, %v8082
    %v8084 = vpop.f32.mrf.mxu0
    %v8085 = vadd.f32 %v8044, %v8084
    %v8086 = vpop.f32.mrf.mxu0
    %v8087 = vpop.f32.mrf.mxu0
    %8088 = vdwg.mxu0
    %8089 = vmatprep.subr.bf16.mxu0 %v7059
    %8090 = vmatpush1.bf16.msra.mxu0 %v7058
    %8091 = vmatprep.subr.bf16.mxu0 %v7051
    %8092 = vmatpush1.bf16.msra.mxu0 %v7050
    %8093 = vmatprep.subr.bf16.mxu0 %v7043
    %8094 = vmatpush1.bf16.msra.mxu0 %v7042
    %8095 = vmatprep.subr.bf16.mxu0 %v7035
    %8096 = vmatpush1.bf16.msra.mxu0 %v7034
    %8097 = vmatprep.subr.bf16.mxu0 %v7027
    %8098 = vmatpush1.bf16.msra.mxu0 %v7026
    %8099 = vmatprep.subr.bf16.mxu0 %v7019
    %8100 = vmatpush1.bf16.msra.mxu0 %v7018
    %8101 = vmatprep.subr.bf16.mxu0 %v7011
    %8102 = vmatpush1.bf16.msra.mxu0 %v7010
    %8103 = vmatprep.subr.bf16.mxu0 %v7003
    %8104 = vmatpush1.bf16.msra.mxu0 %v7002
    %8105 = vmatprep.subr.bf16.mxu0 %v7123
    %8106 = vmatpush2.bf16.msra.mxu0 %v7122
    %8107 = vmatprep.subr.bf16.mxu0 %v7115
    %8108 = vmatpush2.bf16.msra.mxu0 %v7114
    %8109 = vmatprep.subr.bf16.mxu0 %v7107
    %8110 = vmatpush2.bf16.msra.mxu0 %v7106
    %8111 = vmatprep.subr.bf16.mxu0 %v7099
    %8112 = vmatpush2.bf16.msra.mxu0 %v7098
    %8113 = vmatprep.subr.bf16.mxu0 %v7091
    %8114 = vmatpush2.bf16.msra.mxu0 %v7090
    %8115 = vmatprep.subr.bf16.mxu0 %v7083
    %8116 = vmatpush2.bf16.msra.mxu0 %v7082
    %8117 = vmatprep.subr.bf16.mxu0 %v7075
    %8118 = vmatpush2.bf16.msra.mxu0 %v7074
    %8119 = vmatprep.subr.bf16.mxu0 %v7067
    %8120 = vmatpush2.bf16.msra.mxu0 %v7066
    %8121 = vmatprep.mubr.bf16.mxu0 %v4493
    %8122 = vmatmul.mubr.bf16.gmra.mxu0 %v4492
    %v8123 = vpop.f32.mrf.mxu0
    %v8124 = vadd.f32 %v8083, %v8123
    %v8125 = vpop.f32.mrf.mxu0
    %v8126 = vadd.f32 %v8085, %v8125
    %v8127 = vpop.f32.mrf.mxu0
    %v8128 = vpop.f32.mrf.mxu0
    %8129 = vdwg.mxu0
    %8130 = vmatprep.subr.bf16.mxu0 %v6677
    %8131 = vmatpush1.bf16.msra.mxu0 %v6676
    %8132 = vmatprep.subr.bf16.mxu0 %v6669
    %8133 = vmatpush1.bf16.msra.mxu0 %v6668
    %8134 = vmatprep.subr.bf16.mxu0 %v6661
    %8135 = vmatpush1.bf16.msra.mxu0 %v6660
    %8136 = vmatprep.subr.bf16.mxu0 %v6653
    %8137 = vmatpush1.bf16.msra.mxu0 %v6652
    %8138 = vmatprep.subr.bf16.mxu0 %v6645
    %8139 = vmatpush1.bf16.msra.mxu0 %v6644
    %8140 = vmatprep.subr.bf16.mxu0 %v6637
    %8141 = vmatpush1.bf16.msra.mxu0 %v6636
    %8142 = vmatprep.subr.bf16.mxu0 %v6629
    %8143 = vmatpush1.bf16.msra.mxu0 %v6628
    %8144 = vmatprep.subr.bf16.mxu0 %v6621
    %8145 = vmatpush1.bf16.msra.mxu0 %v6620
    %8146 = vmatprep.subr.bf16.mxu0 %v6741
    %8147 = vmatpush2.bf16.msra.mxu0 %v6740
    %8148 = vmatprep.subr.bf16.mxu0 %v6733
    %8149 = vmatpush2.bf16.msra.mxu0 %v6732
    %8150 = vmatprep.subr.bf16.mxu0 %v6725
    %8151 = vmatpush2.bf16.msra.mxu0 %v6724
    %8152 = vmatprep.subr.bf16.mxu0 %v6717
    %8153 = vmatpush2.bf16.msra.mxu0 %v6716
    %8154 = vmatprep.subr.bf16.mxu0 %v6709
    %8155 = vmatpush2.bf16.msra.mxu0 %v6708
    %8156 = vmatprep.subr.bf16.mxu0 %v6701
    %8157 = vmatpush2.bf16.msra.mxu0 %v6700
    %8158 = vmatprep.subr.bf16.mxu0 %v6693
    %8159 = vmatpush2.bf16.msra.mxu0 %v6692
    %8160 = vmatprep.subr.bf16.mxu0 %v6685
    %8161 = vmatpush2.bf16.msra.mxu0 %v6684
    %8162 = vmatprep.mubr.bf16.mxu0 %v4487
    %8163 = vmatmul.mubr.bf16.gmra.mxu0 %v4486
    %v8164 = vpop.f32.mrf.mxu0
    %v8165 = vadd.f32 %v5073, %v8164
    %v8166 = vpop.f32.mrf.mxu0
    %v8167 = vadd.f32 %v5077, %v8166
    %v8168 = vpop.f32.mrf.mxu0
    %v8169 = vpop.f32.mrf.mxu0
    %8170 = vdwg.mxu0
    %8171 = vmatprep.subr.bf16.mxu0 %v6805
    %8172 = vmatpush1.bf16.msra.mxu0 %v6804
    %8173 = vmatprep.subr.bf16.mxu0 %v6797
    %8174 = vmatpush1.bf16.msra.mxu0 %v6796
    %8175 = vmatprep.subr.bf16.mxu0 %v6789
    %8176 = vmatpush1.bf16.msra.mxu0 %v6788
    %8177 = vmatprep.subr.bf16.mxu0 %v6781
    %8178 = vmatpush1.bf16.msra.mxu0 %v6780
    %8179 = vmatprep.subr.bf16.mxu0 %v6773
    %8180 = vmatpush1.bf16.msra.mxu0 %v6772
    %8181 = vmatprep.subr.bf16.mxu0 %v6765
    %8182 = vmatpush1.bf16.msra.mxu0 %v6764
    %8183 = vmatprep.subr.bf16.mxu0 %v6757
    %8184 = vmatpush1.bf16.msra.mxu0 %v6756
    %8185 = vmatprep.subr.bf16.mxu0 %v6749
    %8186 = vmatpush1.bf16.msra.mxu0 %v6748
    %8187 = vmatprep.subr.bf16.mxu0 %v6869
    %8188 = vmatpush2.bf16.msra.mxu0 %v6868
    %8189 = vmatprep.subr.bf16.mxu0 %v6861
    %8190 = vmatpush2.bf16.msra.mxu0 %v6860
    %8191 = vmatprep.subr.bf16.mxu0 %v6853
    %8192 = vmatpush2.bf16.msra.mxu0 %v6852
    %8193 = vmatprep.subr.bf16.mxu0 %v6845
    %8194 = vmatpush2.bf16.msra.mxu0 %v6844
    %8195 = vmatprep.subr.bf16.mxu0 %v6837
    %8196 = vmatpush2.bf16.msra.mxu0 %v6836
    %8197 = vmatprep.subr.bf16.mxu0 %v6829
    %8198 = vmatpush2.bf16.msra.mxu0 %v6828
    %8199 = vmatprep.subr.bf16.mxu0 %v6821
    %8200 = vmatpush2.bf16.msra.mxu0 %v6820
    %8201 = vmatprep.subr.bf16.mxu0 %v6813
    %8202 = vmatpush2.bf16.msra.mxu0 %v6812
    %8203 = vmatprep.mubr.bf16.mxu0 %v4489
    %8204 = vmatmul.mubr.bf16.gmra.mxu0 %v4488
    %v8205 = vpop.f32.mrf.mxu0
    %v8206 = vadd.f32 %v8165, %v8205
    %v8207 = vpop.f32.mrf.mxu0
    %v8208 = vadd.f32 %v8167, %v8207
    %v8209 = vpop.f32.mrf.mxu0
    %v8210 = vpop.f32.mrf.mxu0
    %8211 = vdwg.mxu0
    %8212 = vmatprep.subr.bf16.mxu0 %v6933
    %8213 = vmatpush1.bf16.msra.mxu0 %v6932
    %8214 = vmatprep.subr.bf16.mxu0 %v6925
    %8215 = vmatpush1.bf16.msra.mxu0 %v6924
    %8216 = vmatprep.subr.bf16.mxu0 %v6917
    %8217 = vmatpush1.bf16.msra.mxu0 %v6916
    %8218 = vmatprep.subr.bf16.mxu0 %v6909
    %8219 = vmatpush1.bf16.msra.mxu0 %v6908
    %8220 = vmatprep.subr.bf16.mxu0 %v6901
    %8221 = vmatpush1.bf16.msra.mxu0 %v6900
    %8222 = vmatprep.subr.bf16.mxu0 %v6893
    %8223 = vmatpush1.bf16.msra.mxu0 %v6892
    %8224 = vmatprep.subr.bf16.mxu0 %v6885
    %8225 = vmatpush1.bf16.msra.mxu0 %v6884
    %8226 = vmatprep.subr.bf16.mxu0 %v6877
    %8227 = vmatpush1.bf16.msra.mxu0 %v6876
    %8228 = vmatprep.subr.bf16.mxu0 %v6997
    %8229 = vmatpush2.bf16.msra.mxu0 %v6996
    %8230 = vmatprep.subr.bf16.mxu0 %v6989
    %8231 = vmatpush2.bf16.msra.mxu0 %v6988
    %8232 = vmatprep.subr.bf16.mxu0 %v6981
    %8233 = vmatpush2.bf16.msra.mxu0 %v6980
    %8234 = vmatprep.subr.bf16.mxu0 %v6973
    %8235 = vmatpush2.bf16.msra.mxu0 %v6972
    %8236 = vmatprep.subr.bf16.mxu0 %v6965
    %8237 = vmatpush2.bf16.msra.mxu0 %v6964
    %8238 = vmatprep.subr.bf16.mxu0 %v6957
    %8239 = vmatpush2.bf16.msra.mxu0 %v6956
    %8240 = vmatprep.subr.bf16.mxu0 %v6949
    %8241 = vmatpush2.bf16.msra.mxu0 %v6948
    %8242 = vmatprep.subr.bf16.mxu0 %v6941
    %8243 = vmatpush2.bf16.msra.mxu0 %v6940
    %8244 = vmatprep.mubr.bf16.mxu0 %v4491
    %8245 = vmatmul.mubr.bf16.gmra.mxu0 %v4490
    %v8246 = vpop.f32.mrf.mxu0
    %v8247 = vadd.f32 %v8206, %v8246
    %v8248 = vpop.f32.mrf.mxu0
    %v8249 = vadd.f32 %v8208, %v8248
    %v8250 = vpop.f32.mrf.mxu0
    %v8251 = vpop.f32.mrf.mxu0
    %8252 = vdwg.mxu0
    %8253 = vmatprep.subr.bf16.mxu0 %v7061
    %8254 = vmatpush1.bf16.msra.mxu0 %v7060
    %8255 = vmatprep.subr.bf16.mxu0 %v7053
    %8256 = vmatpush1.bf16.msra.mxu0 %v7052
    %8257 = vmatprep.subr.bf16.mxu0 %v7045
    %8258 = vmatpush1.bf16.msra.mxu0 %v7044
    %8259 = vmatprep.subr.bf16.mxu0 %v7037
    %8260 = vmatpush1.bf16.msra.mxu0 %v7036
    %8261 = vmatprep.subr.bf16.mxu0 %v7029
    %8262 = vmatpush1.bf16.msra.mxu0 %v7028
    %8263 = vmatprep.subr.bf16.mxu0 %v7021
    %8264 = vmatpush1.bf16.msra.mxu0 %v7020
    %8265 = vmatprep.subr.bf16.mxu0 %v7013
    %8266 = vmatpush1.bf16.msra.mxu0 %v7012
    %8267 = vmatprep.subr.bf16.mxu0 %v7005
    %8268 = vmatpush1.bf16.msra.mxu0 %v7004
    %8269 = vmatprep.subr.bf16.mxu0 %v7125
    %8270 = vmatpush2.bf16.msra.mxu0 %v7124
    %8271 = vmatprep.subr.bf16.mxu0 %v7117
    %8272 = vmatpush2.bf16.msra.mxu0 %v7116
    %8273 = vmatprep.subr.bf16.mxu0 %v7109
    %8274 = vmatpush2.bf16.msra.mxu0 %v7108
    %8275 = vmatprep.subr.bf16.mxu0 %v7101
    %8276 = vmatpush2.bf16.msra.mxu0 %v7100
    %8277 = vmatprep.subr.bf16.mxu0 %v7093
    %8278 = vmatpush2.bf16.msra.mxu0 %v7092
    %8279 = vmatprep.subr.bf16.mxu0 %v7085
    %8280 = vmatpush2.bf16.msra.mxu0 %v7084
    %8281 = vmatprep.subr.bf16.mxu0 %v7077
    %8282 = vmatpush2.bf16.msra.mxu0 %v7076
    %8283 = vmatprep.subr.bf16.mxu0 %v7069
    %8284 = vmatpush2.bf16.msra.mxu0 %v7068
    %8285 = vmatprep.mubr.bf16.mxu0 %v4493
    %8286 = vmatmul.mubr.bf16.gmra.mxu0 %v4492
    %v8287 = vpop.f32.mrf.mxu0
    %v8288 = vadd.f32 %v8247, %v8287
    %v8289 = vpop.f32.mrf.mxu0
    %v8290 = vadd.f32 %v8249, %v8289
    %v8291 = vpop.f32.mrf.mxu0
    %v8292 = vpop.f32.mrf.mxu0
    %8293 = vdwg.mxu0
    %v8294 = vmax.f32 %v7796, 0.0
    %v8295 = vmax.f32 %v7798, 0.0
    %v8296 = vmax.f32 %v7960, 0.0
    %v8297 = vmax.f32 %v7962, 0.0
    %v8298 = vmax.f32 %v8124, 0.0
    %v8299 = vmax.f32 %v8126, 0.0
    %v8300 = vmax.f32 %v8288, 0.0
    %v8301 = vmax.f32 %v8290, 0.0
    %v8302 = vpack.c.bf16 %v8294, %v8294
    %v8303 = vpack.c.bf16 %v8295, %v8295
    %v8304 = vpack.c.bf16 %v8296, %v8296
    %v8305 = vpack.c.bf16 %v8297, %v8297
    %v8306 = vpack.c.bf16 %v8298, %v8298
    %v8307 = vpack.c.bf16 %v8299, %v8299
    %v8308 = vpack.c.bf16 %v8300, %v8300
    %v8309 = vpack.c.bf16 %v8301, %v8301
    %v8310 = vld [vmem:[#allocation4] sm:$0xff]
    %v8311 = vld [vmem:[#allocation4 + $0x8] sm:$0xff]
    %v8312 = vld [vmem:[#allocation4 + $0x10] sm:$0xff]
    %v8313 = vld [vmem:[#allocation4 + $0x18] sm:$0xff]
    %v8314 = vld [vmem:[#allocation4 + $0x20] sm:$0xff]
    %v8315 = vld [vmem:[#allocation4 + $0x28] sm:$0xff]
    %v8316 = vld [vmem:[#allocation4 + $0x30] sm:$0xff]
    %v8317 = vld [vmem:[#allocation4 + $0x38] sm:$0xff]
    %v8318 = vld [vmem:[#allocation4 + $0x40] sm:$0xff]
    %v8319 = vld [vmem:[#allocation4 + $0x48] sm:$0xff]
    %v8320 = vld [vmem:[#allocation4 + $0x50] sm:$0xff]
    %v8321 = vld [vmem:[#allocation4 + $0x58] sm:$0xff]
    %v8322 = vld [vmem:[#allocation4 + $0x60] sm:$0xff]
    %v8323 = vld [vmem:[#allocation4 + $0x68] sm:$0xff]
    %v8324 = vld [vmem:[#allocation4 + $0x70] sm:$0xff]
    %v8325 = vld [vmem:[#allocation4 + $0x78] sm:$0xff]
    %v8326 = vld [vmem:[#allocation4 + $0x80] sm:$0xff]
    %v8327 = vld [vmem:[#allocation4 + $0x88] sm:$0xff]
    %v8328 = vld [vmem:[#allocation4 + $0x90] sm:$0xff]
    %v8329 = vld [vmem:[#allocation4 + $0x98] sm:$0xff]
    %v8330 = vld [vmem:[#allocation4 + $0xa0] sm:$0xff]
    %v8331 = vld [vmem:[#allocation4 + $0xa8] sm:$0xff]
    %v8332 = vld [vmem:[#allocation4 + $0xb0] sm:$0xff]
    %v8333 = vld [vmem:[#allocation4 + $0xb8] sm:$0xff]
    %v8334 = vld [vmem:[#allocation4 + $0xc0] sm:$0xff]
    %v8335 = vld [vmem:[#allocation4 + $0xc8] sm:$0xff]
    %v8336 = vld [vmem:[#allocation4 + $0xd0] sm:$0xff]
    %v8337 = vld [vmem:[#allocation4 + $0xd8] sm:$0xff]
    %v8338 = vld [vmem:[#allocation4 + $0xe0] sm:$0xff]
    %v8339 = vld [vmem:[#allocation4 + $0xe8] sm:$0xff]
    %v8340 = vld [vmem:[#allocation4 + $0xf0] sm:$0xff]
    %v8341 = vld [vmem:[#allocation4 + $0xf8] sm:$0xff]
    %v8342 = vld [vmem:[#allocation4 + $0x100] sm:$0xff]
    %v8343 = vld [vmem:[#allocation4 + $0x108] sm:$0xff]
    %v8344 = vld [vmem:[#allocation4 + $0x110] sm:$0xff]
    %v8345 = vld [vmem:[#allocation4 + $0x118] sm:$0xff]
    %v8346 = vld [vmem:[#allocation4 + $0x120] sm:$0xff]
    %v8347 = vld [vmem:[#allocation4 + $0x128] sm:$0xff]
    %v8348 = vld [vmem:[#allocation4 + $0x130] sm:$0xff]
    %v8349 = vld [vmem:[#allocation4 + $0x138] sm:$0xff]
    %v8350 = vld [vmem:[#allocation4 + $0x140] sm:$0xff]
    %v8351 = vld [vmem:[#allocation4 + $0x148] sm:$0xff]
    %v8352 = vld [vmem:[#allocation4 + $0x150] sm:$0xff]
    %v8353 = vld [vmem:[#allocation4 + $0x158] sm:$0xff]
    %v8354 = vld [vmem:[#allocation4 + $0x160] sm:$0xff]
    %v8355 = vld [vmem:[#allocation4 + $0x168] sm:$0xff]
    %v8356 = vld [vmem:[#allocation4 + $0x170] sm:$0xff]
    %v8357 = vld [vmem:[#allocation4 + $0x178] sm:$0xff]
    %v8358 = vld [vmem:[#allocation4 + $0x180] sm:$0xff]
    %v8359 = vld [vmem:[#allocation4 + $0x188] sm:$0xff]
    %v8360 = vld [vmem:[#allocation4 + $0x190] sm:$0xff]
    %v8361 = vld [vmem:[#allocation4 + $0x198] sm:$0xff]
    %v8362 = vld [vmem:[#allocation4 + $0x1a0] sm:$0xff]
    %v8363 = vld [vmem:[#allocation4 + $0x1a8] sm:$0xff]
    %v8364 = vld [vmem:[#allocation4 + $0x1b0] sm:$0xff]
    %v8365 = vld [vmem:[#allocation4 + $0x1b8] sm:$0xff]
    %v8366 = vld [vmem:[#allocation4 + $0x1c0] sm:$0xff]
    %v8367 = vld [vmem:[#allocation4 + $0x1c8] sm:$0xff]
    %v8368 = vld [vmem:[#allocation4 + $0x1d0] sm:$0xff]
    %v8369 = vld [vmem:[#allocation4 + $0x1d8] sm:$0xff]
    %v8370 = vld [vmem:[#allocation4 + $0x1e0] sm:$0xff]
    %v8371 = vld [vmem:[#allocation4 + $0x1e8] sm:$0xff]
    %v8372 = vld [vmem:[#allocation4 + $0x1f0] sm:$0xff]
    %v8373 = vld [vmem:[#allocation4 + $0x1f8] sm:$0xff]
    %v8374 = vld [vmem:[#allocation4 + $0x200] sm:$0xff]
    %v8375 = vld [vmem:[#allocation4 + $0x208] sm:$0xff]
    %v8376 = vld [vmem:[#allocation4 + $0x210] sm:$0xff]
    %v8377 = vld [vmem:[#allocation4 + $0x218] sm:$0xff]
    %v8378 = vld [vmem:[#allocation4 + $0x220] sm:$0xff]
    %v8379 = vld [vmem:[#allocation4 + $0x228] sm:$0xff]
    %v8380 = vld [vmem:[#allocation4 + $0x230] sm:$0xff]
    %v8381 = vld [vmem:[#allocation4 + $0x238] sm:$0xff]
    %v8382 = vld [vmem:[#allocation4 + $0x240] sm:$0xff]
    %v8383 = vld [vmem:[#allocation4 + $0x248] sm:$0xff]
    %v8384 = vld [vmem:[#allocation4 + $0x250] sm:$0xff]
    %v8385 = vld [vmem:[#allocation4 + $0x258] sm:$0xff]
    %v8386 = vld [vmem:[#allocation4 + $0x260] sm:$0xff]
    %v8387 = vld [vmem:[#allocation4 + $0x268] sm:$0xff]
    %v8388 = vld [vmem:[#allocation4 + $0x270] sm:$0xff]
    %v8389 = vld [vmem:[#allocation4 + $0x278] sm:$0xff]
    %v8390 = vld [vmem:[#allocation4 + $0x280] sm:$0xff]
    %v8391 = vld [vmem:[#allocation4 + $0x288] sm:$0xff]
    %v8392 = vld [vmem:[#allocation4 + $0x290] sm:$0xff]
    %v8393 = vld [vmem:[#allocation4 + $0x298] sm:$0xff]
    %v8394 = vld [vmem:[#allocation4 + $0x2a0] sm:$0xff]
    %v8395 = vld [vmem:[#allocation4 + $0x2a8] sm:$0xff]
    %v8396 = vld [vmem:[#allocation4 + $0x2b0] sm:$0xff]
    %v8397 = vld [vmem:[#allocation4 + $0x2b8] sm:$0xff]
    %v8398 = vld [vmem:[#allocation4 + $0x2c0] sm:$0xff]
    %v8399 = vld [vmem:[#allocation4 + $0x2c8] sm:$0xff]
    %v8400 = vld [vmem:[#allocation4 + $0x2d0] sm:$0xff]
    %v8401 = vld [vmem:[#allocation4 + $0x2d8] sm:$0xff]
    %v8402 = vld [vmem:[#allocation4 + $0x2e0] sm:$0xff]
    %v8403 = vld [vmem:[#allocation4 + $0x2e8] sm:$0xff]
    %v8404 = vld [vmem:[#allocation4 + $0x2f0] sm:$0xff]
    %v8405 = vld [vmem:[#allocation4 + $0x2f8] sm:$0xff]
    %v8406 = vld [vmem:[#allocation4 + $0x300] sm:$0xff]
    %v8407 = vld [vmem:[#allocation4 + $0x308] sm:$0xff]
    %v8408 = vld [vmem:[#allocation4 + $0x310] sm:$0xff]
    %v8409 = vld [vmem:[#allocation4 + $0x318] sm:$0xff]
    %v8410 = vld [vmem:[#allocation4 + $0x320] sm:$0xff]
    %v8411 = vld [vmem:[#allocation4 + $0x328] sm:$0xff]
    %v8412 = vld [vmem:[#allocation4 + $0x330] sm:$0xff]
    %v8413 = vld [vmem:[#allocation4 + $0x338] sm:$0xff]
    %v8414 = vld [vmem:[#allocation4 + $0x340] sm:$0xff]
    %v8415 = vld [vmem:[#allocation4 + $0x348] sm:$0xff]
    %v8416 = vld [vmem:[#allocation4 + $0x350] sm:$0xff]
    %v8417 = vld [vmem:[#allocation4 + $0x358] sm:$0xff]
    %v8418 = vld [vmem:[#allocation4 + $0x360] sm:$0xff]
    %v8419 = vld [vmem:[#allocation4 + $0x368] sm:$0xff]
    %v8420 = vld [vmem:[#allocation4 + $0x370] sm:$0xff]
    %v8421 = vld [vmem:[#allocation4 + $0x378] sm:$0xff]
    %v8422 = vld [vmem:[#allocation4 + $0x380] sm:$0xff]
    %v8423 = vld [vmem:[#allocation4 + $0x388] sm:$0xff]
    %v8424 = vld [vmem:[#allocation4 + $0x390] sm:$0xff]
    %v8425 = vld [vmem:[#allocation4 + $0x398] sm:$0xff]
    %v8426 = vld [vmem:[#allocation4 + $0x3a0] sm:$0xff]
    %v8427 = vld [vmem:[#allocation4 + $0x3a8] sm:$0xff]
    %v8428 = vld [vmem:[#allocation4 + $0x3b0] sm:$0xff]
    %v8429 = vld [vmem:[#allocation4 + $0x3b8] sm:$0xff]
    %v8430 = vld [vmem:[#allocation4 + $0x3c0] sm:$0xff]
    %v8431 = vld [vmem:[#allocation4 + $0x3c8] sm:$0xff]
    %v8432 = vld [vmem:[#allocation4 + $0x3d0] sm:$0xff]
    %v8433 = vld [vmem:[#allocation4 + $0x3d8] sm:$0xff]
    %v8434 = vld [vmem:[#allocation4 + $0x3e0] sm:$0xff]
    %v8435 = vld [vmem:[#allocation4 + $0x3e8] sm:$0xff]
    %v8436 = vld [vmem:[#allocation4 + $0x3f0] sm:$0xff]
    %v8437 = vld [vmem:[#allocation4 + $0x3f8] sm:$0xff]
    %v8438 = vld [vmem:[#allocation4 + $0x400] sm:$0xff]
    %v8439 = vld [vmem:[#allocation4 + $0x408] sm:$0xff]
    %v8440 = vld [vmem:[#allocation4 + $0x410] sm:$0xff]
    %v8441 = vld [vmem:[#allocation4 + $0x418] sm:$0xff]
    %v8442 = vld [vmem:[#allocation4 + $0x420] sm:$0xff]
    %v8443 = vld [vmem:[#allocation4 + $0x428] sm:$0xff]
    %v8444 = vld [vmem:[#allocation4 + $0x430] sm:$0xff]
    %v8445 = vld [vmem:[#allocation4 + $0x438] sm:$0xff]
    %v8446 = vld [vmem:[#allocation4 + $0x440] sm:$0xff]
    %v8447 = vld [vmem:[#allocation4 + $0x448] sm:$0xff]
    %v8448 = vld [vmem:[#allocation4 + $0x450] sm:$0xff]
    %v8449 = vld [vmem:[#allocation4 + $0x458] sm:$0xff]
    %v8450 = vld [vmem:[#allocation4 + $0x460] sm:$0xff]
    %v8451 = vld [vmem:[#allocation4 + $0x468] sm:$0xff]
    %v8452 = vld [vmem:[#allocation4 + $0x470] sm:$0xff]
    %v8453 = vld [vmem:[#allocation4 + $0x478] sm:$0xff]
    %v8454 = vld [vmem:[#allocation4 + $0x480] sm:$0xff]
    %v8455 = vld [vmem:[#allocation4 + $0x488] sm:$0xff]
    %v8456 = vld [vmem:[#allocation4 + $0x490] sm:$0xff]
    %v8457 = vld [vmem:[#allocation4 + $0x498] sm:$0xff]
    %v8458 = vld [vmem:[#allocation4 + $0x4a0] sm:$0xff]
    %v8459 = vld [vmem:[#allocation4 + $0x4a8] sm:$0xff]
    %v8460 = vld [vmem:[#allocation4 + $0x4b0] sm:$0xff]
    %v8461 = vld [vmem:[#allocation4 + $0x4b8] sm:$0xff]
    %v8462 = vld [vmem:[#allocation4 + $0x4c0] sm:$0xff]
    %v8463 = vld [vmem:[#allocation4 + $0x4c8] sm:$0xff]
    %v8464 = vld [vmem:[#allocation4 + $0x4d0] sm:$0xff]
    %v8465 = vld [vmem:[#allocation4 + $0x4d8] sm:$0xff]
    %v8466 = vld [vmem:[#allocation4 + $0x4e0] sm:$0xff]
    %v8467 = vld [vmem:[#allocation4 + $0x4e8] sm:$0xff]
    %v8468 = vld [vmem:[#allocation4 + $0x4f0] sm:$0xff]
    %v8469 = vld [vmem:[#allocation4 + $0x4f8] sm:$0xff]
    %v8470 = vld [vmem:[#allocation4 + $0x500] sm:$0xff]
    %v8471 = vld [vmem:[#allocation4 + $0x508] sm:$0xff]
    %v8472 = vld [vmem:[#allocation4 + $0x510] sm:$0xff]
    %v8473 = vld [vmem:[#allocation4 + $0x518] sm:$0xff]
    %v8474 = vld [vmem:[#allocation4 + $0x520] sm:$0xff]
    %v8475 = vld [vmem:[#allocation4 + $0x528] sm:$0xff]
    %v8476 = vld [vmem:[#allocation4 + $0x530] sm:$0xff]
    %v8477 = vld [vmem:[#allocation4 + $0x538] sm:$0xff]
    %v8478 = vld [vmem:[#allocation4 + $0x540] sm:$0xff]
    %v8479 = vld [vmem:[#allocation4 + $0x548] sm:$0xff]
    %v8480 = vld [vmem:[#allocation4 + $0x550] sm:$0xff]
    %v8481 = vld [vmem:[#allocation4 + $0x558] sm:$0xff]
    %v8482 = vld [vmem:[#allocation4 + $0x560] sm:$0xff]
    %v8483 = vld [vmem:[#allocation4 + $0x568] sm:$0xff]
    %v8484 = vld [vmem:[#allocation4 + $0x570] sm:$0xff]
    %v8485 = vld [vmem:[#allocation4 + $0x578] sm:$0xff]
    %v8486 = vld [vmem:[#allocation4 + $0x580] sm:$0xff]
    %v8487 = vld [vmem:[#allocation4 + $0x588] sm:$0xff]
    %v8488 = vld [vmem:[#allocation4 + $0x590] sm:$0xff]
    %v8489 = vld [vmem:[#allocation4 + $0x598] sm:$0xff]
    %v8490 = vld [vmem:[#allocation4 + $0x5a0] sm:$0xff]
    %v8491 = vld [vmem:[#allocation4 + $0x5a8] sm:$0xff]
    %v8492 = vld [vmem:[#allocation4 + $0x5b0] sm:$0xff]
    %v8493 = vld [vmem:[#allocation4 + $0x5b8] sm:$0xff]
    %v8494 = vld [vmem:[#allocation4 + $0x5c0] sm:$0xff]
    %v8495 = vld [vmem:[#allocation4 + $0x5c8] sm:$0xff]
    %v8496 = vld [vmem:[#allocation4 + $0x5d0] sm:$0xff]
    %v8497 = vld [vmem:[#allocation4 + $0x5d8] sm:$0xff]
    %v8498 = vld [vmem:[#allocation4 + $0x5e0] sm:$0xff]
    %v8499 = vld [vmem:[#allocation4 + $0x5e8] sm:$0xff]
    %v8500 = vld [vmem:[#allocation4 + $0x5f0] sm:$0xff]
    %v8501 = vld [vmem:[#allocation4 + $0x5f8] sm:$0xff]
    %v8502 = vld [vmem:[#allocation4 + $0x600] sm:$0xff]
    %v8503 = vld [vmem:[#allocation4 + $0x608] sm:$0xff]
    %v8504 = vld [vmem:[#allocation4 + $0x610] sm:$0xff]
    %v8505 = vld [vmem:[#allocation4 + $0x618] sm:$0xff]
    %v8506 = vld [vmem:[#allocation4 + $0x620] sm:$0xff]
    %v8507 = vld [vmem:[#allocation4 + $0x628] sm:$0xff]
    %v8508 = vld [vmem:[#allocation4 + $0x630] sm:$0xff]
    %v8509 = vld [vmem:[#allocation4 + $0x638] sm:$0xff]
    %v8510 = vld [vmem:[#allocation4 + $0x640] sm:$0xff]
    %v8511 = vld [vmem:[#allocation4 + $0x648] sm:$0xff]
    %v8512 = vld [vmem:[#allocation4 + $0x650] sm:$0xff]
    %v8513 = vld [vmem:[#allocation4 + $0x658] sm:$0xff]
    %v8514 = vld [vmem:[#allocation4 + $0x660] sm:$0xff]
    %v8515 = vld [vmem:[#allocation4 + $0x668] sm:$0xff]
    %v8516 = vld [vmem:[#allocation4 + $0x670] sm:$0xff]
    %v8517 = vld [vmem:[#allocation4 + $0x678] sm:$0xff]
    %v8518 = vld [vmem:[#allocation4 + $0x680] sm:$0xff]
    %v8519 = vld [vmem:[#allocation4 + $0x688] sm:$0xff]
    %v8520 = vld [vmem:[#allocation4 + $0x690] sm:$0xff]
    %v8521 = vld [vmem:[#allocation4 + $0x698] sm:$0xff]
    %v8522 = vld [vmem:[#allocation4 + $0x6a0] sm:$0xff]
    %v8523 = vld [vmem:[#allocation4 + $0x6a8] sm:$0xff]
    %v8524 = vld [vmem:[#allocation4 + $0x6b0] sm:$0xff]
    %v8525 = vld [vmem:[#allocation4 + $0x6b8] sm:$0xff]
    %v8526 = vld [vmem:[#allocation4 + $0x6c0] sm:$0xff]
    %v8527 = vld [vmem:[#allocation4 + $0x6c8] sm:$0xff]
    %v8528 = vld [vmem:[#allocation4 + $0x6d0] sm:$0xff]
    %v8529 = vld [vmem:[#allocation4 + $0x6d8] sm:$0xff]
    %v8530 = vld [vmem:[#allocation4 + $0x6e0] sm:$0xff]
    %v8531 = vld [vmem:[#allocation4 + $0x6e8] sm:$0xff]
    %v8532 = vld [vmem:[#allocation4 + $0x6f0] sm:$0xff]
    %v8533 = vld [vmem:[#allocation4 + $0x6f8] sm:$0xff]
    %v8534 = vld [vmem:[#allocation4 + $0x700] sm:$0xff]
    %v8535 = vld [vmem:[#allocation4 + $0x708] sm:$0xff]
    %v8536 = vld [vmem:[#allocation4 + $0x710] sm:$0xff]
    %v8537 = vld [vmem:[#allocation4 + $0x718] sm:$0xff]
    %v8538 = vld [vmem:[#allocation4 + $0x720] sm:$0xff]
    %v8539 = vld [vmem:[#allocation4 + $0x728] sm:$0xff]
    %v8540 = vld [vmem:[#allocation4 + $0x730] sm:$0xff]
    %v8541 = vld [vmem:[#allocation4 + $0x738] sm:$0xff]
    %v8542 = vld [vmem:[#allocation4 + $0x740] sm:$0xff]
    %v8543 = vld [vmem:[#allocation4 + $0x748] sm:$0xff]
    %v8544 = vld [vmem:[#allocation4 + $0x750] sm:$0xff]
    %v8545 = vld [vmem:[#allocation4 + $0x758] sm:$0xff]
    %v8546 = vld [vmem:[#allocation4 + $0x760] sm:$0xff]
    %v8547 = vld [vmem:[#allocation4 + $0x768] sm:$0xff]
    %v8548 = vld [vmem:[#allocation4 + $0x770] sm:$0xff]
    %v8549 = vld [vmem:[#allocation4 + $0x778] sm:$0xff]
    %v8550 = vld [vmem:[#allocation4 + $0x780] sm:$0xff]
    %v8551 = vld [vmem:[#allocation4 + $0x788] sm:$0xff]
    %v8552 = vld [vmem:[#allocation4 + $0x790] sm:$0xff]
    %v8553 = vld [vmem:[#allocation4 + $0x798] sm:$0xff]
    %v8554 = vld [vmem:[#allocation4 + $0x7a0] sm:$0xff]
    %v8555 = vld [vmem:[#allocation4 + $0x7a8] sm:$0xff]
    %v8556 = vld [vmem:[#allocation4 + $0x7b0] sm:$0xff]
    %v8557 = vld [vmem:[#allocation4 + $0x7b8] sm:$0xff]
    %v8558 = vld [vmem:[#allocation4 + $0x7c0] sm:$0xff]
    %v8559 = vld [vmem:[#allocation4 + $0x7c8] sm:$0xff]
    %v8560 = vld [vmem:[#allocation4 + $0x7d0] sm:$0xff]
    %v8561 = vld [vmem:[#allocation4 + $0x7d8] sm:$0xff]
    %v8562 = vld [vmem:[#allocation4 + $0x7e0] sm:$0xff]
    %v8563 = vld [vmem:[#allocation4 + $0x7e8] sm:$0xff]
    %v8564 = vld [vmem:[#allocation4 + $0x7f0] sm:$0xff]
    %v8565 = vld [vmem:[#allocation4 + $0x7f8] sm:$0xff]
    %v8566 = vlaneseq
    %v8567 = vshrl.u32 %v8566, 7
    %v8568 = vsub.s32 2, %v8567
    %v8569 = vrot.slane %v4038, %v8568
    %v8570 = vlaneseq
    %v8571 = vshrl.u32 %v8570, 7
    %v8572 = vsub.s32 6, %v8571
    %v8573 = vrot.slane %v4038, %v8572
    %v8574 = vlaneseq
    %v8575 = vshrl.u32 %v8574, 7
    %v8576 = vsub.s32 2, %v8575
    %v8577 = vrot.slane %v4039, %v8576
    %v8578 = vlaneseq
    %v8579 = vshrl.u32 %v8578, 7
    %v8580 = vsub.s32 6, %v8579
    %v8581 = vrot.slane %v4039, %v8580
    %v8586 = vlaneseq
    %v8587 = vshrl.u32 %v8586, 7
    %v8588 = vsub.s32 2, %v8587
    %v8589 = vrot.slane %v8569, %v8588
    %v8590 = vlaneseq
    %v8591 = vshrl.u32 %v8590, 7
    %v8592 = vsub.s32 2, %v8591
    %v8593 = vrot.slane %v8573, %v8592
    %v8594 = vlaneseq
    %v8595 = vshrl.u32 %v8594, 7
    %v8596 = vsub.s32 2, %v8595
    %v8597 = vrot.slane %v8577, %v8596
    %v8598 = vlaneseq
    %v8599 = vshrl.u32 %v8598, 7
    %v8600 = vsub.s32 2, %v8599
    %v8601 = vrot.slane %v8581, %v8600
    %v8858 = vunpack.c.l.b16 %v8310
    %v8859 = vunpack.c.h.b16 %v8310
    %v8860 = vunpack.c.l.b16 %v8311
    %v8861 = vunpack.c.h.b16 %v8311
    %v8862 = vunpack.c.l.b16 %v8312
    %v8863 = vunpack.c.h.b16 %v8312
    %v8864 = vunpack.c.l.b16 %v8313
    %v8865 = vunpack.c.h.b16 %v8313
    %v8866 = vunpack.c.l.b16 %v8314
    %v8867 = vunpack.c.h.b16 %v8314
    %v8868 = vunpack.c.l.b16 %v8315
    %v8869 = vunpack.c.h.b16 %v8315
    %v8870 = vunpack.c.l.b16 %v8316
    %v8871 = vunpack.c.h.b16 %v8316
    %v8872 = vunpack.c.l.b16 %v8317
    %v8873 = vunpack.c.h.b16 %v8317
    %v8874 = vunpack.c.l.b16 %v8318
    %v8875 = vunpack.c.h.b16 %v8318
    %v8876 = vunpack.c.l.b16 %v8319
    %v8877 = vunpack.c.h.b16 %v8319
    %v8878 = vunpack.c.l.b16 %v8320
    %v8879 = vunpack.c.h.b16 %v8320
    %v8880 = vunpack.c.l.b16 %v8321
    %v8881 = vunpack.c.h.b16 %v8321
    %v8882 = vunpack.c.l.b16 %v8322
    %v8883 = vunpack.c.h.b16 %v8322
    %v8884 = vunpack.c.l.b16 %v8323
    %v8885 = vunpack.c.h.b16 %v8323
    %v8886 = vunpack.c.l.b16 %v8324
    %v8887 = vunpack.c.h.b16 %v8324
    %v8888 = vunpack.c.l.b16 %v8325
    %v8889 = vunpack.c.h.b16 %v8325
    %v8890 = vunpack.c.l.b16 %v8326
    %v8891 = vunpack.c.h.b16 %v8326
    %v8892 = vunpack.c.l.b16 %v8327
    %v8893 = vunpack.c.h.b16 %v8327
    %v8894 = vunpack.c.l.b16 %v8328
    %v8895 = vunpack.c.h.b16 %v8328
    %v8896 = vunpack.c.l.b16 %v8329
    %v8897 = vunpack.c.h.b16 %v8329
    %v8898 = vunpack.c.l.b16 %v8330
    %v8899 = vunpack.c.h.b16 %v8330
    %v8900 = vunpack.c.l.b16 %v8331
    %v8901 = vunpack.c.h.b16 %v8331
    %v8902 = vunpack.c.l.b16 %v8332
    %v8903 = vunpack.c.h.b16 %v8332
    %v8904 = vunpack.c.l.b16 %v8333
    %v8905 = vunpack.c.h.b16 %v8333
    %v8906 = vunpack.c.l.b16 %v8334
    %v8907 = vunpack.c.h.b16 %v8334
    %v8908 = vunpack.c.l.b16 %v8335
    %v8909 = vunpack.c.h.b16 %v8335
    %v8910 = vunpack.c.l.b16 %v8336
    %v8911 = vunpack.c.h.b16 %v8336
    %v8912 = vunpack.c.l.b16 %v8337
    %v8913 = vunpack.c.h.b16 %v8337
    %v8914 = vunpack.c.l.b16 %v8338
    %v8915 = vunpack.c.h.b16 %v8338
    %v8916 = vunpack.c.l.b16 %v8339
    %v8917 = vunpack.c.h.b16 %v8339
    %v8918 = vunpack.c.l.b16 %v8340
    %v8919 = vunpack.c.h.b16 %v8340
    %v8920 = vunpack.c.l.b16 %v8341
    %v8921 = vunpack.c.h.b16 %v8341
    %v8922 = vunpack.c.l.b16 %v8342
    %v8923 = vunpack.c.h.b16 %v8342
    %v8924 = vunpack.c.l.b16 %v8343
    %v8925 = vunpack.c.h.b16 %v8343
    %v8926 = vunpack.c.l.b16 %v8344
    %v8927 = vunpack.c.h.b16 %v8344
    %v8928 = vunpack.c.l.b16 %v8345
    %v8929 = vunpack.c.h.b16 %v8345
    %v8930 = vunpack.c.l.b16 %v8346
    %v8931 = vunpack.c.h.b16 %v8346
    %v8932 = vunpack.c.l.b16 %v8347
    %v8933 = vunpack.c.h.b16 %v8347
    %v8934 = vunpack.c.l.b16 %v8348
    %v8935 = vunpack.c.h.b16 %v8348
    %v8936 = vunpack.c.l.b16 %v8349
    %v8937 = vunpack.c.h.b16 %v8349
    %v8938 = vunpack.c.l.b16 %v8350
    %v8939 = vunpack.c.h.b16 %v8350
    %v8940 = vunpack.c.l.b16 %v8351
    %v8941 = vunpack.c.h.b16 %v8351
    %v8942 = vunpack.c.l.b16 %v8352
    %v8943 = vunpack.c.h.b16 %v8352
    %v8944 = vunpack.c.l.b16 %v8353
    %v8945 = vunpack.c.h.b16 %v8353
    %v8946 = vunpack.c.l.b16 %v8354
    %v8947 = vunpack.c.h.b16 %v8354
    %v8948 = vunpack.c.l.b16 %v8355
    %v8949 = vunpack.c.h.b16 %v8355
    %v8950 = vunpack.c.l.b16 %v8356
    %v8951 = vunpack.c.h.b16 %v8356
    %v8952 = vunpack.c.l.b16 %v8357
    %v8953 = vunpack.c.h.b16 %v8357
    %v8954 = vunpack.c.l.b16 %v8358
    %v8955 = vunpack.c.h.b16 %v8358
    %v8956 = vunpack.c.l.b16 %v8359
    %v8957 = vunpack.c.h.b16 %v8359
    %v8958 = vunpack.c.l.b16 %v8360
    %v8959 = vunpack.c.h.b16 %v8360
    %v8960 = vunpack.c.l.b16 %v8361
    %v8961 = vunpack.c.h.b16 %v8361
    %v8962 = vunpack.c.l.b16 %v8362
    %v8963 = vunpack.c.h.b16 %v8362
    %v8964 = vunpack.c.l.b16 %v8363
    %v8965 = vunpack.c.h.b16 %v8363
    %v8966 = vunpack.c.l.b16 %v8364
    %v8967 = vunpack.c.h.b16 %v8364
    %v8968 = vunpack.c.l.b16 %v8365
    %v8969 = vunpack.c.h.b16 %v8365
    %v8970 = vunpack.c.l.b16 %v8366
    %v8971 = vunpack.c.h.b16 %v8366
    %v8972 = vunpack.c.l.b16 %v8367
    %v8973 = vunpack.c.h.b16 %v8367
    %v8974 = vunpack.c.l.b16 %v8368
    %v8975 = vunpack.c.h.b16 %v8368
    %v8976 = vunpack.c.l.b16 %v8369
    %v8977 = vunpack.c.h.b16 %v8369
    %v8978 = vunpack.c.l.b16 %v8370
    %v8979 = vunpack.c.h.b16 %v8370
    %v8980 = vunpack.c.l.b16 %v8371
    %v8981 = vunpack.c.h.b16 %v8371
    %v8982 = vunpack.c.l.b16 %v8372
    %v8983 = vunpack.c.h.b16 %v8372
    %v8984 = vunpack.c.l.b16 %v8373
    %v8985 = vunpack.c.h.b16 %v8373
    %v8986 = vunpack.c.l.b16 %v8374
    %v8987 = vunpack.c.h.b16 %v8374
    %v8988 = vunpack.c.l.b16 %v8375
    %v8989 = vunpack.c.h.b16 %v8375
    %v8990 = vunpack.c.l.b16 %v8376
    %v8991 = vunpack.c.h.b16 %v8376
    %v8992 = vunpack.c.l.b16 %v8377
    %v8993 = vunpack.c.h.b16 %v8377
    %v8994 = vunpack.c.l.b16 %v8378
    %v8995 = vunpack.c.h.b16 %v8378
    %v8996 = vunpack.c.l.b16 %v8379
    %v8997 = vunpack.c.h.b16 %v8379
    %v8998 = vunpack.c.l.b16 %v8380
    %v8999 = vunpack.c.h.b16 %v8380
    %v9000 = vunpack.c.l.b16 %v8381
    %v9001 = vunpack.c.h.b16 %v8381
    %v9002 = vunpack.c.l.b16 %v8382
    %v9003 = vunpack.c.h.b16 %v8382
    %v9004 = vunpack.c.l.b16 %v8383
    %v9005 = vunpack.c.h.b16 %v8383
    %v9006 = vunpack.c.l.b16 %v8384
    %v9007 = vunpack.c.h.b16 %v8384
    %v9008 = vunpack.c.l.b16 %v8385
    %v9009 = vunpack.c.h.b16 %v8385
    %v9010 = vunpack.c.l.b16 %v8386
    %v9011 = vunpack.c.h.b16 %v8386
    %v9012 = vunpack.c.l.b16 %v8387
    %v9013 = vunpack.c.h.b16 %v8387
    %v9014 = vunpack.c.l.b16 %v8388
    %v9015 = vunpack.c.h.b16 %v8388
    %v9016 = vunpack.c.l.b16 %v8389
    %v9017 = vunpack.c.h.b16 %v8389
    %v9018 = vunpack.c.l.b16 %v8390
    %v9019 = vunpack.c.h.b16 %v8390
    %v9020 = vunpack.c.l.b16 %v8391
    %v9021 = vunpack.c.h.b16 %v8391
    %v9022 = vunpack.c.l.b16 %v8392
    %v9023 = vunpack.c.h.b16 %v8392
    %v9024 = vunpack.c.l.b16 %v8393
    %v9025 = vunpack.c.h.b16 %v8393
    %v9026 = vunpack.c.l.b16 %v8394
    %v9027 = vunpack.c.h.b16 %v8394
    %v9028 = vunpack.c.l.b16 %v8395
    %v9029 = vunpack.c.h.b16 %v8395
    %v9030 = vunpack.c.l.b16 %v8396
    %v9031 = vunpack.c.h.b16 %v8396
    %v9032 = vunpack.c.l.b16 %v8397
    %v9033 = vunpack.c.h.b16 %v8397
    %v9034 = vunpack.c.l.b16 %v8398
    %v9035 = vunpack.c.h.b16 %v8398
    %v9036 = vunpack.c.l.b16 %v8399
    %v9037 = vunpack.c.h.b16 %v8399
    %v9038 = vunpack.c.l.b16 %v8400
    %v9039 = vunpack.c.h.b16 %v8400
    %v9040 = vunpack.c.l.b16 %v8401
    %v9041 = vunpack.c.h.b16 %v8401
    %v9042 = vunpack.c.l.b16 %v8402
    %v9043 = vunpack.c.h.b16 %v8402
    %v9044 = vunpack.c.l.b16 %v8403
    %v9045 = vunpack.c.h.b16 %v8403
    %v9046 = vunpack.c.l.b16 %v8404
    %v9047 = vunpack.c.h.b16 %v8404
    %v9048 = vunpack.c.l.b16 %v8405
    %v9049 = vunpack.c.h.b16 %v8405
    %v9050 = vunpack.c.l.b16 %v8406
    %v9051 = vunpack.c.h.b16 %v8406
    %v9052 = vunpack.c.l.b16 %v8407
    %v9053 = vunpack.c.h.b16 %v8407
    %v9054 = vunpack.c.l.b16 %v8408
    %v9055 = vunpack.c.h.b16 %v8408
    %v9056 = vunpack.c.l.b16 %v8409
    %v9057 = vunpack.c.h.b16 %v8409
    %v9058 = vunpack.c.l.b16 %v8410
    %v9059 = vunpack.c.h.b16 %v8410
    %v9060 = vunpack.c.l.b16 %v8411
    %v9061 = vunpack.c.h.b16 %v8411
    %v9062 = vunpack.c.l.b16 %v8412
    %v9063 = vunpack.c.h.b16 %v8412
    %v9064 = vunpack.c.l.b16 %v8413
    %v9065 = vunpack.c.h.b16 %v8413
    %v9066 = vunpack.c.l.b16 %v8414
    %v9067 = vunpack.c.h.b16 %v8414
    %v9068 = vunpack.c.l.b16 %v8415
    %v9069 = vunpack.c.h.b16 %v8415
    %v9070 = vunpack.c.l.b16 %v8416
    %v9071 = vunpack.c.h.b16 %v8416
    %v9072 = vunpack.c.l.b16 %v8417
    %v9073 = vunpack.c.h.b16 %v8417
    %v9074 = vunpack.c.l.b16 %v8418
    %v9075 = vunpack.c.h.b16 %v8418
    %v9076 = vunpack.c.l.b16 %v8419
    %v9077 = vunpack.c.h.b16 %v8419
    %v9078 = vunpack.c.l.b16 %v8420
    %v9079 = vunpack.c.h.b16 %v8420
    %v9080 = vunpack.c.l.b16 %v8421
    %v9081 = vunpack.c.h.b16 %v8421
    %v9082 = vunpack.c.l.b16 %v8422
    %v9083 = vunpack.c.h.b16 %v8422
    %v9084 = vunpack.c.l.b16 %v8423
    %v9085 = vunpack.c.h.b16 %v8423
    %v9086 = vunpack.c.l.b16 %v8424
    %v9087 = vunpack.c.h.b16 %v8424
    %v9088 = vunpack.c.l.b16 %v8425
    %v9089 = vunpack.c.h.b16 %v8425
    %v9090 = vunpack.c.l.b16 %v8426
    %v9091 = vunpack.c.h.b16 %v8426
    %v9092 = vunpack.c.l.b16 %v8427
    %v9093 = vunpack.c.h.b16 %v8427
    %v9094 = vunpack.c.l.b16 %v8428
    %v9095 = vunpack.c.h.b16 %v8428
    %v9096 = vunpack.c.l.b16 %v8429
    %v9097 = vunpack.c.h.b16 %v8429
    %v9098 = vunpack.c.l.b16 %v8430
    %v9099 = vunpack.c.h.b16 %v8430
    %v9100 = vunpack.c.l.b16 %v8431
    %v9101 = vunpack.c.h.b16 %v8431
    %v9102 = vunpack.c.l.b16 %v8432
    %v9103 = vunpack.c.h.b16 %v8432
    %v9104 = vunpack.c.l.b16 %v8433
    %v9105 = vunpack.c.h.b16 %v8433
    %v9106 = vunpack.c.l.b16 %v8434
    %v9107 = vunpack.c.h.b16 %v8434
    %v9108 = vunpack.c.l.b16 %v8435
    %v9109 = vunpack.c.h.b16 %v8435
    %v9110 = vunpack.c.l.b16 %v8436
    %v9111 = vunpack.c.h.b16 %v8436
    %v9112 = vunpack.c.l.b16 %v8437
    %v9113 = vunpack.c.h.b16 %v8437
    %v9114 = vunpack.c.l.b16 %v8438
    %v9115 = vunpack.c.h.b16 %v8438
    %v9116 = vunpack.c.l.b16 %v8439
    %v9117 = vunpack.c.h.b16 %v8439
    %v9118 = vunpack.c.l.b16 %v8440
    %v9119 = vunpack.c.h.b16 %v8440
    %v9120 = vunpack.c.l.b16 %v8441
    %v9121 = vunpack.c.h.b16 %v8441
    %v9122 = vunpack.c.l.b16 %v8442
    %v9123 = vunpack.c.h.b16 %v8442
    %v9124 = vunpack.c.l.b16 %v8443
    %v9125 = vunpack.c.h.b16 %v8443
    %v9126 = vunpack.c.l.b16 %v8444
    %v9127 = vunpack.c.h.b16 %v8444
    %v9128 = vunpack.c.l.b16 %v8445
    %v9129 = vunpack.c.h.b16 %v8445
    %v9130 = vunpack.c.l.b16 %v8446
    %v9131 = vunpack.c.h.b16 %v8446
    %v9132 = vunpack.c.l.b16 %v8447
    %v9133 = vunpack.c.h.b16 %v8447
    %v9134 = vunpack.c.l.b16 %v8448
    %v9135 = vunpack.c.h.b16 %v8448
    %v9136 = vunpack.c.l.b16 %v8449
    %v9137 = vunpack.c.h.b16 %v8449
    %v9138 = vunpack.c.l.b16 %v8450
    %v9139 = vunpack.c.h.b16 %v8450
    %v9140 = vunpack.c.l.b16 %v8451
    %v9141 = vunpack.c.h.b16 %v8451
    %v9142 = vunpack.c.l.b16 %v8452
    %v9143 = vunpack.c.h.b16 %v8452
    %v9144 = vunpack.c.l.b16 %v8453
    %v9145 = vunpack.c.h.b16 %v8453
    %v9146 = vunpack.c.l.b16 %v8454
    %v9147 = vunpack.c.h.b16 %v8454
    %v9148 = vunpack.c.l.b16 %v8455
    %v9149 = vunpack.c.h.b16 %v8455
    %v9150 = vunpack.c.l.b16 %v8456
    %v9151 = vunpack.c.h.b16 %v8456
    %v9152 = vunpack.c.l.b16 %v8457
    %v9153 = vunpack.c.h.b16 %v8457
    %v9154 = vunpack.c.l.b16 %v8458
    %v9155 = vunpack.c.h.b16 %v8458
    %v9156 = vunpack.c.l.b16 %v8459
    %v9157 = vunpack.c.h.b16 %v8459
    %v9158 = vunpack.c.l.b16 %v8460
    %v9159 = vunpack.c.h.b16 %v8460
    %v9160 = vunpack.c.l.b16 %v8461
    %v9161 = vunpack.c.h.b16 %v8461
    %v9162 = vunpack.c.l.b16 %v8462
    %v9163 = vunpack.c.h.b16 %v8462
    %v9164 = vunpack.c.l.b16 %v8463
    %v9165 = vunpack.c.h.b16 %v8463
    %v9166 = vunpack.c.l.b16 %v8464
    %v9167 = vunpack.c.h.b16 %v8464
    %v9168 = vunpack.c.l.b16 %v8465
    %v9169 = vunpack.c.h.b16 %v8465
    %v9170 = vunpack.c.l.b16 %v8466
    %v9171 = vunpack.c.h.b16 %v8466
    %v9172 = vunpack.c.l.b16 %v8467
    %v9173 = vunpack.c.h.b16 %v8467
    %v9174 = vunpack.c.l.b16 %v8468
    %v9175 = vunpack.c.h.b16 %v8468
    %v9176 = vunpack.c.l.b16 %v8469
    %v9177 = vunpack.c.h.b16 %v8469
    %v9178 = vunpack.c.l.b16 %v8470
    %v9179 = vunpack.c.h.b16 %v8470
    %v9180 = vunpack.c.l.b16 %v8471
    %v9181 = vunpack.c.h.b16 %v8471
    %v9182 = vunpack.c.l.b16 %v8472
    %v9183 = vunpack.c.h.b16 %v8472
    %v9184 = vunpack.c.l.b16 %v8473
    %v9185 = vunpack.c.h.b16 %v8473
    %v9186 = vunpack.c.l.b16 %v8474
    %v9187 = vunpack.c.h.b16 %v8474
    %v9188 = vunpack.c.l.b16 %v8475
    %v9189 = vunpack.c.h.b16 %v8475
    %v9190 = vunpack.c.l.b16 %v8476
    %v9191 = vunpack.c.h.b16 %v8476
    %v9192 = vunpack.c.l.b16 %v8477
    %v9193 = vunpack.c.h.b16 %v8477
    %v9194 = vunpack.c.l.b16 %v8478
    %v9195 = vunpack.c.h.b16 %v8478
    %v9196 = vunpack.c.l.b16 %v8479
    %v9197 = vunpack.c.h.b16 %v8479
    %v9198 = vunpack.c.l.b16 %v8480
    %v9199 = vunpack.c.h.b16 %v8480
    %v9200 = vunpack.c.l.b16 %v8481
    %v9201 = vunpack.c.h.b16 %v8481
    %v9202 = vunpack.c.l.b16 %v8482
    %v9203 = vunpack.c.h.b16 %v8482
    %v9204 = vunpack.c.l.b16 %v8483
    %v9205 = vunpack.c.h.b16 %v8483
    %v9206 = vunpack.c.l.b16 %v8484
    %v9207 = vunpack.c.h.b16 %v8484
    %v9208 = vunpack.c.l.b16 %v8485
    %v9209 = vunpack.c.h.b16 %v8485
    %v9210 = vunpack.c.l.b16 %v8486
    %v9211 = vunpack.c.h.b16 %v8486
    %v9212 = vunpack.c.l.b16 %v8487
    %v9213 = vunpack.c.h.b16 %v8487
    %v9214 = vunpack.c.l.b16 %v8488
    %v9215 = vunpack.c.h.b16 %v8488
    %v9216 = vunpack.c.l.b16 %v8489
    %v9217 = vunpack.c.h.b16 %v8489
    %v9218 = vunpack.c.l.b16 %v8490
    %v9219 = vunpack.c.h.b16 %v8490
    %v9220 = vunpack.c.l.b16 %v8491
    %v9221 = vunpack.c.h.b16 %v8491
    %v9222 = vunpack.c.l.b16 %v8492
    %v9223 = vunpack.c.h.b16 %v8492
    %v9224 = vunpack.c.l.b16 %v8493
    %v9225 = vunpack.c.h.b16 %v8493
    %v9226 = vunpack.c.l.b16 %v8494
    %v9227 = vunpack.c.h.b16 %v8494
    %v9228 = vunpack.c.l.b16 %v8495
    %v9229 = vunpack.c.h.b16 %v8495
    %v9230 = vunpack.c.l.b16 %v8496
    %v9231 = vunpack.c.h.b16 %v8496
    %v9232 = vunpack.c.l.b16 %v8497
    %v9233 = vunpack.c.h.b16 %v8497
    %v9234 = vunpack.c.l.b16 %v8498
    %v9235 = vunpack.c.h.b16 %v8498
    %v9236 = vunpack.c.l.b16 %v8499
    %v9237 = vunpack.c.h.b16 %v8499
    %v9238 = vunpack.c.l.b16 %v8500
    %v9239 = vunpack.c.h.b16 %v8500
    %v9240 = vunpack.c.l.b16 %v8501
    %v9241 = vunpack.c.h.b16 %v8501
    %v9242 = vunpack.c.l.b16 %v8502
    %v9243 = vunpack.c.h.b16 %v8502
    %v9244 = vunpack.c.l.b16 %v8503
    %v9245 = vunpack.c.h.b16 %v8503
    %v9246 = vunpack.c.l.b16 %v8504
    %v9247 = vunpack.c.h.b16 %v8504
    %v9248 = vunpack.c.l.b16 %v8505
    %v9249 = vunpack.c.h.b16 %v8505
    %v9250 = vunpack.c.l.b16 %v8506
    %v9251 = vunpack.c.h.b16 %v8506
    %v9252 = vunpack.c.l.b16 %v8507
    %v9253 = vunpack.c.h.b16 %v8507
    %v9254 = vunpack.c.l.b16 %v8508
    %v9255 = vunpack.c.h.b16 %v8508
    %v9256 = vunpack.c.l.b16 %v8509
    %v9257 = vunpack.c.h.b16 %v8509
    %v9258 = vunpack.c.l.b16 %v8510
    %v9259 = vunpack.c.h.b16 %v8510
    %v9260 = vunpack.c.l.b16 %v8511
    %v9261 = vunpack.c.h.b16 %v8511
    %v9262 = vunpack.c.l.b16 %v8512
    %v9263 = vunpack.c.h.b16 %v8512
    %v9264 = vunpack.c.l.b16 %v8513
    %v9265 = vunpack.c.h.b16 %v8513
    %v9266 = vunpack.c.l.b16 %v8514
    %v9267 = vunpack.c.h.b16 %v8514
    %v9268 = vunpack.c.l.b16 %v8515
    %v9269 = vunpack.c.h.b16 %v8515
    %v9270 = vunpack.c.l.b16 %v8516
    %v9271 = vunpack.c.h.b16 %v8516
    %v9272 = vunpack.c.l.b16 %v8517
    %v9273 = vunpack.c.h.b16 %v8517
    %v9274 = vunpack.c.l.b16 %v8518
    %v9275 = vunpack.c.h.b16 %v8518
    %v9276 = vunpack.c.l.b16 %v8519
    %v9277 = vunpack.c.h.b16 %v8519
    %v9278 = vunpack.c.l.b16 %v8520
    %v9279 = vunpack.c.h.b16 %v8520
    %v9280 = vunpack.c.l.b16 %v8521
    %v9281 = vunpack.c.h.b16 %v8521
    %v9282 = vunpack.c.l.b16 %v8522
    %v9283 = vunpack.c.h.b16 %v8522
    %v9284 = vunpack.c.l.b16 %v8523
    %v9285 = vunpack.c.h.b16 %v8523
    %v9286 = vunpack.c.l.b16 %v8524
    %v9287 = vunpack.c.h.b16 %v8524
    %v9288 = vunpack.c.l.b16 %v8525
    %v9289 = vunpack.c.h.b16 %v8525
    %v9290 = vunpack.c.l.b16 %v8526
    %v9291 = vunpack.c.h.b16 %v8526
    %v9292 = vunpack.c.l.b16 %v8527
    %v9293 = vunpack.c.h.b16 %v8527
    %v9294 = vunpack.c.l.b16 %v8528
    %v9295 = vunpack.c.h.b16 %v8528
    %v9296 = vunpack.c.l.b16 %v8529
    %v9297 = vunpack.c.h.b16 %v8529
    %v9298 = vunpack.c.l.b16 %v8530
    %v9299 = vunpack.c.h.b16 %v8530
    %v9300 = vunpack.c.l.b16 %v8531
    %v9301 = vunpack.c.h.b16 %v8531
    %v9302 = vunpack.c.l.b16 %v8532
    %v9303 = vunpack.c.h.b16 %v8532
    %v9304 = vunpack.c.l.b16 %v8533
    %v9305 = vunpack.c.h.b16 %v8533
    %v9306 = vunpack.c.l.b16 %v8534
    %v9307 = vunpack.c.h.b16 %v8534
    %v9308 = vunpack.c.l.b16 %v8535
    %v9309 = vunpack.c.h.b16 %v8535
    %v9310 = vunpack.c.l.b16 %v8536
    %v9311 = vunpack.c.h.b16 %v8536
    %v9312 = vunpack.c.l.b16 %v8537
    %v9313 = vunpack.c.h.b16 %v8537
    %v9314 = vunpack.c.l.b16 %v8538
    %v9315 = vunpack.c.h.b16 %v8538
    %v9316 = vunpack.c.l.b16 %v8539
    %v9317 = vunpack.c.h.b16 %v8539
    %v9318 = vunpack.c.l.b16 %v8540
    %v9319 = vunpack.c.h.b16 %v8540
    %v9320 = vunpack.c.l.b16 %v8541
    %v9321 = vunpack.c.h.b16 %v8541
    %v9322 = vunpack.c.l.b16 %v8542
    %v9323 = vunpack.c.h.b16 %v8542
    %v9324 = vunpack.c.l.b16 %v8543
    %v9325 = vunpack.c.h.b16 %v8543
    %v9326 = vunpack.c.l.b16 %v8544
    %v9327 = vunpack.c.h.b16 %v8544
    %v9328 = vunpack.c.l.b16 %v8545
    %v9329 = vunpack.c.h.b16 %v8545
    %v9330 = vunpack.c.l.b16 %v8546
    %v9331 = vunpack.c.h.b16 %v8546
    %v9332 = vunpack.c.l.b16 %v8547
    %v9333 = vunpack.c.h.b16 %v8547
    %v9334 = vunpack.c.l.b16 %v8548
    %v9335 = vunpack.c.h.b16 %v8548
    %v9336 = vunpack.c.l.b16 %v8549
    %v9337 = vunpack.c.h.b16 %v8549
    %v9338 = vunpack.c.l.b16 %v8550
    %v9339 = vunpack.c.h.b16 %v8550
    %v9340 = vunpack.c.l.b16 %v8551
    %v9341 = vunpack.c.h.b16 %v8551
    %v9342 = vunpack.c.l.b16 %v8552
    %v9343 = vunpack.c.h.b16 %v8552
    %v9344 = vunpack.c.l.b16 %v8553
    %v9345 = vunpack.c.h.b16 %v8553
    %v9346 = vunpack.c.l.b16 %v8554
    %v9347 = vunpack.c.h.b16 %v8554
    %v9348 = vunpack.c.l.b16 %v8555
    %v9349 = vunpack.c.h.b16 %v8555
    %v9350 = vunpack.c.l.b16 %v8556
    %v9351 = vunpack.c.h.b16 %v8556
    %v9352 = vunpack.c.l.b16 %v8557
    %v9353 = vunpack.c.h.b16 %v8557
    %v9354 = vunpack.c.l.b16 %v8558
    %v9355 = vunpack.c.h.b16 %v8558
    %v9356 = vunpack.c.l.b16 %v8559
    %v9357 = vunpack.c.h.b16 %v8559
    %v9358 = vunpack.c.l.b16 %v8560
    %v9359 = vunpack.c.h.b16 %v8560
    %v9360 = vunpack.c.l.b16 %v8561
    %v9361 = vunpack.c.h.b16 %v8561
    %v9362 = vunpack.c.l.b16 %v8562
    %v9363 = vunpack.c.h.b16 %v8562
    %v9364 = vunpack.c.l.b16 %v8563
    %v9365 = vunpack.c.h.b16 %v8563
    %v9366 = vunpack.c.l.b16 %v8564
    %v9367 = vunpack.c.h.b16 %v8564
    %v9368 = vunpack.c.l.b16 %v8565
    %v9369 = vunpack.c.h.b16 %v8565
    %v9370 = vpack.c.b16 %v8862, %v8858
    %v9371 = vpack.c.b16 %v8863, %v8859
    %v9372 = vpack.c.b16 %v8864, %v8860
    %v9373 = vpack.c.b16 %v8865, %v8861
    %v9374 = vpack.c.b16 %v8870, %v8866
    %v9375 = vpack.c.b16 %v8871, %v8867
    %v9376 = vpack.c.b16 %v8872, %v8868
    %v9377 = vpack.c.b16 %v8873, %v8869
    %v9378 = vpack.c.b16 %v8878, %v8874
    %v9379 = vpack.c.b16 %v8879, %v8875
    %v9380 = vpack.c.b16 %v8880, %v8876
    %v9381 = vpack.c.b16 %v8881, %v8877
    %v9382 = vpack.c.b16 %v8886, %v8882
    %v9383 = vpack.c.b16 %v8887, %v8883
    %v9384 = vpack.c.b16 %v8888, %v8884
    %v9385 = vpack.c.b16 %v8889, %v8885
    %v9386 = vpack.c.b16 %v8894, %v8890
    %v9387 = vpack.c.b16 %v8895, %v8891
    %v9388 = vpack.c.b16 %v8896, %v8892
    %v9389 = vpack.c.b16 %v8897, %v8893
    %v9390 = vpack.c.b16 %v8902, %v8898
    %v9391 = vpack.c.b16 %v8903, %v8899
    %v9392 = vpack.c.b16 %v8904, %v8900
    %v9393 = vpack.c.b16 %v8905, %v8901
    %v9394 = vpack.c.b16 %v8910, %v8906
    %v9395 = vpack.c.b16 %v8911, %v8907
    %v9396 = vpack.c.b16 %v8912, %v8908
    %v9397 = vpack.c.b16 %v8913, %v8909
    %v9398 = vpack.c.b16 %v8918, %v8914
    %v9399 = vpack.c.b16 %v8919, %v8915
    %v9400 = vpack.c.b16 %v8920, %v8916
    %v9401 = vpack.c.b16 %v8921, %v8917
    %v9402 = vpack.c.b16 %v8926, %v8922
    %v9403 = vpack.c.b16 %v8927, %v8923
    %v9404 = vpack.c.b16 %v8928, %v8924
    %v9405 = vpack.c.b16 %v8929, %v8925
    %v9406 = vpack.c.b16 %v8934, %v8930
    %v9407 = vpack.c.b16 %v8935, %v8931
    %v9408 = vpack.c.b16 %v8936, %v8932
    %v9409 = vpack.c.b16 %v8937, %v8933
    %v9410 = vpack.c.b16 %v8942, %v8938
    %v9411 = vpack.c.b16 %v8943, %v8939
    %v9412 = vpack.c.b16 %v8944, %v8940
    %v9413 = vpack.c.b16 %v8945, %v8941
    %v9414 = vpack.c.b16 %v8950, %v8946
    %v9415 = vpack.c.b16 %v8951, %v8947
    %v9416 = vpack.c.b16 %v8952, %v8948
    %v9417 = vpack.c.b16 %v8953, %v8949
    %v9418 = vpack.c.b16 %v8958, %v8954
    %v9419 = vpack.c.b16 %v8959, %v8955
    %v9420 = vpack.c.b16 %v8960, %v8956
    %v9421 = vpack.c.b16 %v8961, %v8957
    %v9422 = vpack.c.b16 %v8966, %v8962
    %v9423 = vpack.c.b16 %v8967, %v8963
    %v9424 = vpack.c.b16 %v8968, %v8964
    %v9425 = vpack.c.b16 %v8969, %v8965
    %v9426 = vpack.c.b16 %v8974, %v8970
    %v9427 = vpack.c.b16 %v8975, %v8971
    %v9428 = vpack.c.b16 %v8976, %v8972
    %v9429 = vpack.c.b16 %v8977, %v8973
    %v9430 = vpack.c.b16 %v8982, %v8978
    %v9431 = vpack.c.b16 %v8983, %v8979
    %v9432 = vpack.c.b16 %v8984, %v8980
    %v9433 = vpack.c.b16 %v8985, %v8981
    %v9434 = vpack.c.b16 %v8990, %v8986
    %v9435 = vpack.c.b16 %v8991, %v8987
    %v9436 = vpack.c.b16 %v8992, %v8988
    %v9437 = vpack.c.b16 %v8993, %v8989
    %v9438 = vpack.c.b16 %v8998, %v8994
    %v9439 = vpack.c.b16 %v8999, %v8995
    %v9440 = vpack.c.b16 %v9000, %v8996
    %v9441 = vpack.c.b16 %v9001, %v8997
    %v9442 = vpack.c.b16 %v9006, %v9002
    %v9443 = vpack.c.b16 %v9007, %v9003
    %v9444 = vpack.c.b16 %v9008, %v9004
    %v9445 = vpack.c.b16 %v9009, %v9005
    %v9446 = vpack.c.b16 %v9014, %v9010
    %v9447 = vpack.c.b16 %v9015, %v9011
    %v9448 = vpack.c.b16 %v9016, %v9012
    %v9449 = vpack.c.b16 %v9017, %v9013
    %v9450 = vpack.c.b16 %v9022, %v9018
    %v9451 = vpack.c.b16 %v9023, %v9019
    %v9452 = vpack.c.b16 %v9024, %v9020
    %v9453 = vpack.c.b16 %v9025, %v9021
    %v9454 = vpack.c.b16 %v9030, %v9026
    %v9455 = vpack.c.b16 %v9031, %v9027
    %v9456 = vpack.c.b16 %v9032, %v9028
    %v9457 = vpack.c.b16 %v9033, %v9029
    %v9458 = vpack.c.b16 %v9038, %v9034
    %v9459 = vpack.c.b16 %v9039, %v9035
    %v9460 = vpack.c.b16 %v9040, %v9036
    %v9461 = vpack.c.b16 %v9041, %v9037
    %v9462 = vpack.c.b16 %v9046, %v9042
    %v9463 = vpack.c.b16 %v9047, %v9043
    %v9464 = vpack.c.b16 %v9048, %v9044
    %v9465 = vpack.c.b16 %v9049, %v9045
    %v9466 = vpack.c.b16 %v9054, %v9050
    %v9467 = vpack.c.b16 %v9055, %v9051
    %v9468 = vpack.c.b16 %v9056, %v9052
    %v9469 = vpack.c.b16 %v9057, %v9053
    %v9470 = vpack.c.b16 %v9062, %v9058
    %v9471 = vpack.c.b16 %v9063, %v9059
    %v9472 = vpack.c.b16 %v9064, %v9060
    %v9473 = vpack.c.b16 %v9065, %v9061
    %v9474 = vpack.c.b16 %v9070, %v9066
    %v9475 = vpack.c.b16 %v9071, %v9067
    %v9476 = vpack.c.b16 %v9072, %v9068
    %v9477 = vpack.c.b16 %v9073, %v9069
    %v9478 = vpack.c.b16 %v9078, %v9074
    %v9479 = vpack.c.b16 %v9079, %v9075
    %v9480 = vpack.c.b16 %v9080, %v9076
    %v9481 = vpack.c.b16 %v9081, %v9077
    %v9482 = vpack.c.b16 %v9086, %v9082
    %v9483 = vpack.c.b16 %v9087, %v9083
    %v9484 = vpack.c.b16 %v9088, %v9084
    %v9485 = vpack.c.b16 %v9089, %v9085
    %v9486 = vpack.c.b16 %v9094, %v9090
    %v9487 = vpack.c.b16 %v9095, %v9091
    %v9488 = vpack.c.b16 %v9096, %v9092
    %v9489 = vpack.c.b16 %v9097, %v9093
    %v9490 = vpack.c.b16 %v9102, %v9098
    %v9491 = vpack.c.b16 %v9103, %v9099
    %v9492 = vpack.c.b16 %v9104, %v9100
    %v9493 = vpack.c.b16 %v9105, %v9101
    %v9494 = vpack.c.b16 %v9110, %v9106
    %v9495 = vpack.c.b16 %v9111, %v9107
    %v9496 = vpack.c.b16 %v9112, %v9108
    %v9497 = vpack.c.b16 %v9113, %v9109
    %v9498 = vpack.c.b16 %v9118, %v9114
    %v9499 = vpack.c.b16 %v9119, %v9115
    %v9500 = vpack.c.b16 %v9120, %v9116
    %v9501 = vpack.c.b16 %v9121, %v9117
    %v9502 = vpack.c.b16 %v9126, %v9122
    %v9503 = vpack.c.b16 %v9127, %v9123
    %v9504 = vpack.c.b16 %v9128, %v9124
    %v9505 = vpack.c.b16 %v9129, %v9125
    %v9506 = vpack.c.b16 %v9134, %v9130
    %v9507 = vpack.c.b16 %v9135, %v9131
    %v9508 = vpack.c.b16 %v9136, %v9132
    %v9509 = vpack.c.b16 %v9137, %v9133
    %v9510 = vpack.c.b16 %v9142, %v9138
    %v9511 = vpack.c.b16 %v9143, %v9139
    %v9512 = vpack.c.b16 %v9144, %v9140
    %v9513 = vpack.c.b16 %v9145, %v9141
    %v9514 = vpack.c.b16 %v9150, %v9146
    %v9515 = vpack.c.b16 %v9151, %v9147
    %v9516 = vpack.c.b16 %v9152, %v9148
    %v9517 = vpack.c.b16 %v9153, %v9149
    %v9518 = vpack.c.b16 %v9158, %v9154
    %v9519 = vpack.c.b16 %v9159, %v9155
    %v9520 = vpack.c.b16 %v9160, %v9156
    %v9521 = vpack.c.b16 %v9161, %v9157
    %v9522 = vpack.c.b16 %v9166, %v9162
    %v9523 = vpack.c.b16 %v9167, %v9163
    %v9524 = vpack.c.b16 %v9168, %v9164
    %v9525 = vpack.c.b16 %v9169, %v9165
    %v9526 = vpack.c.b16 %v9174, %v9170
    %v9527 = vpack.c.b16 %v9175, %v9171
    %v9528 = vpack.c.b16 %v9176, %v9172
    %v9529 = vpack.c.b16 %v9177, %v9173
    %v9530 = vpack.c.b16 %v9182, %v9178
    %v9531 = vpack.c.b16 %v9183, %v9179
    %v9532 = vpack.c.b16 %v9184, %v9180
    %v9533 = vpack.c.b16 %v9185, %v9181
    %v9534 = vpack.c.b16 %v9190, %v9186
    %v9535 = vpack.c.b16 %v9191, %v9187
    %v9536 = vpack.c.b16 %v9192, %v9188
    %v9537 = vpack.c.b16 %v9193, %v9189
    %v9538 = vpack.c.b16 %v9198, %v9194
    %v9539 = vpack.c.b16 %v9199, %v9195
    %v9540 = vpack.c.b16 %v9200, %v9196
    %v9541 = vpack.c.b16 %v9201, %v9197
    %v9542 = vpack.c.b16 %v9206, %v9202
    %v9543 = vpack.c.b16 %v9207, %v9203
    %v9544 = vpack.c.b16 %v9208, %v9204
    %v9545 = vpack.c.b16 %v9209, %v9205
    %v9546 = vpack.c.b16 %v9214, %v9210
    %v9547 = vpack.c.b16 %v9215, %v9211
    %v9548 = vpack.c.b16 %v9216, %v9212
    %v9549 = vpack.c.b16 %v9217, %v9213
    %v9550 = vpack.c.b16 %v9222, %v9218
    %v9551 = vpack.c.b16 %v9223, %v9219
    %v9552 = vpack.c.b16 %v9224, %v9220
    %v9553 = vpack.c.b16 %v9225, %v9221
    %v9554 = vpack.c.b16 %v9230, %v9226
    %v9555 = vpack.c.b16 %v9231, %v9227
    %v9556 = vpack.c.b16 %v9232, %v9228
    %v9557 = vpack.c.b16 %v9233, %v9229
    %v9558 = vpack.c.b16 %v9238, %v9234
    %v9559 = vpack.c.b16 %v9239, %v9235
    %v9560 = vpack.c.b16 %v9240, %v9236
    %v9561 = vpack.c.b16 %v9241, %v9237
    %v9562 = vpack.c.b16 %v9246, %v9242
    %v9563 = vpack.c.b16 %v9247, %v9243
    %v9564 = vpack.c.b16 %v9248, %v9244
    %v9565 = vpack.c.b16 %v9249, %v9245
    %v9566 = vpack.c.b16 %v9254, %v9250
    %v9567 = vpack.c.b16 %v9255, %v9251
    %v9568 = vpack.c.b16 %v9256, %v9252
    %v9569 = vpack.c.b16 %v9257, %v9253
    %v9570 = vpack.c.b16 %v9262, %v9258
    %v9571 = vpack.c.b16 %v9263, %v9259
    %v9572 = vpack.c.b16 %v9264, %v9260
    %v9573 = vpack.c.b16 %v9265, %v9261
    %v9574 = vpack.c.b16 %v9270, %v9266
    %v9575 = vpack.c.b16 %v9271, %v9267
    %v9576 = vpack.c.b16 %v9272, %v9268
    %v9577 = vpack.c.b16 %v9273, %v9269
    %v9578 = vpack.c.b16 %v9278, %v9274
    %v9579 = vpack.c.b16 %v9279, %v9275
    %v9580 = vpack.c.b16 %v9280, %v9276
    %v9581 = vpack.c.b16 %v9281, %v9277
    %v9582 = vpack.c.b16 %v9286, %v9282
    %v9583 = vpack.c.b16 %v9287, %v9283
    %v9584 = vpack.c.b16 %v9288, %v9284
    %v9585 = vpack.c.b16 %v9289, %v9285
    %v9586 = vpack.c.b16 %v9294, %v9290
    %v9587 = vpack.c.b16 %v9295, %v9291
    %v9588 = vpack.c.b16 %v9296, %v9292
    %v9589 = vpack.c.b16 %v9297, %v9293
    %v9590 = vpack.c.b16 %v9302, %v9298
    %v9591 = vpack.c.b16 %v9303, %v9299
    %v9592 = vpack.c.b16 %v9304, %v9300
    %v9593 = vpack.c.b16 %v9305, %v9301
    %v9594 = vpack.c.b16 %v9310, %v9306
    %v9595 = vpack.c.b16 %v9311, %v9307
    %v9596 = vpack.c.b16 %v9312, %v9308
    %v9597 = vpack.c.b16 %v9313, %v9309
    %v9598 = vpack.c.b16 %v9318, %v9314
    %v9599 = vpack.c.b16 %v9319, %v9315
    %v9600 = vpack.c.b16 %v9320, %v9316
    %v9601 = vpack.c.b16 %v9321, %v9317
    %v9602 = vpack.c.b16 %v9326, %v9322
    %v9603 = vpack.c.b16 %v9327, %v9323
    %v9604 = vpack.c.b16 %v9328, %v9324
    %v9605 = vpack.c.b16 %v9329, %v9325
    %v9606 = vpack.c.b16 %v9334, %v9330
    %v9607 = vpack.c.b16 %v9335, %v9331
    %v9608 = vpack.c.b16 %v9336, %v9332
    %v9609 = vpack.c.b16 %v9337, %v9333
    %v9610 = vpack.c.b16 %v9342, %v9338
    %v9611 = vpack.c.b16 %v9343, %v9339
    %v9612 = vpack.c.b16 %v9344, %v9340
    %v9613 = vpack.c.b16 %v9345, %v9341
    %v9614 = vpack.c.b16 %v9350, %v9346
    %v9615 = vpack.c.b16 %v9351, %v9347
    %v9616 = vpack.c.b16 %v9352, %v9348
    %v9617 = vpack.c.b16 %v9353, %v9349
    %v9618 = vpack.c.b16 %v9358, %v9354
    %v9619 = vpack.c.b16 %v9359, %v9355
    %v9620 = vpack.c.b16 %v9360, %v9356
    %v9621 = vpack.c.b16 %v9361, %v9357
    %v9622 = vpack.c.b16 %v9366, %v9362
    %v9623 = vpack.c.b16 %v9367, %v9363
    %v9624 = vpack.c.b16 %v9368, %v9364
    %v9625 = vpack.c.b16 %v9369, %v9365
    %9882 = vmatprep.subr.bf16.mxu0 %v9399
    %9883 = vmatpush1.bf16.msra.mxu0 %v9398
    %9884 = vmatprep.subr.bf16.mxu0 %v9395
    %9885 = vmatpush1.bf16.msra.mxu0 %v9394
    %9886 = vmatprep.subr.bf16.mxu0 %v9391
    %9887 = vmatpush1.bf16.msra.mxu0 %v9390
    %9888 = vmatprep.subr.bf16.mxu0 %v9387
    %9889 = vmatpush1.bf16.msra.mxu0 %v9386
    %9890 = vmatprep.subr.bf16.mxu0 %v9383
    %9891 = vmatpush1.bf16.msra.mxu0 %v9382
    %9892 = vmatprep.subr.bf16.mxu0 %v9379
    %9893 = vmatpush1.bf16.msra.mxu0 %v9378
    %9894 = vmatprep.subr.bf16.mxu0 %v9375
    %9895 = vmatpush1.bf16.msra.mxu0 %v9374
    %9896 = vmatprep.subr.bf16.mxu0 %v9371
    %9897 = vmatpush1.bf16.msra.mxu0 %v9370
    %9898 = vmatprep.subr.bf16.mxu0 %v9431
    %9899 = vmatpush2.bf16.msra.mxu0 %v9430
    %9900 = vmatprep.subr.bf16.mxu0 %v9427
    %9901 = vmatpush2.bf16.msra.mxu0 %v9426
    %9902 = vmatprep.subr.bf16.mxu0 %v9423
    %9903 = vmatpush2.bf16.msra.mxu0 %v9422
    %9904 = vmatprep.subr.bf16.mxu0 %v9419
    %9905 = vmatpush2.bf16.msra.mxu0 %v9418
    %9906 = vmatprep.subr.bf16.mxu0 %v9415
    %9907 = vmatpush2.bf16.msra.mxu0 %v9414
    %9908 = vmatprep.subr.bf16.mxu0 %v9411
    %9909 = vmatpush2.bf16.msra.mxu0 %v9410
    %9910 = vmatprep.subr.bf16.mxu0 %v9407
    %9911 = vmatpush2.bf16.msra.mxu0 %v9406
    %9912 = vmatprep.subr.bf16.mxu0 %v9403
    %9913 = vmatpush2.bf16.msra.mxu0 %v9402
    %9914 = vmatprep.mubr.bf16.mxu0 %v8303
    %9915 = vmatmul.mubr.bf16.gmra.mxu0 %v8302
    %v9916 = vpop.f32.mrf.mxu0
    %v9917 = vadd.f32 %v8589, %v9916
    %v9918 = vpop.f32.mrf.mxu0
    %v9919 = vadd.f32 %v8593, %v9918
    %v9920 = vpop.f32.mrf.mxu0
    %v9921 = vpop.f32.mrf.mxu0
    %9922 = vdwg.mxu0
    %9923 = vmatprep.subr.bf16.mxu0 %v9463
    %9924 = vmatpush1.bf16.msra.mxu0 %v9462
    %9925 = vmatprep.subr.bf16.mxu0 %v9459
    %9926 = vmatpush1.bf16.msra.mxu0 %v9458
    %9927 = vmatprep.subr.bf16.mxu0 %v9455
    %9928 = vmatpush1.bf16.msra.mxu0 %v9454
    %9929 = vmatprep.subr.bf16.mxu0 %v9451
    %9930 = vmatpush1.bf16.msra.mxu0 %v9450
    %9931 = vmatprep.subr.bf16.mxu0 %v9447
    %9932 = vmatpush1.bf16.msra.mxu0 %v9446
    %9933 = vmatprep.subr.bf16.mxu0 %v9443
    %9934 = vmatpush1.bf16.msra.mxu0 %v9442
    %9935 = vmatprep.subr.bf16.mxu0 %v9439
    %9936 = vmatpush1.bf16.msra.mxu0 %v9438
    %9937 = vmatprep.subr.bf16.mxu0 %v9435
    %9938 = vmatpush1.bf16.msra.mxu0 %v9434
    %9939 = vmatprep.subr.bf16.mxu0 %v9495
    %9940 = vmatpush2.bf16.msra.mxu0 %v9494
    %9941 = vmatprep.subr.bf16.mxu0 %v9491
    %9942 = vmatpush2.bf16.msra.mxu0 %v9490
    %9943 = vmatprep.subr.bf16.mxu0 %v9487
    %9944 = vmatpush2.bf16.msra.mxu0 %v9486
    %9945 = vmatprep.subr.bf16.mxu0 %v9483
    %9946 = vmatpush2.bf16.msra.mxu0 %v9482
    %9947 = vmatprep.subr.bf16.mxu0 %v9479
    %9948 = vmatpush2.bf16.msra.mxu0 %v9478
    %9949 = vmatprep.subr.bf16.mxu0 %v9475
    %9950 = vmatpush2.bf16.msra.mxu0 %v9474
    %9951 = vmatprep.subr.bf16.mxu0 %v9471
    %9952 = vmatpush2.bf16.msra.mxu0 %v9470
    %9953 = vmatprep.subr.bf16.mxu0 %v9467
    %9954 = vmatpush2.bf16.msra.mxu0 %v9466
    %9955 = vmatprep.mubr.bf16.mxu0 %v8305
    %9956 = vmatmul.mubr.bf16.gmra.mxu0 %v8304
    %v9957 = vpop.f32.mrf.mxu0
    %v9958 = vadd.f32 %v9917, %v9957
    %v9959 = vpop.f32.mrf.mxu0
    %v9960 = vadd.f32 %v9919, %v9959
    %v9961 = vpop.f32.mrf.mxu0
    %v9962 = vpop.f32.mrf.mxu0
    %9963 = vdwg.mxu0
    %9964 = vmatprep.subr.bf16.mxu0 %v9527
    %9965 = vmatpush1.bf16.msra.mxu0 %v9526
    %9966 = vmatprep.subr.bf16.mxu0 %v9523
    %9967 = vmatpush1.bf16.msra.mxu0 %v9522
    %9968 = vmatprep.subr.bf16.mxu0 %v9519
    %9969 = vmatpush1.bf16.msra.mxu0 %v9518
    %9970 = vmatprep.subr.bf16.mxu0 %v9515
    %9971 = vmatpush1.bf16.msra.mxu0 %v9514
    %9972 = vmatprep.subr.bf16.mxu0 %v9511
    %9973 = vmatpush1.bf16.msra.mxu0 %v9510
    %9974 = vmatprep.subr.bf16.mxu0 %v9507
    %9975 = vmatpush1.bf16.msra.mxu0 %v9506
    %9976 = vmatprep.subr.bf16.mxu0 %v9503
    %9977 = vmatpush1.bf16.msra.mxu0 %v9502
    %9978 = vmatprep.subr.bf16.mxu0 %v9499
    %9979 = vmatpush1.bf16.msra.mxu0 %v9498
    %9980 = vmatprep.subr.bf16.mxu0 %v9559
    %9981 = vmatpush2.bf16.msra.mxu0 %v9558
    %9982 = vmatprep.subr.bf16.mxu0 %v9555
    %9983 = vmatpush2.bf16.msra.mxu0 %v9554
    %9984 = vmatprep.subr.bf16.mxu0 %v9551
    %9985 = vmatpush2.bf16.msra.mxu0 %v9550
    %9986 = vmatprep.subr.bf16.mxu0 %v9547
    %9987 = vmatpush2.bf16.msra.mxu0 %v9546
    %9988 = vmatprep.subr.bf16.mxu0 %v9543
    %9989 = vmatpush2.bf16.msra.mxu0 %v9542
    %9990 = vmatprep.subr.bf16.mxu0 %v9539
    %9991 = vmatpush2.bf16.msra.mxu0 %v9538
    %9992 = vmatprep.subr.bf16.mxu0 %v9535
    %9993 = vmatpush2.bf16.msra.mxu0 %v9534
    %9994 = vmatprep.subr.bf16.mxu0 %v9531
    %9995 = vmatpush2.bf16.msra.mxu0 %v9530
    %9996 = vmatprep.mubr.bf16.mxu0 %v8307
    %9997 = vmatmul.mubr.bf16.gmra.mxu0 %v8306
    %v9998 = vpop.f32.mrf.mxu0
    %v9999 = vadd.f32 %v9958, %v9998
    %v10000 = vpop.f32.mrf.mxu0
    %v10001 = vadd.f32 %v9960, %v10000
    %v10002 = vpop.f32.mrf.mxu0
    %v10003 = vpop.f32.mrf.mxu0
    %10004 = vdwg.mxu0
    %10005 = vmatprep.subr.bf16.mxu0 %v9591
    %10006 = vmatpush1.bf16.msra.mxu0 %v9590
    %10007 = vmatprep.subr.bf16.mxu0 %v9587
    %10008 = vmatpush1.bf16.msra.mxu0 %v9586
    %10009 = vmatprep.subr.bf16.mxu0 %v9583
    %10010 = vmatpush1.bf16.msra.mxu0 %v9582
    %10011 = vmatprep.subr.bf16.mxu0 %v9579
    %10012 = vmatpush1.bf16.msra.mxu0 %v9578
    %10013 = vmatprep.subr.bf16.mxu0 %v9575
    %10014 = vmatpush1.bf16.msra.mxu0 %v9574
    %10015 = vmatprep.subr.bf16.mxu0 %v9571
    %10016 = vmatpush1.bf16.msra.mxu0 %v9570
    %10017 = vmatprep.subr.bf16.mxu0 %v9567
    %10018 = vmatpush1.bf16.msra.mxu0 %v9566
    %10019 = vmatprep.subr.bf16.mxu0 %v9563
    %10020 = vmatpush1.bf16.msra.mxu0 %v9562
    %10021 = vmatprep.subr.bf16.mxu0 %v9623
    %10022 = vmatpush2.bf16.msra.mxu0 %v9622
    %10023 = vmatprep.subr.bf16.mxu0 %v9619
    %10024 = vmatpush2.bf16.msra.mxu0 %v9618
    %10025 = vmatprep.subr.bf16.mxu0 %v9615
    %10026 = vmatpush2.bf16.msra.mxu0 %v9614
    %10027 = vmatprep.subr.bf16.mxu0 %v9611
    %10028 = vmatpush2.bf16.msra.mxu0 %v9610
    %10029 = vmatprep.subr.bf16.mxu0 %v9607
    %10030 = vmatpush2.bf16.msra.mxu0 %v9606
    %10031 = vmatprep.subr.bf16.mxu0 %v9603
    %10032 = vmatpush2.bf16.msra.mxu0 %v9602
    %10033 = vmatprep.subr.bf16.mxu0 %v9599
    %10034 = vmatpush2.bf16.msra.mxu0 %v9598
    %10035 = vmatprep.subr.bf16.mxu0 %v9595
    %10036 = vmatpush2.bf16.msra.mxu0 %v9594
    %10037 = vmatprep.mubr.bf16.mxu0 %v8309
    %10038 = vmatmul.mubr.bf16.gmra.mxu0 %v8308
    %v10039 = vpop.f32.mrf.mxu0
    %v10040 = vadd.f32 %v9999, %v10039
    %v10041 = vpop.f32.mrf.mxu0
    %v10042 = vadd.f32 %v10001, %v10041
    %v10043 = vpop.f32.mrf.mxu0
    %v10044 = vpop.f32.mrf.mxu0
    %10045 = vdwg.mxu0
    %10046 = vmatprep.subr.bf16.mxu0 %v9401
    %10047 = vmatpush1.bf16.msra.mxu0 %v9400
    %10048 = vmatprep.subr.bf16.mxu0 %v9397
    %10049 = vmatpush1.bf16.msra.mxu0 %v9396
    %10050 = vmatprep.subr.bf16.mxu0 %v9393
    %10051 = vmatpush1.bf16.msra.mxu0 %v9392
    %10052 = vmatprep.subr.bf16.mxu0 %v9389
    %10053 = vmatpush1.bf16.msra.mxu0 %v9388
    %10054 = vmatprep.subr.bf16.mxu0 %v9385
    %10055 = vmatpush1.bf16.msra.mxu0 %v9384
    %10056 = vmatprep.subr.bf16.mxu0 %v9381
    %10057 = vmatpush1.bf16.msra.mxu0 %v9380
    %10058 = vmatprep.subr.bf16.mxu0 %v9377
    %10059 = vmatpush1.bf16.msra.mxu0 %v9376
    %10060 = vmatprep.subr.bf16.mxu0 %v9373
    %10061 = vmatpush1.bf16.msra.mxu0 %v9372
    %10062 = vmatprep.subr.bf16.mxu0 %v9433
    %10063 = vmatpush2.bf16.msra.mxu0 %v9432
    %10064 = vmatprep.subr.bf16.mxu0 %v9429
    %10065 = vmatpush2.bf16.msra.mxu0 %v9428
    %10066 = vmatprep.subr.bf16.mxu0 %v9425
    %10067 = vmatpush2.bf16.msra.mxu0 %v9424
    %10068 = vmatprep.subr.bf16.mxu0 %v9421
    %10069 = vmatpush2.bf16.msra.mxu0 %v9420
    %10070 = vmatprep.subr.bf16.mxu0 %v9417
    %10071 = vmatpush2.bf16.msra.mxu0 %v9416
    %10072 = vmatprep.subr.bf16.mxu0 %v9413
    %10073 = vmatpush2.bf16.msra.mxu0 %v9412
    %10074 = vmatprep.subr.bf16.mxu0 %v9409
    %10075 = vmatpush2.bf16.msra.mxu0 %v9408
    %10076 = vmatprep.subr.bf16.mxu0 %v9405
    %10077 = vmatpush2.bf16.msra.mxu0 %v9404
    %10078 = vmatprep.mubr.bf16.mxu0 %v8303
    %10079 = vmatmul.mubr.bf16.gmra.mxu0 %v8302
    %v10080 = vpop.f32.mrf.mxu0
    %v10081 = vadd.f32 %v8597, %v10080
    %v10082 = vpop.f32.mrf.mxu0
    %v10083 = vadd.f32 %v8601, %v10082
    %v10084 = vpop.f32.mrf.mxu0
    %v10085 = vpop.f32.mrf.mxu0
    %10086 = vdwg.mxu0
    %10087 = vmatprep.subr.bf16.mxu0 %v9465
    %10088 = vmatpush1.bf16.msra.mxu0 %v9464
    %10089 = vmatprep.subr.bf16.mxu0 %v9461
    %10090 = vmatpush1.bf16.msra.mxu0 %v9460
    %10091 = vmatprep.subr.bf16.mxu0 %v9457
    %10092 = vmatpush1.bf16.msra.mxu0 %v9456
    %10093 = vmatprep.subr.bf16.mxu0 %v9453
    %10094 = vmatpush1.bf16.msra.mxu0 %v9452
    %10095 = vmatprep.subr.bf16.mxu0 %v9449
    %10096 = vmatpush1.bf16.msra.mxu0 %v9448
    %10097 = vmatprep.subr.bf16.mxu0 %v9445
    %10098 = vmatpush1.bf16.msra.mxu0 %v9444
    %10099 = vmatprep.subr.bf16.mxu0 %v9441
    %10100 = vmatpush1.bf16.msra.mxu0 %v9440
    %10101 = vmatprep.subr.bf16.mxu0 %v9437
    %10102 = vmatpush1.bf16.msra.mxu0 %v9436
    %10103 = vmatprep.subr.bf16.mxu0 %v9497
    %10104 = vmatpush2.bf16.msra.mxu0 %v9496
    %10105 = vmatprep.subr.bf16.mxu0 %v9493
    %10106 = vmatpush2.bf16.msra.mxu0 %v9492
    %10107 = vmatprep.subr.bf16.mxu0 %v9489
    %10108 = vmatpush2.bf16.msra.mxu0 %v9488
    %10109 = vmatprep.subr.bf16.mxu0 %v9485
    %10110 = vmatpush2.bf16.msra.mxu0 %v9484
    %10111 = vmatprep.subr.bf16.mxu0 %v9481
    %10112 = vmatpush2.bf16.msra.mxu0 %v9480
    %10113 = vmatprep.subr.bf16.mxu0 %v9477
    %10114 = vmatpush2.bf16.msra.mxu0 %v9476
    %10115 = vmatprep.subr.bf16.mxu0 %v9473
    %10116 = vmatpush2.bf16.msra.mxu0 %v9472
    %10117 = vmatprep.subr.bf16.mxu0 %v9469
    %10118 = vmatpush2.bf16.msra.mxu0 %v9468
    %10119 = vmatprep.mubr.bf16.mxu0 %v8305
    %10120 = vmatmul.mubr.bf16.gmra.mxu0 %v8304
    %v10121 = vpop.f32.mrf.mxu0
    %v10122 = vadd.f32 %v10081, %v10121
    %v10123 = vpop.f32.mrf.mxu0
    %v10124 = vadd.f32 %v10083, %v10123
    %v10125 = vpop.f32.mrf.mxu0
    %v10126 = vpop.f32.mrf.mxu0
    %10127 = vdwg.mxu0
    %10128 = vmatprep.subr.bf16.mxu0 %v9529
    %10129 = vmatpush1.bf16.msra.mxu0 %v9528
    %10130 = vmatprep.subr.bf16.mxu0 %v9525
    %10131 = vmatpush1.bf16.msra.mxu0 %v9524
    %10132 = vmatprep.subr.bf16.mxu0 %v9521
    %10133 = vmatpush1.bf16.msra.mxu0 %v9520
    %10134 = vmatprep.subr.bf16.mxu0 %v9517
    %10135 = vmatpush1.bf16.msra.mxu0 %v9516
    %10136 = vmatprep.subr.bf16.mxu0 %v9513
    %10137 = vmatpush1.bf16.msra.mxu0 %v9512
    %10138 = vmatprep.subr.bf16.mxu0 %v9509
    %10139 = vmatpush1.bf16.msra.mxu0 %v9508
    %10140 = vmatprep.subr.bf16.mxu0 %v9505
    %10141 = vmatpush1.bf16.msra.mxu0 %v9504
    %10142 = vmatprep.subr.bf16.mxu0 %v9501
    %10143 = vmatpush1.bf16.msra.mxu0 %v9500
    %10144 = vmatprep.subr.bf16.mxu0 %v9561
    %10145 = vmatpush2.bf16.msra.mxu0 %v9560
    %10146 = vmatprep.subr.bf16.mxu0 %v9557
    %10147 = vmatpush2.bf16.msra.mxu0 %v9556
    %10148 = vmatprep.subr.bf16.mxu0 %v9553
    %10149 = vmatpush2.bf16.msra.mxu0 %v9552
    %10150 = vmatprep.subr.bf16.mxu0 %v9549
    %10151 = vmatpush2.bf16.msra.mxu0 %v9548
    %10152 = vmatprep.subr.bf16.mxu0 %v9545
    %10153 = vmatpush2.bf16.msra.mxu0 %v9544
    %10154 = vmatprep.subr.bf16.mxu0 %v9541
    %10155 = vmatpush2.bf16.msra.mxu0 %v9540
    %10156 = vmatprep.subr.bf16.mxu0 %v9537
    %10157 = vmatpush2.bf16.msra.mxu0 %v9536
    %10158 = vmatprep.subr.bf16.mxu0 %v9533
    %10159 = vmatpush2.bf16.msra.mxu0 %v9532
    %10160 = vmatprep.mubr.bf16.mxu0 %v8307
    %10161 = vmatmul.mubr.bf16.gmra.mxu0 %v8306
    %v10162 = vpop.f32.mrf.mxu0
    %v10163 = vadd.f32 %v10122, %v10162
    %v10164 = vpop.f32.mrf.mxu0
    %v10165 = vadd.f32 %v10124, %v10164
    %v10166 = vpop.f32.mrf.mxu0
    %v10167 = vpop.f32.mrf.mxu0
    %10168 = vdwg.mxu0
    %10169 = vmatprep.subr.bf16.mxu0 %v9593
    %10170 = vmatpush1.bf16.msra.mxu0 %v9592
    %10171 = vmatprep.subr.bf16.mxu0 %v9589
    %10172 = vmatpush1.bf16.msra.mxu0 %v9588
    %10173 = vmatprep.subr.bf16.mxu0 %v9585
    %10174 = vmatpush1.bf16.msra.mxu0 %v9584
    %10175 = vmatprep.subr.bf16.mxu0 %v9581
    %10176 = vmatpush1.bf16.msra.mxu0 %v9580
    %10177 = vmatprep.subr.bf16.mxu0 %v9577
    %10178 = vmatpush1.bf16.msra.mxu0 %v9576
    %10179 = vmatprep.subr.bf16.mxu0 %v9573
    %10180 = vmatpush1.bf16.msra.mxu0 %v9572
    %10181 = vmatprep.subr.bf16.mxu0 %v9569
    %10182 = vmatpush1.bf16.msra.mxu0 %v9568
    %10183 = vmatprep.subr.bf16.mxu0 %v9565
    %10184 = vmatpush1.bf16.msra.mxu0 %v9564
    %10185 = vmatprep.subr.bf16.mxu0 %v9625
    %10186 = vmatpush2.bf16.msra.mxu0 %v9624
    %10187 = vmatprep.subr.bf16.mxu0 %v9621
    %10188 = vmatpush2.bf16.msra.mxu0 %v9620
    %10189 = vmatprep.subr.bf16.mxu0 %v9617
    %10190 = vmatpush2.bf16.msra.mxu0 %v9616
    %10191 = vmatprep.subr.bf16.mxu0 %v9613
    %10192 = vmatpush2.bf16.msra.mxu0 %v9612
    %10193 = vmatprep.subr.bf16.mxu0 %v9609
    %10194 = vmatpush2.bf16.msra.mxu0 %v9608
    %10195 = vmatprep.subr.bf16.mxu0 %v9605
    %10196 = vmatpush2.bf16.msra.mxu0 %v9604
    %10197 = vmatprep.subr.bf16.mxu0 %v9601
    %10198 = vmatpush2.bf16.msra.mxu0 %v9600
    %10199 = vmatprep.subr.bf16.mxu0 %v9597
    %10200 = vmatpush2.bf16.msra.mxu0 %v9596
    %10201 = vmatprep.mubr.bf16.mxu0 %v8309
    %10202 = vmatmul.mubr.bf16.gmra.mxu0 %v8308
    %v10203 = vpop.f32.mrf.mxu0
    %v10204 = vadd.f32 %v10163, %v10203
    %v10205 = vpop.f32.mrf.mxu0
    %v10206 = vadd.f32 %v10165, %v10205
    %v10207 = vpop.f32.mrf.mxu0
    %v10208 = vpop.f32.mrf.mxu0
    %10209 = vdwg.mxu0
    %v10210 = vmax.f32 %v10040, 0.0
    %v10211 = vmax.f32 %v10042, 0.0
    %v10212 = vmax.f32 %v10204, 0.0
    %v10213 = vmax.f32 %v10206, 0.0
    %v10214 = vpack.c.bf16 %v10210, %v10210
    %v10215 = vpack.c.bf16 %v10211, %v10211
    %v10216 = vpack.c.bf16 %v10212, %v10212
    %v10217 = vpack.c.bf16 %v10213, %v10213
    %v10218 = vld [vmem:[#allocation5] sm:$0xf]
    %v10219 = vld [vmem:[#allocation5 + $0x4] sm:$0xf]
    %v10220 = vld [vmem:[#allocation5 + $0x8] sm:$0xf]
    %v10221 = vld [vmem:[#allocation5 + $0xc] sm:$0xf]
    %v10222 = vld [vmem:[#allocation5 + $0x10] sm:$0xf]
    %v10223 = vld [vmem:[#allocation5 + $0x14] sm:$0xf]
    %v10224 = vld [vmem:[#allocation5 + $0x18] sm:$0xf]
    %v10225 = vld [vmem:[#allocation5 + $0x1c] sm:$0xf]
    %v10226 = vld [vmem:[#allocation5 + $0x20] sm:$0xf]
    %v10227 = vld [vmem:[#allocation5 + $0x24] sm:$0xf]
    %v10228 = vld [vmem:[#allocation5 + $0x28] sm:$0xf]
    %v10229 = vld [vmem:[#allocation5 + $0x2c] sm:$0xf]
    %v10230 = vld [vmem:[#allocation5 + $0x30] sm:$0xf]
    %v10231 = vld [vmem:[#allocation5 + $0x34] sm:$0xf]
    %v10232 = vld [vmem:[#allocation5 + $0x38] sm:$0xf]
    %v10233 = vld [vmem:[#allocation5 + $0x3c] sm:$0xf]
    %v10234 = vld [vmem:[#allocation5 + $0x40] sm:$0xf]
    %v10235 = vld [vmem:[#allocation5 + $0x44] sm:$0xf]
    %v10236 = vld [vmem:[#allocation5 + $0x48] sm:$0xf]
    %v10237 = vld [vmem:[#allocation5 + $0x4c] sm:$0xf]
    %v10238 = vld [vmem:[#allocation5 + $0x50] sm:$0xf]
    %v10239 = vld [vmem:[#allocation5 + $0x54] sm:$0xf]
    %v10240 = vld [vmem:[#allocation5 + $0x58] sm:$0xf]
    %v10241 = vld [vmem:[#allocation5 + $0x5c] sm:$0xf]
    %v10242 = vld [vmem:[#allocation5 + $0x60] sm:$0xf]
    %v10243 = vld [vmem:[#allocation5 + $0x64] sm:$0xf]
    %v10244 = vld [vmem:[#allocation5 + $0x68] sm:$0xf]
    %v10245 = vld [vmem:[#allocation5 + $0x6c] sm:$0xf]
    %v10246 = vld [vmem:[#allocation5 + $0x70] sm:$0xf]
    %v10247 = vld [vmem:[#allocation5 + $0x74] sm:$0xf]
    %v10248 = vld [vmem:[#allocation5 + $0x78] sm:$0xf]
    %v10249 = vld [vmem:[#allocation5 + $0x7c] sm:$0xf]
    %v10250 = vld [vmem:[#allocation5 + $0x80] sm:$0xf]
    %v10251 = vld [vmem:[#allocation5 + $0x84] sm:$0xf]
    %v10252 = vld [vmem:[#allocation5 + $0x88] sm:$0xf]
    %v10253 = vld [vmem:[#allocation5 + $0x8c] sm:$0xf]
    %v10254 = vld [vmem:[#allocation5 + $0x90] sm:$0xf]
    %v10255 = vld [vmem:[#allocation5 + $0x94] sm:$0xf]
    %v10256 = vld [vmem:[#allocation5 + $0x98] sm:$0xf]
    %v10257 = vld [vmem:[#allocation5 + $0x9c] sm:$0xf]
    %v10258 = vld [vmem:[#allocation5 + $0xa0] sm:$0xf]
    %v10259 = vld [vmem:[#allocation5 + $0xa4] sm:$0xf]
    %v10260 = vld [vmem:[#allocation5 + $0xa8] sm:$0xf]
    %v10261 = vld [vmem:[#allocation5 + $0xac] sm:$0xf]
    %v10262 = vld [vmem:[#allocation5 + $0xb0] sm:$0xf]
    %v10263 = vld [vmem:[#allocation5 + $0xb4] sm:$0xf]
    %v10264 = vld [vmem:[#allocation5 + $0xb8] sm:$0xf]
    %v10265 = vld [vmem:[#allocation5 + $0xbc] sm:$0xf]
    %v10266 = vld [vmem:[#allocation5 + $0xc0] sm:$0xf]
    %v10267 = vld [vmem:[#allocation5 + $0xc4] sm:$0xf]
    %v10268 = vld [vmem:[#allocation5 + $0xc8] sm:$0xf]
    %v10269 = vld [vmem:[#allocation5 + $0xcc] sm:$0xf]
    %v10270 = vld [vmem:[#allocation5 + $0xd0] sm:$0xf]
    %v10271 = vld [vmem:[#allocation5 + $0xd4] sm:$0xf]
    %v10272 = vld [vmem:[#allocation5 + $0xd8] sm:$0xf]
    %v10273 = vld [vmem:[#allocation5 + $0xdc] sm:$0xf]
    %v10274 = vld [vmem:[#allocation5 + $0xe0] sm:$0xf]
    %v10275 = vld [vmem:[#allocation5 + $0xe4] sm:$0xf]
    %v10276 = vld [vmem:[#allocation5 + $0xe8] sm:$0xf]
    %v10277 = vld [vmem:[#allocation5 + $0xec] sm:$0xf]
    %v10278 = vld [vmem:[#allocation5 + $0xf0] sm:$0xf]
    %v10279 = vld [vmem:[#allocation5 + $0xf4] sm:$0xf]
    %v10280 = vld [vmem:[#allocation5 + $0xf8] sm:$0xf]
    %v10281 = vld [vmem:[#allocation5 + $0xfc] sm:$0xf]
    %v10282 = vlaneseq
    %v10283 = vshrl.u32 %v10282, 7
    %v10284 = vsub.s32 3, %v10283
    %v10285 = vrot.slane %v4038, %v10284
    %v10350 = vunpack.c.l.b16 %v10218
    %v10351 = vunpack.c.l.b16 %v10219
    %v10352 = vunpack.c.l.b16 %v10220
    %v10353 = vunpack.c.l.b16 %v10221
    %v10354 = vunpack.c.l.b16 %v10222
    %v10355 = vunpack.c.l.b16 %v10223
    %v10356 = vunpack.c.l.b16 %v10224
    %v10357 = vunpack.c.l.b16 %v10225
    %v10358 = vunpack.c.l.b16 %v10226
    %v10359 = vunpack.c.l.b16 %v10227
    %v10360 = vunpack.c.l.b16 %v10228
    %v10361 = vunpack.c.l.b16 %v10229
    %v10362 = vunpack.c.l.b16 %v10230
    %v10363 = vunpack.c.l.b16 %v10231
    %v10364 = vunpack.c.l.b16 %v10232
    %v10365 = vunpack.c.l.b16 %v10233
    %v10366 = vunpack.c.l.b16 %v10234
    %v10367 = vunpack.c.l.b16 %v10235
    %v10368 = vunpack.c.l.b16 %v10236
    %v10369 = vunpack.c.l.b16 %v10237
    %v10370 = vunpack.c.l.b16 %v10238
    %v10371 = vunpack.c.l.b16 %v10239
    %v10372 = vunpack.c.l.b16 %v10240
    %v10373 = vunpack.c.l.b16 %v10241
    %v10374 = vunpack.c.l.b16 %v10242
    %v10375 = vunpack.c.l.b16 %v10243
    %v10376 = vunpack.c.l.b16 %v10244
    %v10377 = vunpack.c.l.b16 %v10245
    %v10378 = vunpack.c.l.b16 %v10246
    %v10379 = vunpack.c.l.b16 %v10247
    %v10380 = vunpack.c.l.b16 %v10248
    %v10381 = vunpack.c.l.b16 %v10249
    %v10382 = vunpack.c.l.b16 %v10250
    %v10383 = vunpack.c.l.b16 %v10251
    %v10384 = vunpack.c.l.b16 %v10252
    %v10385 = vunpack.c.l.b16 %v10253
    %v10386 = vunpack.c.l.b16 %v10254
    %v10387 = vunpack.c.l.b16 %v10255
    %v10388 = vunpack.c.l.b16 %v10256
    %v10389 = vunpack.c.l.b16 %v10257
    %v10390 = vunpack.c.l.b16 %v10258
    %v10391 = vunpack.c.l.b16 %v10259
    %v10392 = vunpack.c.l.b16 %v10260
    %v10393 = vunpack.c.l.b16 %v10261
    %v10394 = vunpack.c.l.b16 %v10262
    %v10395 = vunpack.c.l.b16 %v10263
    %v10396 = vunpack.c.l.b16 %v10264
    %v10397 = vunpack.c.l.b16 %v10265
    %v10398 = vunpack.c.l.b16 %v10266
    %v10399 = vunpack.c.l.b16 %v10267
    %v10400 = vunpack.c.l.b16 %v10268
    %v10401 = vunpack.c.l.b16 %v10269
    %v10402 = vunpack.c.l.b16 %v10270
    %v10403 = vunpack.c.l.b16 %v10271
    %v10404 = vunpack.c.l.b16 %v10272
    %v10405 = vunpack.c.l.b16 %v10273
    %v10406 = vunpack.c.l.b16 %v10274
    %v10407 = vunpack.c.l.b16 %v10275
    %v10408 = vunpack.c.l.b16 %v10276
    %v10409 = vunpack.c.l.b16 %v10277
    %v10410 = vunpack.c.l.b16 %v10278
    %v10411 = vunpack.c.l.b16 %v10279
    %v10412 = vunpack.c.l.b16 %v10280
    %v10413 = vunpack.c.l.b16 %v10281
    %v10414 = vpack.c.b16 %v10351, %v10350
    %v10415 = vpack.c.b16 %v10353, %v10352
    %v10416 = vpack.c.b16 %v10355, %v10354
    %v10417 = vpack.c.b16 %v10357, %v10356
    %v10418 = vpack.c.b16 %v10359, %v10358
    %v10419 = vpack.c.b16 %v10361, %v10360
    %v10420 = vpack.c.b16 %v10363, %v10362
    %v10421 = vpack.c.b16 %v10365, %v10364
    %v10422 = vpack.c.b16 %v10367, %v10366
    %v10423 = vpack.c.b16 %v10369, %v10368
    %v10424 = vpack.c.b16 %v10371, %v10370
    %v10425 = vpack.c.b16 %v10373, %v10372
    %v10426 = vpack.c.b16 %v10375, %v10374
    %v10427 = vpack.c.b16 %v10377, %v10376
    %v10428 = vpack.c.b16 %v10379, %v10378
    %v10429 = vpack.c.b16 %v10381, %v10380
    %v10430 = vpack.c.b16 %v10383, %v10382
    %v10431 = vpack.c.b16 %v10385, %v10384
    %v10432 = vpack.c.b16 %v10387, %v10386
    %v10433 = vpack.c.b16 %v10389, %v10388
    %v10434 = vpack.c.b16 %v10391, %v10390
    %v10435 = vpack.c.b16 %v10393, %v10392
    %v10436 = vpack.c.b16 %v10395, %v10394
    %v10437 = vpack.c.b16 %v10397, %v10396
    %v10438 = vpack.c.b16 %v10399, %v10398
    %v10439 = vpack.c.b16 %v10401, %v10400
    %v10440 = vpack.c.b16 %v10403, %v10402
    %v10441 = vpack.c.b16 %v10405, %v10404
    %v10442 = vpack.c.b16 %v10407, %v10406
    %v10443 = vpack.c.b16 %v10409, %v10408
    %v10444 = vpack.c.b16 %v10411, %v10410
    %v10445 = vpack.c.b16 %v10413, %v10412
    %10478 = vmatprep.subr.bf16.mxu0 0
    %10479 = vmatpush1.bf16.msra.mxu0 %v10421
    %10480 = vmatprep.subr.bf16.mxu0 0
    %10481 = vmatpush1.bf16.msra.mxu0 %v10420
    %10482 = vmatprep.subr.bf16.mxu0 0
    %10483 = vmatpush1.bf16.msra.mxu0 %v10419
    %10484 = vmatprep.subr.bf16.mxu0 0
    %10485 = vmatpush1.bf16.msra.mxu0 %v10418
    %10486 = vmatprep.subr.bf16.mxu0 0
    %10487 = vmatpush1.bf16.msra.mxu0 %v10417
    %10488 = vmatprep.subr.bf16.mxu0 0
    %10489 = vmatpush1.bf16.msra.mxu0 %v10416
    %10490 = vmatprep.subr.bf16.mxu0 0
    %10491 = vmatpush1.bf16.msra.mxu0 %v10415
    %10492 = vmatprep.subr.bf16.mxu0 0
    %10493 = vmatpush1.bf16.msra.mxu0 %v10414
    %10494 = vmatprep.subr.bf16.mxu0 0
    %10495 = vmatpush2.bf16.msra.mxu0 %v10429
    %10496 = vmatprep.subr.bf16.mxu0 0
    %10497 = vmatpush2.bf16.msra.mxu0 %v10428
    %10498 = vmatprep.subr.bf16.mxu0 0
    %10499 = vmatpush2.bf16.msra.mxu0 %v10427
    %10500 = vmatprep.subr.bf16.mxu0 0
    %10501 = vmatpush2.bf16.msra.mxu0 %v10426
    %10502 = vmatprep.subr.bf16.mxu0 0
    %10503 = vmatpush2.bf16.msra.mxu0 %v10425
    %10504 = vmatprep.subr.bf16.mxu0 0
    %10505 = vmatpush2.bf16.msra.mxu0 %v10424
    %10506 = vmatprep.subr.bf16.mxu0 0
    %10507 = vmatpush2.bf16.msra.mxu0 %v10423
    %10508 = vmatprep.subr.bf16.mxu0 0
    %10509 = vmatpush2.bf16.msra.mxu0 %v10422
    %10510 = vmatprep.mubr.bf16.mxu0 %v10215
    %10511 = vmatmul.mubr.bf16.gmra.mxu0 %v10214
    %v10512 = vpop.f32.mrf.mxu0
    %v10513 = vadd.f32 %v10285, %v10512
    %v10514 = vpop.f32.mrf.mxu0
    %v10515 = vpop.f32.mrf.mxu0
    %v10516 = vpop.f32.mrf.mxu0
    %10517 = vdwg.mxu0
    %10518 = vmatprep.subr.bf16.mxu0 0
    %10519 = vmatpush1.bf16.msra.mxu0 %v10437
    %10520 = vmatprep.subr.bf16.mxu0 0
    %10521 = vmatpush1.bf16.msra.mxu0 %v10436
    %10522 = vmatprep.subr.bf16.mxu0 0
    %10523 = vmatpush1.bf16.msra.mxu0 %v10435
    %10524 = vmatprep.subr.bf16.mxu0 0
    %10525 = vmatpush1.bf16.msra.mxu0 %v10434
    %10526 = vmatprep.subr.bf16.mxu0 0
    %10527 = vmatpush1.bf16.msra.mxu0 %v10433
    %10528 = vmatprep.subr.bf16.mxu0 0
    %10529 = vmatpush1.bf16.msra.mxu0 %v10432
    %10530 = vmatprep.subr.bf16.mxu0 0
    %10531 = vmatpush1.bf16.msra.mxu0 %v10431
    %10532 = vmatprep.subr.bf16.mxu0 0
    %10533 = vmatpush1.bf16.msra.mxu0 %v10430
    %10534 = vmatprep.subr.bf16.mxu0 0
    %10535 = vmatpush2.bf16.msra.mxu0 %v10445
    %10536 = vmatprep.subr.bf16.mxu0 0
    %10537 = vmatpush2.bf16.msra.mxu0 %v10444
    %10538 = vmatprep.subr.bf16.mxu0 0
    %10539 = vmatpush2.bf16.msra.mxu0 %v10443
    %10540 = vmatprep.subr.bf16.mxu0 0
    %10541 = vmatpush2.bf16.msra.mxu0 %v10442
    %10542 = vmatprep.subr.bf16.mxu0 0
    %10543 = vmatpush2.bf16.msra.mxu0 %v10441
    %10544 = vmatprep.subr.bf16.mxu0 0
    %10545 = vmatpush2.bf16.msra.mxu0 %v10440
    %10546 = vmatprep.subr.bf16.mxu0 0
    %10547 = vmatpush2.bf16.msra.mxu0 %v10439
    %10548 = vmatprep.subr.bf16.mxu0 0
    %10549 = vmatpush2.bf16.msra.mxu0 %v10438
    %10550 = vmatprep.mubr.bf16.mxu0 %v10217
    %10551 = vmatmul.mubr.bf16.gmra.mxu0 %v10216
    %v10552 = vpop.f32.mrf.mxu0
    %v10553 = vadd.f32 %v10513, %v10552
    %v10554 = vpop.f32.mrf.mxu0
    %v10555 = vpop.f32.mrf.mxu0
    %v10556 = vpop.f32.mrf.mxu0
    %10557 = vdwg.mxu0
    %vm10558 = vcmp.lt.s32.totalorder %v202, 3
    %v10559 = vsel %vm10558, 1, 0
    %v10560 = vcvt.s32.f32 %v10559
    %v10561 = vsub.f32 0.0, %v10553
    %v10562 = vmul.f32 %v10561, 1.442695
    %v10563 = vpow.pop %v10562
    %v10564 = vadd.f32 %v10563, 1.0
    %v10565 = vrcp.pop %v10564
    %v10566 = vmul.f32 1.0, %v10565
    %10567 = vst [vmem:[#allocation21] sm:$0x3] %v10566
    %v10568 = vld [vmem:[%s6] sm:$0x3]
    %v10569 = vmax.f32 %v10553, 0.0
    %v10570 = vmul.f32 %v10553, %v10568
    %v10571 = vsub.f32 %v10569, %v10570
    %v10572 = vand.u32 2147483647, %v10553
    %v10573 = vsub.f32 0.0, %v10572
    %v10574 = vmul.f32 %v10573, 1.442695
    %v10575 = vpow.pop %v10574
    %v10576 = vadd.f32 %v10575, 1.0
    %v10577 = vlog2.pop %v10576
    %v10578 = vmul.f32 %v10577, 0.6931472
    %v10579 = vadd.f32 %v10571, %v10578
    %v10580 = vmul.f32 %v10579, %v10560
    %vm10581 = vcmask 1041408
    %v10582 = vsel %vm10581, %v10580, 0.0
    %10583 = vadd.xlane.f32.xlu0 %v10582
    %v10584 = vpop.xlane.xlu0 %10583
    %v10585 = vsel %vm10581, %v10584, 0.0
    %v10586 = vrot.slane %v10585, 4
    %v10587 = vadd.f32 %v10585, %v10586
    %v10588 = vrot.slane %v10587, 2
    %v10589 = vadd.f32 %v10587, %v10588
    %v10590 = vrot.slane %v10589, 1
    %v10591 = vadd.f32 %v10589, %v10590
    %v10592 = vmul.f32 %v10591, 0.16666667
    %vm10593 = vcmask 0
    %10594 = vst.msk [vmem:[#allocation22] sm:$0x1] %vm10593, %v10592
    // Predicated region
    $region102: #{forward.1} parent=1 // pred_check
      _
    $region103: #{forward.1} parent=1 // pred_check_branch
      %10596 = sbr.rel (0) target = $region105
    $region104: #{forward.1} parent=1 // pred_region
      %s10598 = ssub.s32 32, 32
      %10599 = vsyncadd [#allocation9], %s10598
      %s10601 = sshll.u32 [#allocation21], 4
      %s10602 = int_to_ptr.vmem [resolvable:$true] %s10601
      %10604 = dma.vmem_to_hbm [thread:$0]  %s10602, 32, %s17, [#allocation9]
    $region105: #{forward.1} parent=1 // pred_fallthru
      _
    // Predicated region
    $region106: #{forward.1} parent=1 // pred_check
      _
    $region107: #{forward.1} parent=1 // pred_check_branch
      %10606 = sbr.rel (0) target = $region109
    $region108: #{forward.1} parent=1 // pred_region
      %s10608 = ssub.s32 16, 16
      %10609 = vsyncadd [#allocation23], %s10608
      %s10611 = sshll.u32 [#allocation22], 4
      %s10612 = int_to_ptr.vmem [resolvable:$true] %s10611
      %10614 = dma.vmem_to_hbm [thread:$0]  %s10612, 16, %s18, [#allocation23]
    $region109: #{forward.1} parent=1 // pred_fallthru
      _
    // Predicated region
    $region110: #{forward.1} parent=1 // pred_check
      _
    $region111: #{forward.1} parent=1 // pred_check_branch
      %10616 = sbr.rel (0) target = $region113
    $region112: #{forward.1} parent=1 // pred_region
      %10617 = dma.done [#allocation9], 32
    $region113: #{forward.1} parent=1 // pred_fallthru
      _
    // Predicated region
    $region114: #{forward.1} parent=1 // pred_check
      _
    $region115: #{forward.1} parent=1 // pred_check_branch
      %10619 = sbr.rel (0) target = $region117
    $region116: #{forward.1} parent=1 // pred_region
      %10620 = dma.done [#allocation23], 16
    $region117: #{forward.1} parent=1 // pred_fallthru
      _
    %10621 = vsyncpa [#allocation8], 1
    %10622 = vsyncpa [#allocation11], 1
    %10623 = vsyncpa [#allocation14], 1
    %10624 = vsyncpa [#allocation17], 1
    %10625 = vsyncpa [#allocation20], 1
    %10626 = vsyncpa [#allocation9], 1
    %10627 = vsyncpa [#allocation23], 1
  %10628 = vsyncmov [#allocation6]
  %s10629 = vpop.sfrf %10628
  %p10630 = scmp.eq.s32.totalorder %s10629, 0
  %p10631 = pneg %p10630
  %10633 = shalt.err (%p10631)
  %s10634 = scalar_lea.sflag [#allocation6], 1
  %10635 = vsyncmov %s10634
  %s10636 = vpop.sfrf %10635
  %p10637 = scmp.eq.s32.totalorder %s10636, 0
  %p10638 = pneg %p10637
  %10640 = shalt.err (%p10638)
  %s10641 = scalar_lea.sflag [#allocation6], 2
  %10642 = vsyncmov %s10641
  %s10643 = vpop.sfrf %10642
  %p10644 = scmp.eq.s32.totalorder %s10643, 0
  %p10645 = pneg %p10644
  %10647 = shalt.err (%p10645)
  %s10648 = scalar_lea.sflag [#allocation6], 3
  %10649 = vsyncmov %s10648
  %s10650 = vpop.sfrf %10649
  %p10651 = scmp.eq.s32.totalorder %s10650, 0
  %p10652 = pneg %p10651
  %10654 = shalt.err (%p10652)

</llo_original>
